<compile_context>
chip_gen: v5e
topology: v5e:2x2
jax: 0.10.0
libtpu: 0.0.40
codegen_flags: <defaults>
</compile_context>

<pallas_src>
import functools

import numpy as np

import jax
import jax.numpy as jnp
from jax.experimental import pallas as pl
from jax.experimental.pallas import tpu as pltpu


# ---------------------------------------------------------------------------
# Host-side helpers (hoisted out of the per-grid-step / per-forward path)
# ---------------------------------------------------------------------------
_MASK_CACHE = {}


def _tap_masks(D, H, W):
    """(27, D*H*W) f32 {0,1} edge-validity masks, one row per 3x3x3 conv tap.

    Grid-invariant: built once per (D, H, W) with numpy and passed as a kernel input
    with a constant index_map (DMA'd once), instead of being recomputed with
    iota / div / mod on the VPU inside every grid step.
    """
    key = (D, H, W)
    if key not in _MASK_CACHE:
        d = np.arange(D)[:, None, None]
        h = np.arange(H)[None, :, None]
        w = np.arange(W)[None, None, :]
        rows = []
        for kd in (-1, 0, 1):
            for kh in (-1, 0, 1):
                for kw in (-1, 0, 1):
                    valid = ((d + kd >= 0) & (d + kd < D) &
                             (h + kh >= 0) & (h + kh < H) &
                             (w + kw >= 0) & (w + kw < W))
                    rows.append(valid.reshape(-1))
        _MASK_CACHE[key] = jnp.asarray(np.stack(rows).astype(np.float32))
    return _MASK_CACHE[key]


# ---------------------------------------------------------------------------
# In-kernel helpers
# ---------------------------------------------------------------------------
def _group_sum_per_channel(stat_c1, groups):
    """stat_c1: (C, 1). Returns (C, 1): each channel holds the sum over its group.

    GroupNorm groups are contiguous channel blocks (PyTorch semantics): a small
    unrolled segment-sum on the VPU — no MXU matmuls, no exotic tiny reshapes.
    """
    C = stat_c1.shape[0]
    gs = C // groups
    if groups == 1:
        return jnp.broadcast_to(jnp.sum(stat_c1, axis=0, keepdims=True), (C, 1))
    parts = []
    for g in range(groups):
        tot = jnp.sum(stat_c1[g * gs:(g + 1) * gs, :], axis=0, keepdims=True)  # (1,1)
        parts.append(jnp.broadcast_to(tot, (gs, 1)))
    return jnp.concatenate(parts, axis=0)                                       # (C,1)


def _gn_conv3x3x3_relu(xf, gamma, beta, groups, w_ref, mask_ref, pad_ref,
                       D, H, W, eps):
    """One SingleConv ('gcr') on spatial-on-lanes data.

    xf:       (C, S) f32 activations, S = D*H*W flattened row-major (d, h, w).
    gamma/beta: (C, 1) f32.
    w_ref:    (27, C_out, C) bf16  (one (C_out, C) weight slice per tap).
    mask_ref: (27, S) f32 {0,1} edge-validity masks (precomputed on host).
    pad_ref:  (>=C, S + 2*P) f32 flat zero-halo scratch (halo strips pre-zeroed).
    Returns (C_out, S) f32 (post-ReLU).
    """
    C, S = xf.shape
    C_out = w_ref.shape[1]
    HW = H * W
    P = HW + W + 1
    gs = C // groups
    denom = float(gs * S)

    # ---- GroupNorm: two-pass stats, gamma & mean folded into one scale/bias ----
    s1 = jnp.sum(xf, axis=1, keepdims=True)                       # (C, 1)
    mean = _group_sum_per_channel(s1, groups) / denom             # (C, 1)
    d0 = xf - mean                                                # dies right after s2
    s2 = jnp.sum(d0 * d0, axis=1, keepdims=True)                  # (C, 1)
    var = _group_sum_per_channel(s2, groups) / denom              # (C, 1)
    scale = jax.lax.rsqrt(var + eps) * gamma                      # fold gamma
    bias = beta - mean * scale                                    # fold mean
    pad_ref[0:C, P:P + S] = xf * scale + bias                     # 1 mul + 1 add / elem

    # ---- Conv3d(3x3x3, pad=1): 27 accumulated per-tap matmuls (no im2col) ----
    # Each tap is a contiguous lane slice of the flat halo scratch, edge-masked with a
    # single f32 multiply, then cast once to bf16 and fed straight to the MXU with f32
    # accumulation.  The center tap (offset 0) is always valid -> no mask needed.
    acc = None
    for k in range(27):
        kd, kh, kw = k // 9, (k // 3) % 3, k % 3
        off = (kd - 1) * HW + (kh - 1) * W + (kw - 1)
        tap = pad_ref[0:C, P + off:P + off + S]                   # (C, S) f32
        if off != 0:
            tap = tap * mask_ref[pl.ds(k, 1), :]                  # (1, S) broadcast
        p = jnp.dot(w_ref[k], tap.astype(jnp.bfloat16),
                    preferred_element_type=jnp.float32)           # (C_out, S) f32
        acc = p if acc is None else acc + p
    return jnp.maximum(acc, 0.0)                                  # ReLU


# ---------------------------------------------------------------------------
# Pallas kernel: one encoder level = fused DoubleConv (2 x SingleConv)
# ---------------------------------------------------------------------------
def _double_conv_kernel(x_ref, mask_ref, g1_ref, b1_ref, w1_ref,
                        g2_ref, b2_ref, w2_ref, o_ref, pad_ref,
                        *, D, H, W, G1, G2, eps):
    S = D * H * W
    P = H * W + W + 1
    Cmax = pad_ref.shape[0]

    # Halo strips never receive valid data; zero them so stale VMEM NaN/Inf cannot leak
    # through the mask-multiply (0 * NaN = NaN).  Unconditional (not program_id-gated)
    # so it stays correct when the "parallel" grid axis is split across TensorCores.
    zeros_halo = jnp.zeros((Cmax, P), jnp.float32)
    pad_ref[:, 0:P] = zeros_halo
    pad_ref[:, P + S:P + S + P] = zeros_halo

    xf = x_ref[0].astype(jnp.float32)                             # (C_in, S)
    h1 = _gn_conv3x3x3_relu(xf, g1_ref[...], b1_ref[...], G1, w1_ref, mask_ref,
                            pad_ref, D, H, W, eps)                # (C_mid, S)
    h2 = _gn_conv3x3x3_relu(h1, g2_ref[...], b2_ref[...], G2, w2_ref, mask_ref,
                            pad_ref, D, H, W, eps)                # (C_out, S)
    o_ref[0] = h2.astype(o_ref.dtype)


def double_conv_level(x, level_params, dims, out_dtype=jnp.bfloat16, eps=1e-5):
    """x: (N, C_in, S), S = D*H*W (row-major).  Returns (N, C_out, S) in out_dtype."""
    N, C_in, S = x.shape
    D, H, W = dims
    assert S == D * H * W
    sc1, sc2 = level_params
    C_mid = sc1['wk'].shape[1]
    C_out = sc2['wk'].shape[1]
    P = H * W + W + 1
    masks = _tap_masks(D, H, W)

    kernel = functools.partial(_double_conv_kernel, D=D, H=H, W=W,
                               G1=sc1['groups'], G2=sc2['groups'], eps=eps)

    return pl.pallas_call(
        kernel,
        out_shape=jax.ShapeDtypeStruct((N, C_out, S), out_dtype),
        grid_spec=pltpu.PrefetchScalarGridSpec(
            num_scalar_prefetch=0,
            grid=(N,),
            in_specs=[
                pl.BlockSpec((1, C_in, S), lambda n: (n, 0, 0)),
                pl.BlockSpec((27, S), lambda n: (0, 0)),             # tap masks (const)
                pl.BlockSpec((C_in, 1), lambda n: (0, 0)),            # gamma1
                pl.BlockSpec((C_in, 1), lambda n: (0, 0)),            # beta1
                pl.BlockSpec((27, C_mid, C_in), lambda n: (0, 0, 0)), # W1 per-tap
                pl.BlockSpec((C_mid, 1), lambda n: (0, 0)),           # gamma2
                pl.BlockSpec((C_mid, 1), lambda n: (0, 0)),           # beta2
                pl.BlockSpec((27, C_out, C_mid), lambda n: (0, 0, 0)),# W2 per-tap
            ],
            out_specs=pl.BlockSpec((1, C_out, S), lambda n: (n, 0, 0)),
            scratch_shapes=[
                # single flat zero-halo buffer, SHARED by both SingleConvs
                pltpu.VMEM((max(C_in, C_mid), S + 2 * P), jnp.float32),
            ],
        ),
        compiler_params=pltpu.CompilerParams(
            dimension_semantics=("parallel",)),
    )(x, masks, sc1['gamma_col'], sc1['beta_col'], sc1['wk'],
      sc2['gamma_col'], sc2['beta_col'], sc2['wk'])


# ---------------------------------------------------------------------------
# MaxPool3d(kernel=2, stride=2) on the flattened (N, C, S) layout (bf16 XLA glue)
# ---------------------------------------------------------------------------
def max_pool3d_flat(x, dims):
    # TODO(synk): fold this 2x2x2 max-pool into the producing level kernel as a second
    #             (pooled) output to remove one inter-level HBM round trip.
    N, C, _ = x.shape
    D, H, W = dims
    xr = x.reshape(N, C, D // 2, 2, H // 2, 2, W // 2, 2)
    return xr.max(axis=(3, 5, 7)).reshape(N, C, (D // 2) * (H // 2) * (W // 2))


# ---------------------------------------------------------------------------
# Parameter construction (deterministic, in-script; kernel-side prep hoisted here)
# ---------------------------------------------------------------------------
def build_encoder_params(key, in_channels, f_maps=8, num_groups=4, num_levels=3):
    feature_maps = [f_maps * 2 ** k for k in range(num_levels)]
    params = []
    c_prev = in_channels
    for fout in feature_maps:
        conv1_in = c_prev
        conv1_out = max(conv1_in, fout // 2)
        level = []
        for (ci, co) in [(conv1_in, conv1_out), (conv1_out, fout)]:
            g = num_groups if ci >= num_groups else 1
            assert ci % g == 0
            key, kw_, kg_, kb_ = jax.random.split(key, 4)
            fan_in = ci * 27
            bound = 1.0 / (fan_in ** 0.5)
            w = jax.random.uniform(kw_, (3, 3, 3, ci, co), jnp.float32, -bound, bound)
            gamma = jax.random.uniform(kg_, (ci,), jnp.float32, 0.5, 1.5)
            beta = jax.random.uniform(kb_, (ci,), jnp.float32, -0.5, 0.5)
            # Kernel-side parameter prep hoisted to build time (done once, not per fwd):
            #   (3,3,3,ci,co) DHWIO -> (27, co, ci) bf16 per-tap weight slices.
            wk = jnp.transpose(w.reshape(27, ci, co), (0, 2, 1)).astype(jnp.bfloat16)
            level.append(dict(
                w=w, gamma=gamma, beta=beta, groups=g,
                wk=wk,
                gamma_col=gamma.reshape(ci, 1).astype(jnp.float32),
                beta_col=beta.reshape(ci, 1).astype(jnp.float32)))
        params.append(level)
        c_prev = fout
    return params


# ---------------------------------------------------------------------------
# Encoder forward (public API takes / returns NCDHW like the PyTorch module)
# ---------------------------------------------------------------------------
def unet3d_encoder_forward(img_ncdhw, params):
    N, C, D, H, W = img_ncdhw.shape
    x = img_ncdhw.reshape(N, C, D * H * W)          # free: channels-first, spatial flat
    dims = (D, H, W)
    n_levels = len(params)
    for lvl, level in enumerate(params):
        if lvl > 0:
            x = max_pool3d_flat(x, dims)
            dims = tuple(s // 2 for s in dims)
        # inter-level activations stay bf16 in HBM; only the final level emits f32
        out_dtype = jnp.float32 if lvl == n_levels - 1 else jnp.bfloat16
        x = double_conv_level(x, level, dims, out_dtype=out_dtype)
    Dl, Hl, Wl = dims
    return x.reshape(N, x.shape[1], Dl, Hl, Wl)     # back to NCDHW


# ---------------------------------------------------------------------------
# Pure-JAX reference (for correctness check)
# ---------------------------------------------------------------------------
def _ref_gn_conv_relu(x, gamma, beta, w, groups, eps=1e-5, match_bf16=False):
    # x: (N, D, H, W, C) NDHWC
    N, D, H, W, C = x.shape
    xg = x.reshape(N, D, H, W, groups, C // groups)
    mean = xg.mean(axis=(1, 2, 3, 5), keepdims=True)
    var = xg.var(axis=(1, 2, 3, 5), keepdims=True)
    xn = ((xg - mean) / jnp.sqrt(var + eps)).reshape(N, D, H, W, C)
    y = xn * gamma + beta
    wr = w
    if match_bf16:
        y = y.astype(jnp.bfloat16)
        wr = wr.astype(jnp.bfloat16)
    out = jax.lax.conv_general_dilated(
        y, wr, window_strides=(1, 1, 1), padding=((1, 1),) * 3,
        dimension_numbers=('NDHWC', 'DHWIO', 'NDHWC'),
        preferred_element_type=jnp.float32)
    return jnp.maximum(out, 0.0)


def _ref_max_pool3d(x):
    N, D, H, W, C = x.shape
    xr = x.reshape(N, D // 2, 2, H // 2, 2, W // 2, 2, C)
    return xr.max(axis=(2, 4, 6))


def _ref_forward(img_ncdhw, params, match_bf16=False):
    x = jnp.transpose(img_ncdhw, (0, 2, 3, 4, 1))   # NCDHW -> NDHWC
    n_levels = len(params)
    for lvl, level in enumerate(params):
        if lvl > 0:
            x = _ref_max_pool3d(x)
        for sc in level:
            x = _ref_gn_conv_relu(x, sc['gamma'], sc['beta'], sc['w'], sc['groups'],
                                  match_bf16=match_bf16)
        if match_bf16 and lvl < n_levels - 1:
            # Pallas path keeps inter-level activations in bf16 HBM.
            x = x.astype(jnp.bfloat16).astype(jnp.float32)
    return jnp.transpose(x, (0, 4, 1, 2, 3))        # NDHWC -> NCDHW


if __name__ == "__main__":
    key = jax.random.PRNGKey(0)
    kx, kp = jax.random.split(key)

    # Small, module-consistent shapes: batch=2, in_channels=2, 8^3 volume,
    # f_maps=8, num_groups=4, num_levels=3.
    N, Cin, D, H, W = 2, 2, 8, 8, 8
    img = jax.random.normal(kx, (N, Cin, D, H, W), jnp.float32)
    params = build_encoder_params(kp, in_channels=Cin, f_maps=8,
                                  num_groups=4, num_levels=3)

    out = jax.block_until_ready(unet3d_encoder_forward(img, params))

    # Deepest encoder feature map: (N, f_maps*2^(L-1), D/4, H/4, W/4)
    assert out.shape == (N, 32, D // 4, H // 4, W // 4), out.shape

    # Tight check: reference with the same bf16 rounding points as the kernel (conv
    # inputs/weights and inter-level activations); remaining diff = accumulation order.
    ref_bf = jax.block_until_ready(_ref_forward(img, params, match_bf16=True))
    # Loose check: pure-f32 reference (semantic fidelity within bf16 noise).
    ref_32 = jax.block_until_ready(_ref_forward(img, params, match_bf16=False))

    err_bf = float(jnp.max(jnp.abs(out - ref_bf)))
    err_32 = float(jnp.max(jnp.abs(out - ref_32)))
    assert jnp.allclose(out, ref_bf, rtol=1e-2, atol=1e-2), (err_bf, err_32)
    assert jnp.allclose(out, ref_32, rtol=2e-1, atol=2e-1), (err_bf, err_32)

    print("KERNEL_OK")
</pallas_src>

<mosaic_0001>
module attributes {stable_mosaic.version = 11 : i64} {
  func.func @_double_conv_kernel(%arg0: i32, %arg1: memref<1x2x512xf32, #tpu.memory_space<vmem>>, %arg2: memref<27x512xf32, #tpu.memory_space<vmem>>, %arg3: memref<2x1xf32, #tpu.memory_space<vmem>>, %arg4: memref<2x1xf32, #tpu.memory_space<vmem>>, %arg5: memref<27x4x2xbf16, #tpu.memory_space<vmem>>, %arg6: memref<4x1xf32, #tpu.memory_space<vmem>>, %arg7: memref<4x1xf32, #tpu.memory_space<vmem>>, %arg8: memref<27x8x4xbf16, #tpu.memory_space<vmem>>, %arg9: memref<1x8x512xbf16, #tpu.memory_space<vmem>>, %arg10: memref<4x658xf32, #tpu.memory_space<vmem>>) attributes {dimension_semantics = [#tpu.dimension_semantics<parallel>], iteration_bounds = array<i64: 2>, scalar_prefetch = 0 : i64, scratch_operands = 1 : i64, tpu.core_type = #tpu.core_type<tc>, window_params = [{transform_indices = @transform_0, window_bounds = array<i64: 1, 2, 512>}, {pipeline_mode = #tpu.pipeline_mode<synchronous>, transform_indices = @transform_1, window_bounds = array<i64: 27, 512>}, {pipeline_mode = #tpu.pipeline_mode<synchronous>, transform_indices = @transform_2, window_bounds = array<i64: 2, 1>}, {pipeline_mode = #tpu.pipeline_mode<synchronous>, transform_indices = @transform_3, window_bounds = array<i64: 2, 1>}, {pipeline_mode = #tpu.pipeline_mode<synchronous>, transform_indices = @transform_4, window_bounds = array<i64: 27, 4, 2>}, {pipeline_mode = #tpu.pipeline_mode<synchronous>, transform_indices = @transform_5, window_bounds = array<i64: 4, 1>}, {pipeline_mode = #tpu.pipeline_mode<synchronous>, transform_indices = @transform_6, window_bounds = array<i64: 4, 1>}, {pipeline_mode = #tpu.pipeline_mode<synchronous>, transform_indices = @transform_7, window_bounds = array<i64: 27, 8, 4>}, {transform_indices = @transform_8, window_bounds = array<i64: 1, 8, 512>}]} {
    %cst = arith.constant 0.000000e+00 : f32
    %0 = vector.broadcast %cst : f32 to vector<4x73xf32>
    %c0 = arith.constant 0 : index
    %c0_0 = arith.constant 0 : index
    %1 = vector.load %arg10[%c0, %c0_0] : memref<4x658xf32, #tpu.memory_space<vmem>>, vector<4x73xf32>
    tpu.vector_store %arg10[%c0, %c0_0], %0 {strides = array<i32>} : memref<4x658xf32, #tpu.memory_space<vmem>>, vector<4x73xf32>,
    %c0_1 = arith.constant 0 : index
    %c585 = arith.constant 585 : index
    %2 = vector.load %arg10[%c0_1, %c585] : memref<4x658xf32, #tpu.memory_space<vmem>>, vector<4x73xf32>
    tpu.vector_store %arg10[%c0_1, %c585], %0 {strides = array<i32>} : memref<4x658xf32, #tpu.memory_space<vmem>>, vector<4x73xf32>,
    %c0_2 = arith.constant 0 : index
    %c0_3 = arith.constant 0 : index
    %c0_4 = arith.constant 0 : index
    %3 = vector.load %arg1[%c0_2, %c0_3, %c0_4] : memref<1x2x512xf32, #tpu.memory_space<vmem>>, vector<1x2x512xf32>
    %4 = vector.shape_cast %3 : vector<1x2x512xf32> to vector<2x512xf32>
    %c0_5 = arith.constant 0 : index
    %c0_6 = arith.constant 0 : index
    %5 = vector.load %arg3[%c0_5, %c0_6] : memref<2x1xf32, #tpu.memory_space<vmem>>, vector<2x1xf32>
    %c0_7 = arith.constant 0 : index
    %c0_8 = arith.constant 0 : index
    %6 = vector.load %arg4[%c0_7, %c0_8] : memref<2x1xf32, #tpu.memory_space<vmem>>, vector<2x1xf32>
    %cst_9 = arith.constant dense<0.000000e+00> : vector<2xf32>
    %7 = vector.multi_reduction <add>, %4, %cst_9 [1] : vector<2x512xf32> to vector<2xf32>
    %8 = vector.shape_cast %7 : vector<2xf32> to vector<2x1xf32>
    %cst_10 = arith.constant dense<0.000000e+00> : vector<1xf32>
    %9 = vector.multi_reduction <add>, %8, %cst_10 [0] : vector<2x1xf32> to vector<1xf32>
    %10 = vector.shape_cast %9 : vector<1xf32> to vector<1x1xf32>
    %11 = vector.shape_cast %10 : vector<1x1xf32> to vector<1x1xf32>
    %12 = vector.broadcast %11 : vector<1x1xf32> to vector<2x1xf32>
    %cst_11 = arith.constant 1.024000e+03 : f32
    %13 = vector.broadcast %cst_11 : f32 to vector<2x1xf32>
    %14 = arith.divf %12, %13 : vector<2x1xf32>
    %15 = vector.broadcast %14 : vector<2x1xf32> to vector<2x512xf32>
    %16 = arith.subf %4, %15 : vector<2x512xf32>
    %17 = arith.mulf %16, %16 : vector<2x512xf32>
    %cst_12 = arith.constant dense<0.000000e+00> : vector<2xf32>
    %18 = vector.multi_reduction <add>, %17, %cst_12 [1] : vector<2x512xf32> to vector<2xf32>
    %19 = vector.shape_cast %18 : vector<2xf32> to vector<2x1xf32>
    %cst_13 = arith.constant dense<0.000000e+00> : vector<1xf32>
    %20 = vector.multi_reduction <add>, %19, %cst_13 [0] : vector<2x1xf32> to vector<1xf32>
    %21 = vector.shape_cast %20 : vector<1xf32> to vector<1x1xf32>
    %22 = vector.shape_cast %21 : vector<1x1xf32> to vector<1x1xf32>
    %23 = vector.broadcast %22 : vector<1x1xf32> to vector<2x1xf32>
    %cst_14 = arith.constant 1.024000e+03 : f32
    %24 = vector.broadcast %cst_14 : f32 to vector<2x1xf32>
    %25 = arith.divf %23, %24 : vector<2x1xf32>
    %cst_15 = arith.constant 9.99999974E-6 : f32
    %26 = vector.broadcast %cst_15 : f32 to vector<2x1xf32>
    %27 = arith.addf %25, %26 : vector<2x1xf32>
    %28 = math.rsqrt %27 : vector<2x1xf32>
    %29 = arith.mulf %28, %5 : vector<2x1xf32>
    %30 = arith.mulf %14, %29 : vector<2x1xf32>
    %31 = arith.subf %6, %30 : vector<2x1xf32>
    %32 = vector.broadcast %29 : vector<2x1xf32> to vector<2x512xf32>
    %33 = arith.mulf %4, %32 : vector<2x512xf32>
    %34 = vector.broadcast %31 : vector<2x1xf32> to vector<2x512xf32>
    %35 = arith.addf %33, %34 : vector<2x512xf32>
    %c0_16 = arith.constant 0 : index
    %c73 = arith.constant 73 : index
    %36 = vector.load %arg10[%c0_16, %c73] : memref<4x658xf32, #tpu.memory_space<vmem>>, vector<2x512xf32>
    tpu.vector_store %arg10[%c0_16, %c73], %35 {strides = array<i32>} : memref<4x658xf32, #tpu.memory_space<vmem>>, vector<2x512xf32>,
    %c0_17 = arith.constant 0 : index
    %c0_18 = arith.constant 0 : index
    %37 = vector.load %arg10[%c0_17, %c0_18] : memref<4x658xf32, #tpu.memory_space<vmem>>, vector<2x512xf32>
    %c0_19 = arith.constant 0 : index
    %c0_20 = arith.constant 0 : index
    %38 = vector.load %arg2[%c0_19, %c0_20] : memref<27x512xf32, #tpu.memory_space<vmem>>, vector<1x512xf32>
    %39 = vector.broadcast %38 : vector<1x512xf32> to vector<2x512xf32>
    %40 = arith.mulf %37, %39 : vector<2x512xf32>
    %c0_21 = arith.constant 0 : index
    %c0_22 = arith.constant 0 : index
    %c0_23 = arith.constant 0 : index
    %41 = vector.load %arg5[%c0_21, %c0_22, %c0_23] : memref<27x4x2xbf16, #tpu.memory_space<vmem>>, vector<1x4x2xbf16>
    %42 = vector.shape_cast %41 : vector<1x4x2xbf16> to vector<4x2xbf16>
    %43 = arith.truncf %40 : vector<2x512xf32> to vector<2x512xbf16>
    %cst_24 = arith.constant dense<0.000000e+00> : vector<4x512xf32>
    %44 = tpu.matmul %42, %43, %cst_24 {dimension_numbers = #tpu.dot_dimension_numbers<[1], [0], [0], [1], [0, 0, 1, 1], [], []>} : vector<4x2xbf16>, vector<2x512xbf16>, vector<4x512xf32> -> vector<4x512xf32>
    %c0_25 = arith.constant 0 : index
    %c1 = arith.constant 1 : index
    %45 = vector.load %arg10[%c0_25, %c1] : memref<4x658xf32, #tpu.memory_space<vmem>>, vector<2x512xf32>
    %c1_26 = arith.constant 1 : index
    %c0_27 = arith.constant 0 : index
    %46 = vector.load %arg2[%c1_26, %c0_27] : memref<27x512xf32, #tpu.memory_space<vmem>>, vector<1x512xf32>
    %47 = vector.broadcast %46 : vector<1x512xf32> to vector<2x512xf32>
    %48 = arith.mulf %45, %47 : vector<2x512xf32>
    %c1_28 = arith.constant 1 : index
    %c0_29 = arith.constant 0 : index
    %c0_30 = arith.constant 0 : index
    %49 = vector.load %arg5[%c1_28, %c0_29, %c0_30] : memref<27x4x2xbf16, #tpu.memory_space<vmem>>, vector<1x4x2xbf16>
    %50 = vector.shape_cast %49 : vector<1x4x2xbf16> to vector<4x2xbf16>
    %51 = arith.truncf %48 : vector<2x512xf32> to vector<2x512xbf16>
    %cst_31 = arith.constant dense<0.000000e+00> : vector<4x512xf32>
    %52 = tpu.matmul %50, %51, %cst_31 {dimension_numbers = #tpu.dot_dimension_numbers<[1], [0], [0], [1], [0, 0, 1, 1], [], []>} : vector<4x2xbf16>, vector<2x512xbf16>, vector<4x512xf32> -> vector<4x512xf32>
    %53 = arith.addf %44, %52 : vector<4x512xf32>
    %c0_32 = arith.constant 0 : index
    %c2 = arith.constant 2 : index
    %54 = vector.load %arg10[%c0_32, %c2] : memref<4x658xf32, #tpu.memory_space<vmem>>, vector<2x512xf32>
    %c2_33 = arith.constant 2 : index
    %c0_34 = arith.constant 0 : index
    %55 = vector.load %arg2[%c2_33, %c0_34] : memref<27x512xf32, #tpu.memory_space<vmem>>, vector<1x512xf32>
    %56 = vector.broadcast %55 : vector<1x512xf32> to vector<2x512xf32>
    %57 = arith.mulf %54, %56 : vector<2x512xf32>
    %c2_35 = arith.constant 2 : index
    %c0_36 = arith.constant 0 : index
    %c0_37 = arith.constant 0 : index
    %58 = vector.load %arg5[%c2_35, %c0_36, %c0_37] : memref<27x4x2xbf16, #tpu.memory_space<vmem>>, vector<1x4x2xbf16>
    %59 = vector.shape_cast %58 : vector<1x4x2xbf16> to vector<4x2xbf16>
    %60 = arith.truncf %57 : vector<2x512xf32> to vector<2x512xbf16>
    %cst_38 = arith.constant dense<0.000000e+00> : vector<4x512xf32>
    %61 = tpu.matmul %59, %60, %cst_38 {dimension_numbers = #tpu.dot_dimension_numbers<[1], [0], [0], [1], [0, 0, 1, 1], [], []>} : vector<4x2xbf16>, vector<2x512xbf16>, vector<4x512xf32> -> vector<4x512xf32>
    %62 = arith.addf %53, %61 : vector<4x512xf32>
    %c0_39 = arith.constant 0 : index
    %c8 = arith.constant 8 : index
    %63 = vector.load %arg10[%c0_39, %c8] : memref<4x658xf32, #tpu.memory_space<vmem>>, vector<2x512xf32>
    %c3 = arith.constant 3 : index
    %c0_40 = arith.constant 0 : index
    %64 = vector.load %arg2[%c3, %c0_40] : memref<27x512xf32, #tpu.memory_space<vmem>>, vector<1x512xf32>
    %65 = vector.broadcast %64 : vector<1x512xf32> to vector<2x512xf32>
    %66 = arith.mulf %63, %65 : vector<2x512xf32>
    %c3_41 = arith.constant 3 : index
    %c0_42 = arith.constant 0 : index
    %c0_43 = arith.constant 0 : index
    %67 = vector.load %arg5[%c3_41, %c0_42, %c0_43] : memref<27x4x2xbf16, #tpu.memory_space<vmem>>, vector<1x4x2xbf16>
    %68 = vector.shape_cast %67 : vector<1x4x2xbf16> to vector<4x2xbf16>
    %69 = arith.truncf %66 : vector<2x512xf32> to vector<2x512xbf16>
    %cst_44 = arith.constant dense<0.000000e+00> : vector<4x512xf32>
    %70 = tpu.matmul %68, %69, %cst_44 {dimension_numbers = #tpu.dot_dimension_numbers<[1], [0], [0], [1], [0, 0, 1, 1], [], []>} : vector<4x2xbf16>, vector<2x512xbf16>, vector<4x512xf32> -> vector<4x512xf32>
    %71 = arith.addf %62, %70 : vector<4x512xf32>
    %c0_45 = arith.constant 0 : index
    %c9 = arith.constant 9 : index
    %72 = vector.load %arg10[%c0_45, %c9] : memref<4x658xf32, #tpu.memory_space<vmem>>, vector<2x512xf32>
    %c4 = arith.constant 4 : index
    %c0_46 = arith.constant 0 : index
    %73 = vector.load %arg2[%c4, %c0_46] : memref<27x512xf32, #tpu.memory_space<vmem>>, vector<1x512xf32>
    %74 = vector.broadcast %73 : vector<1x512xf32> to vector<2x512xf32>
    %75 = arith.mulf %72, %74 : vector<2x512xf32>
    %c4_47 = arith.constant 4 : index
    %c0_48 = arith.constant 0 : index
    %c0_49 = arith.constant 0 : index
    %76 = vector.load %arg5[%c4_47, %c0_48, %c0_49] : memref<27x4x2xbf16, #tpu.memory_space<vmem>>, vector<1x4x2xbf16>
    %77 = vector.shape_cast %76 : vector<1x4x2xbf16> to vector<4x2xbf16>
    %78 = arith.truncf %75 : vector<2x512xf32> to vector<2x512xbf16>
    %cst_50 = arith.constant dense<0.000000e+00> : vector<4x512xf32>
    %79 = tpu.matmul %77, %78, %cst_50 {dimension_numbers = #tpu.dot_dimension_numbers<[1], [0], [0], [1], [0, 0, 1, 1], [], []>} : vector<4x2xbf16>, vector<2x512xbf16>, vector<4x512xf32> -> vector<4x512xf32>
    %80 = arith.addf %71, %79 : vector<4x512xf32>
    %c0_51 = arith.constant 0 : index
    %c10 = arith.constant 10 : index
    %81 = vector.load %arg10[%c0_51, %c10] : memref<4x658xf32, #tpu.memory_space<vmem>>, vector<2x512xf32>
    %c5 = arith.constant 5 : index
    %c0_52 = arith.constant 0 : index
    %82 = vector.load %arg2[%c5, %c0_52] : memref<27x512xf32, #tpu.memory_space<vmem>>, vector<1x512xf32>
    %83 = vector.broadcast %82 : vector<1x512xf32> to vector<2x512xf32>
    %84 = arith.mulf %81, %83 : vector<2x512xf32>
    %c5_53 = arith.constant 5 : index
    %c0_54 = arith.constant 0 : index
    %c0_55 = arith.constant 0 : index
    %85 = vector.load %arg5[%c5_53, %c0_54, %c0_55] : memref<27x4x2xbf16, #tpu.memory_space<vmem>>, vector<1x4x2xbf16>
    %86 = vector.shape_cast %85 : vector<1x4x2xbf16> to vector<4x2xbf16>
    %87 = arith.truncf %84 : vector<2x512xf32> to vector<2x512xbf16>
    %cst_56 = arith.constant dense<0.000000e+00> : vector<4x512xf32>
    %88 = tpu.matmul %86, %87, %cst_56 {dimension_numbers = #tpu.dot_dimension_numbers<[1], [0], [0], [1], [0, 0, 1, 1], [], []>} : vector<4x2xbf16>, vector<2x512xbf16>, vector<4x512xf32> -> vector<4x512xf32>
    %89 = arith.addf %80, %88 : vector<4x512xf32>
    %c0_57 = arith.constant 0 : index
    %c16 = arith.constant 16 : index
    %90 = vector.load %arg10[%c0_57, %c16] : memref<4x658xf32, #tpu.memory_space<vmem>>, vector<2x512xf32>
    %c6 = arith.constant 6 : index
    %c0_58 = arith.constant 0 : index
    %91 = vector.load %arg2[%c6, %c0_58] : memref<27x512xf32, #tpu.memory_space<vmem>>, vector<1x512xf32>
    %92 = vector.broadcast %91 : vector<1x512xf32> to vector<2x512xf32>
    %93 = arith.mulf %90, %92 : vector<2x512xf32>
    %c6_59 = arith.constant 6 : index
    %c0_60 = arith.constant 0 : index
    %c0_61 = arith.constant 0 : index
    %94 = vector.load %arg5[%c6_59, %c0_60, %c0_61] : memref<27x4x2xbf16, #tpu.memory_space<vmem>>, vector<1x4x2xbf16>
    %95 = vector.shape_cast %94 : vector<1x4x2xbf16> to vector<4x2xbf16>
    %96 = arith.truncf %93 : vector<2x512xf32> to vector<2x512xbf16>
    %cst_62 = arith.constant dense<0.000000e+00> : vector<4x512xf32>
    %97 = tpu.matmul %95, %96, %cst_62 {dimension_numbers = #tpu.dot_dimension_numbers<[1], [0], [0], [1], [0, 0, 1, 1], [], []>} : vector<4x2xbf16>, vector<2x512xbf16>, vector<4x512xf32> -> vector<4x512xf32>
    %98 = arith.addf %89, %97 : vector<4x512xf32>
    %c0_63 = arith.constant 0 : index
    %c17 = arith.constant 17 : index
    %99 = vector.load %arg10[%c0_63, %c17] : memref<4x658xf32, #tpu.memory_space<vmem>>, vector<2x512xf32>
    %c7 = arith.constant 7 : index
    %c0_64 = arith.constant 0 : index
    %100 = vector.load %arg2[%c7, %c0_64] : memref<27x512xf32, #tpu.memory_space<vmem>>, vector<1x512xf32>
    %101 = vector.broadcast %100 : vector<1x512xf32> to vector<2x512xf32>
    %102 = arith.mulf %99, %101 : vector<2x512xf32>
    %c7_65 = arith.constant 7 : index
    %c0_66 = arith.constant 0 : index
    %c0_67 = arith.constant 0 : index
    %103 = vector.load %arg5[%c7_65, %c0_66, %c0_67] : memref<27x4x2xbf16, #tpu.memory_space<vmem>>, vector<1x4x2xbf16>
    %104 = vector.shape_cast %103 : vector<1x4x2xbf16> to vector<4x2xbf16>
    %105 = arith.truncf %102 : vector<2x512xf32> to vector<2x512xbf16>
    %cst_68 = arith.constant dense<0.000000e+00> : vector<4x512xf32>
    %106 = tpu.matmul %104, %105, %cst_68 {dimension_numbers = #tpu.dot_dimension_numbers<[1], [0], [0], [1], [0, 0, 1, 1], [], []>} : vector<4x2xbf16>, vector<2x512xbf16>, vector<4x512xf32> -> vector<4x512xf32>
    %107 = arith.addf %98, %106 : vector<4x512xf32>
    %c0_69 = arith.constant 0 : index
    %c18 = arith.constant 18 : index
    %108 = vector.load %arg10[%c0_69, %c18] : memref<4x658xf32, #tpu.memory_space<vmem>>, vector<2x512xf32>
    %c8_70 = arith.constant 8 : index
    %c0_71 = arith.constant 0 : index
    %109 = vector.load %arg2[%c8_70, %c0_71] : memref<27x512xf32, #tpu.memory_space<vmem>>, vector<1x512xf32>
    %110 = vector.broadcast %109 : vector<1x512xf32> to vector<2x512xf32>
    %111 = arith.mulf %108, %110 : vector<2x512xf32>
    %c8_72 = arith.constant 8 : index
    %c0_73 = arith.constant 0 : index
    %c0_74 = arith.constant 0 : index
    %112 = vector.load %arg5[%c8_72, %c0_73, %c0_74] : memref<27x4x2xbf16, #tpu.memory_space<vmem>>, vector<1x4x2xbf16>
    %113 = vector.shape_cast %112 : vector<1x4x2xbf16> to vector<4x2xbf16>
    %114 = arith.truncf %111 : vector<2x512xf32> to vector<2x512xbf16>
    %cst_75 = arith.constant dense<0.000000e+00> : vector<4x512xf32>
    %115 = tpu.matmul %113, %114, %cst_75 {dimension_numbers = #tpu.dot_dimension_numbers<[1], [0], [0], [1], [0, 0, 1, 1], [], []>} : vector<4x2xbf16>, vector<2x512xbf16>, vector<4x512xf32> -> vector<4x512xf32>
    %116 = arith.addf %107, %115 : vector<4x512xf32>
    %c0_76 = arith.constant 0 : index
    %c64 = arith.constant 64 : index
    %117 = vector.load %arg10[%c0_76, %c64] : memref<4x658xf32, #tpu.memory_space<vmem>>, vector<2x512xf32>
    %c9_77 = arith.constant 9 : index
    %c0_78 = arith.constant 0 : index
    %118 = vector.load %arg2[%c9_77, %c0_78] : memref<27x512xf32, #tpu.memory_space<vmem>>, vector<1x512xf32>
    %119 = vector.broadcast %118 : vector<1x512xf32> to vector<2x512xf32>
    %120 = arith.mulf %117, %119 : vector<2x512xf32>
    %c9_79 = arith.constant 9 : index
    %c0_80 = arith.constant 0 : index
    %c0_81 = arith.constant 0 : index
    %121 = vector.load %arg5[%c9_79, %c0_80, %c0_81] : memref<27x4x2xbf16, #tpu.memory_space<vmem>>, vector<1x4x2xbf16>
    %122 = vector.shape_cast %121 : vector<1x4x2xbf16> to vector<4x2xbf16>
    %123 = arith.truncf %120 : vector<2x512xf32> to vector<2x512xbf16>
    %cst_82 = arith.constant dense<0.000000e+00> : vector<4x512xf32>
    %124 = tpu.matmul %122, %123, %cst_82 {dimension_numbers = #tpu.dot_dimension_numbers<[1], [0], [0], [1], [0, 0, 1, 1], [], []>} : vector<4x2xbf16>, vector<2x512xbf16>, vector<4x512xf32> -> vector<4x512xf32>
    %125 = arith.addf %116, %124 : vector<4x512xf32>
    %c0_83 = arith.constant 0 : index
    %c65 = arith.constant 65 : index
    %126 = vector.load %arg10[%c0_83, %c65] : memref<4x658xf32, #tpu.memory_space<vmem>>, vector<2x512xf32>
    %c10_84 = arith.constant 10 : index
    %c0_85 = arith.constant 0 : index
    %127 = vector.load %arg2[%c10_84, %c0_85] : memref<27x512xf32, #tpu.memory_space<vmem>>, vector<1x512xf32>
    %128 = vector.broadcast %127 : vector<1x512xf32> to vector<2x512xf32>
    %129 = arith.mulf %126, %128 : vector<2x512xf32>
    %c10_86 = arith.constant 10 : index
    %c0_87 = arith.constant 0 : index
    %c0_88 = arith.constant 0 : index
    %130 = vector.load %arg5[%c10_86, %c0_87, %c0_88] : memref<27x4x2xbf16, #tpu.memory_space<vmem>>, vector<1x4x2xbf16>
    %131 = vector.shape_cast %130 : vector<1x4x2xbf16> to vector<4x2xbf16>
    %132 = arith.truncf %129 : vector<2x512xf32> to vector<2x512xbf16>
    %cst_89 = arith.constant dense<0.000000e+00> : vector<4x512xf32>
    %133 = tpu.matmul %131, %132, %cst_89 {dimension_numbers = #tpu.dot_dimension_numbers<[1], [0], [0], [1], [0, 0, 1, 1], [], []>} : vector<4x2xbf16>, vector<2x512xbf16>, vector<4x512xf32> -> vector<4x512xf32>
    %134 = arith.addf %125, %133 : vector<4x512xf32>
    %c0_90 = arith.constant 0 : index
    %c66 = arith.constant 66 : index
    %135 = vector.load %arg10[%c0_90, %c66] : memref<4x658xf32, #tpu.memory_space<vmem>>, vector<2x512xf32>
    %c11 = arith.constant 11 : index
    %c0_91 = arith.constant 0 : index
    %136 = vector.load %arg2[%c11, %c0_91] : memref<27x512xf32, #tpu.memory_space<vmem>>, vector<1x512xf32>
    %137 = vector.broadcast %136 : vector<1x512xf32> to vector<2x512xf32>
    %138 = arith.mulf %135, %137 : vector<2x512xf32>
    %c11_92 = arith.constant 11 : index
    %c0_93 = arith.constant 0 : index
    %c0_94 = arith.constant 0 : index
    %139 = vector.load %arg5[%c11_92, %c0_93, %c0_94] : memref<27x4x2xbf16, #tpu.memory_space<vmem>>, vector<1x4x2xbf16>
    %140 = vector.shape_cast %139 : vector<1x4x2xbf16> to vector<4x2xbf16>
    %141 = arith.truncf %138 : vector<2x512xf32> to vector<2x512xbf16>
    %cst_95 = arith.constant dense<0.000000e+00> : vector<4x512xf32>
    %142 = tpu.matmul %140, %141, %cst_95 {dimension_numbers = #tpu.dot_dimension_numbers<[1], [0], [0], [1], [0, 0, 1, 1], [], []>} : vector<4x2xbf16>, vector<2x512xbf16>, vector<4x512xf32> -> vector<4x512xf32>
    %143 = arith.addf %134, %142 : vector<4x512xf32>
    %c0_96 = arith.constant 0 : index
    %c72 = arith.constant 72 : index
    %144 = vector.load %arg10[%c0_96, %c72] : memref<4x658xf32, #tpu.memory_space<vmem>>, vector<2x512xf32>
    %c12 = arith.constant 12 : index
    %c0_97 = arith.constant 0 : index
    %145 = vector.load %arg2[%c12, %c0_97] : memref<27x512xf32, #tpu.memory_space<vmem>>, vector<1x512xf32>
    %146 = vector.broadcast %145 : vector<1x512xf32> to vector<2x512xf32>
    %147 = arith.mulf %144, %146 : vector<2x512xf32>
    %c12_98 = arith.constant 12 : index
    %c0_99 = arith.constant 0 : index
    %c0_100 = arith.constant 0 : index
    %148 = vector.load %arg5[%c12_98, %c0_99, %c0_100] : memref<27x4x2xbf16, #tpu.memory_space<vmem>>, vector<1x4x2xbf16>
    %149 = vector.shape_cast %148 : vector<1x4x2xbf16> to vector<4x2xbf16>
    %150 = arith.truncf %147 : vector<2x512xf32> to vector<2x512xbf16>
    %cst_101 = arith.constant dense<0.000000e+00> : vector<4x512xf32>
    %151 = tpu.matmul %149, %150, %cst_101 {dimension_numbers = #tpu.dot_dimension_numbers<[1], [0], [0], [1], [0, 0, 1, 1], [], []>} : vector<4x2xbf16>, vector<2x512xbf16>, vector<4x512xf32> -> vector<4x512xf32>
    %152 = arith.addf %143, %151 : vector<4x512xf32>
    %c0_102 = arith.constant 0 : index
    %c73_103 = arith.constant 73 : index
    %153 = vector.load %arg10[%c0_102, %c73_103] : memref<4x658xf32, #tpu.memory_space<vmem>>, vector<2x512xf32>
    %c13 = arith.constant 13 : index
    %c0_104 = arith.constant 0 : index
    %c0_105 = arith.constant 0 : index
    %154 = vector.load %arg5[%c13, %c0_104, %c0_105] : memref<27x4x2xbf16, #tpu.memory_space<vmem>>, vector<1x4x2xbf16>
    %155 = vector.shape_cast %154 : vector<1x4x2xbf16> to vector<4x2xbf16>
    %156 = arith.truncf %153 : vector<2x512xf32> to vector<2x512xbf16>
    %cst_106 = arith.constant dense<0.000000e+00> : vector<4x512xf32>
    %157 = tpu.matmul %155, %156, %cst_106 {dimension_numbers = #tpu.dot_dimension_numbers<[1], [0], [0], [1], [0, 0, 1, 1], [], []>} : vector<4x2xbf16>, vector<2x512xbf16>, vector<4x512xf32> -> vector<4x512xf32>
    %158 = arith.addf %152, %157 : vector<4x512xf32>
    %c0_107 = arith.constant 0 : index
    %c74 = arith.constant 74 : index
    %159 = vector.load %arg10[%c0_107, %c74] : memref<4x658xf32, #tpu.memory_space<vmem>>, vector<2x512xf32>
    %c14 = arith.constant 14 : index
    %c0_108 = arith.constant 0 : index
    %160 = vector.load %arg2[%c14, %c0_108] : memref<27x512xf32, #tpu.memory_space<vmem>>, vector<1x512xf32>
    %161 = vector.broadcast %160 : vector<1x512xf32> to vector<2x512xf32>
    %162 = arith.mulf %159, %161 : vector<2x512xf32>
    %c14_109 = arith.constant 14 : index
    %c0_110 = arith.constant 0 : index
    %c0_111 = arith.constant 0 : index
    %163 = vector.load %arg5[%c14_109, %c0_110, %c0_111] : memref<27x4x2xbf16, #tpu.memory_space<vmem>>, vector<1x4x2xbf16>
    %164 = vector.shape_cast %163 : vector<1x4x2xbf16> to vector<4x2xbf16>
    %165 = arith.truncf %162 : vector<2x512xf32> to vector<2x512xbf16>
    %cst_112 = arith.constant dense<0.000000e+00> : vector<4x512xf32>
    %166 = tpu.matmul %164, %165, %cst_112 {dimension_numbers = #tpu.dot_dimension_numbers<[1], [0], [0], [1], [0, 0, 1, 1], [], []>} : vector<4x2xbf16>, vector<2x512xbf16>, vector<4x512xf32> -> vector<4x512xf32>
    %167 = arith.addf %158, %166 : vector<4x512xf32>
    %c0_113 = arith.constant 0 : index
    %c80 = arith.constant 80 : index
    %168 = vector.load %arg10[%c0_113, %c80] : memref<4x658xf32, #tpu.memory_space<vmem>>, vector<2x512xf32>
    %c15 = arith.constant 15 : index
    %c0_114 = arith.constant 0 : index
    %169 = vector.load %arg2[%c15, %c0_114] : memref<27x512xf32, #tpu.memory_space<vmem>>, vector<1x512xf32>
    %170 = vector.broadcast %169 : vector<1x512xf32> to vector<2x512xf32>
    %171 = arith.mulf %168, %170 : vector<2x512xf32>
    %c15_115 = arith.constant 15 : index
    %c0_116 = arith.constant 0 : index
    %c0_117 = arith.constant 0 : index
    %172 = vector.load %arg5[%c15_115, %c0_116, %c0_117] : memref<27x4x2xbf16, #tpu.memory_space<vmem>>, vector<1x4x2xbf16>
    %173 = vector.shape_cast %172 : vector<1x4x2xbf16> to vector<4x2xbf16>
    %174 = arith.truncf %171 : vector<2x512xf32> to vector<2x512xbf16>
    %cst_118 = arith.constant dense<0.000000e+00> : vector<4x512xf32>
    %175 = tpu.matmul %173, %174, %cst_118 {dimension_numbers = #tpu.dot_dimension_numbers<[1], [0], [0], [1], [0, 0, 1, 1], [], []>} : vector<4x2xbf16>, vector<2x512xbf16>, vector<4x512xf32> -> vector<4x512xf32>
    %176 = arith.addf %167, %175 : vector<4x512xf32>
    %c0_119 = arith.constant 0 : index
    %c81 = arith.constant 81 : index
    %177 = vector.load %arg10[%c0_119, %c81] : memref<4x658xf32, #tpu.memory_space<vmem>>, vector<2x512xf32>
    %c16_120 = arith.constant 16 : index
    %c0_121 = arith.constant 0 : index
    %178 = vector.load %arg2[%c16_120, %c0_121] : memref<27x512xf32, #tpu.memory_space<vmem>>, vector<1x512xf32>
    %179 = vector.broadcast %178 : vector<1x512xf32> to vector<2x512xf32>
    %180 = arith.mulf %177, %179 : vector<2x512xf32>
    %c16_122 = arith.constant 16 : index
    %c0_123 = arith.constant 0 : index
    %c0_124 = arith.constant 0 : index
    %181 = vector.load %arg5[%c16_122, %c0_123, %c0_124] : memref<27x4x2xbf16, #tpu.memory_space<vmem>>, vector<1x4x2xbf16>
    %182 = vector.shape_cast %181 : vector<1x4x2xbf16> to vector<4x2xbf16>
    %183 = arith.truncf %180 : vector<2x512xf32> to vector<2x512xbf16>
    %cst_125 = arith.constant dense<0.000000e+00> : vector<4x512xf32>
    %184 = tpu.matmul %182, %183, %cst_125 {dimension_numbers = #tpu.dot_dimension_numbers<[1], [0], [0], [1], [0, 0, 1, 1], [], []>} : vector<4x2xbf16>, vector<2x512xbf16>, vector<4x512xf32> -> vector<4x512xf32>
    %185 = arith.addf %176, %184 : vector<4x512xf32>
    %c0_126 = arith.constant 0 : index
    %c82 = arith.constant 82 : index
    %186 = vector.load %arg10[%c0_126, %c82] : memref<4x658xf32, #tpu.memory_space<vmem>>, vector<2x512xf32>
    %c17_127 = arith.constant 17 : index
    %c0_128 = arith.constant 0 : index
    %187 = vector.load %arg2[%c17_127, %c0_128] : memref<27x512xf32, #tpu.memory_space<vmem>>, vector<1x512xf32>
    %188 = vector.broadcast %187 : vector<1x512xf32> to vector<2x512xf32>
    %189 = arith.mulf %186, %188 : vector<2x512xf32>
    %c17_129 = arith.constant 17 : index
    %c0_130 = arith.constant 0 : index
    %c0_131 = arith.constant 0 : index
    %190 = vector.load %arg5[%c17_129, %c0_130, %c0_131] : memref<27x4x2xbf16, #tpu.memory_space<vmem>>, vector<1x4x2xbf16>
    %191 = vector.shape_cast %190 : vector<1x4x2xbf16> to vector<4x2xbf16>
    %192 = arith.truncf %189 : vector<2x512xf32> to vector<2x512xbf16>
    %cst_132 = arith.constant dense<0.000000e+00> : vector<4x512xf32>
    %193 = tpu.matmul %191, %192, %cst_132 {dimension_numbers = #tpu.dot_dimension_numbers<[1], [0], [0], [1], [0, 0, 1, 1], [], []>} : vector<4x2xbf16>, vector<2x512xbf16>, vector<4x512xf32> -> vector<4x512xf32>
    %194 = arith.addf %185, %193 : vector<4x512xf32>
    %c0_133 = arith.constant 0 : index
    %c128 = arith.constant 128 : index
    %195 = vector.load %arg10[%c0_133, %c128] : memref<4x658xf32, #tpu.memory_space<vmem>>, vector<2x512xf32>
    %c18_134 = arith.constant 18 : index
    %c0_135 = arith.constant 0 : index
    %196 = vector.load %arg2[%c18_134, %c0_135] : memref<27x512xf32, #tpu.memory_space<vmem>>, vector<1x512xf32>
    %197 = vector.broadcast %196 : vector<1x512xf32> to vector<2x512xf32>
    %198 = arith.mulf %195, %197 : vector<2x512xf32>
    %c18_136 = arith.constant 18 : index
    %c0_137 = arith.constant 0 : index
    %c0_138 = arith.constant 0 : index
    %199 = vector.load %arg5[%c18_136, %c0_137, %c0_138] : memref<27x4x2xbf16, #tpu.memory_space<vmem>>, vector<1x4x2xbf16>
    %200 = vector.shape_cast %199 : vector<1x4x2xbf16> to vector<4x2xbf16>
    %201 = arith.truncf %198 : vector<2x512xf32> to vector<2x512xbf16>
    %cst_139 = arith.constant dense<0.000000e+00> : vector<4x512xf32>
    %202 = tpu.matmul %200, %201, %cst_139 {dimension_numbers = #tpu.dot_dimension_numbers<[1], [0], [0], [1], [0, 0, 1, 1], [], []>} : vector<4x2xbf16>, vector<2x512xbf16>, vector<4x512xf32> -> vector<4x512xf32>
    %203 = arith.addf %194, %202 : vector<4x512xf32>
    %c0_140 = arith.constant 0 : index
    %c129 = arith.constant 129 : index
    %204 = vector.load %arg10[%c0_140, %c129] : memref<4x658xf32, #tpu.memory_space<vmem>>, vector<2x512xf32>
    %c19 = arith.constant 19 : index
    %c0_141 = arith.constant 0 : index
    %205 = vector.load %arg2[%c19, %c0_141] : memref<27x512xf32, #tpu.memory_space<vmem>>, vector<1x512xf32>
    %206 = vector.broadcast %205 : vector<1x512xf32> to vector<2x512xf32>
    %207 = arith.mulf %204, %206 : vector<2x512xf32>
    %c19_142 = arith.constant 19 : index
    %c0_143 = arith.constant 0 : index
    %c0_144 = arith.constant 0 : index
    %208 = vector.load %arg5[%c19_142, %c0_143, %c0_144] : memref<27x4x2xbf16, #tpu.memory_space<vmem>>, vector<1x4x2xbf16>
    %209 = vector.shape_cast %208 : vector<1x4x2xbf16> to vector<4x2xbf16>
    %210 = arith.truncf %207 : vector<2x512xf32> to vector<2x512xbf16>
    %cst_145 = arith.constant dense<0.000000e+00> : vector<4x512xf32>
    %211 = tpu.matmul %209, %210, %cst_145 {dimension_numbers = #tpu.dot_dimension_numbers<[1], [0], [0], [1], [0, 0, 1, 1], [], []>} : vector<4x2xbf16>, vector<2x512xbf16>, vector<4x512xf32> -> vector<4x512xf32>
    %212 = arith.addf %203, %211 : vector<4x512xf32>
    %c0_146 = arith.constant 0 : index
    %c130 = arith.constant 130 : index
    %213 = vector.load %arg10[%c0_146, %c130] : memref<4x658xf32, #tpu.memory_space<vmem>>, vector<2x512xf32>
    %c20 = arith.constant 20 : index
    %c0_147 = arith.constant 0 : index
    %214 = vector.load %arg2[%c20, %c0_147] : memref<27x512xf32, #tpu.memory_space<vmem>>, vector<1x512xf32>
    %215 = vector.broadcast %214 : vector<1x512xf32> to vector<2x512xf32>
    %216 = arith.mulf %213, %215 : vector<2x512xf32>
    %c20_148 = arith.constant 20 : index
    %c0_149 = arith.constant 0 : index
    %c0_150 = arith.constant 0 : index
    %217 = vector.load %arg5[%c20_148, %c0_149, %c0_150] : memref<27x4x2xbf16, #tpu.memory_space<vmem>>, vector<1x4x2xbf16>
    %218 = vector.shape_cast %217 : vector<1x4x2xbf16> to vector<4x2xbf16>
    %219 = arith.truncf %216 : vector<2x512xf32> to vector<2x512xbf16>
    %cst_151 = arith.constant dense<0.000000e+00> : vector<4x512xf32>
    %220 = tpu.matmul %218, %219, %cst_151 {dimension_numbers = #tpu.dot_dimension_numbers<[1], [0], [0], [1], [0, 0, 1, 1], [], []>} : vector<4x2xbf16>, vector<2x512xbf16>, vector<4x512xf32> -> vector<4x512xf32>
    %221 = arith.addf %212, %220 : vector<4x512xf32>
    %c0_152 = arith.constant 0 : index
    %c136 = arith.constant 136 : index
    %222 = vector.load %arg10[%c0_152, %c136] : memref<4x658xf32, #tpu.memory_space<vmem>>, vector<2x512xf32>
    %c21 = arith.constant 21 : index
    %c0_153 = arith.constant 0 : index
    %223 = vector.load %arg2[%c21, %c0_153] : memref<27x512xf32, #tpu.memory_space<vmem>>, vector<1x512xf32>
    %224 = vector.broadcast %223 : vector<1x512xf32> to vector<2x512xf32>
    %225 = arith.mulf %222, %224 : vector<2x512xf32>
    %c21_154 = arith.constant 21 : index
    %c0_155 = arith.constant 0 : index
    %c0_156 = arith.constant 0 : index
    %226 = vector.load %arg5[%c21_154, %c0_155, %c0_156] : memref<27x4x2xbf16, #tpu.memory_space<vmem>>, vector<1x4x2xbf16>
    %227 = vector.shape_cast %226 : vector<1x4x2xbf16> to vector<4x2xbf16>
    %228 = arith.truncf %225 : vector<2x512xf32> to vector<2x512xbf16>
    %cst_157 = arith.constant dense<0.000000e+00> : vector<4x512xf32>
    %229 = tpu.matmul %227, %228, %cst_157 {dimension_numbers = #tpu.dot_dimension_numbers<[1], [0], [0], [1], [0, 0, 1, 1], [], []>} : vector<4x2xbf16>, vector<2x512xbf16>, vector<4x512xf32> -> vector<4x512xf32>
    %230 = arith.addf %221, %229 : vector<4x512xf32>
    %c0_158 = arith.constant 0 : index
    %c137 = arith.constant 137 : index
    %231 = vector.load %arg10[%c0_158, %c137] : memref<4x658xf32, #tpu.memory_space<vmem>>, vector<2x512xf32>
    %c22 = arith.constant 22 : index
    %c0_159 = arith.constant 0 : index
    %232 = vector.load %arg2[%c22, %c0_159] : memref<27x512xf32, #tpu.memory_space<vmem>>, vector<1x512xf32>
    %233 = vector.broadcast %232 : vector<1x512xf32> to vector<2x512xf32>
    %234 = arith.mulf %231, %233 : vector<2x512xf32>
    %c22_160 = arith.constant 22 : index
    %c0_161 = arith.constant 0 : index
    %c0_162 = arith.constant 0 : index
    %235 = vector.load %arg5[%c22_160, %c0_161, %c0_162] : memref<27x4x2xbf16, #tpu.memory_space<vmem>>, vector<1x4x2xbf16>
    %236 = vector.shape_cast %235 : vector<1x4x2xbf16> to vector<4x2xbf16>
    %237 = arith.truncf %234 : vector<2x512xf32> to vector<2x512xbf16>
    %cst_163 = arith.constant dense<0.000000e+00> : vector<4x512xf32>
    %238 = tpu.matmul %236, %237, %cst_163 {dimension_numbers = #tpu.dot_dimension_numbers<[1], [0], [0], [1], [0, 0, 1, 1], [], []>} : vector<4x2xbf16>, vector<2x512xbf16>, vector<4x512xf32> -> vector<4x512xf32>
    %239 = arith.addf %230, %238 : vector<4x512xf32>
    %c0_164 = arith.constant 0 : index
    %c138 = arith.constant 138 : index
    %240 = vector.load %arg10[%c0_164, %c138] : memref<4x658xf32, #tpu.memory_space<vmem>>, vector<2x512xf32>
    %c23 = arith.constant 23 : index
    %c0_165 = arith.constant 0 : index
    %241 = vector.load %arg2[%c23, %c0_165] : memref<27x512xf32, #tpu.memory_space<vmem>>, vector<1x512xf32>
    %242 = vector.broadcast %241 : vector<1x512xf32> to vector<2x512xf32>
    %243 = arith.mulf %240, %242 : vector<2x512xf32>
    %c23_166 = arith.constant 23 : index
    %c0_167 = arith.constant 0 : index
    %c0_168 = arith.constant 0 : index
    %244 = vector.load %arg5[%c23_166, %c0_167, %c0_168] : memref<27x4x2xbf16, #tpu.memory_space<vmem>>, vector<1x4x2xbf16>
    %245 = vector.shape_cast %244 : vector<1x4x2xbf16> to vector<4x2xbf16>
    %246 = arith.truncf %243 : vector<2x512xf32> to vector<2x512xbf16>
    %cst_169 = arith.constant dense<0.000000e+00> : vector<4x512xf32>
    %247 = tpu.matmul %245, %246, %cst_169 {dimension_numbers = #tpu.dot_dimension_numbers<[1], [0], [0], [1], [0, 0, 1, 1], [], []>} : vector<4x2xbf16>, vector<2x512xbf16>, vector<4x512xf32> -> vector<4x512xf32>
    %248 = arith.addf %239, %247 : vector<4x512xf32>
    %c0_170 = arith.constant 0 : index
    %c144 = arith.constant 144 : index
    %249 = vector.load %arg10[%c0_170, %c144] : memref<4x658xf32, #tpu.memory_space<vmem>>, vector<2x512xf32>
    %c24 = arith.constant 24 : index
    %c0_171 = arith.constant 0 : index
    %250 = vector.load %arg2[%c24, %c0_171] : memref<27x512xf32, #tpu.memory_space<vmem>>, vector<1x512xf32>
    %251 = vector.broadcast %250 : vector<1x512xf32> to vector<2x512xf32>
    %252 = arith.mulf %249, %251 : vector<2x512xf32>
    %c24_172 = arith.constant 24 : index
    %c0_173 = arith.constant 0 : index
    %c0_174 = arith.constant 0 : index
    %253 = vector.load %arg5[%c24_172, %c0_173, %c0_174] : memref<27x4x2xbf16, #tpu.memory_space<vmem>>, vector<1x4x2xbf16>
    %254 = vector.shape_cast %253 : vector<1x4x2xbf16> to vector<4x2xbf16>
    %255 = arith.truncf %252 : vector<2x512xf32> to vector<2x512xbf16>
    %cst_175 = arith.constant dense<0.000000e+00> : vector<4x512xf32>
    %256 = tpu.matmul %254, %255, %cst_175 {dimension_numbers = #tpu.dot_dimension_numbers<[1], [0], [0], [1], [0, 0, 1, 1], [], []>} : vector<4x2xbf16>, vector<2x512xbf16>, vector<4x512xf32> -> vector<4x512xf32>
    %257 = arith.addf %248, %256 : vector<4x512xf32>
    %c0_176 = arith.constant 0 : index
    %c145 = arith.constant 145 : index
    %258 = vector.load %arg10[%c0_176, %c145] : memref<4x658xf32, #tpu.memory_space<vmem>>, vector<2x512xf32>
    %c25 = arith.constant 25 : index
    %c0_177 = arith.constant 0 : index
    %259 = vector.load %arg2[%c25, %c0_177] : memref<27x512xf32, #tpu.memory_space<vmem>>, vector<1x512xf32>
    %260 = vector.broadcast %259 : vector<1x512xf32> to vector<2x512xf32>
    %261 = arith.mulf %258, %260 : vector<2x512xf32>
    %c25_178 = arith.constant 25 : index
    %c0_179 = arith.constant 0 : index
    %c0_180 = arith.constant 0 : index
    %262 = vector.load %arg5[%c25_178, %c0_179, %c0_180] : memref<27x4x2xbf16, #tpu.memory_space<vmem>>, vector<1x4x2xbf16>
    %263 = vector.shape_cast %262 : vector<1x4x2xbf16> to vector<4x2xbf16>
    %264 = arith.truncf %261 : vector<2x512xf32> to vector<2x512xbf16>
    %cst_181 = arith.constant dense<0.000000e+00> : vector<4x512xf32>
    %265 = tpu.matmul %263, %264, %cst_181 {dimension_numbers = #tpu.dot_dimension_numbers<[1], [0], [0], [1], [0, 0, 1, 1], [], []>} : vector<4x2xbf16>, vector<2x512xbf16>, vector<4x512xf32> -> vector<4x512xf32>
    %266 = arith.addf %257, %265 : vector<4x512xf32>
    %c0_182 = arith.constant 0 : index
    %c146 = arith.constant 146 : index
    %267 = vector.load %arg10[%c0_182, %c146] : memref<4x658xf32, #tpu.memory_space<vmem>>, vector<2x512xf32>
    %c26 = arith.constant 26 : index
    %c0_183 = arith.constant 0 : index
    %268 = vector.load %arg2[%c26, %c0_183] : memref<27x512xf32, #tpu.memory_space<vmem>>, vector<1x512xf32>
    %269 = vector.broadcast %268 : vector<1x512xf32> to vector<2x512xf32>
    %270 = arith.mulf %267, %269 : vector<2x512xf32>
    %c26_184 = arith.constant 26 : index
    %c0_185 = arith.constant 0 : index
    %c0_186 = arith.constant 0 : index
    %271 = vector.load %arg5[%c26_184, %c0_185, %c0_186] : memref<27x4x2xbf16, #tpu.memory_space<vmem>>, vector<1x4x2xbf16>
    %272 = vector.shape_cast %271 : vector<1x4x2xbf16> to vector<4x2xbf16>
    %273 = arith.truncf %270 : vector<2x512xf32> to vector<2x512xbf16>
    %cst_187 = arith.constant dense<0.000000e+00> : vector<4x512xf32>
    %274 = tpu.matmul %272, %273, %cst_187 {dimension_numbers = #tpu.dot_dimension_numbers<[1], [0], [0], [1], [0, 0, 1, 1], [], []>} : vector<4x2xbf16>, vector<2x512xbf16>, vector<4x512xf32> -> vector<4x512xf32>
    %275 = arith.addf %266, %274 : vector<4x512xf32>
    %cst_188 = arith.constant 0.000000e+00 : f32
    %276 = vector.broadcast %cst_188 : f32 to vector<4x512xf32>
    %277 = arith.maximumf %275, %276 : vector<4x512xf32>
    %c0_189 = arith.constant 0 : index
    %c0_190 = arith.constant 0 : index
    %278 = vector.load %arg6[%c0_189, %c0_190] : memref<4x1xf32, #tpu.memory_space<vmem>>, vector<4x1xf32>
    %c0_191 = arith.constant 0 : index
    %c0_192 = arith.constant 0 : index
    %279 = vector.load %arg7[%c0_191, %c0_192] : memref<4x1xf32, #tpu.memory_space<vmem>>, vector<4x1xf32>
    %cst_193 = arith.constant dense<0.000000e+00> : vector<4xf32>
    %280 = vector.multi_reduction <add>, %277, %cst_193 [1] : vector<4x512xf32> to vector<4xf32>
    %281 = vector.shape_cast %280 : vector<4xf32> to vector<4x1xf32>
    %282 = vector.extract_strided_slice %281 {offsets = [0, 0], sizes = [1, 1], strides = [1, 1]} : vector<4x1xf32> to vector<1x1xf32>
    %cst_194 = arith.constant dense<0.000000e+00> : vector<1xf32>
    %283 = vector.multi_reduction <add>, %282, %cst_194 [0] : vector<1x1xf32> to vector<1xf32>
    %284 = vector.shape_cast %283 : vector<1xf32> to vector<1x1xf32>
    %285 = vector.extract_strided_slice %281 {offsets = [1, 0], sizes = [1, 1], strides = [1, 1]} : vector<4x1xf32> to vector<1x1xf32>
    %cst_195 = arith.constant dense<0.000000e+00> : vector<1xf32>
    %286 = vector.multi_reduction <add>, %285, %cst_195 [0] : vector<1x1xf32> to vector<1xf32>
    %287 = vector.shape_cast %286 : vector<1xf32> to vector<1x1xf32>
    %288 = vector.extract_strided_slice %281 {offsets = [2, 0], sizes = [1, 1], strides = [1, 1]} : vector<4x1xf32> to vector<1x1xf32>
    %cst_196 = arith.constant dense<0.000000e+00> : vector<1xf32>
    %289 = vector.multi_reduction <add>, %288, %cst_196 [0] : vector<1x1xf32> to vector<1xf32>
    %290 = vector.shape_cast %289 : vector<1xf32> to vector<1x1xf32>
    %291 = vector.extract_strided_slice %281 {offsets = [3, 0], sizes = [1, 1], strides = [1, 1]} : vector<4x1xf32> to vector<1x1xf32>
    %cst_197 = arith.constant dense<0.000000e+00> : vector<1xf32>
    %292 = vector.multi_reduction <add>, %291, %cst_197 [0] : vector<1x1xf32> to vector<1xf32>
    %293 = vector.shape_cast %292 : vector<1xf32> to vector<1x1xf32>
    %294 = tpu.concatenate %284, %287, %290, %293 in 0 : vector<1x1xf32>, vector<1x1xf32>, vector<1x1xf32>, vector<1x1xf32> -> vector<4x1xf32>
    %cst_198 = arith.constant 5.120000e+02 : f32
    %295 = vector.broadcast %cst_198 : f32 to vector<4x1xf32>
    %296 = arith.divf %294, %295 : vector<4x1xf32>
    %297 = vector.broadcast %296 : vector<4x1xf32> to vector<4x512xf32>
    %298 = arith.subf %277, %297 : vector<4x512xf32>
    %299 = arith.mulf %298, %298 : vector<4x512xf32>
    %cst_199 = arith.constant dense<0.000000e+00> : vector<4xf32>
    %300 = vector.multi_reduction <add>, %299, %cst_199 [1] : vector<4x512xf32> to vector<4xf32>
    %301 = vector.shape_cast %300 : vector<4xf32> to vector<4x1xf32>
    %302 = vector.extract_strided_slice %301 {offsets = [0, 0], sizes = [1, 1], strides = [1, 1]} : vector<4x1xf32> to vector<1x1xf32>
    %cst_200 = arith.constant dense<0.000000e+00> : vector<1xf32>
    %303 = vector.multi_reduction <add>, %302, %cst_200 [0] : vector<1x1xf32> to vector<1xf32>
    %304 = vector.shape_cast %303 : vector<1xf32> to vector<1x1xf32>
    %305 = vector.extract_strided_slice %301 {offsets = [1, 0], sizes = [1, 1], strides = [1, 1]} : vector<4x1xf32> to vector<1x1xf32>
    %cst_201 = arith.constant dense<0.000000e+00> : vector<1xf32>
    %306 = vector.multi_reduction <add>, %305, %cst_201 [0] : vector<1x1xf32> to vector<1xf32>
    %307 = vector.shape_cast %306 : vector<1xf32> to vector<1x1xf32>
    %308 = vector.extract_strided_slice %301 {offsets = [2, 0], sizes = [1, 1], strides = [1, 1]} : vector<4x1xf32> to vector<1x1xf32>
    %cst_202 = arith.constant dense<0.000000e+00> : vector<1xf32>
    %309 = vector.multi_reduction <add>, %308, %cst_202 [0] : vector<1x1xf32> to vector<1xf32>
    %310 = vector.shape_cast %309 : vector<1xf32> to vector<1x1xf32>
    %311 = vector.extract_strided_slice %301 {offsets = [3, 0], sizes = [1, 1], strides = [1, 1]} : vector<4x1xf32> to vector<1x1xf32>
    %cst_203 = arith.constant dense<0.000000e+00> : vector<1xf32>
    %312 = vector.multi_reduction <add>, %311, %cst_203 [0] : vector<1x1xf32> to vector<1xf32>
    %313 = vector.shape_cast %312 : vector<1xf32> to vector<1x1xf32>
    %314 = tpu.concatenate %304, %307, %310, %313 in 0 : vector<1x1xf32>, vector<1x1xf32>, vector<1x1xf32>, vector<1x1xf32> -> vector<4x1xf32>
    %cst_204 = arith.constant 5.120000e+02 : f32
    %315 = vector.broadcast %cst_204 : f32 to vector<4x1xf32>
    %316 = arith.divf %314, %315 : vector<4x1xf32>
    %cst_205 = arith.constant 9.99999974E-6 : f32
    %317 = vector.broadcast %cst_205 : f32 to vector<4x1xf32>
    %318 = arith.addf %316, %317 : vector<4x1xf32>
    %319 = math.rsqrt %318 : vector<4x1xf32>
    %320 = arith.mulf %319, %278 : vector<4x1xf32>
    %321 = arith.mulf %296, %320 : vector<4x1xf32>
    %322 = arith.subf %279, %321 : vector<4x1xf32>
    %323 = vector.broadcast %320 : vector<4x1xf32> to vector<4x512xf32>
    %324 = arith.mulf %277, %323 : vector<4x512xf32>
    %325 = vector.broadcast %322 : vector<4x1xf32> to vector<4x512xf32>
    %326 = arith.addf %324, %325 : vector<4x512xf32>
    %c0_206 = arith.constant 0 : index
    %c73_207 = arith.constant 73 : index
    %327 = vector.load %arg10[%c0_206, %c73_207] : memref<4x658xf32, #tpu.memory_space<vmem>>, vector<4x512xf32>
    tpu.vector_store %arg10[%c0_206, %c73_207], %326 {strides = array<i32>} : memref<4x658xf32, #tpu.memory_space<vmem>>, vector<4x512xf32>,
    %c0_208 = arith.constant 0 : index
    %c0_209 = arith.constant 0 : index
    %328 = vector.load %arg10[%c0_208, %c0_209] : memref<4x658xf32, #tpu.memory_space<vmem>>, vector<4x512xf32>
    %c0_210 = arith.constant 0 : index
    %c0_211 = arith.constant 0 : index
    %329 = vector.load %arg2[%c0_210, %c0_211] : memref<27x512xf32, #tpu.memory_space<vmem>>, vector<1x512xf32>
    %330 = vector.broadcast %329 : vector<1x512xf32> to vector<4x512xf32>
    %331 = arith.mulf %328, %330 : vector<4x512xf32>
    %c0_212 = arith.constant 0 : index
    %c0_213 = arith.constant 0 : index
    %c0_214 = arith.constant 0 : index
    %332 = vector.load %arg8[%c0_212, %c0_213, %c0_214] : memref<27x8x4xbf16, #tpu.memory_space<vmem>>, vector<1x8x4xbf16>
    %333 = vector.shape_cast %332 : vector<1x8x4xbf16> to vector<8x4xbf16>
    %334 = arith.truncf %331 : vector<4x512xf32> to vector<4x512xbf16>
    %cst_215 = arith.constant dense<0.000000e+00> : vector<8x512xf32>
    %335 = tpu.matmul %333, %334, %cst_215 {dimension_numbers = #tpu.dot_dimension_numbers<[1], [0], [0], [1], [0, 0, 1, 1], [], []>} : vector<8x4xbf16>, vector<4x512xbf16>, vector<8x512xf32> -> vector<8x512xf32>
    %c0_216 = arith.constant 0 : index
    %c1_217 = arith.constant 1 : index
    %336 = vector.load %arg10[%c0_216, %c1_217] : memref<4x658xf32, #tpu.memory_space<vmem>>, vector<4x512xf32>
    %c1_218 = arith.constant 1 : index
    %c0_219 = arith.constant 0 : index
    %337 = vector.load %arg2[%c1_218, %c0_219] : memref<27x512xf32, #tpu.memory_space<vmem>>, vector<1x512xf32>
    %338 = vector.broadcast %337 : vector<1x512xf32> to vector<4x512xf32>
    %339 = arith.mulf %336, %338 : vector<4x512xf32>
    %c1_220 = arith.constant 1 : index
    %c0_221 = arith.constant 0 : index
    %c0_222 = arith.constant 0 : index
    %340 = vector.load %arg8[%c1_220, %c0_221, %c0_222] : memref<27x8x4xbf16, #tpu.memory_space<vmem>>, vector<1x8x4xbf16>
    %341 = vector.shape_cast %340 : vector<1x8x4xbf16> to vector<8x4xbf16>
    %342 = arith.truncf %339 : vector<4x512xf32> to vector<4x512xbf16>
    %cst_223 = arith.constant dense<0.000000e+00> : vector<8x512xf32>
    %343 = tpu.matmul %341, %342, %cst_223 {dimension_numbers = #tpu.dot_dimension_numbers<[1], [0], [0], [1], [0, 0, 1, 1], [], []>} : vector<8x4xbf16>, vector<4x512xbf16>, vector<8x512xf32> -> vector<8x512xf32>
    %344 = arith.addf %335, %343 : vector<8x512xf32>
    %c0_224 = arith.constant 0 : index
    %c2_225 = arith.constant 2 : index
    %345 = vector.load %arg10[%c0_224, %c2_225] : memref<4x658xf32, #tpu.memory_space<vmem>>, vector<4x512xf32>
    %c2_226 = arith.constant 2 : index
    %c0_227 = arith.constant 0 : index
    %346 = vector.load %arg2[%c2_226, %c0_227] : memref<27x512xf32, #tpu.memory_space<vmem>>, vector<1x512xf32>
    %347 = vector.broadcast %346 : vector<1x512xf32> to vector<4x512xf32>
    %348 = arith.mulf %345, %347 : vector<4x512xf32>
    %c2_228 = arith.constant 2 : index
    %c0_229 = arith.constant 0 : index
    %c0_230 = arith.constant 0 : index
    %349 = vector.load %arg8[%c2_228, %c0_229, %c0_230] : memref<27x8x4xbf16, #tpu.memory_space<vmem>>, vector<1x8x4xbf16>
    %350 = vector.shape_cast %349 : vector<1x8x4xbf16> to vector<8x4xbf16>
    %351 = arith.truncf %348 : vector<4x512xf32> to vector<4x512xbf16>
    %cst_231 = arith.constant dense<0.000000e+00> : vector<8x512xf32>
    %352 = tpu.matmul %350, %351, %cst_231 {dimension_numbers = #tpu.dot_dimension_numbers<[1], [0], [0], [1], [0, 0, 1, 1], [], []>} : vector<8x4xbf16>, vector<4x512xbf16>, vector<8x512xf32> -> vector<8x512xf32>
    %353 = arith.addf %344, %352 : vector<8x512xf32>
    %c0_232 = arith.constant 0 : index
    %c8_233 = arith.constant 8 : index
    %354 = vector.load %arg10[%c0_232, %c8_233] : memref<4x658xf32, #tpu.memory_space<vmem>>, vector<4x512xf32>
    %c3_234 = arith.constant 3 : index
    %c0_235 = arith.constant 0 : index
    %355 = vector.load %arg2[%c3_234, %c0_235] : memref<27x512xf32, #tpu.memory_space<vmem>>, vector<1x512xf32>
    %356 = vector.broadcast %355 : vector<1x512xf32> to vector<4x512xf32>
    %357 = arith.mulf %354, %356 : vector<4x512xf32>
    %c3_236 = arith.constant 3 : index
    %c0_237 = arith.constant 0 : index
    %c0_238 = arith.constant 0 : index
    %358 = vector.load %arg8[%c3_236, %c0_237, %c0_238] : memref<27x8x4xbf16, #tpu.memory_space<vmem>>, vector<1x8x4xbf16>
    %359 = vector.shape_cast %358 : vector<1x8x4xbf16> to vector<8x4xbf16>
    %360 = arith.truncf %357 : vector<4x512xf32> to vector<4x512xbf16>
    %cst_239 = arith.constant dense<0.000000e+00> : vector<8x512xf32>
    %361 = tpu.matmul %359, %360, %cst_239 {dimension_numbers = #tpu.dot_dimension_numbers<[1], [0], [0], [1], [0, 0, 1, 1], [], []>} : vector<8x4xbf16>, vector<4x512xbf16>, vector<8x512xf32> -> vector<8x512xf32>
    %362 = arith.addf %353, %361 : vector<8x512xf32>
    %c0_240 = arith.constant 0 : index
    %c9_241 = arith.constant 9 : index
    %363 = vector.load %arg10[%c0_240, %c9_241] : memref<4x658xf32, #tpu.memory_space<vmem>>, vector<4x512xf32>
    %c4_242 = arith.constant 4 : index
    %c0_243 = arith.constant 0 : index
    %364 = vector.load %arg2[%c4_242, %c0_243] : memref<27x512xf32, #tpu.memory_space<vmem>>, vector<1x512xf32>
    %365 = vector.broadcast %364 : vector<1x512xf32> to vector<4x512xf32>
    %366 = arith.mulf %363, %365 : vector<4x512xf32>
    %c4_244 = arith.constant 4 : index
    %c0_245 = arith.constant 0 : index
    %c0_246 = arith.constant 0 : index
    %367 = vector.load %arg8[%c4_244, %c0_245, %c0_246] : memref<27x8x4xbf16, #tpu.memory_space<vmem>>, vector<1x8x4xbf16>
    %368 = vector.shape_cast %367 : vector<1x8x4xbf16> to vector<8x4xbf16>
    %369 = arith.truncf %366 : vector<4x512xf32> to vector<4x512xbf16>
    %cst_247 = arith.constant dense<0.000000e+00> : vector<8x512xf32>
    %370 = tpu.matmul %368, %369, %cst_247 {dimension_numbers = #tpu.dot_dimension_numbers<[1], [0], [0], [1], [0, 0, 1, 1], [], []>} : vector<8x4xbf16>, vector<4x512xbf16>, vector<8x512xf32> -> vector<8x512xf32>
    %371 = arith.addf %362, %370 : vector<8x512xf32>
    %c0_248 = arith.constant 0 : index
    %c10_249 = arith.constant 10 : index
    %372 = vector.load %arg10[%c0_248, %c10_249] : memref<4x658xf32, #tpu.memory_space<vmem>>, vector<4x512xf32>
    %c5_250 = arith.constant 5 : index
    %c0_251 = arith.constant 0 : index
    %373 = vector.load %arg2[%c5_250, %c0_251] : memref<27x512xf32, #tpu.memory_space<vmem>>, vector<1x512xf32>
    %374 = vector.broadcast %373 : vector<1x512xf32> to vector<4x512xf32>
    %375 = arith.mulf %372, %374 : vector<4x512xf32>
    %c5_252 = arith.constant 5 : index
    %c0_253 = arith.constant 0 : index
    %c0_254 = arith.constant 0 : index
    %376 = vector.load %arg8[%c5_252, %c0_253, %c0_254] : memref<27x8x4xbf16, #tpu.memory_space<vmem>>, vector<1x8x4xbf16>
    %377 = vector.shape_cast %376 : vector<1x8x4xbf16> to vector<8x4xbf16>
    %378 = arith.truncf %375 : vector<4x512xf32> to vector<4x512xbf16>
    %cst_255 = arith.constant dense<0.000000e+00> : vector<8x512xf32>
    %379 = tpu.matmul %377, %378, %cst_255 {dimension_numbers = #tpu.dot_dimension_numbers<[1], [0], [0], [1], [0, 0, 1, 1], [], []>} : vector<8x4xbf16>, vector<4x512xbf16>, vector<8x512xf32> -> vector<8x512xf32>
    %380 = arith.addf %371, %379 : vector<8x512xf32>
    %c0_256 = arith.constant 0 : index
    %c16_257 = arith.constant 16 : index
    %381 = vector.load %arg10[%c0_256, %c16_257] : memref<4x658xf32, #tpu.memory_space<vmem>>, vector<4x512xf32>
    %c6_258 = arith.constant 6 : index
    %c0_259 = arith.constant 0 : index
    %382 = vector.load %arg2[%c6_258, %c0_259] : memref<27x512xf32, #tpu.memory_space<vmem>>, vector<1x512xf32>
    %383 = vector.broadcast %382 : vector<1x512xf32> to vector<4x512xf32>
    %384 = arith.mulf %381, %383 : vector<4x512xf32>
    %c6_260 = arith.constant 6 : index
    %c0_261 = arith.constant 0 : index
    %c0_262 = arith.constant 0 : index
    %385 = vector.load %arg8[%c6_260, %c0_261, %c0_262] : memref<27x8x4xbf16, #tpu.memory_space<vmem>>, vector<1x8x4xbf16>
    %386 = vector.shape_cast %385 : vector<1x8x4xbf16> to vector<8x4xbf16>
    %387 = arith.truncf %384 : vector<4x512xf32> to vector<4x512xbf16>
    %cst_263 = arith.constant dense<0.000000e+00> : vector<8x512xf32>
    %388 = tpu.matmul %386, %387, %cst_263 {dimension_numbers = #tpu.dot_dimension_numbers<[1], [0], [0], [1], [0, 0, 1, 1], [], []>} : vector<8x4xbf16>, vector<4x512xbf16>, vector<8x512xf32> -> vector<8x512xf32>
    %389 = arith.addf %380, %388 : vector<8x512xf32>
    %c0_264 = arith.constant 0 : index
    %c17_265 = arith.constant 17 : index
    %390 = vector.load %arg10[%c0_264, %c17_265] : memref<4x658xf32, #tpu.memory_space<vmem>>, vector<4x512xf32>
    %c7_266 = arith.constant 7 : index
    %c0_267 = arith.constant 0 : index
    %391 = vector.load %arg2[%c7_266, %c0_267] : memref<27x512xf32, #tpu.memory_space<vmem>>, vector<1x512xf32>
    %392 = vector.broadcast %391 : vector<1x512xf32> to vector<4x512xf32>
    %393 = arith.mulf %390, %392 : vector<4x512xf32>
    %c7_268 = arith.constant 7 : index
    %c0_269 = arith.constant 0 : index
    %c0_270 = arith.constant 0 : index
    %394 = vector.load %arg8[%c7_268, %c0_269, %c0_270] : memref<27x8x4xbf16, #tpu.memory_space<vmem>>, vector<1x8x4xbf16>
    %395 = vector.shape_cast %394 : vector<1x8x4xbf16> to vector<8x4xbf16>
    %396 = arith.truncf %393 : vector<4x512xf32> to vector<4x512xbf16>
    %cst_271 = arith.constant dense<0.000000e+00> : vector<8x512xf32>
    %397 = tpu.matmul %395, %396, %cst_271 {dimension_numbers = #tpu.dot_dimension_numbers<[1], [0], [0], [1], [0, 0, 1, 1], [], []>} : vector<8x4xbf16>, vector<4x512xbf16>, vector<8x512xf32> -> vector<8x512xf32>
    %398 = arith.addf %389, %397 : vector<8x512xf32>
    %c0_272 = arith.constant 0 : index
    %c18_273 = arith.constant 18 : index
    %399 = vector.load %arg10[%c0_272, %c18_273] : memref<4x658xf32, #tpu.memory_space<vmem>>, vector<4x512xf32>
    %c8_274 = arith.constant 8 : index
    %c0_275 = arith.constant 0 : index
    %400 = vector.load %arg2[%c8_274, %c0_275] : memref<27x512xf32, #tpu.memory_space<vmem>>, vector<1x512xf32>
    %401 = vector.broadcast %400 : vector<1x512xf32> to vector<4x512xf32>
    %402 = arith.mulf %399, %401 : vector<4x512xf32>
    %c8_276 = arith.constant 8 : index
    %c0_277 = arith.constant 0 : index
    %c0_278 = arith.constant 0 : index
    %403 = vector.load %arg8[%c8_276, %c0_277, %c0_278] : memref<27x8x4xbf16, #tpu.memory_space<vmem>>, vector<1x8x4xbf16>
    %404 = vector.shape_cast %403 : vector<1x8x4xbf16> to vector<8x4xbf16>
    %405 = arith.truncf %402 : vector<4x512xf32> to vector<4x512xbf16>
    %cst_279 = arith.constant dense<0.000000e+00> : vector<8x512xf32>
    %406 = tpu.matmul %404, %405, %cst_279 {dimension_numbers = #tpu.dot_dimension_numbers<[1], [0], [0], [1], [0, 0, 1, 1], [], []>} : vector<8x4xbf16>, vector<4x512xbf16>, vector<8x512xf32> -> vector<8x512xf32>
    %407 = arith.addf %398, %406 : vector<8x512xf32>
    %c0_280 = arith.constant 0 : index
    %c64_281 = arith.constant 64 : index
    %408 = vector.load %arg10[%c0_280, %c64_281] : memref<4x658xf32, #tpu.memory_space<vmem>>, vector<4x512xf32>
    %c9_282 = arith.constant 9 : index
    %c0_283 = arith.constant 0 : index
    %409 = vector.load %arg2[%c9_282, %c0_283] : memref<27x512xf32, #tpu.memory_space<vmem>>, vector<1x512xf32>
    %410 = vector.broadcast %409 : vector<1x512xf32> to vector<4x512xf32>
    %411 = arith.mulf %408, %410 : vector<4x512xf32>
    %c9_284 = arith.constant 9 : index
    %c0_285 = arith.constant 0 : index
    %c0_286 = arith.constant 0 : index
    %412 = vector.load %arg8[%c9_284, %c0_285, %c0_286] : memref<27x8x4xbf16, #tpu.memory_space<vmem>>, vector<1x8x4xbf16>
    %413 = vector.shape_cast %412 : vector<1x8x4xbf16> to vector<8x4xbf16>
    %414 = arith.truncf %411 : vector<4x512xf32> to vector<4x512xbf16>
    %cst_287 = arith.constant dense<0.000000e+00> : vector<8x512xf32>
    %415 = tpu.matmul %413, %414, %cst_287 {dimension_numbers = #tpu.dot_dimension_numbers<[1], [0], [0], [1], [0, 0, 1, 1], [], []>} : vector<8x4xbf16>, vector<4x512xbf16>, vector<8x512xf32> -> vector<8x512xf32>
    %416 = arith.addf %407, %415 : vector<8x512xf32>
    %c0_288 = arith.constant 0 : index
    %c65_289 = arith.constant 65 : index
    %417 = vector.load %arg10[%c0_288, %c65_289] : memref<4x658xf32, #tpu.memory_space<vmem>>, vector<4x512xf32>
    %c10_290 = arith.constant 10 : index
    %c0_291 = arith.constant 0 : index
    %418 = vector.load %arg2[%c10_290, %c0_291] : memref<27x512xf32, #tpu.memory_space<vmem>>, vector<1x512xf32>
    %419 = vector.broadcast %418 : vector<1x512xf32> to vector<4x512xf32>
    %420 = arith.mulf %417, %419 : vector<4x512xf32>
    %c10_292 = arith.constant 10 : index
    %c0_293 = arith.constant 0 : index
    %c0_294 = arith.constant 0 : index
    %421 = vector.load %arg8[%c10_292, %c0_293, %c0_294] : memref<27x8x4xbf16, #tpu.memory_space<vmem>>, vector<1x8x4xbf16>
    %422 = vector.shape_cast %421 : vector<1x8x4xbf16> to vector<8x4xbf16>
    %423 = arith.truncf %420 : vector<4x512xf32> to vector<4x512xbf16>
    %cst_295 = arith.constant dense<0.000000e+00> : vector<8x512xf32>
    %424 = tpu.matmul %422, %423, %cst_295 {dimension_numbers = #tpu.dot_dimension_numbers<[1], [0], [0], [1], [0, 0, 1, 1], [], []>} : vector<8x4xbf16>, vector<4x512xbf16>, vector<8x512xf32> -> vector<8x512xf32>
    %425 = arith.addf %416, %424 : vector<8x512xf32>
    %c0_296 = arith.constant 0 : index
    %c66_297 = arith.constant 66 : index
    %426 = vector.load %arg10[%c0_296, %c66_297] : memref<4x658xf32, #tpu.memory_space<vmem>>, vector<4x512xf32>
    %c11_298 = arith.constant 11 : index
    %c0_299 = arith.constant 0 : index
    %427 = vector.load %arg2[%c11_298, %c0_299] : memref<27x512xf32, #tpu.memory_space<vmem>>, vector<1x512xf32>
    %428 = vector.broadcast %427 : vector<1x512xf32> to vector<4x512xf32>
    %429 = arith.mulf %426, %428 : vector<4x512xf32>
    %c11_300 = arith.constant 11 : index
    %c0_301 = arith.constant 0 : index
    %c0_302 = arith.constant 0 : index
    %430 = vector.load %arg8[%c11_300, %c0_301, %c0_302] : memref<27x8x4xbf16, #tpu.memory_space<vmem>>, vector<1x8x4xbf16>
    %431 = vector.shape_cast %430 : vector<1x8x4xbf16> to vector<8x4xbf16>
    %432 = arith.truncf %429 : vector<4x512xf32> to vector<4x512xbf16>
    %cst_303 = arith.constant dense<0.000000e+00> : vector<8x512xf32>
    %433 = tpu.matmul %431, %432, %cst_303 {dimension_numbers = #tpu.dot_dimension_numbers<[1], [0], [0], [1], [0, 0, 1, 1], [], []>} : vector<8x4xbf16>, vector<4x512xbf16>, vector<8x512xf32> -> vector<8x512xf32>
    %434 = arith.addf %425, %433 : vector<8x512xf32>
    %c0_304 = arith.constant 0 : index
    %c72_305 = arith.constant 72 : index
    %435 = vector.load %arg10[%c0_304, %c72_305] : memref<4x658xf32, #tpu.memory_space<vmem>>, vector<4x512xf32>
    %c12_306 = arith.constant 12 : index
    %c0_307 = arith.constant 0 : index
    %436 = vector.load %arg2[%c12_306, %c0_307] : memref<27x512xf32, #tpu.memory_space<vmem>>, vector<1x512xf32>
    %437 = vector.broadcast %436 : vector<1x512xf32> to vector<4x512xf32>
    %438 = arith.mulf %435, %437 : vector<4x512xf32>
    %c12_308 = arith.constant 12 : index
    %c0_309 = arith.constant 0 : index
    %c0_310 = arith.constant 0 : index
    %439 = vector.load %arg8[%c12_308, %c0_309, %c0_310] : memref<27x8x4xbf16, #tpu.memory_space<vmem>>, vector<1x8x4xbf16>
    %440 = vector.shape_cast %439 : vector<1x8x4xbf16> to vector<8x4xbf16>
    %441 = arith.truncf %438 : vector<4x512xf32> to vector<4x512xbf16>
    %cst_311 = arith.constant dense<0.000000e+00> : vector<8x512xf32>
    %442 = tpu.matmul %440, %441, %cst_311 {dimension_numbers = #tpu.dot_dimension_numbers<[1], [0], [0], [1], [0, 0, 1, 1], [], []>} : vector<8x4xbf16>, vector<4x512xbf16>, vector<8x512xf32> -> vector<8x512xf32>
    %443 = arith.addf %434, %442 : vector<8x512xf32>
    %c0_312 = arith.constant 0 : index
    %c73_313 = arith.constant 73 : index
    %444 = vector.load %arg10[%c0_312, %c73_313] : memref<4x658xf32, #tpu.memory_space<vmem>>, vector<4x512xf32>
    %c13_314 = arith.constant 13 : index
    %c0_315 = arith.constant 0 : index
    %c0_316 = arith.constant 0 : index
    %445 = vector.load %arg8[%c13_314, %c0_315, %c0_316] : memref<27x8x4xbf16, #tpu.memory_space<vmem>>, vector<1x8x4xbf16>
    %446 = vector.shape_cast %445 : vector<1x8x4xbf16> to vector<8x4xbf16>
    %447 = arith.truncf %444 : vector<4x512xf32> to vector<4x512xbf16>
    %cst_317 = arith.constant dense<0.000000e+00> : vector<8x512xf32>
    %448 = tpu.matmul %446, %447, %cst_317 {dimension_numbers = #tpu.dot_dimension_numbers<[1], [0], [0], [1], [0, 0, 1, 1], [], []>} : vector<8x4xbf16>, vector<4x512xbf16>, vector<8x512xf32> -> vector<8x512xf32>
    %449 = arith.addf %443, %448 : vector<8x512xf32>
    %c0_318 = arith.constant 0 : index
    %c74_319 = arith.constant 74 : index
    %450 = vector.load %arg10[%c0_318, %c74_319] : memref<4x658xf32, #tpu.memory_space<vmem>>, vector<4x512xf32>
    %c14_320 = arith.constant 14 : index
    %c0_321 = arith.constant 0 : index
    %451 = vector.load %arg2[%c14_320, %c0_321] : memref<27x512xf32, #tpu.memory_space<vmem>>, vector<1x512xf32>
    %452 = vector.broadcast %451 : vector<1x512xf32> to vector<4x512xf32>
    %453 = arith.mulf %450, %452 : vector<4x512xf32>
    %c14_322 = arith.constant 14 : index
    %c0_323 = arith.constant 0 : index
    %c0_324 = arith.constant 0 : index
    %454 = vector.load %arg8[%c14_322, %c0_323, %c0_324] : memref<27x8x4xbf16, #tpu.memory_space<vmem>>, vector<1x8x4xbf16>
    %455 = vector.shape_cast %454 : vector<1x8x4xbf16> to vector<8x4xbf16>
    %456 = arith.truncf %453 : vector<4x512xf32> to vector<4x512xbf16>
    %cst_325 = arith.constant dense<0.000000e+00> : vector<8x512xf32>
    %457 = tpu.matmul %455, %456, %cst_325 {dimension_numbers = #tpu.dot_dimension_numbers<[1], [0], [0], [1], [0, 0, 1, 1], [], []>} : vector<8x4xbf16>, vector<4x512xbf16>, vector<8x512xf32> -> vector<8x512xf32>
    %458 = arith.addf %449, %457 : vector<8x512xf32>
    %c0_326 = arith.constant 0 : index
    %c80_327 = arith.constant 80 : index
    %459 = vector.load %arg10[%c0_326, %c80_327] : memref<4x658xf32, #tpu.memory_space<vmem>>, vector<4x512xf32>
    %c15_328 = arith.constant 15 : index
    %c0_329 = arith.constant 0 : index
    %460 = vector.load %arg2[%c15_328, %c0_329] : memref<27x512xf32, #tpu.memory_space<vmem>>, vector<1x512xf32>
    %461 = vector.broadcast %460 : vector<1x512xf32> to vector<4x512xf32>
    %462 = arith.mulf %459, %461 : vector<4x512xf32>
    %c15_330 = arith.constant 15 : index
    %c0_331 = arith.constant 0 : index
    %c0_332 = arith.constant 0 : index
    %463 = vector.load %arg8[%c15_330, %c0_331, %c0_332] : memref<27x8x4xbf16, #tpu.memory_space<vmem>>, vector<1x8x4xbf16>
    %464 = vector.shape_cast %463 : vector<1x8x4xbf16> to vector<8x4xbf16>
    %465 = arith.truncf %462 : vector<4x512xf32> to vector<4x512xbf16>
    %cst_333 = arith.constant dense<0.000000e+00> : vector<8x512xf32>
    %466 = tpu.matmul %464, %465, %cst_333 {dimension_numbers = #tpu.dot_dimension_numbers<[1], [0], [0], [1], [0, 0, 1, 1], [], []>} : vector<8x4xbf16>, vector<4x512xbf16>, vector<8x512xf32> -> vector<8x512xf32>
    %467 = arith.addf %458, %466 : vector<8x512xf32>
    %c0_334 = arith.constant 0 : index
    %c81_335 = arith.constant 81 : index
    %468 = vector.load %arg10[%c0_334, %c81_335] : memref<4x658xf32, #tpu.memory_space<vmem>>, vector<4x512xf32>
    %c16_336 = arith.constant 16 : index
    %c0_337 = arith.constant 0 : index
    %469 = vector.load %arg2[%c16_336, %c0_337] : memref<27x512xf32, #tpu.memory_space<vmem>>, vector<1x512xf32>
    %470 = vector.broadcast %469 : vector<1x512xf32> to vector<4x512xf32>
    %471 = arith.mulf %468, %470 : vector<4x512xf32>
    %c16_338 = arith.constant 16 : index
    %c0_339 = arith.constant 0 : index
    %c0_340 = arith.constant 0 : index
    %472 = vector.load %arg8[%c16_338, %c0_339, %c0_340] : memref<27x8x4xbf16, #tpu.memory_space<vmem>>, vector<1x8x4xbf16>
    %473 = vector.shape_cast %472 : vector<1x8x4xbf16> to vector<8x4xbf16>
    %474 = arith.truncf %471 : vector<4x512xf32> to vector<4x512xbf16>
    %cst_341 = arith.constant dense<0.000000e+00> : vector<8x512xf32>
    %475 = tpu.matmul %473, %474, %cst_341 {dimension_numbers = #tpu.dot_dimension_numbers<[1], [0], [0], [1], [0, 0, 1, 1], [], []>} : vector<8x4xbf16>, vector<4x512xbf16>, vector<8x512xf32> -> vector<8x512xf32>
    %476 = arith.addf %467, %475 : vector<8x512xf32>
    %c0_342 = arith.constant 0 : index
    %c82_343 = arith.constant 82 : index
    %477 = vector.load %arg10[%c0_342, %c82_343] : memref<4x658xf32, #tpu.memory_space<vmem>>, vector<4x512xf32>
    %c17_344 = arith.constant 17 : index
    %c0_345 = arith.constant 0 : index
    %478 = vector.load %arg2[%c17_344, %c0_345] : memref<27x512xf32, #tpu.memory_space<vmem>>, vector<1x512xf32>
    %479 = vector.broadcast %478 : vector<1x512xf32> to vector<4x512xf32>
    %480 = arith.mulf %477, %479 : vector<4x512xf32>
    %c17_346 = arith.constant 17 : index
    %c0_347 = arith.constant 0 : index
    %c0_348 = arith.constant 0 : index
    %481 = vector.load %arg8[%c17_346, %c0_347, %c0_348] : memref<27x8x4xbf16, #tpu.memory_space<vmem>>, vector<1x8x4xbf16>
    %482 = vector.shape_cast %481 : vector<1x8x4xbf16> to vector<8x4xbf16>
    %483 = arith.truncf %480 : vector<4x512xf32> to vector<4x512xbf16>
    %cst_349 = arith.constant dense<0.000000e+00> : vector<8x512xf32>
    %484 = tpu.matmul %482, %483, %cst_349 {dimension_numbers = #tpu.dot_dimension_numbers<[1], [0], [0], [1], [0, 0, 1, 1], [], []>} : vector<8x4xbf16>, vector<4x512xbf16>, vector<8x512xf32> -> vector<8x512xf32>
    %485 = arith.addf %476, %484 : vector<8x512xf32>
    %c0_350 = arith.constant 0 : index
    %c128_351 = arith.constant 128 : index
    %486 = vector.load %arg10[%c0_350, %c128_351] : memref<4x658xf32, #tpu.memory_space<vmem>>, vector<4x512xf32>
    %c18_352 = arith.constant 18 : index
    %c0_353 = arith.constant 0 : index
    %487 = vector.load %arg2[%c18_352, %c0_353] : memref<27x512xf32, #tpu.memory_space<vmem>>, vector<1x512xf32>
    %488 = vector.broadcast %487 : vector<1x512xf32> to vector<4x512xf32>
    %489 = arith.mulf %486, %488 : vector<4x512xf32>
    %c18_354 = arith.constant 18 : index
    %c0_355 = arith.constant 0 : index
    %c0_356 = arith.constant 0 : index
    %490 = vector.load %arg8[%c18_354, %c0_355, %c0_356] : memref<27x8x4xbf16, #tpu.memory_space<vmem>>, vector<1x8x4xbf16>
    %491 = vector.shape_cast %490 : vector<1x8x4xbf16> to vector<8x4xbf16>
    %492 = arith.truncf %489 : vector<4x512xf32> to vector<4x512xbf16>
    %cst_357 = arith.constant dense<0.000000e+00> : vector<8x512xf32>
    %493 = tpu.matmul %491, %492, %cst_357 {dimension_numbers = #tpu.dot_dimension_numbers<[1], [0], [0], [1], [0, 0, 1, 1], [], []>} : vector<8x4xbf16>, vector<4x512xbf16>, vector<8x512xf32> -> vector<8x512xf32>
    %494 = arith.addf %485, %493 : vector<8x512xf32>
    %c0_358 = arith.constant 0 : index
    %c129_359 = arith.constant 129 : index
    %495 = vector.load %arg10[%c0_358, %c129_359] : memref<4x658xf32, #tpu.memory_space<vmem>>, vector<4x512xf32>
    %c19_360 = arith.constant 19 : index
    %c0_361 = arith.constant 0 : index
    %496 = vector.load %arg2[%c19_360, %c0_361] : memref<27x512xf32, #tpu.memory_space<vmem>>, vector<1x512xf32>
    %497 = vector.broadcast %496 : vector<1x512xf32> to vector<4x512xf32>
    %498 = arith.mulf %495, %497 : vector<4x512xf32>
    %c19_362 = arith.constant 19 : index
    %c0_363 = arith.constant 0 : index
    %c0_364 = arith.constant 0 : index
    %499 = vector.load %arg8[%c19_362, %c0_363, %c0_364] : memref<27x8x4xbf16, #tpu.memory_space<vmem>>, vector<1x8x4xbf16>
    %500 = vector.shape_cast %499 : vector<1x8x4xbf16> to vector<8x4xbf16>
    %501 = arith.truncf %498 : vector<4x512xf32> to vector<4x512xbf16>
    %cst_365 = arith.constant dense<0.000000e+00> : vector<8x512xf32>
    %502 = tpu.matmul %500, %501, %cst_365 {dimension_numbers = #tpu.dot_dimension_numbers<[1], [0], [0], [1], [0, 0, 1, 1], [], []>} : vector<8x4xbf16>, vector<4x512xbf16>, vector<8x512xf32> -> vector<8x512xf32>
    %503 = arith.addf %494, %502 : vector<8x512xf32>
    %c0_366 = arith.constant 0 : index
    %c130_367 = arith.constant 130 : index
    %504 = vector.load %arg10[%c0_366, %c130_367] : memref<4x658xf32, #tpu.memory_space<vmem>>, vector<4x512xf32>
    %c20_368 = arith.constant 20 : index
    %c0_369 = arith.constant 0 : index
    %505 = vector.load %arg2[%c20_368, %c0_369] : memref<27x512xf32, #tpu.memory_space<vmem>>, vector<1x512xf32>
    %506 = vector.broadcast %505 : vector<1x512xf32> to vector<4x512xf32>
    %507 = arith.mulf %504, %506 : vector<4x512xf32>
    %c20_370 = arith.constant 20 : index
    %c0_371 = arith.constant 0 : index
    %c0_372 = arith.constant 0 : index
    %508 = vector.load %arg8[%c20_370, %c0_371, %c0_372] : memref<27x8x4xbf16, #tpu.memory_space<vmem>>, vector<1x8x4xbf16>
    %509 = vector.shape_cast %508 : vector<1x8x4xbf16> to vector<8x4xbf16>
    %510 = arith.truncf %507 : vector<4x512xf32> to vector<4x512xbf16>
    %cst_373 = arith.constant dense<0.000000e+00> : vector<8x512xf32>
    %511 = tpu.matmul %509, %510, %cst_373 {dimension_numbers = #tpu.dot_dimension_numbers<[1], [0], [0], [1], [0, 0, 1, 1], [], []>} : vector<8x4xbf16>, vector<4x512xbf16>, vector<8x512xf32> -> vector<8x512xf32>
    %512 = arith.addf %503, %511 : vector<8x512xf32>
    %c0_374 = arith.constant 0 : index
    %c136_375 = arith.constant 136 : index
    %513 = vector.load %arg10[%c0_374, %c136_375] : memref<4x658xf32, #tpu.memory_space<vmem>>, vector<4x512xf32>
    %c21_376 = arith.constant 21 : index
    %c0_377 = arith.constant 0 : index
    %514 = vector.load %arg2[%c21_376, %c0_377] : memref<27x512xf32, #tpu.memory_space<vmem>>, vector<1x512xf32>
    %515 = vector.broadcast %514 : vector<1x512xf32> to vector<4x512xf32>
    %516 = arith.mulf %513, %515 : vector<4x512xf32>
    %c21_378 = arith.constant 21 : index
    %c0_379 = arith.constant 0 : index
    %c0_380 = arith.constant 0 : index
    %517 = vector.load %arg8[%c21_378, %c0_379, %c0_380] : memref<27x8x4xbf16, #tpu.memory_space<vmem>>, vector<1x8x4xbf16>
    %518 = vector.shape_cast %517 : vector<1x8x4xbf16> to vector<8x4xbf16>
    %519 = arith.truncf %516 : vector<4x512xf32> to vector<4x512xbf16>
    %cst_381 = arith.constant dense<0.000000e+00> : vector<8x512xf32>
    %520 = tpu.matmul %518, %519, %cst_381 {dimension_numbers = #tpu.dot_dimension_numbers<[1], [0], [0], [1], [0, 0, 1, 1], [], []>} : vector<8x4xbf16>, vector<4x512xbf16>, vector<8x512xf32> -> vector<8x512xf32>
    %521 = arith.addf %512, %520 : vector<8x512xf32>
    %c0_382 = arith.constant 0 : index
    %c137_383 = arith.constant 137 : index
    %522 = vector.load %arg10[%c0_382, %c137_383] : memref<4x658xf32, #tpu.memory_space<vmem>>, vector<4x512xf32>
    %c22_384 = arith.constant 22 : index
    %c0_385 = arith.constant 0 : index
    %523 = vector.load %arg2[%c22_384, %c0_385] : memref<27x512xf32, #tpu.memory_space<vmem>>, vector<1x512xf32>
    %524 = vector.broadcast %523 : vector<1x512xf32> to vector<4x512xf32>
    %525 = arith.mulf %522, %524 : vector<4x512xf32>
    %c22_386 = arith.constant 22 : index
    %c0_387 = arith.constant 0 : index
    %c0_388 = arith.constant 0 : index
    %526 = vector.load %arg8[%c22_386, %c0_387, %c0_388] : memref<27x8x4xbf16, #tpu.memory_space<vmem>>, vector<1x8x4xbf16>
    %527 = vector.shape_cast %526 : vector<1x8x4xbf16> to vector<8x4xbf16>
    %528 = arith.truncf %525 : vector<4x512xf32> to vector<4x512xbf16>
    %cst_389 = arith.constant dense<0.000000e+00> : vector<8x512xf32>
    %529 = tpu.matmul %527, %528, %cst_389 {dimension_numbers = #tpu.dot_dimension_numbers<[1], [0], [0], [1], [0, 0, 1, 1], [], []>} : vector<8x4xbf16>, vector<4x512xbf16>, vector<8x512xf32> -> vector<8x512xf32>
    %530 = arith.addf %521, %529 : vector<8x512xf32>
    %c0_390 = arith.constant 0 : index
    %c138_391 = arith.constant 138 : index
    %531 = vector.load %arg10[%c0_390, %c138_391] : memref<4x658xf32, #tpu.memory_space<vmem>>, vector<4x512xf32>
    %c23_392 = arith.constant 23 : index
    %c0_393 = arith.constant 0 : index
    %532 = vector.load %arg2[%c23_392, %c0_393] : memref<27x512xf32, #tpu.memory_space<vmem>>, vector<1x512xf32>
    %533 = vector.broadcast %532 : vector<1x512xf32> to vector<4x512xf32>
    %534 = arith.mulf %531, %533 : vector<4x512xf32>
    %c23_394 = arith.constant 23 : index
    %c0_395 = arith.constant 0 : index
    %c0_396 = arith.constant 0 : index
    %535 = vector.load %arg8[%c23_394, %c0_395, %c0_396] : memref<27x8x4xbf16, #tpu.memory_space<vmem>>, vector<1x8x4xbf16>
    %536 = vector.shape_cast %535 : vector<1x8x4xbf16> to vector<8x4xbf16>
    %537 = arith.truncf %534 : vector<4x512xf32> to vector<4x512xbf16>
    %cst_397 = arith.constant dense<0.000000e+00> : vector<8x512xf32>
    %538 = tpu.matmul %536, %537, %cst_397 {dimension_numbers = #tpu.dot_dimension_numbers<[1], [0], [0], [1], [0, 0, 1, 1], [], []>} : vector<8x4xbf16>, vector<4x512xbf16>, vector<8x512xf32> -> vector<8x512xf32>
    %539 = arith.addf %530, %538 : vector<8x512xf32>
    %c0_398 = arith.constant 0 : index
    %c144_399 = arith.constant 144 : index
    %540 = vector.load %arg10[%c0_398, %c144_399] : memref<4x658xf32, #tpu.memory_space<vmem>>, vector<4x512xf32>
    %c24_400 = arith.constant 24 : index
    %c0_401 = arith.constant 0 : index
    %541 = vector.load %arg2[%c24_400, %c0_401] : memref<27x512xf32, #tpu.memory_space<vmem>>, vector<1x512xf32>
    %542 = vector.broadcast %541 : vector<1x512xf32> to vector<4x512xf32>
    %543 = arith.mulf %540, %542 : vector<4x512xf32>
    %c24_402 = arith.constant 24 : index
    %c0_403 = arith.constant 0 : index
    %c0_404 = arith.constant 0 : index
    %544 = vector.load %arg8[%c24_402, %c0_403, %c0_404] : memref<27x8x4xbf16, #tpu.memory_space<vmem>>, vector<1x8x4xbf16>
    %545 = vector.shape_cast %544 : vector<1x8x4xbf16> to vector<8x4xbf16>
    %546 = arith.truncf %543 : vector<4x512xf32> to vector<4x512xbf16>
    %cst_405 = arith.constant dense<0.000000e+00> : vector<8x512xf32>
    %547 = tpu.matmul %545, %546, %cst_405 {dimension_numbers = #tpu.dot_dimension_numbers<[1], [0], [0], [1], [0, 0, 1, 1], [], []>} : vector<8x4xbf16>, vector<4x512xbf16>, vector<8x512xf32> -> vector<8x512xf32>
    %548 = arith.addf %539, %547 : vector<8x512xf32>
    %c0_406 = arith.constant 0 : index
    %c145_407 = arith.constant 145 : index
    %549 = vector.load %arg10[%c0_406, %c145_407] : memref<4x658xf32, #tpu.memory_space<vmem>>, vector<4x512xf32>
    %c25_408 = arith.constant 25 : index
    %c0_409 = arith.constant 0 : index
    %550 = vector.load %arg2[%c25_408, %c0_409] : memref<27x512xf32, #tpu.memory_space<vmem>>, vector<1x512xf32>
    %551 = vector.broadcast %550 : vector<1x512xf32> to vector<4x512xf32>
    %552 = arith.mulf %549, %551 : vector<4x512xf32>
    %c25_410 = arith.constant 25 : index
    %c0_411 = arith.constant 0 : index
    %c0_412 = arith.constant 0 : index
    %553 = vector.load %arg8[%c25_410, %c0_411, %c0_412] : memref<27x8x4xbf16, #tpu.memory_space<vmem>>, vector<1x8x4xbf16>
    %554 = vector.shape_cast %553 : vector<1x8x4xbf16> to vector<8x4xbf16>
    %555 = arith.truncf %552 : vector<4x512xf32> to vector<4x512xbf16>
    %cst_413 = arith.constant dense<0.000000e+00> : vector<8x512xf32>
    %556 = tpu.matmul %554, %555, %cst_413 {dimension_numbers = #tpu.dot_dimension_numbers<[1], [0], [0], [1], [0, 0, 1, 1], [], []>} : vector<8x4xbf16>, vector<4x512xbf16>, vector<8x512xf32> -> vector<8x512xf32>
    %557 = arith.addf %548, %556 : vector<8x512xf32>
    %c0_414 = arith.constant 0 : index
    %c146_415 = arith.constant 146 : index
    %558 = vector.load %arg10[%c0_414, %c146_415] : memref<4x658xf32, #tpu.memory_space<vmem>>, vector<4x512xf32>
    %c26_416 = arith.constant 26 : index
    %c0_417 = arith.constant 0 : index
    %559 = vector.load %arg2[%c26_416, %c0_417] : memref<27x512xf32, #tpu.memory_space<vmem>>, vector<1x512xf32>
    %560 = vector.broadcast %559 : vector<1x512xf32> to vector<4x512xf32>
    %561 = arith.mulf %558, %560 : vector<4x512xf32>
    %c26_418 = arith.constant 26 : index
    %c0_419 = arith.constant 0 : index
    %c0_420 = arith.constant 0 : index
    %562 = vector.load %arg8[%c26_418, %c0_419, %c0_420] : memref<27x8x4xbf16, #tpu.memory_space<vmem>>, vector<1x8x4xbf16>
    %563 = vector.shape_cast %562 : vector<1x8x4xbf16> to vector<8x4xbf16>
    %564 = arith.truncf %561 : vector<4x512xf32> to vector<4x512xbf16>
    %cst_421 = arith.constant dense<0.000000e+00> : vector<8x512xf32>
    %565 = tpu.matmul %563, %564, %cst_421 {dimension_numbers = #tpu.dot_dimension_numbers<[1], [0], [0], [1], [0, 0, 1, 1], [], []>} : vector<8x4xbf16>, vector<4x512xbf16>, vector<8x512xf32> -> vector<8x512xf32>
    %566 = arith.addf %557, %565 : vector<8x512xf32>
    %cst_422 = arith.constant 0.000000e+00 : f32
    %567 = vector.broadcast %cst_422 : f32 to vector<8x512xf32>
    %568 = arith.maximumf %566, %567 : vector<8x512xf32>
    %569 = arith.truncf %568 : vector<8x512xf32> to vector<8x512xbf16>
    %c0_423 = arith.constant 0 : index
    %c0_424 = arith.constant 0 : index
    %c0_425 = arith.constant 0 : index
    %570 = vector.load %arg9[%c0_423, %c0_424, %c0_425] : memref<1x8x512xbf16, #tpu.memory_space<vmem>>, vector<1x8x512xbf16>
    %571 = vector.shape_cast %570 : vector<1x8x512xbf16> to vector<8x512xbf16>
    %572 = vector.shape_cast %569 : vector<8x512xbf16> to vector<1x8x512xbf16>
    tpu.vector_store %arg9[%c0_423, %c0_424, %c0_425], %572 {strides = array<i32>} : memref<1x8x512xbf16, #tpu.memory_space<vmem>>, vector<1x8x512xbf16>,
    return
  }
  func.func @transform_0(%arg0: i32) -> (i32, i32, i32) {
    %c0_i32 = arith.constant 0 : i32
    %c0_i32_0 = arith.constant 0 : i32
    %c0_i32_1 = arith.constant 0 : i32
    return %arg0, %c0_i32, %c0_i32_0 : i32, i32, i32
  }
  func.func @transform_1(%arg0: i32) -> (i32, i32) {
    %c0_i32 = arith.constant 0 : i32
    %c0_i32_0 = arith.constant 0 : i32
    %c0_i32_1 = arith.constant 0 : i32
    return %c0_i32, %c0_i32_0 : i32, i32
  }
  func.func @transform_2(%arg0: i32) -> (i32, i32) {
    %c0_i32 = arith.constant 0 : i32
    %c0_i32_0 = arith.constant 0 : i32
    %c0_i32_1 = arith.constant 0 : i32
    return %c0_i32, %c0_i32_0 : i32, i32
  }
  func.func @transform_3(%arg0: i32) -> (i32, i32) {
    %c0_i32 = arith.constant 0 : i32
    %c0_i32_0 = arith.constant 0 : i32
    %c0_i32_1 = arith.constant 0 : i32
    return %c0_i32, %c0_i32_0 : i32, i32
  }
  func.func @transform_4(%arg0: i32) -> (i32, i32, i32) {
    %c0_i32 = arith.constant 0 : i32
    %c0_i32_0 = arith.constant 0 : i32
    %c0_i32_1 = arith.constant 0 : i32
    %c0_i32_2 = arith.constant 0 : i32
    return %c0_i32, %c0_i32_0, %c0_i32_1 : i32, i32, i32
  }
  func.func @transform_5(%arg0: i32) -> (i32, i32) {
    %c0_i32 = arith.constant 0 : i32
    %c0_i32_0 = arith.constant 0 : i32
    %c0_i32_1 = arith.constant 0 : i32
    return %c0_i32, %c0_i32_0 : i32, i32
  }
  func.func @transform_6(%arg0: i32) -> (i32, i32) {
    %c0_i32 = arith.constant 0 : i32
    %c0_i32_0 = arith.constant 0 : i32
    %c0_i32_1 = arith.constant 0 : i32
    return %c0_i32, %c0_i32_0 : i32, i32
  }
  func.func @transform_7(%arg0: i32) -> (i32, i32, i32) {
    %c0_i32 = arith.constant 0 : i32
    %c0_i32_0 = arith.constant 0 : i32
    %c0_i32_1 = arith.constant 0 : i32
    %c0_i32_2 = arith.constant 0 : i32
    return %c0_i32, %c0_i32_0, %c0_i32_1 : i32, i32, i32
  }
  func.func @transform_8(%arg0: i32) -> (i32, i32, i32) {
    %c0_i32 = arith.constant 0 : i32
    %c0_i32_0 = arith.constant 0 : i32
    %c0_i32_1 = arith.constant 0 : i32
    return %arg0, %c0_i32, %c0_i32_0 : i32, i32, i32
  }
}

</mosaic_0001>

<llo_original>
// kernel: tpu_custom_call.1
$region0: #{tpu_custom_call.1}
  #allocation0 [shape = 'u32[]', space=smem, size = 0x4, offset = 0x4, fixed_abs, tag = 'smem constant byte address 0x4 - core index']
  #allocation1 [shape = 'u32[72,128]{1,0:T(1,128)}', space=vmem, size = 0x9000, scoped, tag = 'internal scratch']
  #allocation2 [shape = 'f32[4,658]{1,0:T(4,128)}', space=vmem, size = 0x3000, scoped, tag = 'scratch operand']
  %s0 = inlined_call_operand.vmem [shape: f32[2,2,512], index: 0, kind: input, shape index: {}]
  %s1 = inlined_call_operand.vmem [shape: f32[27,512], index: 1, kind: input, shape index: {}]
  %s2 = inlined_call_operand.vmem [shape: f32[2,1], index: 2, kind: input, shape index: {}]
  %s3 = inlined_call_operand.vmem [shape: f32[2,1], index: 3, kind: input, shape index: {}]
  %s4 = inlined_call_operand.vmem [shape: bf16[27,4,2], index: 4, kind: input, shape index: {}]
  %s5 = inlined_call_operand.vmem [shape: f32[4,1], index: 5, kind: input, shape index: {}]
  %s6 = inlined_call_operand.vmem [shape: f32[4,1], index: 6, kind: input, shape index: {}]
  %s7 = inlined_call_operand.vmem [shape: bf16[27,8,4], index: 7, kind: input, shape index: {}]
  %s8 = inlined_call_operand.hbm [shape: bf16[2,8,512], index: 8, kind: output, shape index: {}]
  %s9 = sld [smem:[#allocation0]]
  $region65: #{tpu_custom_call.1} parent=0
    _
  %s11 = ssub.s32 1, %s9
  %s12 = scalar_select 0, %s11, %s9
  $region1: #{tpu_custom_call.1} parent=0
    #allocation3 [shape = 'u8[16384]{0}', space=vmem, size = 0x4000, scoped, tag = 'output window, operand 0']
    #allocation4 [shape = 's32[2]{0}', space=sflag, size = 0x8, scoped, tag = 'scoped memory for tpu_custom_call.1']
    %13 = vsyncpa [#allocation4], 0
    %s14 = scalar_lea.sflag [#allocation4], 1
    %15 = vsyncpa %s14, 0
    loop: start=0, step=1, limit=4
    $region2: #{tpu_custom_call.1} parent=1 // loop_pre_header
      _
    $region3: #{tpu_custom_call.1} parent=1 // loop_header
      %s17 = sphi 0, %s21
      %p18 = scmp.ge.s32.totalorder %s17, 4
      %s27 = sphi 0, %s29
      %s30 = sphi 0, %s27
      %s31 = sphi 0, %s30
      %s47 = sphi 0, %s31
      %s51 = sphi 0, %s51
      %s53 = sphi 0, %s51
      %s54 = sphi 0, %s53
      %s68 = sphi 0, %s54
      %s72 = sphi 0, %s72
      %s74 = sphi 0, %s72
      %s75 = sphi 0, %s74
      %s89 = sphi 0, %s75
      %s93 = sphi 0, %s93
      %s95 = sphi 0, %s93
      %s96 = sphi 0, %s95
      %s110 = sphi 0, %s96
      %s114 = sphi 0, %s114
      %s116 = sphi 0, %s114
      %s117 = sphi 0, %s116
      %s131 = sphi 0, %s117
      %s135 = sphi 0, %s135
      %s137 = sphi 0, %s135
      %s138 = sphi 0, %s137
      %s152 = sphi 0, %s138
      %s156 = sphi 0, %s156
      %s158 = sphi 0, %s156
      %s159 = sphi 0, %s158
      %s173 = sphi 0, %s159
      %s177 = sphi 0, %s177
      %s179 = sphi 0, %s177
      %s180 = sphi 0, %s179
      %s194 = sphi 0, %s180
      %s200 = sphi 0, %s202
      %s203 = sphi 0, %s200
      %s204 = sphi 0, %s203
      %s220 = sphi 0, %s204
    $region4: #{tpu_custom_call.1} parent=1 // loop_header_branch
      %20 = sbr.rel (%p18) target = $region8
    $region5: #{tpu_custom_call.1} parent=1 // loop_body
      %s22 = ssub.s32 %s17, 1
      %s23 = ssub.s32 %s17, 2
      %s24 = sadd.s32 %s17, 1
      %s25 = ssub.s32 %s17, %s24
      %p26 = scmp.eq.s32.totalorder %s25, 0
      %s28 = sadd.s32 %s27, 1
      %s29 = scalar_select %p26, %s27, %s28
      %p32 = pneg %p26
      %p33 = scmp.eq.s32.totalorder %s17, 1
      %p34 = por %p32, %p33
      %p35 = scmp.ne.s32.totalorder %s27, %s30
      %p36 = scmp.eq.s32.totalorder %s17, 0
      %p37 = por %p35, %p36
      %p38 = scmp.ne.s32.totalorder %s27, %s30
      %p39 = scmp.eq.s32.totalorder %s22, 1
      %p40 = por %p38, %p39
      %p41 = scmp.ne.s32.totalorder %s30, %s31
      %p42 = scmp.eq.s32.totalorder %s22, 0
      %p43 = por %p41, %p42
      %p44 = scmp.ne.s32.totalorder %s30, %s31
      %p45 = scmp.eq.s32.totalorder %s23, 1
      %p46 = por %p44, %p45
      %p48 = scmp.ne.s32.totalorder %s31, %s47
      %p49 = scmp.eq.s32.totalorder %s23, 0
      %p50 = por %p48, %p49
      %s52 = sadd.s32 %s51, 1
      %p55 = scmp.eq.s32.totalorder %s17, 1
      %p56 = scmp.ne.s32.totalorder %s51, %s53
      %p57 = scmp.eq.s32.totalorder %s17, 0
      %p58 = por %p56, %p57
      %p59 = scmp.ne.s32.totalorder %s51, %s53
      %p60 = scmp.eq.s32.totalorder %s22, 1
      %p61 = por %p59, %p60
      %p62 = scmp.ne.s32.totalorder %s53, %s54
      %p63 = scmp.eq.s32.totalorder %s22, 0
      %p64 = por %p62, %p63
      %p65 = scmp.ne.s32.totalorder %s53, %s54
      %p66 = scmp.eq.s32.totalorder %s23, 1
      %p67 = por %p65, %p66
      %p69 = scmp.ne.s32.totalorder %s54, %s68
      %p70 = scmp.eq.s32.totalorder %s23, 0
      %p71 = por %p69, %p70
      %s73 = sadd.s32 %s72, 1
      %p76 = scmp.eq.s32.totalorder %s17, 1
      %p77 = scmp.ne.s32.totalorder %s72, %s74
      %p78 = scmp.eq.s32.totalorder %s17, 0
      %p79 = por %p77, %p78
      %p80 = scmp.ne.s32.totalorder %s72, %s74
      %p81 = scmp.eq.s32.totalorder %s22, 1
      %p82 = por %p80, %p81
      %p83 = scmp.ne.s32.totalorder %s74, %s75
      %p84 = scmp.eq.s32.totalorder %s22, 0
      %p85 = por %p83, %p84
      %p86 = scmp.ne.s32.totalorder %s74, %s75
      %p87 = scmp.eq.s32.totalorder %s23, 1
      %p88 = por %p86, %p87
      %p90 = scmp.ne.s32.totalorder %s75, %s89
      %p91 = scmp.eq.s32.totalorder %s23, 0
      %p92 = por %p90, %p91
      %s94 = sadd.s32 %s93, 1
      %p97 = scmp.eq.s32.totalorder %s17, 1
      %p98 = scmp.ne.s32.totalorder %s93, %s95
      %p99 = scmp.eq.s32.totalorder %s17, 0
      %p100 = por %p98, %p99
      %p101 = scmp.ne.s32.totalorder %s93, %s95
      %p102 = scmp.eq.s32.totalorder %s22, 1
      %p103 = por %p101, %p102
      %p104 = scmp.ne.s32.totalorder %s95, %s96
      %p105 = scmp.eq.s32.totalorder %s22, 0
      %p106 = por %p104, %p105
      %p107 = scmp.ne.s32.totalorder %s95, %s96
      %p108 = scmp.eq.s32.totalorder %s23, 1
      %p109 = por %p107, %p108
      %p111 = scmp.ne.s32.totalorder %s96, %s110
      %p112 = scmp.eq.s32.totalorder %s23, 0
      %p113 = por %p111, %p112
      %s115 = sadd.s32 %s114, 1
      %p118 = scmp.eq.s32.totalorder %s17, 1
      %p119 = scmp.ne.s32.totalorder %s114, %s116
      %p120 = scmp.eq.s32.totalorder %s17, 0
      %p121 = por %p119, %p120
      %p122 = scmp.ne.s32.totalorder %s114, %s116
      %p123 = scmp.eq.s32.totalorder %s22, 1
      %p124 = por %p122, %p123
      %p125 = scmp.ne.s32.totalorder %s116, %s117
      %p126 = scmp.eq.s32.totalorder %s22, 0
      %p127 = por %p125, %p126
      %p128 = scmp.ne.s32.totalorder %s116, %s117
      %p129 = scmp.eq.s32.totalorder %s23, 1
      %p130 = por %p128, %p129
      %p132 = scmp.ne.s32.totalorder %s117, %s131
      %p133 = scmp.eq.s32.totalorder %s23, 0
      %p134 = por %p132, %p133
      %s136 = sadd.s32 %s135, 1
      %p139 = scmp.eq.s32.totalorder %s17, 1
      %p140 = scmp.ne.s32.totalorder %s135, %s137
      %p141 = scmp.eq.s32.totalorder %s17, 0
      %p142 = por %p140, %p141
      %p143 = scmp.ne.s32.totalorder %s135, %s137
      %p144 = scmp.eq.s32.totalorder %s22, 1
      %p145 = por %p143, %p144
      %p146 = scmp.ne.s32.totalorder %s137, %s138
      %p147 = scmp.eq.s32.totalorder %s22, 0
      %p148 = por %p146, %p147
      %p149 = scmp.ne.s32.totalorder %s137, %s138
      %p150 = scmp.eq.s32.totalorder %s23, 1
      %p151 = por %p149, %p150
      %p153 = scmp.ne.s32.totalorder %s138, %s152
      %p154 = scmp.eq.s32.totalorder %s23, 0
      %p155 = por %p153, %p154
      %s157 = sadd.s32 %s156, 1
      %p160 = scmp.eq.s32.totalorder %s17, 1
      %p161 = scmp.ne.s32.totalorder %s156, %s158
      %p162 = scmp.eq.s32.totalorder %s17, 0
      %p163 = por %p161, %p162
      %p164 = scmp.ne.s32.totalorder %s156, %s158
      %p165 = scmp.eq.s32.totalorder %s22, 1
      %p166 = por %p164, %p165
      %p167 = scmp.ne.s32.totalorder %s158, %s159
      %p168 = scmp.eq.s32.totalorder %s22, 0
      %p169 = por %p167, %p168
      %p170 = scmp.ne.s32.totalorder %s158, %s159
      %p171 = scmp.eq.s32.totalorder %s23, 1
      %p172 = por %p170, %p171
      %p174 = scmp.ne.s32.totalorder %s159, %s173
      %p175 = scmp.eq.s32.totalorder %s23, 0
      %p176 = por %p174, %p175
      %s178 = sadd.s32 %s177, 1
      %p181 = scmp.eq.s32.totalorder %s17, 1
      %p182 = scmp.ne.s32.totalorder %s177, %s179
      %p183 = scmp.eq.s32.totalorder %s17, 0
      %p184 = por %p182, %p183
      %p185 = scmp.ne.s32.totalorder %s177, %s179
      %p186 = scmp.eq.s32.totalorder %s22, 1
      %p187 = por %p185, %p186
      %p188 = scmp.ne.s32.totalorder %s179, %s180
      %p189 = scmp.eq.s32.totalorder %s22, 0
      %p190 = por %p188, %p189
      %p191 = scmp.ne.s32.totalorder %s179, %s180
      %p192 = scmp.eq.s32.totalorder %s23, 1
      %p193 = por %p191, %p192
      %p195 = scmp.ne.s32.totalorder %s180, %s194
      %p196 = scmp.eq.s32.totalorder %s23, 0
      %p197 = por %p195, %p196
      %s198 = ssub.s32 %s17, %s24
      %p199 = scmp.eq.s32.totalorder %s198, 0
      %s201 = sadd.s32 %s200, 1
      %s202 = scalar_select %p199, %s200, %s201
      %p205 = pneg %p199
      %p206 = scmp.eq.s32.totalorder %s17, 1
      %p207 = por %p205, %p206
      %p208 = scmp.ne.s32.totalorder %s200, %s203
      %p209 = scmp.eq.s32.totalorder %s17, 0
      %p210 = por %p208, %p209
      %p211 = scmp.ne.s32.totalorder %s200, %s203
      %p212 = scmp.eq.s32.totalorder %s22, 1
      %p213 = por %p211, %p212
      %p214 = scmp.ne.s32.totalorder %s203, %s204
      %p215 = scmp.eq.s32.totalorder %s22, 0
      %p216 = por %p214, %p215
      %p217 = scmp.ne.s32.totalorder %s203, %s204
      %p218 = scmp.eq.s32.totalorder %s23, 1
      %p219 = por %p217, %p218
      %p221 = scmp.ne.s32.totalorder %s204, %s220
      %p222 = scmp.eq.s32.totalorder %s23, 0
      %p223 = por %p221, %p222
      %p224 = scmp.le.s32.totalorder 1, %s17
      %p225 = scmp.lt.s32.totalorder %s17, 3
      %p226 = pnand %p224, %p225
      %p227 = pneg %p226
      // Predicated region
      $region9: #{tpu_custom_call.1} parent=5 // pred_check
        _
      $region10: #{tpu_custom_call.1} parent=5 // pred_check_branch
        %229 = sbr.rel (%p226) target = $region12
      $region11: #{tpu_custom_call.1} parent=5 // pred_region
        %s230 = ssub.s32 %s17, 1
        // Predicated region
        $region13: #{tpu_custom_call.1} parent=11 // pred_check
          %p231 = pneg %p64
        $region14: #{tpu_custom_call.1} parent=11 // pred_check_branch
          %233 = sbr.rel (%p231) target = $region16
        $region15: #{tpu_custom_call.1} parent=11 // pred_region
          _
        $region16: #{tpu_custom_call.1} parent=11 // pred_fallthru
          _
        // Predicated region
        $region17: #{tpu_custom_call.1} parent=11 // pred_check
          %p234 = pneg %p85
        $region18: #{tpu_custom_call.1} parent=11 // pred_check_branch
          %236 = sbr.rel (%p234) target = $region20
        $region19: #{tpu_custom_call.1} parent=11 // pred_region
          _
        $region20: #{tpu_custom_call.1} parent=11 // pred_fallthru
          _
        // Predicated region
        $region21: #{tpu_custom_call.1} parent=11 // pred_check
          %p237 = pneg %p106
        $region22: #{tpu_custom_call.1} parent=11 // pred_check_branch
          %239 = sbr.rel (%p237) target = $region24
        $region23: #{tpu_custom_call.1} parent=11 // pred_region
          _
        $region24: #{tpu_custom_call.1} parent=11 // pred_fallthru
          _
        // Predicated region
        $region25: #{tpu_custom_call.1} parent=11 // pred_check
          %p240 = pneg %p127
        $region26: #{tpu_custom_call.1} parent=11 // pred_check_branch
          %242 = sbr.rel (%p240) target = $region28
        $region27: #{tpu_custom_call.1} parent=11 // pred_region
          _
        $region28: #{tpu_custom_call.1} parent=11 // pred_fallthru
          _
        // Predicated region
        $region29: #{tpu_custom_call.1} parent=11 // pred_check
          %p243 = pneg %p148
        $region30: #{tpu_custom_call.1} parent=11 // pred_check_branch
          %245 = sbr.rel (%p243) target = $region32
        $region31: #{tpu_custom_call.1} parent=11 // pred_region
          _
        $region32: #{tpu_custom_call.1} parent=11 // pred_fallthru
          _
        // Predicated region
        $region33: #{tpu_custom_call.1} parent=11 // pred_check
          %p246 = pneg %p169
        $region34: #{tpu_custom_call.1} parent=11 // pred_check_branch
          %248 = sbr.rel (%p246) target = $region36
        $region35: #{tpu_custom_call.1} parent=11 // pred_region
          _
        $region36: #{tpu_custom_call.1} parent=11 // pred_fallthru
          _
        // Predicated region
        $region37: #{tpu_custom_call.1} parent=11 // pred_check
          %p249 = pneg %p190
        $region38: #{tpu_custom_call.1} parent=11 // pred_check_branch
          %251 = sbr.rel (%p249) target = $region40
        $region39: #{tpu_custom_call.1} parent=11 // pred_region
          _
        $region40: #{tpu_custom_call.1} parent=11 // pred_fallthru
          _
      $region12: #{tpu_custom_call.1} parent=5 // pred_fallthru
        _
      %p252 = scmp.lt.s32.totalorder %s17, 2
      // Predicated region
      $region41: #{tpu_custom_call.1} parent=5 // pred_check
        %p253 = pneg %p252
      $region42: #{tpu_custom_call.1} parent=5 // pred_check_branch
        %255 = sbr.rel (%p253) target = $region44
      $region43: #{tpu_custom_call.1} parent=5 // pred_region
        // Predicated region
        $region45: #{tpu_custom_call.1} parent=43 // pred_check
          %p256 = pneg %p37
        $region46: #{tpu_custom_call.1} parent=43 // pred_check_branch
          %258 = sbr.rel (%p256) target = $region48
        $region47: #{tpu_custom_call.1} parent=43 // pred_region
          %p259 = scmp.lt.s32.totalorder %s17, 1
          %s260 = scalar_select %p259, %s17, 1
          %s261 = smul.addr %s260, 4
          %s262 = smul.addr %s261, 2
          %s263 = scalar_lea.vmem %s0, %s262
        $region48: #{tpu_custom_call.1} parent=43 // pred_fallthru
          _
      $region44: #{tpu_custom_call.1} parent=5 // pred_fallthru
        _
      %p264 = scmp.le.s32.totalorder 1, %s17
      %p265 = scmp.lt.s32.totalorder %s17, 3
      %p266 = pnand %p264, %p265
      %p267 = pneg %p266
      // Predicated region
      $region49: #{tpu_custom_call.1} parent=5 // pred_check
        _
      $region50: #{tpu_custom_call.1} parent=5 // pred_check_branch
        %269 = sbr.rel (%p266) target = $region52
      $region51: #{tpu_custom_call.1} parent=5 // pred_region
        %s270 = ssub.s32 %s17, 1
        %p271 = scmp.lt.s32.totalorder %s22, 1
        %s272 = scalar_select %p271, %s22, 1
        %s273 = smul.addr %s272, 4
        %s274 = smul.addr %s273, 2
        %s275 = scalar_lea.vmem %s0, %s274
        %p276 = pneg %p43
        %p277 = pneg %p40
        %p278 = pneg %p64
        %p279 = pneg %p61
        %p280 = pneg %p85
        %p281 = pneg %p82
        %p282 = pneg %p106
        %p283 = pneg %p103
        %p284 = pneg %p127
        %p285 = pneg %p124
        %p286 = pneg %p148
        %p287 = pneg %p145
        %p288 = pneg %p169
        %p289 = pneg %p166
        %p290 = pneg %p190
        %p291 = pneg %p187
        %p292 = pneg %p216
        %p293 = pneg %p213
        %s294 = sand.u32 %s203, 1
        %s295 = scalar_lea.sflag [#allocation4], %s294
        %s296 = sand.u32 %s203, 1
        %s297 = smul.addr %s296, 16
        %s298 = scalar_lea.vmem [#allocation3], %s297
        %p299 = scmp.lt.s32.totalorder %s22, 1
        %s300 = scalar_select %p299, %s22, 1
        %s301 = smul.addr %s300, 4
        %s302 = smul.addr %s301, 2
        %s303 = scalar_lea.vmem %s0, %s302
        %vm305 = vcmask 592896
        %306 = vst.msk [vmem:[#allocation2] sm:$0xf] %vm305, 0.0
        %vm307 = vcmask 1044040
        %vm308 = vcmask 146436
        %vm309 = vmor %vm308, %vm307
        %310 = vst.msk [vmem:[#allocation2 + $0x10] sm:$0xff] %vm309, 0.0
        %v311 = vld [vmem:[%s303] sm:$0xff]
        %v312 = vld [vmem:[%s2] sm:$0x3]
        %v313 = vld [vmem:[%s3] sm:$0x3]
        %315 = vst [vmem:[#allocation1] ss:$4 sm:$0xff] %v311
        %v316 = vld.sshfl [vmem:[#allocation1] sm:$0xff pattern:$0x73625140]
        %v317 = vld.sshfl [vmem:[#allocation1 + $0x8] sm:$0xff pattern:$0x73625140]
        %v318 = vld.sshfl [vmem:[#allocation1 + $0x10] sm:$0xff pattern:$0x73625140]
        %v319 = vld.sshfl [vmem:[#allocation1 + $0x18] sm:$0xff pattern:$0x73625140]
        %vm324 = vcmask 1041408
        %v325 = vsel %vm324, %v316, 0.0
        %v326 = vsel %vm324, %v317, 0.0
        %v327 = vadd.f32 %v325, %v326
        %v328 = vsel %vm324, %v318, 0.0
        %v329 = vadd.f32 %v327, %v328
        %v330 = vsel %vm324, %v319, 0.0
        %v331 = vadd.f32 %v329, %v330
        %332 = vadd.xlane.f32.xlu0 %v331
        %v333 = vpop.xlane.xlu0 %332
        %v334 = vsel %vm324, %v333, 0.0
        %v335 = vrot.slane %v334, 4
        %v336 = vadd.f32 %v334, %v335
        %v337 = vrot.slane %v336, 2
        %v338 = vadd.f32 %v336, %v337
        %v339 = vrot.slane %v338, 1
        %v340 = vadd.f32 %v338, %v339
        %v341 = vrcp.pop 1024.0
        %v342 = vmul.f32 1024.0, %v341
        %v343 = vsub.f32 1.0, %v342
        %v344 = vmul.f32 %v341, %v343
        %v345 = vadd.f32 %v341, %v344
        %vm346 = vweird.f32 %v341
        %v347 = vsel %vm346, %v341, %v345
        %v348 = vmul.f32 %v340, %v347
        %v349 = vsub.f32 %v311, %v348
        %v350 = vmul.f32 %v349, %v349
        %352 = vst [vmem:[#allocation1] ss:$4 sm:$0xff] %v350
        %v353 = vld.sshfl [vmem:[#allocation1] sm:$0xff pattern:$0x73625140]
        %v354 = vld.sshfl [vmem:[#allocation1 + $0x8] sm:$0xff pattern:$0x73625140]
        %v355 = vld.sshfl [vmem:[#allocation1 + $0x10] sm:$0xff pattern:$0x73625140]
        %v356 = vld.sshfl [vmem:[#allocation1 + $0x18] sm:$0xff pattern:$0x73625140]
        %v361 = vsel %vm324, %v353, 0.0
        %v362 = vsel %vm324, %v354, 0.0
        %v363 = vadd.f32 %v361, %v362
        %v364 = vsel %vm324, %v355, 0.0
        %v365 = vadd.f32 %v363, %v364
        %v366 = vsel %vm324, %v356, 0.0
        %v367 = vadd.f32 %v365, %v366
        %368 = vadd.xlane.f32.xlu0 %v367
        %v369 = vpop.xlane.xlu0 %368
        %v370 = vsel %vm324, %v369, 0.0
        %v371 = vrot.slane %v370, 4
        %v372 = vadd.f32 %v370, %v371
        %v373 = vrot.slane %v372, 2
        %v374 = vadd.f32 %v372, %v373
        %v375 = vrot.slane %v374, 1
        %v376 = vadd.f32 %v374, %v375
        %v377 = vmul.f32 %v376, %v347
        %v378 = vadd.f32 %v377, 1e-05
        %v379 = vrsqrt.pop %v378
        %v380 = vmul.f32 %v379, %v378
        %v381 = vmul.f32 %v380, %v379
        %v382 = vmul.f32 0.5, %v381
        %v383 = vsub.f32 1.5, %v382
        %v384 = vmul.f32 %v379, %v383
        %vm385 = vweird.f32 %v378
        %vm386 = vweird.f32 %v379
        %vm387 = vmor %vm385, %vm386
        %v388 = vsel %vm387, %v379, %v384
        %v389 = vmul.f32 %v388, %v312
        %v390 = vmul.f32 %v348, %v389
        %v391 = vsub.f32 %v313, %v390
        %393 = vset.pattern.permute.xlu0 0
        %394 = vperm.xlu0 %393, %v389
        %v395 = vpop.permute.xlu0 %394
        %v397 = vunpack.c.l.s4 269488144
        %v398 = vunpack.c.0.s8 %v397
        %v399 = vperm.slane %v395, %v398
        %v401 = vmul.f32 %v311, %v399
        %403 = vset.pattern.permute.xlu0 0
        %404 = vperm.xlu0 %403, %v391
        %v405 = vpop.permute.xlu0 %404
        %v407 = vunpack.c.l.s4 269488144
        %v408 = vunpack.c.0.s8 %v407
        %v409 = vperm.slane %v405, %v408
        %v411 = vadd.f32 %v401, %v409
        %413 = vst [vmem:[#allocation1] ss:$2 sm:$0xff] %v411
        %v414 = vld.sshfl [vmem:[#allocation1] sm:$0xff pattern:$0x75643120]
        %v415 = vld.sshfl [vmem:[#allocation1 + $0x8] sm:$0xff pattern:$0x75643120]
        %416 = vrot.lane.b32.xlu0 %v414, 73
        %v417 = vpop.permute.xlu0 %416
        %418 = vrot.lane.b32.xlu0 %v415, 73
        %v419 = vpop.permute.xlu0 %418
        %v420 = vrot.slane %v417, 4
        %v421 = vrot.slane %v419, 4
        %vm422 = vcmask 596992
        %v423 = vsel %vm422, %v420, %v417
        %vm424 = vcmask 1043456
        %v425 = vsel %vm424, %v420, %v421
        %v426 = vsel %vm422, %v425, %v419
        %vm430 = vcmask 1041992
        %vm431 = vcmask 1045508
        %vm432 = vmor %vm431, %vm430
        %433 = vst.msk [vmem:[#allocation2] sm:$0x33] %vm432, %v423
        %434 = vst [vmem:[#allocation2 + $0x8] sm:$0x33] %v426
        %vm435 = vcmask 590848
        %436 = vst.msk [vmem:[#allocation2 + $0x10] sm:$0x3] %vm435, %v421
        %v437 = vld [vmem:[#allocation2] sm:$0x33]
        %v438 = vld [vmem:[#allocation2 + $0x8] sm:$0x33]
        %v439 = vld [vmem:[%s1] ss:$8 sm:$0xf]
        %v441 = vperm.slane %v439, 0
        %v442 = vperm.slane %v439, 1
        %v443 = vperm.slane %v439, 2
        %v444 = vperm.slane %v439, 3
        %v445 = vrot.slane %v442, 4
        %v446 = vrot.slane %v444, 4
        %v447 = vsel %vm424, %v441, %v445
        %v448 = vsel %vm424, %v443, %v446
        %v451 = vmul.f32 %v437, %v447
        %v452 = vmul.f32 %v438, %v448
        %v453 = vld [vmem:[%s4] sm:$0x3]
        %456 = vst [vmem:[#allocation1] ss:$2 sm:$0xff] %v451
        %s457 = scalar_lea.vmem [#allocation1], 16
        %458 = vst [vmem:[%s457] ss:$2 sm:$0xff] %v452
        %v459 = vld.sshfl [vmem:[#allocation1] sm:$0xff pattern:$0x75316420]
        %v460 = vld.sshfl [vmem:[#allocation1 + $0x8] sm:$0xff pattern:$0x75316420]
        %v461 = vld.sshfl [vmem:[#allocation1 + $0x10] sm:$0xff pattern:$0x75316420]
        %v462 = vld.sshfl [vmem:[#allocation1 + $0x18] sm:$0xff pattern:$0x75316420]
        %v467 = vpack.c.bf16 %v459, %v459
        %v468 = vpack.c.bf16 %v460, %v460
        %v469 = vpack.c.bf16 %v461, %v461
        %v470 = vpack.c.bf16 %v462, %v462
        %v471 = vld [vmem:[#allocation2] sm:$0x33]
        %v472 = vld [vmem:[#allocation2 + $0x8] sm:$0x33]
        %v473 = vld [vmem:[#allocation2 + $0x10] sm:$0x3]
        %s474 = scalar_lea.vmem %s1, 1
        %v475 = vld [vmem:[%s474] ss:$8 sm:$0xf]
        %v477 = vperm.slane %v475, 0
        %v478 = vperm.slane %v475, 1
        %v479 = vperm.slane %v475, 2
        %v480 = vperm.slane %v475, 3
        %v481 = vrot.slane %v478, 4
        %v482 = vrot.slane %v480, 4
        %v483 = vsel %vm424, %v477, %v481
        %v484 = vsel %vm424, %v479, %v482
        %485 = vrot.lane.b32.xlu0 %v483, 1
        %v486 = vpop.permute.xlu0 %485
        %487 = vrot.lane.b32.xlu0 %v484, 1
        %v488 = vpop.permute.xlu0 %487
        %v489 = vrot.slane %v486, 4
        %v490 = vrot.slane %v488, 4
        %vm491 = vcmask 7168
        %v492 = vsel %vm491, %v489, %v486
        %v493 = vsel %vm424, %v489, %v490
        %v494 = vsel %vm491, %v493, %v488
        %v498 = vmul.f32 %v471, %v492
        %v499 = vmul.f32 %v472, %v494
        %v500 = vmul.f32 %v473, %v490
        %s501 = scalar_lea.vmem %s4, 2
        %v502 = vld [vmem:[%s501] sm:$0x3]
        %506 = vst [vmem:[#allocation1] ss:$2 sm:$0xff] %v498
        %s507 = scalar_lea.vmem [#allocation1], 16
        %508 = vst [vmem:[%s507] ss:$2 sm:$0xff] %v499
        %s509 = scalar_lea.vmem [#allocation1], 32
        %510 = vst [vmem:[%s509] ss:$2 sm:$0xff] %v500
        %v511 = vld.sshfl [vmem:[#allocation1] sm:$0xff pattern:$0x75316420]
        %v512 = vld.sshfl [vmem:[#allocation1 + $0x8] sm:$0xff pattern:$0x75316420]
        %v513 = vld.sshfl [vmem:[#allocation1 + $0x10] sm:$0xff pattern:$0x75316420]
        %v514 = vld.sshfl [vmem:[#allocation1 + $0x18] sm:$0xff pattern:$0x75316420]
        %v515 = vld.sshfl [vmem:[#allocation1 + $0x20] sm:$0xff pattern:$0x75316420]
        %v521 = vpack.c.bf16 %v511, %v511
        %v522 = vpack.c.bf16 %v512, %v512
        %v523 = vpack.c.bf16 %v513, %v513
        %v524 = vpack.c.bf16 %v514, %v514
        %v525 = vpack.c.bf16 %v515, %v515
        %531 = vrot.lane.b32.xlu0 %v521, 127
        %v532 = vpop.permute.xlu0 %531
        %533 = vrot.lane.b32.xlu0 %v522, 127
        %v534 = vpop.permute.xlu0 %533
        %535 = vrot.lane.b32.xlu0 %v523, 127
        %v536 = vpop.permute.xlu0 %535
        %537 = vrot.lane.b32.xlu0 %v524, 127
        %v538 = vpop.permute.xlu0 %537
        %539 = vrot.lane.b32.xlu0 %v525, 127
        %v540 = vpop.permute.xlu0 %539
        %vm541 = vcmask 1039360
        %v542 = vsel %vm541, %v532, %v534
        %v543 = vsel %vm541, %v534, %v536
        %v544 = vsel %vm541, %v536, %v538
        %v545 = vsel %vm541, %v538, %v540
        %vm546 = vcmask 15360
        %v548 = vsel %vm546, %v502, 0
        %vm550 = vcmask 1040384
        %v552 = vsel %vm550, %v542, 0
        %v555 = vsel %vm550, %v543, 0
        %v558 = vsel %vm550, %v544, 0
        %v561 = vsel %vm550, %v545, 0
        %563 = vmatpush.bf16.msra.mxu0 0
        %564 = vmatpush.bf16.msra.mxu0 0
        %565 = vmatpush.bf16.msra.mxu0 0
        %566 = vmatpush.bf16.msra.mxu0 0
        %567 = vmatpush.bf16.msra.mxu0 0
        %568 = vmatpush.bf16.msra.mxu0 0
        %569 = vmatpush.bf16.msra.mxu0 0
        %570 = vmatpush.bf16.msra.mxu0 %v552
        %571 = vmatmul.bf16.gmra.mxu0 %v548
        %v572 = vpop.f32.mrf.mxu0
        %v573 = vadd.f32 0.0, %v572
        %v574 = vpop.f32.mrf.mxu0
        %575 = vdwg.mxu0
        %576 = vmatpush.bf16.msra.mxu0 0
        %577 = vmatpush.bf16.msra.mxu0 0
        %578 = vmatpush.bf16.msra.mxu0 0
        %579 = vmatpush.bf16.msra.mxu0 0
        %580 = vmatpush.bf16.msra.mxu0 0
        %581 = vmatpush.bf16.msra.mxu0 0
        %582 = vmatpush.bf16.msra.mxu0 0
        %583 = vmatpush.bf16.msra.mxu0 %v555
        %584 = vmatmul.bf16.gmra.mxu0 %v548
        %v585 = vpop.f32.mrf.mxu0
        %v586 = vadd.f32 0.0, %v585
        %v587 = vpop.f32.mrf.mxu0
        %588 = vdwg.mxu0
        %589 = vmatpush.bf16.msra.mxu0 0
        %590 = vmatpush.bf16.msra.mxu0 0
        %591 = vmatpush.bf16.msra.mxu0 0
        %592 = vmatpush.bf16.msra.mxu0 0
        %593 = vmatpush.bf16.msra.mxu0 0
        %594 = vmatpush.bf16.msra.mxu0 0
        %595 = vmatpush.bf16.msra.mxu0 0
        %596 = vmatpush.bf16.msra.mxu0 %v558
        %597 = vmatmul.bf16.gmra.mxu0 %v548
        %v598 = vpop.f32.mrf.mxu0
        %v599 = vadd.f32 0.0, %v598
        %v600 = vpop.f32.mrf.mxu0
        %601 = vdwg.mxu0
        %602 = vmatpush.bf16.msra.mxu0 0
        %603 = vmatpush.bf16.msra.mxu0 0
        %604 = vmatpush.bf16.msra.mxu0 0
        %605 = vmatpush.bf16.msra.mxu0 0
        %606 = vmatpush.bf16.msra.mxu0 0
        %607 = vmatpush.bf16.msra.mxu0 0
        %608 = vmatpush.bf16.msra.mxu0 0
        %609 = vmatpush.bf16.msra.mxu0 %v561
        %610 = vmatmul.bf16.gmra.mxu0 %v548
        %v611 = vpop.f32.mrf.mxu0
        %v612 = vadd.f32 0.0, %v611
        %v613 = vpop.f32.mrf.mxu0
        %614 = vdwg.mxu0
        %v616 = vsel %vm546, %v453, 0
        %v619 = vsel %vm550, %v467, 0
        %v622 = vsel %vm550, %v468, 0
        %v625 = vsel %vm550, %v469, 0
        %v628 = vsel %vm550, %v470, 0
        %630 = vmatpush.bf16.msra.mxu0 0
        %631 = vmatpush.bf16.msra.mxu0 0
        %632 = vmatpush.bf16.msra.mxu0 0
        %633 = vmatpush.bf16.msra.mxu0 0
        %634 = vmatpush.bf16.msra.mxu0 0
        %635 = vmatpush.bf16.msra.mxu0 0
        %636 = vmatpush.bf16.msra.mxu0 0
        %637 = vmatpush.bf16.msra.mxu0 %v619
        %638 = vmatmul.bf16.gmra.mxu0 %v616
        %v639 = vpop.f32.mrf.mxu0
        %v640 = vadd.f32 %v573, %v639
        %v641 = vpop.f32.mrf.mxu0
        %642 = vdwg.mxu0
        %643 = vmatpush.bf16.msra.mxu0 0
        %644 = vmatpush.bf16.msra.mxu0 0
        %645 = vmatpush.bf16.msra.mxu0 0
        %646 = vmatpush.bf16.msra.mxu0 0
        %647 = vmatpush.bf16.msra.mxu0 0
        %648 = vmatpush.bf16.msra.mxu0 0
        %649 = vmatpush.bf16.msra.mxu0 0
        %650 = vmatpush.bf16.msra.mxu0 %v622
        %651 = vmatmul.bf16.gmra.mxu0 %v616
        %v652 = vpop.f32.mrf.mxu0
        %v653 = vadd.f32 %v586, %v652
        %v654 = vpop.f32.mrf.mxu0
        %655 = vdwg.mxu0
        %656 = vmatpush.bf16.msra.mxu0 0
        %657 = vmatpush.bf16.msra.mxu0 0
        %658 = vmatpush.bf16.msra.mxu0 0
        %659 = vmatpush.bf16.msra.mxu0 0
        %660 = vmatpush.bf16.msra.mxu0 0
        %661 = vmatpush.bf16.msra.mxu0 0
        %662 = vmatpush.bf16.msra.mxu0 0
        %663 = vmatpush.bf16.msra.mxu0 %v625
        %664 = vmatmul.bf16.gmra.mxu0 %v616
        %v665 = vpop.f32.mrf.mxu0
        %v666 = vadd.f32 %v599, %v665
        %v667 = vpop.f32.mrf.mxu0
        %668 = vdwg.mxu0
        %669 = vmatpush.bf16.msra.mxu0 0
        %670 = vmatpush.bf16.msra.mxu0 0
        %671 = vmatpush.bf16.msra.mxu0 0
        %672 = vmatpush.bf16.msra.mxu0 0
        %673 = vmatpush.bf16.msra.mxu0 0
        %674 = vmatpush.bf16.msra.mxu0 0
        %675 = vmatpush.bf16.msra.mxu0 0
        %676 = vmatpush.bf16.msra.mxu0 %v628
        %677 = vmatmul.bf16.gmra.mxu0 %v616
        %v678 = vpop.f32.mrf.mxu0
        %v679 = vadd.f32 %v612, %v678
        %v680 = vpop.f32.mrf.mxu0
        %681 = vdwg.mxu0
        %v682 = vld [vmem:[#allocation2] sm:$0x33]
        %v683 = vld [vmem:[#allocation2 + $0x8] sm:$0x33]
        %v684 = vld [vmem:[#allocation2 + $0x10] sm:$0x3]
        %s685 = scalar_lea.vmem %s1, 2
        %v686 = vld [vmem:[%s685] ss:$8 sm:$0xf]
        %v688 = vperm.slane %v686, 0
        %v689 = vperm.slane %v686, 1
        %v690 = vperm.slane %v686, 2
        %v691 = vperm.slane %v686, 3
        %v692 = vrot.slane %v689, 4
        %v693 = vrot.slane %v691, 4
        %v694 = vsel %vm424, %v688, %v692
        %v695 = vsel %vm424, %v690, %v693
        %696 = vrot.lane.b32.xlu0 %v694, 2
        %v697 = vpop.permute.xlu0 %696
        %698 = vrot.lane.b32.xlu0 %v695, 2
        %v699 = vpop.permute.xlu0 %698
        %v700 = vrot.slane %v697, 4
        %v701 = vrot.slane %v699, 4
        %v702 = vsel %vm546, %v700, %v697
        %v703 = vsel %vm424, %v700, %v701
        %v704 = vsel %vm546, %v703, %v699
        %v708 = vmul.f32 %v682, %v702
        %v709 = vmul.f32 %v683, %v704
        %v710 = vmul.f32 %v684, %v701
        %s711 = scalar_lea.vmem %s4, 4
        %v712 = vld [vmem:[%s711] sm:$0x3]
        %716 = vst [vmem:[#allocation1] ss:$2 sm:$0xff] %v708
        %s717 = scalar_lea.vmem [#allocation1], 16
        %718 = vst [vmem:[%s717] ss:$2 sm:$0xff] %v709
        %s719 = scalar_lea.vmem [#allocation1], 32
        %720 = vst [vmem:[%s719] ss:$2 sm:$0xff] %v710
        %v721 = vld.sshfl [vmem:[#allocation1] sm:$0xff pattern:$0x75316420]
        %v722 = vld.sshfl [vmem:[#allocation1 + $0x8] sm:$0xff pattern:$0x75316420]
        %v723 = vld.sshfl [vmem:[#allocation1 + $0x10] sm:$0xff pattern:$0x75316420]
        %v724 = vld.sshfl [vmem:[#allocation1 + $0x18] sm:$0xff pattern:$0x75316420]
        %v725 = vld.sshfl [vmem:[#allocation1 + $0x20] sm:$0xff pattern:$0x75316420]
        %v731 = vpack.c.bf16 %v721, %v721
        %v732 = vpack.c.bf16 %v722, %v722
        %v733 = vpack.c.bf16 %v723, %v723
        %v734 = vpack.c.bf16 %v724, %v724
        %v735 = vpack.c.bf16 %v725, %v725
        %741 = vrot.lane.b32.xlu0 %v731, 126
        %v742 = vpop.permute.xlu0 %741
        %743 = vrot.lane.b32.xlu0 %v732, 126
        %v744 = vpop.permute.xlu0 %743
        %745 = vrot.lane.b32.xlu0 %v733, 126
        %v746 = vpop.permute.xlu0 %745
        %747 = vrot.lane.b32.xlu0 %v734, 126
        %v748 = vpop.permute.xlu0 %747
        %749 = vrot.lane.b32.xlu0 %v735, 126
        %v750 = vpop.permute.xlu0 %749
        %vm751 = vcmask 1031168
        %v752 = vsel %vm751, %v742, %v744
        %v753 = vsel %vm751, %v744, %v746
        %v754 = vsel %vm751, %v746, %v748
        %v755 = vsel %vm751, %v748, %v750
        %v757 = vsel %vm546, %v712, 0
        %v760 = vsel %vm550, %v752, 0
        %v763 = vsel %vm550, %v753, 0
        %v766 = vsel %vm550, %v754, 0
        %v769 = vsel %vm550, %v755, 0
        %771 = vmatpush.bf16.msra.mxu0 0
        %772 = vmatpush.bf16.msra.mxu0 0
        %773 = vmatpush.bf16.msra.mxu0 0
        %774 = vmatpush.bf16.msra.mxu0 0
        %775 = vmatpush.bf16.msra.mxu0 0
        %776 = vmatpush.bf16.msra.mxu0 0
        %777 = vmatpush.bf16.msra.mxu0 0
        %778 = vmatpush.bf16.msra.mxu0 %v760
        %779 = vmatmul.bf16.gmra.mxu0 %v757
        %v780 = vpop.f32.mrf.mxu0
        %v781 = vadd.f32 0.0, %v780
        %v782 = vpop.f32.mrf.mxu0
        %783 = vdwg.mxu0
        %784 = vmatpush.bf16.msra.mxu0 0
        %785 = vmatpush.bf16.msra.mxu0 0
        %786 = vmatpush.bf16.msra.mxu0 0
        %787 = vmatpush.bf16.msra.mxu0 0
        %788 = vmatpush.bf16.msra.mxu0 0
        %789 = vmatpush.bf16.msra.mxu0 0
        %790 = vmatpush.bf16.msra.mxu0 0
        %791 = vmatpush.bf16.msra.mxu0 %v763
        %792 = vmatmul.bf16.gmra.mxu0 %v757
        %v793 = vpop.f32.mrf.mxu0
        %v794 = vadd.f32 0.0, %v793
        %v795 = vpop.f32.mrf.mxu0
        %796 = vdwg.mxu0
        %797 = vmatpush.bf16.msra.mxu0 0
        %798 = vmatpush.bf16.msra.mxu0 0
        %799 = vmatpush.bf16.msra.mxu0 0
        %800 = vmatpush.bf16.msra.mxu0 0
        %801 = vmatpush.bf16.msra.mxu0 0
        %802 = vmatpush.bf16.msra.mxu0 0
        %803 = vmatpush.bf16.msra.mxu0 0
        %804 = vmatpush.bf16.msra.mxu0 %v766
        %805 = vmatmul.bf16.gmra.mxu0 %v757
        %v806 = vpop.f32.mrf.mxu0
        %v807 = vadd.f32 0.0, %v806
        %v808 = vpop.f32.mrf.mxu0
        %809 = vdwg.mxu0
        %810 = vmatpush.bf16.msra.mxu0 0
        %811 = vmatpush.bf16.msra.mxu0 0
        %812 = vmatpush.bf16.msra.mxu0 0
        %813 = vmatpush.bf16.msra.mxu0 0
        %814 = vmatpush.bf16.msra.mxu0 0
        %815 = vmatpush.bf16.msra.mxu0 0
        %816 = vmatpush.bf16.msra.mxu0 0
        %817 = vmatpush.bf16.msra.mxu0 %v769
        %818 = vmatmul.bf16.gmra.mxu0 %v757
        %v819 = vpop.f32.mrf.mxu0
        %v820 = vadd.f32 0.0, %v819
        %v821 = vpop.f32.mrf.mxu0
        %822 = vdwg.mxu0
        %v823 = vadd.f32 %v640, %v781
        %v824 = vadd.f32 %v653, %v794
        %v825 = vadd.f32 %v666, %v807
        %v826 = vadd.f32 %v679, %v820
        %v827 = vld [vmem:[#allocation2] sm:$0x33]
        %v828 = vld [vmem:[#allocation2 + $0x8] sm:$0x33]
        %v829 = vld [vmem:[#allocation2 + $0x10] sm:$0x3]
        %s830 = scalar_lea.vmem %s1, 3
        %v831 = vld [vmem:[%s830] ss:$8 sm:$0xf]
        %v833 = vperm.slane %v831, 0
        %v834 = vperm.slane %v831, 1
        %v835 = vperm.slane %v831, 2
        %v836 = vperm.slane %v831, 3
        %v837 = vrot.slane %v834, 4
        %v838 = vrot.slane %v836, 4
        %v839 = vsel %vm424, %v833, %v837
        %v840 = vsel %vm424, %v835, %v838
        %841 = vrot.lane.b32.xlu0 %v839, 8
        %v842 = vpop.permute.xlu0 %841
        %843 = vrot.lane.b32.xlu0 %v840, 8
        %v844 = vpop.permute.xlu0 %843
        %v845 = vrot.slane %v842, 4
        %v846 = vrot.slane %v844, 4
        %vm847 = vcmask 64512
        %v848 = vsel %vm847, %v845, %v842
        %v849 = vsel %vm424, %v845, %v846
        %v850 = vsel %vm847, %v849, %v844
        %v854 = vmul.f32 %v827, %v848
        %v855 = vmul.f32 %v828, %v850
        %v856 = vmul.f32 %v829, %v846
        %s857 = scalar_lea.vmem %s4, 6
        %v858 = vld [vmem:[%s857] sm:$0x3]
        %862 = vst [vmem:[#allocation1] ss:$2 sm:$0xff] %v854
        %s863 = scalar_lea.vmem [#allocation1], 16
        %864 = vst [vmem:[%s863] ss:$2 sm:$0xff] %v855
        %s865 = scalar_lea.vmem [#allocation1], 32
        %866 = vst [vmem:[%s865] ss:$2 sm:$0xff] %v856
        %v867 = vld.sshfl [vmem:[#allocation1] sm:$0xff pattern:$0x75316420]
        %v868 = vld.sshfl [vmem:[#allocation1 + $0x8] sm:$0xff pattern:$0x75316420]
        %v869 = vld.sshfl [vmem:[#allocation1 + $0x10] sm:$0xff pattern:$0x75316420]
        %v870 = vld.sshfl [vmem:[#allocation1 + $0x18] sm:$0xff pattern:$0x75316420]
        %v871 = vld.sshfl [vmem:[#allocation1 + $0x20] sm:$0xff pattern:$0x75316420]
        %v877 = vpack.c.bf16 %v867, %v867
        %v878 = vpack.c.bf16 %v868, %v868
        %v879 = vpack.c.bf16 %v869, %v869
        %v880 = vpack.c.bf16 %v870, %v870
        %v881 = vpack.c.bf16 %v871, %v871
        %887 = vrot.lane.b32.xlu0 %v877, 120
        %v888 = vpop.permute.xlu0 %887
        %889 = vrot.lane.b32.xlu0 %v878, 120
        %v890 = vpop.permute.xlu0 %889
        %891 = vrot.lane.b32.xlu0 %v879, 120
        %v892 = vpop.permute.xlu0 %891
        %893 = vrot.lane.b32.xlu0 %v880, 120
        %v894 = vpop.permute.xlu0 %893
        %895 = vrot.lane.b32.xlu0 %v881, 120
        %v896 = vpop.permute.xlu0 %895
        %vm897 = vcmask 982016
        %v898 = vsel %vm897, %v888, %v890
        %v899 = vsel %vm897, %v890, %v892
        %v900 = vsel %vm897, %v892, %v894
        %v901 = vsel %vm897, %v894, %v896
        %v903 = vsel %vm546, %v858, 0
        %v906 = vsel %vm550, %v898, 0
        %v909 = vsel %vm550, %v899, 0
        %v912 = vsel %vm550, %v900, 0
        %v915 = vsel %vm550, %v901, 0
        %917 = vmatpush.bf16.msra.mxu0 0
        %918 = vmatpush.bf16.msra.mxu0 0
        %919 = vmatpush.bf16.msra.mxu0 0
        %920 = vmatpush.bf16.msra.mxu0 0
        %921 = vmatpush.bf16.msra.mxu0 0
        %922 = vmatpush.bf16.msra.mxu0 0
        %923 = vmatpush.bf16.msra.mxu0 0
        %924 = vmatpush.bf16.msra.mxu0 %v906
        %925 = vmatmul.bf16.gmra.mxu0 %v903
        %v926 = vpop.f32.mrf.mxu0
        %v927 = vadd.f32 0.0, %v926
        %v928 = vpop.f32.mrf.mxu0
        %929 = vdwg.mxu0
        %930 = vmatpush.bf16.msra.mxu0 0
        %931 = vmatpush.bf16.msra.mxu0 0
        %932 = vmatpush.bf16.msra.mxu0 0
        %933 = vmatpush.bf16.msra.mxu0 0
        %934 = vmatpush.bf16.msra.mxu0 0
        %935 = vmatpush.bf16.msra.mxu0 0
        %936 = vmatpush.bf16.msra.mxu0 0
        %937 = vmatpush.bf16.msra.mxu0 %v909
        %938 = vmatmul.bf16.gmra.mxu0 %v903
        %v939 = vpop.f32.mrf.mxu0
        %v940 = vadd.f32 0.0, %v939
        %v941 = vpop.f32.mrf.mxu0
        %942 = vdwg.mxu0
        %943 = vmatpush.bf16.msra.mxu0 0
        %944 = vmatpush.bf16.msra.mxu0 0
        %945 = vmatpush.bf16.msra.mxu0 0
        %946 = vmatpush.bf16.msra.mxu0 0
        %947 = vmatpush.bf16.msra.mxu0 0
        %948 = vmatpush.bf16.msra.mxu0 0
        %949 = vmatpush.bf16.msra.mxu0 0
        %950 = vmatpush.bf16.msra.mxu0 %v912
        %951 = vmatmul.bf16.gmra.mxu0 %v903
        %v952 = vpop.f32.mrf.mxu0
        %v953 = vadd.f32 0.0, %v952
        %v954 = vpop.f32.mrf.mxu0
        %955 = vdwg.mxu0
        %956 = vmatpush.bf16.msra.mxu0 0
        %957 = vmatpush.bf16.msra.mxu0 0
        %958 = vmatpush.bf16.msra.mxu0 0
        %959 = vmatpush.bf16.msra.mxu0 0
        %960 = vmatpush.bf16.msra.mxu0 0
        %961 = vmatpush.bf16.msra.mxu0 0
        %962 = vmatpush.bf16.msra.mxu0 0
        %963 = vmatpush.bf16.msra.mxu0 %v915
        %964 = vmatmul.bf16.gmra.mxu0 %v903
        %v965 = vpop.f32.mrf.mxu0
        %v966 = vadd.f32 0.0, %v965
        %v967 = vpop.f32.mrf.mxu0
        %968 = vdwg.mxu0
        %v969 = vadd.f32 %v823, %v927
        %v970 = vadd.f32 %v824, %v940
        %v971 = vadd.f32 %v825, %v953
        %v972 = vadd.f32 %v826, %v966
        %v973 = vld [vmem:[#allocation2] sm:$0x33]
        %v974 = vld [vmem:[#allocation2 + $0x8] sm:$0x33]
        %v975 = vld [vmem:[#allocation2 + $0x10] sm:$0x3]
        %s976 = scalar_lea.vmem %s1, 4
        %v977 = vld [vmem:[%s976] ss:$8 sm:$0xf]
        %v979 = vperm.slane %v977, 0
        %v980 = vperm.slane %v977, 1
        %v981 = vperm.slane %v977, 2
        %v982 = vperm.slane %v977, 3
        %v983 = vrot.slane %v980, 4
        %v984 = vrot.slane %v982, 4
        %v985 = vsel %vm424, %v979, %v983
        %v986 = vsel %vm424, %v981, %v984
        %987 = vrot.lane.b32.xlu0 %v985, 9
        %v988 = vpop.permute.xlu0 %987
        %989 = vrot.lane.b32.xlu0 %v986, 9
        %v990 = vpop.permute.xlu0 %989
        %v991 = vrot.slane %v988, 4
        %v992 = vrot.slane %v990, 4
        %vm993 = vcmask 72704
        %v994 = vsel %vm993, %v991, %v988
        %v995 = vsel %vm424, %v991, %v992
        %v996 = vsel %vm993, %v995, %v990
        %v1000 = vmul.f32 %v973, %v994
        %v1001 = vmul.f32 %v974, %v996
        %v1002 = vmul.f32 %v975, %v992
        %s1003 = scalar_lea.vmem %s4, 8
        %v1004 = vld [vmem:[%s1003] sm:$0x3]
        %1008 = vst [vmem:[#allocation1] ss:$2 sm:$0xff] %v1000
        %s1009 = scalar_lea.vmem [#allocation1], 16
        %1010 = vst [vmem:[%s1009] ss:$2 sm:$0xff] %v1001
        %s1011 = scalar_lea.vmem [#allocation1], 32
        %1012 = vst [vmem:[%s1011] ss:$2 sm:$0xff] %v1002
        %v1013 = vld.sshfl [vmem:[#allocation1] sm:$0xff pattern:$0x75316420]
        %v1014 = vld.sshfl [vmem:[#allocation1 + $0x8] sm:$0xff pattern:$0x75316420]
        %v1015 = vld.sshfl [vmem:[#allocation1 + $0x10] sm:$0xff pattern:$0x75316420]
        %v1016 = vld.sshfl [vmem:[#allocation1 + $0x18] sm:$0xff pattern:$0x75316420]
        %v1017 = vld.sshfl [vmem:[#allocation1 + $0x20] sm:$0xff pattern:$0x75316420]
        %v1023 = vpack.c.bf16 %v1013, %v1013
        %v1024 = vpack.c.bf16 %v1014, %v1014
        %v1025 = vpack.c.bf16 %v1015, %v1015
        %v1026 = vpack.c.bf16 %v1016, %v1016
        %v1027 = vpack.c.bf16 %v1017, %v1017
        %1033 = vrot.lane.b32.xlu0 %v1023, 119
        %v1034 = vpop.permute.xlu0 %1033
        %1035 = vrot.lane.b32.xlu0 %v1024, 119
        %v1036 = vpop.permute.xlu0 %1035
        %1037 = vrot.lane.b32.xlu0 %v1025, 119
        %v1038 = vpop.permute.xlu0 %1037
        %1039 = vrot.lane.b32.xlu0 %v1026, 119
        %v1040 = vpop.permute.xlu0 %1039
        %1041 = vrot.lane.b32.xlu0 %v1027, 119
        %v1042 = vpop.permute.xlu0 %1041
        %vm1043 = vcmask 973824
        %v1044 = vsel %vm1043, %v1034, %v1036
        %v1045 = vsel %vm1043, %v1036, %v1038
        %v1046 = vsel %vm1043, %v1038, %v1040
        %v1047 = vsel %vm1043, %v1040, %v1042
        %v1049 = vsel %vm546, %v1004, 0
        %v1052 = vsel %vm550, %v1044, 0
        %v1055 = vsel %vm550, %v1045, 0
        %v1058 = vsel %vm550, %v1046, 0
        %v1061 = vsel %vm550, %v1047, 0
        %1063 = vmatpush.bf16.msra.mxu0 0
        %1064 = vmatpush.bf16.msra.mxu0 0
        %1065 = vmatpush.bf16.msra.mxu0 0
        %1066 = vmatpush.bf16.msra.mxu0 0
        %1067 = vmatpush.bf16.msra.mxu0 0
        %1068 = vmatpush.bf16.msra.mxu0 0
        %1069 = vmatpush.bf16.msra.mxu0 0
        %1070 = vmatpush.bf16.msra.mxu0 %v1052
        %1071 = vmatmul.bf16.gmra.mxu0 %v1049
        %v1072 = vpop.f32.mrf.mxu0
        %v1073 = vadd.f32 0.0, %v1072
        %v1074 = vpop.f32.mrf.mxu0
        %1075 = vdwg.mxu0
        %1076 = vmatpush.bf16.msra.mxu0 0
        %1077 = vmatpush.bf16.msra.mxu0 0
        %1078 = vmatpush.bf16.msra.mxu0 0
        %1079 = vmatpush.bf16.msra.mxu0 0
        %1080 = vmatpush.bf16.msra.mxu0 0
        %1081 = vmatpush.bf16.msra.mxu0 0
        %1082 = vmatpush.bf16.msra.mxu0 0
        %1083 = vmatpush.bf16.msra.mxu0 %v1055
        %1084 = vmatmul.bf16.gmra.mxu0 %v1049
        %v1085 = vpop.f32.mrf.mxu0
        %v1086 = vadd.f32 0.0, %v1085
        %v1087 = vpop.f32.mrf.mxu0
        %1088 = vdwg.mxu0
        %1089 = vmatpush.bf16.msra.mxu0 0
        %1090 = vmatpush.bf16.msra.mxu0 0
        %1091 = vmatpush.bf16.msra.mxu0 0
        %1092 = vmatpush.bf16.msra.mxu0 0
        %1093 = vmatpush.bf16.msra.mxu0 0
        %1094 = vmatpush.bf16.msra.mxu0 0
        %1095 = vmatpush.bf16.msra.mxu0 0
        %1096 = vmatpush.bf16.msra.mxu0 %v1058
        %1097 = vmatmul.bf16.gmra.mxu0 %v1049
        %v1098 = vpop.f32.mrf.mxu0
        %v1099 = vadd.f32 0.0, %v1098
        %v1100 = vpop.f32.mrf.mxu0
        %1101 = vdwg.mxu0
        %1102 = vmatpush.bf16.msra.mxu0 0
        %1103 = vmatpush.bf16.msra.mxu0 0
        %1104 = vmatpush.bf16.msra.mxu0 0
        %1105 = vmatpush.bf16.msra.mxu0 0
        %1106 = vmatpush.bf16.msra.mxu0 0
        %1107 = vmatpush.bf16.msra.mxu0 0
        %1108 = vmatpush.bf16.msra.mxu0 0
        %1109 = vmatpush.bf16.msra.mxu0 %v1061
        %1110 = vmatmul.bf16.gmra.mxu0 %v1049
        %v1111 = vpop.f32.mrf.mxu0
        %v1112 = vadd.f32 0.0, %v1111
        %v1113 = vpop.f32.mrf.mxu0
        %1114 = vdwg.mxu0
        %v1115 = vadd.f32 %v969, %v1073
        %v1116 = vadd.f32 %v970, %v1086
        %v1117 = vadd.f32 %v971, %v1099
        %v1118 = vadd.f32 %v972, %v1112
        %v1119 = vld [vmem:[#allocation2] sm:$0x33]
        %v1120 = vld [vmem:[#allocation2 + $0x8] sm:$0x33]
        %v1121 = vld [vmem:[#allocation2 + $0x10] sm:$0x3]
        %s1122 = scalar_lea.vmem %s1, 5
        %v1123 = vld [vmem:[%s1122] ss:$8 sm:$0xf]
        %v1125 = vperm.slane %v1123, 0
        %v1126 = vperm.slane %v1123, 1
        %v1127 = vperm.slane %v1123, 2
        %v1128 = vperm.slane %v1123, 3
        %v1129 = vrot.slane %v1126, 4
        %v1130 = vrot.slane %v1128, 4
        %v1131 = vsel %vm424, %v1125, %v1129
        %v1132 = vsel %vm424, %v1127, %v1130
        %1133 = vrot.lane.b32.xlu0 %v1131, 10
        %v1134 = vpop.permute.xlu0 %1133
        %1135 = vrot.lane.b32.xlu0 %v1132, 10
        %v1136 = vpop.permute.xlu0 %1135
        %v1137 = vrot.slane %v1134, 4
        %v1138 = vrot.slane %v1136, 4
        %vm1139 = vcmask 80896
        %v1140 = vsel %vm1139, %v1137, %v1134
        %v1141 = vsel %vm424, %v1137, %v1138
        %v1142 = vsel %vm1139, %v1141, %v1136
        %v1146 = vmul.f32 %v1119, %v1140
        %v1147 = vmul.f32 %v1120, %v1142
        %v1148 = vmul.f32 %v1121, %v1138
        %s1149 = scalar_lea.vmem %s4, 10
        %v1150 = vld [vmem:[%s1149] sm:$0x3]
        %1154 = vst [vmem:[#allocation1] ss:$2 sm:$0xff] %v1146
        %s1155 = scalar_lea.vmem [#allocation1], 16
        %1156 = vst [vmem:[%s1155] ss:$2 sm:$0xff] %v1147
        %s1157 = scalar_lea.vmem [#allocation1], 32
        %1158 = vst [vmem:[%s1157] ss:$2 sm:$0xff] %v1148
        %v1159 = vld.sshfl [vmem:[#allocation1] sm:$0xff pattern:$0x75316420]
        %v1160 = vld.sshfl [vmem:[#allocation1 + $0x8] sm:$0xff pattern:$0x75316420]
        %v1161 = vld.sshfl [vmem:[#allocation1 + $0x10] sm:$0xff pattern:$0x75316420]
        %v1162 = vld.sshfl [vmem:[#allocation1 + $0x18] sm:$0xff pattern:$0x75316420]
        %v1163 = vld.sshfl [vmem:[#allocation1 + $0x20] sm:$0xff pattern:$0x75316420]
        %v1169 = vpack.c.bf16 %v1159, %v1159
        %v1170 = vpack.c.bf16 %v1160, %v1160
        %v1171 = vpack.c.bf16 %v1161, %v1161
        %v1172 = vpack.c.bf16 %v1162, %v1162
        %v1173 = vpack.c.bf16 %v1163, %v1163
        %1179 = vrot.lane.b32.xlu0 %v1169, 118
        %v1180 = vpop.permute.xlu0 %1179
        %1181 = vrot.lane.b32.xlu0 %v1170, 118
        %v1182 = vpop.permute.xlu0 %1181
        %1183 = vrot.lane.b32.xlu0 %v1171, 118
        %v1184 = vpop.permute.xlu0 %1183
        %1185 = vrot.lane.b32.xlu0 %v1172, 118
        %v1186 = vpop.permute.xlu0 %1185
        %1187 = vrot.lane.b32.xlu0 %v1173, 118
        %v1188 = vpop.permute.xlu0 %1187
        %vm1189 = vcmask 965632
        %v1190 = vsel %vm1189, %v1180, %v1182
        %v1191 = vsel %vm1189, %v1182, %v1184
        %v1192 = vsel %vm1189, %v1184, %v1186
        %v1193 = vsel %vm1189, %v1186, %v1188
        %v1195 = vsel %vm546, %v1150, 0
        %v1198 = vsel %vm550, %v1190, 0
        %v1201 = vsel %vm550, %v1191, 0
        %v1204 = vsel %vm550, %v1192, 0
        %v1207 = vsel %vm550, %v1193, 0
        %1209 = vmatpush.bf16.msra.mxu0 0
        %1210 = vmatpush.bf16.msra.mxu0 0
        %1211 = vmatpush.bf16.msra.mxu0 0
        %1212 = vmatpush.bf16.msra.mxu0 0
        %1213 = vmatpush.bf16.msra.mxu0 0
        %1214 = vmatpush.bf16.msra.mxu0 0
        %1215 = vmatpush.bf16.msra.mxu0 0
        %1216 = vmatpush.bf16.msra.mxu0 %v1198
        %1217 = vmatmul.bf16.gmra.mxu0 %v1195
        %v1218 = vpop.f32.mrf.mxu0
        %v1219 = vadd.f32 0.0, %v1218
        %v1220 = vpop.f32.mrf.mxu0
        %1221 = vdwg.mxu0
        %1222 = vmatpush.bf16.msra.mxu0 0
        %1223 = vmatpush.bf16.msra.mxu0 0
        %1224 = vmatpush.bf16.msra.mxu0 0
        %1225 = vmatpush.bf16.msra.mxu0 0
        %1226 = vmatpush.bf16.msra.mxu0 0
        %1227 = vmatpush.bf16.msra.mxu0 0
        %1228 = vmatpush.bf16.msra.mxu0 0
        %1229 = vmatpush.bf16.msra.mxu0 %v1201
        %1230 = vmatmul.bf16.gmra.mxu0 %v1195
        %v1231 = vpop.f32.mrf.mxu0
        %v1232 = vadd.f32 0.0, %v1231
        %v1233 = vpop.f32.mrf.mxu0
        %1234 = vdwg.mxu0
        %1235 = vmatpush.bf16.msra.mxu0 0
        %1236 = vmatpush.bf16.msra.mxu0 0
        %1237 = vmatpush.bf16.msra.mxu0 0
        %1238 = vmatpush.bf16.msra.mxu0 0
        %1239 = vmatpush.bf16.msra.mxu0 0
        %1240 = vmatpush.bf16.msra.mxu0 0
        %1241 = vmatpush.bf16.msra.mxu0 0
        %1242 = vmatpush.bf16.msra.mxu0 %v1204
        %1243 = vmatmul.bf16.gmra.mxu0 %v1195
        %v1244 = vpop.f32.mrf.mxu0
        %v1245 = vadd.f32 0.0, %v1244
        %v1246 = vpop.f32.mrf.mxu0
        %1247 = vdwg.mxu0
        %1248 = vmatpush.bf16.msra.mxu0 0
        %1249 = vmatpush.bf16.msra.mxu0 0
        %1250 = vmatpush.bf16.msra.mxu0 0
        %1251 = vmatpush.bf16.msra.mxu0 0
        %1252 = vmatpush.bf16.msra.mxu0 0
        %1253 = vmatpush.bf16.msra.mxu0 0
        %1254 = vmatpush.bf16.msra.mxu0 0
        %1255 = vmatpush.bf16.msra.mxu0 %v1207
        %1256 = vmatmul.bf16.gmra.mxu0 %v1195
        %v1257 = vpop.f32.mrf.mxu0
        %v1258 = vadd.f32 0.0, %v1257
        %v1259 = vpop.f32.mrf.mxu0
        %1260 = vdwg.mxu0
        %v1261 = vadd.f32 %v1115, %v1219
        %v1262 = vadd.f32 %v1116, %v1232
        %v1263 = vadd.f32 %v1117, %v1245
        %v1264 = vadd.f32 %v1118, %v1258
        %v1265 = vld [vmem:[#allocation2] sm:$0x33]
        %v1266 = vld [vmem:[#allocation2 + $0x8] sm:$0x33]
        %v1267 = vld [vmem:[#allocation2 + $0x10] sm:$0x3]
        %s1268 = scalar_lea.vmem %s1, 6
        %v1269 = vld [vmem:[%s1268] ss:$8 sm:$0xf]
        %v1271 = vperm.slane %v1269, 0
        %v1272 = vperm.slane %v1269, 1
        %v1273 = vperm.slane %v1269, 2
        %v1274 = vperm.slane %v1269, 3
        %v1275 = vrot.slane %v1272, 4
        %v1276 = vrot.slane %v1274, 4
        %v1277 = vsel %vm424, %v1271, %v1275
        %v1278 = vsel %vm424, %v1273, %v1276
        %1279 = vrot.lane.b32.xlu0 %v1277, 16
        %v1280 = vpop.permute.xlu0 %1279
        %1281 = vrot.lane.b32.xlu0 %v1278, 16
        %v1282 = vpop.permute.xlu0 %1281
        %v1283 = vrot.slane %v1280, 4
        %v1284 = vrot.slane %v1282, 4
        %vm1285 = vcmask 130048
        %v1286 = vsel %vm1285, %v1283, %v1280
        %v1287 = vsel %vm424, %v1283, %v1284
        %v1288 = vsel %vm1285, %v1287, %v1282
        %v1292 = vmul.f32 %v1265, %v1286
        %v1293 = vmul.f32 %v1266, %v1288
        %v1294 = vmul.f32 %v1267, %v1284
        %s1295 = scalar_lea.vmem %s4, 12
        %v1296 = vld [vmem:[%s1295] sm:$0x3]
        %1300 = vst [vmem:[#allocation1] ss:$2 sm:$0xff] %v1292
        %s1301 = scalar_lea.vmem [#allocation1], 16
        %1302 = vst [vmem:[%s1301] ss:$2 sm:$0xff] %v1293
        %s1303 = scalar_lea.vmem [#allocation1], 32
        %1304 = vst [vmem:[%s1303] ss:$2 sm:$0xff] %v1294
        %v1305 = vld.sshfl [vmem:[#allocation1] sm:$0xff pattern:$0x75316420]
        %v1306 = vld.sshfl [vmem:[#allocation1 + $0x8] sm:$0xff pattern:$0x75316420]
        %v1307 = vld.sshfl [vmem:[#allocation1 + $0x10] sm:$0xff pattern:$0x75316420]
        %v1308 = vld.sshfl [vmem:[#allocation1 + $0x18] sm:$0xff pattern:$0x75316420]
        %v1309 = vld.sshfl [vmem:[#allocation1 + $0x20] sm:$0xff pattern:$0x75316420]
        %v1315 = vpack.c.bf16 %v1305, %v1305
        %v1316 = vpack.c.bf16 %v1306, %v1306
        %v1317 = vpack.c.bf16 %v1307, %v1307
        %v1318 = vpack.c.bf16 %v1308, %v1308
        %v1319 = vpack.c.bf16 %v1309, %v1309
        %1325 = vrot.lane.b32.xlu0 %v1315, 112
        %v1326 = vpop.permute.xlu0 %1325
        %1327 = vrot.lane.b32.xlu0 %v1316, 112
        %v1328 = vpop.permute.xlu0 %1327
        %1329 = vrot.lane.b32.xlu0 %v1317, 112
        %v1330 = vpop.permute.xlu0 %1329
        %1331 = vrot.lane.b32.xlu0 %v1318, 112
        %v1332 = vpop.permute.xlu0 %1331
        %1333 = vrot.lane.b32.xlu0 %v1319, 112
        %v1334 = vpop.permute.xlu0 %1333
        %vm1335 = vcmask 916480
        %v1336 = vsel %vm1335, %v1326, %v1328
        %v1337 = vsel %vm1335, %v1328, %v1330
        %v1338 = vsel %vm1335, %v1330, %v1332
        %v1339 = vsel %vm1335, %v1332, %v1334
        %v1341 = vsel %vm546, %v1296, 0
        %v1344 = vsel %vm550, %v1336, 0
        %v1347 = vsel %vm550, %v1337, 0
        %v1350 = vsel %vm550, %v1338, 0
        %v1353 = vsel %vm550, %v1339, 0
        %1355 = vmatpush.bf16.msra.mxu0 0
        %1356 = vmatpush.bf16.msra.mxu0 0
        %1357 = vmatpush.bf16.msra.mxu0 0
        %1358 = vmatpush.bf16.msra.mxu0 0
        %1359 = vmatpush.bf16.msra.mxu0 0
        %1360 = vmatpush.bf16.msra.mxu0 0
        %1361 = vmatpush.bf16.msra.mxu0 0
        %1362 = vmatpush.bf16.msra.mxu0 %v1344
        %1363 = vmatmul.bf16.gmra.mxu0 %v1341
        %v1364 = vpop.f32.mrf.mxu0
        %v1365 = vadd.f32 0.0, %v1364
        %v1366 = vpop.f32.mrf.mxu0
        %1367 = vdwg.mxu0
        %1368 = vmatpush.bf16.msra.mxu0 0
        %1369 = vmatpush.bf16.msra.mxu0 0
        %1370 = vmatpush.bf16.msra.mxu0 0
        %1371 = vmatpush.bf16.msra.mxu0 0
        %1372 = vmatpush.bf16.msra.mxu0 0
        %1373 = vmatpush.bf16.msra.mxu0 0
        %1374 = vmatpush.bf16.msra.mxu0 0
        %1375 = vmatpush.bf16.msra.mxu0 %v1347
        %1376 = vmatmul.bf16.gmra.mxu0 %v1341
        %v1377 = vpop.f32.mrf.mxu0
        %v1378 = vadd.f32 0.0, %v1377
        %v1379 = vpop.f32.mrf.mxu0
        %1380 = vdwg.mxu0
        %1381 = vmatpush.bf16.msra.mxu0 0
        %1382 = vmatpush.bf16.msra.mxu0 0
        %1383 = vmatpush.bf16.msra.mxu0 0
        %1384 = vmatpush.bf16.msra.mxu0 0
        %1385 = vmatpush.bf16.msra.mxu0 0
        %1386 = vmatpush.bf16.msra.mxu0 0
        %1387 = vmatpush.bf16.msra.mxu0 0
        %1388 = vmatpush.bf16.msra.mxu0 %v1350
        %1389 = vmatmul.bf16.gmra.mxu0 %v1341
        %v1390 = vpop.f32.mrf.mxu0
        %v1391 = vadd.f32 0.0, %v1390
        %v1392 = vpop.f32.mrf.mxu0
        %1393 = vdwg.mxu0
        %1394 = vmatpush.bf16.msra.mxu0 0
        %1395 = vmatpush.bf16.msra.mxu0 0
        %1396 = vmatpush.bf16.msra.mxu0 0
        %1397 = vmatpush.bf16.msra.mxu0 0
        %1398 = vmatpush.bf16.msra.mxu0 0
        %1399 = vmatpush.bf16.msra.mxu0 0
        %1400 = vmatpush.bf16.msra.mxu0 0
        %1401 = vmatpush.bf16.msra.mxu0 %v1353
        %1402 = vmatmul.bf16.gmra.mxu0 %v1341
        %v1403 = vpop.f32.mrf.mxu0
        %v1404 = vadd.f32 0.0, %v1403
        %v1405 = vpop.f32.mrf.mxu0
        %1406 = vdwg.mxu0
        %v1407 = vadd.f32 %v1261, %v1365
        %v1408 = vadd.f32 %v1262, %v1378
        %v1409 = vadd.f32 %v1263, %v1391
        %v1410 = vadd.f32 %v1264, %v1404
        %v1411 = vld [vmem:[#allocation2] sm:$0x33]
        %v1412 = vld [vmem:[#allocation2 + $0x8] sm:$0x33]
        %v1413 = vld [vmem:[#allocation2 + $0x10] sm:$0x3]
        %s1414 = scalar_lea.vmem %s1, 7
        %v1415 = vld [vmem:[%s1414] ss:$8 sm:$0xf]
        %v1417 = vperm.slane %v1415, 0
        %v1418 = vperm.slane %v1415, 1
        %v1419 = vperm.slane %v1415, 2
        %v1420 = vperm.slane %v1415, 3
        %v1421 = vrot.slane %v1418, 4
        %v1422 = vrot.slane %v1420, 4
        %v1423 = vsel %vm424, %v1417, %v1421
        %v1424 = vsel %vm424, %v1419, %v1422
        %1425 = vrot.lane.b32.xlu0 %v1423, 17
        %v1426 = vpop.permute.xlu0 %1425
        %1427 = vrot.lane.b32.xlu0 %v1424, 17
        %v1428 = vpop.permute.xlu0 %1427
        %v1429 = vrot.slane %v1426, 4
        %v1430 = vrot.slane %v1428, 4
        %vm1431 = vcmask 138240
        %v1432 = vsel %vm1431, %v1429, %v1426
        %v1433 = vsel %vm424, %v1429, %v1430
        %v1434 = vsel %vm1431, %v1433, %v1428
        %v1438 = vmul.f32 %v1411, %v1432
        %v1439 = vmul.f32 %v1412, %v1434
        %v1440 = vmul.f32 %v1413, %v1430
        %s1441 = scalar_lea.vmem %s4, 14
        %v1442 = vld [vmem:[%s1441] sm:$0x3]
        %1446 = vst [vmem:[#allocation1] ss:$2 sm:$0xff] %v1438
        %s1447 = scalar_lea.vmem [#allocation1], 16
        %1448 = vst [vmem:[%s1447] ss:$2 sm:$0xff] %v1439
        %s1449 = scalar_lea.vmem [#allocation1], 32
        %1450 = vst [vmem:[%s1449] ss:$2 sm:$0xff] %v1440
        %v1451 = vld.sshfl [vmem:[#allocation1] sm:$0xff pattern:$0x75316420]
        %v1452 = vld.sshfl [vmem:[#allocation1 + $0x8] sm:$0xff pattern:$0x75316420]
        %v1453 = vld.sshfl [vmem:[#allocation1 + $0x10] sm:$0xff pattern:$0x75316420]
        %v1454 = vld.sshfl [vmem:[#allocation1 + $0x18] sm:$0xff pattern:$0x75316420]
        %v1455 = vld.sshfl [vmem:[#allocation1 + $0x20] sm:$0xff pattern:$0x75316420]
        %v1461 = vpack.c.bf16 %v1451, %v1451
        %v1462 = vpack.c.bf16 %v1452, %v1452
        %v1463 = vpack.c.bf16 %v1453, %v1453
        %v1464 = vpack.c.bf16 %v1454, %v1454
        %v1465 = vpack.c.bf16 %v1455, %v1455
        %1471 = vrot.lane.b32.xlu0 %v1461, 111
        %v1472 = vpop.permute.xlu0 %1471
        %1473 = vrot.lane.b32.xlu0 %v1462, 111
        %v1474 = vpop.permute.xlu0 %1473
        %1475 = vrot.lane.b32.xlu0 %v1463, 111
        %v1476 = vpop.permute.xlu0 %1475
        %1477 = vrot.lane.b32.xlu0 %v1464, 111
        %v1478 = vpop.permute.xlu0 %1477
        %1479 = vrot.lane.b32.xlu0 %v1465, 111
        %v1480 = vpop.permute.xlu0 %1479
        %vm1481 = vcmask 908288
        %v1482 = vsel %vm1481, %v1472, %v1474
        %v1483 = vsel %vm1481, %v1474, %v1476
        %v1484 = vsel %vm1481, %v1476, %v1478
        %v1485 = vsel %vm1481, %v1478, %v1480
        %v1487 = vsel %vm546, %v1442, 0
        %v1490 = vsel %vm550, %v1482, 0
        %v1493 = vsel %vm550, %v1483, 0
        %v1496 = vsel %vm550, %v1484, 0
        %v1499 = vsel %vm550, %v1485, 0
        %1501 = vmatpush.bf16.msra.mxu0 0
        %1502 = vmatpush.bf16.msra.mxu0 0
        %1503 = vmatpush.bf16.msra.mxu0 0
        %1504 = vmatpush.bf16.msra.mxu0 0
        %1505 = vmatpush.bf16.msra.mxu0 0
        %1506 = vmatpush.bf16.msra.mxu0 0
        %1507 = vmatpush.bf16.msra.mxu0 0
        %1508 = vmatpush.bf16.msra.mxu0 %v1490
        %1509 = vmatmul.bf16.gmra.mxu0 %v1487
        %v1510 = vpop.f32.mrf.mxu0
        %v1511 = vadd.f32 0.0, %v1510
        %v1512 = vpop.f32.mrf.mxu0
        %1513 = vdwg.mxu0
        %1514 = vmatpush.bf16.msra.mxu0 0
        %1515 = vmatpush.bf16.msra.mxu0 0
        %1516 = vmatpush.bf16.msra.mxu0 0
        %1517 = vmatpush.bf16.msra.mxu0 0
        %1518 = vmatpush.bf16.msra.mxu0 0
        %1519 = vmatpush.bf16.msra.mxu0 0
        %1520 = vmatpush.bf16.msra.mxu0 0
        %1521 = vmatpush.bf16.msra.mxu0 %v1493
        %1522 = vmatmul.bf16.gmra.mxu0 %v1487
        %v1523 = vpop.f32.mrf.mxu0
        %v1524 = vadd.f32 0.0, %v1523
        %v1525 = vpop.f32.mrf.mxu0
        %1526 = vdwg.mxu0
        %1527 = vmatpush.bf16.msra.mxu0 0
        %1528 = vmatpush.bf16.msra.mxu0 0
        %1529 = vmatpush.bf16.msra.mxu0 0
        %1530 = vmatpush.bf16.msra.mxu0 0
        %1531 = vmatpush.bf16.msra.mxu0 0
        %1532 = vmatpush.bf16.msra.mxu0 0
        %1533 = vmatpush.bf16.msra.mxu0 0
        %1534 = vmatpush.bf16.msra.mxu0 %v1496
        %1535 = vmatmul.bf16.gmra.mxu0 %v1487
        %v1536 = vpop.f32.mrf.mxu0
        %v1537 = vadd.f32 0.0, %v1536
        %v1538 = vpop.f32.mrf.mxu0
        %1539 = vdwg.mxu0
        %1540 = vmatpush.bf16.msra.mxu0 0
        %1541 = vmatpush.bf16.msra.mxu0 0
        %1542 = vmatpush.bf16.msra.mxu0 0
        %1543 = vmatpush.bf16.msra.mxu0 0
        %1544 = vmatpush.bf16.msra.mxu0 0
        %1545 = vmatpush.bf16.msra.mxu0 0
        %1546 = vmatpush.bf16.msra.mxu0 0
        %1547 = vmatpush.bf16.msra.mxu0 %v1499
        %1548 = vmatmul.bf16.gmra.mxu0 %v1487
        %v1549 = vpop.f32.mrf.mxu0
        %v1550 = vadd.f32 0.0, %v1549
        %v1551 = vpop.f32.mrf.mxu0
        %1552 = vdwg.mxu0
        %v1553 = vadd.f32 %v1407, %v1511
        %v1554 = vadd.f32 %v1408, %v1524
        %v1555 = vadd.f32 %v1409, %v1537
        %v1556 = vadd.f32 %v1410, %v1550
        %v1557 = vld [vmem:[#allocation2] sm:$0x33]
        %v1558 = vld [vmem:[#allocation2 + $0x8] sm:$0x33]
        %v1559 = vld [vmem:[#allocation2 + $0x10] sm:$0x3]
        %s1560 = scalar_lea.vmem %s1, 32
        %v1561 = vld [vmem:[%s1560] ss:$8 sm:$0xf]
        %v1563 = vperm.slane %v1561, 0
        %v1564 = vperm.slane %v1561, 1
        %v1565 = vperm.slane %v1561, 2
        %v1566 = vperm.slane %v1561, 3
        %v1567 = vrot.slane %v1564, 4
        %v1568 = vrot.slane %v1566, 4
        %v1569 = vsel %vm424, %v1563, %v1567
        %v1570 = vsel %vm424, %v1565, %v1568
        %1571 = vrot.lane.b32.xlu0 %v1569, 18
        %v1572 = vpop.permute.xlu0 %1571
        %1573 = vrot.lane.b32.xlu0 %v1570, 18
        %v1574 = vpop.permute.xlu0 %1573
        %v1575 = vrot.slane %v1572, 4
        %v1576 = vrot.slane %v1574, 4
        %vm1577 = vcmask 146432
        %v1578 = vsel %vm1577, %v1575, %v1572
        %v1579 = vsel %vm424, %v1575, %v1576
        %v1580 = vsel %vm1577, %v1579, %v1574
        %v1584 = vmul.f32 %v1557, %v1578
        %v1585 = vmul.f32 %v1558, %v1580
        %v1586 = vmul.f32 %v1559, %v1576
        %s1587 = scalar_lea.vmem %s4, 16
        %v1588 = vld [vmem:[%s1587] sm:$0x3]
        %1592 = vst [vmem:[#allocation1] ss:$2 sm:$0xff] %v1584
        %s1593 = scalar_lea.vmem [#allocation1], 16
        %1594 = vst [vmem:[%s1593] ss:$2 sm:$0xff] %v1585
        %s1595 = scalar_lea.vmem [#allocation1], 32
        %1596 = vst [vmem:[%s1595] ss:$2 sm:$0xff] %v1586
        %v1597 = vld.sshfl [vmem:[#allocation1] sm:$0xff pattern:$0x75316420]
        %v1598 = vld.sshfl [vmem:[#allocation1 + $0x8] sm:$0xff pattern:$0x75316420]
        %v1599 = vld.sshfl [vmem:[#allocation1 + $0x10] sm:$0xff pattern:$0x75316420]
        %v1600 = vld.sshfl [vmem:[#allocation1 + $0x18] sm:$0xff pattern:$0x75316420]
        %v1601 = vld.sshfl [vmem:[#allocation1 + $0x20] sm:$0xff pattern:$0x75316420]
        %v1607 = vpack.c.bf16 %v1597, %v1597
        %v1608 = vpack.c.bf16 %v1598, %v1598
        %v1609 = vpack.c.bf16 %v1599, %v1599
        %v1610 = vpack.c.bf16 %v1600, %v1600
        %v1611 = vpack.c.bf16 %v1601, %v1601
        %1617 = vrot.lane.b32.xlu0 %v1607, 110
        %v1618 = vpop.permute.xlu0 %1617
        %1619 = vrot.lane.b32.xlu0 %v1608, 110
        %v1620 = vpop.permute.xlu0 %1619
        %1621 = vrot.lane.b32.xlu0 %v1609, 110
        %v1622 = vpop.permute.xlu0 %1621
        %1623 = vrot.lane.b32.xlu0 %v1610, 110
        %v1624 = vpop.permute.xlu0 %1623
        %1625 = vrot.lane.b32.xlu0 %v1611, 110
        %v1626 = vpop.permute.xlu0 %1625
        %vm1627 = vcmask 900096
        %v1628 = vsel %vm1627, %v1618, %v1620
        %v1629 = vsel %vm1627, %v1620, %v1622
        %v1630 = vsel %vm1627, %v1622, %v1624
        %v1631 = vsel %vm1627, %v1624, %v1626
        %v1633 = vsel %vm546, %v1588, 0
        %v1636 = vsel %vm550, %v1628, 0
        %v1639 = vsel %vm550, %v1629, 0
        %v1642 = vsel %vm550, %v1630, 0
        %v1645 = vsel %vm550, %v1631, 0
        %1647 = vmatpush.bf16.msra.mxu0 0
        %1648 = vmatpush.bf16.msra.mxu0 0
        %1649 = vmatpush.bf16.msra.mxu0 0
        %1650 = vmatpush.bf16.msra.mxu0 0
        %1651 = vmatpush.bf16.msra.mxu0 0
        %1652 = vmatpush.bf16.msra.mxu0 0
        %1653 = vmatpush.bf16.msra.mxu0 0
        %1654 = vmatpush.bf16.msra.mxu0 %v1636
        %1655 = vmatmul.bf16.gmra.mxu0 %v1633
        %v1656 = vpop.f32.mrf.mxu0
        %v1657 = vadd.f32 0.0, %v1656
        %v1658 = vpop.f32.mrf.mxu0
        %1659 = vdwg.mxu0
        %1660 = vmatpush.bf16.msra.mxu0 0
        %1661 = vmatpush.bf16.msra.mxu0 0
        %1662 = vmatpush.bf16.msra.mxu0 0
        %1663 = vmatpush.bf16.msra.mxu0 0
        %1664 = vmatpush.bf16.msra.mxu0 0
        %1665 = vmatpush.bf16.msra.mxu0 0
        %1666 = vmatpush.bf16.msra.mxu0 0
        %1667 = vmatpush.bf16.msra.mxu0 %v1639
        %1668 = vmatmul.bf16.gmra.mxu0 %v1633
        %v1669 = vpop.f32.mrf.mxu0
        %v1670 = vadd.f32 0.0, %v1669
        %v1671 = vpop.f32.mrf.mxu0
        %1672 = vdwg.mxu0
        %1673 = vmatpush.bf16.msra.mxu0 0
        %1674 = vmatpush.bf16.msra.mxu0 0
        %1675 = vmatpush.bf16.msra.mxu0 0
        %1676 = vmatpush.bf16.msra.mxu0 0
        %1677 = vmatpush.bf16.msra.mxu0 0
        %1678 = vmatpush.bf16.msra.mxu0 0
        %1679 = vmatpush.bf16.msra.mxu0 0
        %1680 = vmatpush.bf16.msra.mxu0 %v1642
        %1681 = vmatmul.bf16.gmra.mxu0 %v1633
        %v1682 = vpop.f32.mrf.mxu0
        %v1683 = vadd.f32 0.0, %v1682
        %v1684 = vpop.f32.mrf.mxu0
        %1685 = vdwg.mxu0
        %1686 = vmatpush.bf16.msra.mxu0 0
        %1687 = vmatpush.bf16.msra.mxu0 0
        %1688 = vmatpush.bf16.msra.mxu0 0
        %1689 = vmatpush.bf16.msra.mxu0 0
        %1690 = vmatpush.bf16.msra.mxu0 0
        %1691 = vmatpush.bf16.msra.mxu0 0
        %1692 = vmatpush.bf16.msra.mxu0 0
        %1693 = vmatpush.bf16.msra.mxu0 %v1645
        %1694 = vmatmul.bf16.gmra.mxu0 %v1633
        %v1695 = vpop.f32.mrf.mxu0
        %v1696 = vadd.f32 0.0, %v1695
        %v1697 = vpop.f32.mrf.mxu0
        %1698 = vdwg.mxu0
        %v1699 = vadd.f32 %v1553, %v1657
        %v1700 = vadd.f32 %v1554, %v1670
        %v1701 = vadd.f32 %v1555, %v1683
        %v1702 = vadd.f32 %v1556, %v1696
        %v1703 = vld [vmem:[#allocation2] sm:$0x33]
        %v1704 = vld [vmem:[#allocation2 + $0x8] sm:$0x33]
        %v1705 = vld [vmem:[#allocation2 + $0x10] sm:$0x3]
        %s1706 = scalar_lea.vmem %s1, 33
        %v1707 = vld [vmem:[%s1706] ss:$8 sm:$0xf]
        %v1709 = vperm.slane %v1707, 0
        %v1710 = vperm.slane %v1707, 1
        %v1711 = vperm.slane %v1707, 2
        %v1712 = vperm.slane %v1707, 3
        %v1713 = vrot.slane %v1710, 4
        %v1714 = vrot.slane %v1712, 4
        %v1715 = vsel %vm424, %v1709, %v1713
        %v1716 = vsel %vm424, %v1711, %v1714
        %1717 = vrot.lane.b32.xlu0 %v1715, 64
        %v1718 = vpop.permute.xlu0 %1717
        %1719 = vrot.lane.b32.xlu0 %v1716, 64
        %v1720 = vpop.permute.xlu0 %1719
        %v1721 = vrot.slane %v1718, 4
        %v1722 = vrot.slane %v1720, 4
        %vm1723 = vcmask 523264
        %v1724 = vsel %vm1723, %v1721, %v1718
        %v1725 = vsel %vm424, %v1721, %v1722
        %v1726 = vsel %vm1723, %v1725, %v1720
        %v1730 = vmul.f32 %v1703, %v1724
        %v1731 = vmul.f32 %v1704, %v1726
        %v1732 = vmul.f32 %v1705, %v1722
        %s1733 = scalar_lea.vmem %s4, 18
        %v1734 = vld [vmem:[%s1733] sm:$0x3]
        %1738 = vst [vmem:[#allocation1] ss:$2 sm:$0xff] %v1730
        %s1739 = scalar_lea.vmem [#allocation1], 16
        %1740 = vst [vmem:[%s1739] ss:$2 sm:$0xff] %v1731
        %s1741 = scalar_lea.vmem [#allocation1], 32
        %1742 = vst [vmem:[%s1741] ss:$2 sm:$0xff] %v1732
        %v1743 = vld.sshfl [vmem:[#allocation1] sm:$0xff pattern:$0x75316420]
        %v1744 = vld.sshfl [vmem:[#allocation1 + $0x8] sm:$0xff pattern:$0x75316420]
        %v1745 = vld.sshfl [vmem:[#allocation1 + $0x10] sm:$0xff pattern:$0x75316420]
        %v1746 = vld.sshfl [vmem:[#allocation1 + $0x18] sm:$0xff pattern:$0x75316420]
        %v1747 = vld.sshfl [vmem:[#allocation1 + $0x20] sm:$0xff pattern:$0x75316420]
        %v1753 = vpack.c.bf16 %v1743, %v1743
        %v1754 = vpack.c.bf16 %v1744, %v1744
        %v1755 = vpack.c.bf16 %v1745, %v1745
        %v1756 = vpack.c.bf16 %v1746, %v1746
        %v1757 = vpack.c.bf16 %v1747, %v1747
        %1763 = vrot.lane.b32.xlu0 %v1753, 64
        %v1764 = vpop.permute.xlu0 %1763
        %1765 = vrot.lane.b32.xlu0 %v1754, 64
        %v1766 = vpop.permute.xlu0 %1765
        %1767 = vrot.lane.b32.xlu0 %v1755, 64
        %v1768 = vpop.permute.xlu0 %1767
        %1769 = vrot.lane.b32.xlu0 %v1756, 64
        %v1770 = vpop.permute.xlu0 %1769
        %1771 = vrot.lane.b32.xlu0 %v1757, 64
        %v1772 = vpop.permute.xlu0 %1771
        %vm1773 = vcmask 523264
        %v1774 = vsel %vm1773, %v1764, %v1766
        %v1775 = vsel %vm1773, %v1766, %v1768
        %v1776 = vsel %vm1773, %v1768, %v1770
        %v1777 = vsel %vm1773, %v1770, %v1772
        %v1779 = vsel %vm546, %v1734, 0
        %v1782 = vsel %vm550, %v1774, 0
        %v1785 = vsel %vm550, %v1775, 0
        %v1788 = vsel %vm550, %v1776, 0
        %v1791 = vsel %vm550, %v1777, 0
        %1793 = vmatpush.bf16.msra.mxu0 0
        %1794 = vmatpush.bf16.msra.mxu0 0
        %1795 = vmatpush.bf16.msra.mxu0 0
        %1796 = vmatpush.bf16.msra.mxu0 0
        %1797 = vmatpush.bf16.msra.mxu0 0
        %1798 = vmatpush.bf16.msra.mxu0 0
        %1799 = vmatpush.bf16.msra.mxu0 0
        %1800 = vmatpush.bf16.msra.mxu0 %v1782
        %1801 = vmatmul.bf16.gmra.mxu0 %v1779
        %v1802 = vpop.f32.mrf.mxu0
        %v1803 = vadd.f32 0.0, %v1802
        %v1804 = vpop.f32.mrf.mxu0
        %1805 = vdwg.mxu0
        %1806 = vmatpush.bf16.msra.mxu0 0
        %1807 = vmatpush.bf16.msra.mxu0 0
        %1808 = vmatpush.bf16.msra.mxu0 0
        %1809 = vmatpush.bf16.msra.mxu0 0
        %1810 = vmatpush.bf16.msra.mxu0 0
        %1811 = vmatpush.bf16.msra.mxu0 0
        %1812 = vmatpush.bf16.msra.mxu0 0
        %1813 = vmatpush.bf16.msra.mxu0 %v1785
        %1814 = vmatmul.bf16.gmra.mxu0 %v1779
        %v1815 = vpop.f32.mrf.mxu0
        %v1816 = vadd.f32 0.0, %v1815
        %v1817 = vpop.f32.mrf.mxu0
        %1818 = vdwg.mxu0
        %1819 = vmatpush.bf16.msra.mxu0 0
        %1820 = vmatpush.bf16.msra.mxu0 0
        %1821 = vmatpush.bf16.msra.mxu0 0
        %1822 = vmatpush.bf16.msra.mxu0 0
        %1823 = vmatpush.bf16.msra.mxu0 0
        %1824 = vmatpush.bf16.msra.mxu0 0
        %1825 = vmatpush.bf16.msra.mxu0 0
        %1826 = vmatpush.bf16.msra.mxu0 %v1788
        %1827 = vmatmul.bf16.gmra.mxu0 %v1779
        %v1828 = vpop.f32.mrf.mxu0
        %v1829 = vadd.f32 0.0, %v1828
        %v1830 = vpop.f32.mrf.mxu0
        %1831 = vdwg.mxu0
        %1832 = vmatpush.bf16.msra.mxu0 0
        %1833 = vmatpush.bf16.msra.mxu0 0
        %1834 = vmatpush.bf16.msra.mxu0 0
        %1835 = vmatpush.bf16.msra.mxu0 0
        %1836 = vmatpush.bf16.msra.mxu0 0
        %1837 = vmatpush.bf16.msra.mxu0 0
        %1838 = vmatpush.bf16.msra.mxu0 0
        %1839 = vmatpush.bf16.msra.mxu0 %v1791
        %1840 = vmatmul.bf16.gmra.mxu0 %v1779
        %v1841 = vpop.f32.mrf.mxu0
        %v1842 = vadd.f32 0.0, %v1841
        %v1843 = vpop.f32.mrf.mxu0
        %1844 = vdwg.mxu0
        %v1845 = vadd.f32 %v1699, %v1803
        %v1846 = vadd.f32 %v1700, %v1816
        %v1847 = vadd.f32 %v1701, %v1829
        %v1848 = vadd.f32 %v1702, %v1842
        %v1849 = vld [vmem:[#allocation2] sm:$0x33]
        %v1850 = vld [vmem:[#allocation2 + $0x8] sm:$0x33]
        %v1851 = vld [vmem:[#allocation2 + $0x10] sm:$0x3]
        %s1852 = scalar_lea.vmem %s1, 34
        %v1853 = vld [vmem:[%s1852] ss:$8 sm:$0xf]
        %v1855 = vperm.slane %v1853, 0
        %v1856 = vperm.slane %v1853, 1
        %v1857 = vperm.slane %v1853, 2
        %v1858 = vperm.slane %v1853, 3
        %v1859 = vrot.slane %v1856, 4
        %v1860 = vrot.slane %v1858, 4
        %v1861 = vsel %vm424, %v1855, %v1859
        %v1862 = vsel %vm424, %v1857, %v1860
        %1863 = vrot.lane.b32.xlu0 %v1861, 65
        %v1864 = vpop.permute.xlu0 %1863
        %1865 = vrot.lane.b32.xlu0 %v1862, 65
        %v1866 = vpop.permute.xlu0 %1865
        %v1867 = vrot.slane %v1864, 4
        %v1868 = vrot.slane %v1866, 4
        %vm1869 = vcmask 531456
        %v1870 = vsel %vm1869, %v1867, %v1864
        %v1871 = vsel %vm424, %v1867, %v1868
        %v1872 = vsel %vm1869, %v1871, %v1866
        %v1876 = vmul.f32 %v1849, %v1870
        %v1877 = vmul.f32 %v1850, %v1872
        %v1878 = vmul.f32 %v1851, %v1868
        %s1879 = scalar_lea.vmem %s4, 20
        %v1880 = vld [vmem:[%s1879] sm:$0x3]
        %1884 = vst [vmem:[#allocation1] ss:$2 sm:$0xff] %v1876
        %s1885 = scalar_lea.vmem [#allocation1], 16
        %1886 = vst [vmem:[%s1885] ss:$2 sm:$0xff] %v1877
        %s1887 = scalar_lea.vmem [#allocation1], 32
        %1888 = vst [vmem:[%s1887] ss:$2 sm:$0xff] %v1878
        %v1889 = vld.sshfl [vmem:[#allocation1] sm:$0xff pattern:$0x75316420]
        %v1890 = vld.sshfl [vmem:[#allocation1 + $0x8] sm:$0xff pattern:$0x75316420]
        %v1891 = vld.sshfl [vmem:[#allocation1 + $0x10] sm:$0xff pattern:$0x75316420]
        %v1892 = vld.sshfl [vmem:[#allocation1 + $0x18] sm:$0xff pattern:$0x75316420]
        %v1893 = vld.sshfl [vmem:[#allocation1 + $0x20] sm:$0xff pattern:$0x75316420]
        %v1899 = vpack.c.bf16 %v1889, %v1889
        %v1900 = vpack.c.bf16 %v1890, %v1890
        %v1901 = vpack.c.bf16 %v1891, %v1891
        %v1902 = vpack.c.bf16 %v1892, %v1892
        %v1903 = vpack.c.bf16 %v1893, %v1893
        %1909 = vrot.lane.b32.xlu0 %v1899, 63
        %v1910 = vpop.permute.xlu0 %1909
        %1911 = vrot.lane.b32.xlu0 %v1900, 63
        %v1912 = vpop.permute.xlu0 %1911
        %1913 = vrot.lane.b32.xlu0 %v1901, 63
        %v1914 = vpop.permute.xlu0 %1913
        %1915 = vrot.lane.b32.xlu0 %v1902, 63
        %v1916 = vpop.permute.xlu0 %1915
        %1917 = vrot.lane.b32.xlu0 %v1903, 63
        %v1918 = vpop.permute.xlu0 %1917
        %vm1919 = vcmask 515072
        %v1920 = vsel %vm1919, %v1910, %v1912
        %v1921 = vsel %vm1919, %v1912, %v1914
        %v1922 = vsel %vm1919, %v1914, %v1916
        %v1923 = vsel %vm1919, %v1916, %v1918
        %v1925 = vsel %vm546, %v1880, 0
        %v1928 = vsel %vm550, %v1920, 0
        %v1931 = vsel %vm550, %v1921, 0
        %v1934 = vsel %vm550, %v1922, 0
        %v1937 = vsel %vm550, %v1923, 0
        %1939 = vmatpush.bf16.msra.mxu0 0
        %1940 = vmatpush.bf16.msra.mxu0 0
        %1941 = vmatpush.bf16.msra.mxu0 0
        %1942 = vmatpush.bf16.msra.mxu0 0
        %1943 = vmatpush.bf16.msra.mxu0 0
        %1944 = vmatpush.bf16.msra.mxu0 0
        %1945 = vmatpush.bf16.msra.mxu0 0
        %1946 = vmatpush.bf16.msra.mxu0 %v1928
        %1947 = vmatmul.bf16.gmra.mxu0 %v1925
        %v1948 = vpop.f32.mrf.mxu0
        %v1949 = vadd.f32 0.0, %v1948
        %v1950 = vpop.f32.mrf.mxu0
        %1951 = vdwg.mxu0
        %1952 = vmatpush.bf16.msra.mxu0 0
        %1953 = vmatpush.bf16.msra.mxu0 0
        %1954 = vmatpush.bf16.msra.mxu0 0
        %1955 = vmatpush.bf16.msra.mxu0 0
        %1956 = vmatpush.bf16.msra.mxu0 0
        %1957 = vmatpush.bf16.msra.mxu0 0
        %1958 = vmatpush.bf16.msra.mxu0 0
        %1959 = vmatpush.bf16.msra.mxu0 %v1931
        %1960 = vmatmul.bf16.gmra.mxu0 %v1925
        %v1961 = vpop.f32.mrf.mxu0
        %v1962 = vadd.f32 0.0, %v1961
        %v1963 = vpop.f32.mrf.mxu0
        %1964 = vdwg.mxu0
        %1965 = vmatpush.bf16.msra.mxu0 0
        %1966 = vmatpush.bf16.msra.mxu0 0
        %1967 = vmatpush.bf16.msra.mxu0 0
        %1968 = vmatpush.bf16.msra.mxu0 0
        %1969 = vmatpush.bf16.msra.mxu0 0
        %1970 = vmatpush.bf16.msra.mxu0 0
        %1971 = vmatpush.bf16.msra.mxu0 0
        %1972 = vmatpush.bf16.msra.mxu0 %v1934
        %1973 = vmatmul.bf16.gmra.mxu0 %v1925
        %v1974 = vpop.f32.mrf.mxu0
        %v1975 = vadd.f32 0.0, %v1974
        %v1976 = vpop.f32.mrf.mxu0
        %1977 = vdwg.mxu0
        %1978 = vmatpush.bf16.msra.mxu0 0
        %1979 = vmatpush.bf16.msra.mxu0 0
        %1980 = vmatpush.bf16.msra.mxu0 0
        %1981 = vmatpush.bf16.msra.mxu0 0
        %1982 = vmatpush.bf16.msra.mxu0 0
        %1983 = vmatpush.bf16.msra.mxu0 0
        %1984 = vmatpush.bf16.msra.mxu0 0
        %1985 = vmatpush.bf16.msra.mxu0 %v1937
        %1986 = vmatmul.bf16.gmra.mxu0 %v1925
        %v1987 = vpop.f32.mrf.mxu0
        %v1988 = vadd.f32 0.0, %v1987
        %v1989 = vpop.f32.mrf.mxu0
        %1990 = vdwg.mxu0
        %v1991 = vadd.f32 %v1845, %v1949
        %v1992 = vadd.f32 %v1846, %v1962
        %v1993 = vadd.f32 %v1847, %v1975
        %v1994 = vadd.f32 %v1848, %v1988
        %v1995 = vld [vmem:[#allocation2] sm:$0x33]
        %v1996 = vld [vmem:[#allocation2 + $0x8] sm:$0x33]
        %v1997 = vld [vmem:[#allocation2 + $0x10] sm:$0x3]
        %s1998 = scalar_lea.vmem %s1, 35
        %v1999 = vld [vmem:[%s1998] ss:$8 sm:$0xf]
        %v2001 = vperm.slane %v1999, 0
        %v2002 = vperm.slane %v1999, 1
        %v2003 = vperm.slane %v1999, 2
        %v2004 = vperm.slane %v1999, 3
        %v2005 = vrot.slane %v2002, 4
        %v2006 = vrot.slane %v2004, 4
        %v2007 = vsel %vm424, %v2001, %v2005
        %v2008 = vsel %vm424, %v2003, %v2006
        %2009 = vrot.lane.b32.xlu0 %v2007, 66
        %v2010 = vpop.permute.xlu0 %2009
        %2011 = vrot.lane.b32.xlu0 %v2008, 66
        %v2012 = vpop.permute.xlu0 %2011
        %v2013 = vrot.slane %v2010, 4
        %v2014 = vrot.slane %v2012, 4
        %vm2015 = vcmask 539648
        %v2016 = vsel %vm2015, %v2013, %v2010
        %v2017 = vsel %vm424, %v2013, %v2014
        %v2018 = vsel %vm2015, %v2017, %v2012
        %v2022 = vmul.f32 %v1995, %v2016
        %v2023 = vmul.f32 %v1996, %v2018
        %v2024 = vmul.f32 %v1997, %v2014
        %s2025 = scalar_lea.vmem %s4, 22
        %v2026 = vld [vmem:[%s2025] sm:$0x3]
        %2030 = vst [vmem:[#allocation1] ss:$2 sm:$0xff] %v2022
        %s2031 = scalar_lea.vmem [#allocation1], 16
        %2032 = vst [vmem:[%s2031] ss:$2 sm:$0xff] %v2023
        %s2033 = scalar_lea.vmem [#allocation1], 32
        %2034 = vst [vmem:[%s2033] ss:$2 sm:$0xff] %v2024
        %v2035 = vld.sshfl [vmem:[#allocation1] sm:$0xff pattern:$0x75316420]
        %v2036 = vld.sshfl [vmem:[#allocation1 + $0x8] sm:$0xff pattern:$0x75316420]
        %v2037 = vld.sshfl [vmem:[#allocation1 + $0x10] sm:$0xff pattern:$0x75316420]
        %v2038 = vld.sshfl [vmem:[#allocation1 + $0x18] sm:$0xff pattern:$0x75316420]
        %v2039 = vld.sshfl [vmem:[#allocation1 + $0x20] sm:$0xff pattern:$0x75316420]
        %v2045 = vpack.c.bf16 %v2035, %v2035
        %v2046 = vpack.c.bf16 %v2036, %v2036
        %v2047 = vpack.c.bf16 %v2037, %v2037
        %v2048 = vpack.c.bf16 %v2038, %v2038
        %v2049 = vpack.c.bf16 %v2039, %v2039
        %2055 = vrot.lane.b32.xlu0 %v2045, 62
        %v2056 = vpop.permute.xlu0 %2055
        %2057 = vrot.lane.b32.xlu0 %v2046, 62
        %v2058 = vpop.permute.xlu0 %2057
        %2059 = vrot.lane.b32.xlu0 %v2047, 62
        %v2060 = vpop.permute.xlu0 %2059
        %2061 = vrot.lane.b32.xlu0 %v2048, 62
        %v2062 = vpop.permute.xlu0 %2061
        %2063 = vrot.lane.b32.xlu0 %v2049, 62
        %v2064 = vpop.permute.xlu0 %2063
        %vm2065 = vcmask 506880
        %v2066 = vsel %vm2065, %v2056, %v2058
        %v2067 = vsel %vm2065, %v2058, %v2060
        %v2068 = vsel %vm2065, %v2060, %v2062
        %v2069 = vsel %vm2065, %v2062, %v2064
        %v2071 = vsel %vm546, %v2026, 0
        %v2074 = vsel %vm550, %v2066, 0
        %v2077 = vsel %vm550, %v2067, 0
        %v2080 = vsel %vm550, %v2068, 0
        %v2083 = vsel %vm550, %v2069, 0
        %2085 = vmatpush.bf16.msra.mxu0 0
        %2086 = vmatpush.bf16.msra.mxu0 0
        %2087 = vmatpush.bf16.msra.mxu0 0
        %2088 = vmatpush.bf16.msra.mxu0 0
        %2089 = vmatpush.bf16.msra.mxu0 0
        %2090 = vmatpush.bf16.msra.mxu0 0
        %2091 = vmatpush.bf16.msra.mxu0 0
        %2092 = vmatpush.bf16.msra.mxu0 %v2074
        %2093 = vmatmul.bf16.gmra.mxu0 %v2071
        %v2094 = vpop.f32.mrf.mxu0
        %v2095 = vadd.f32 0.0, %v2094
        %v2096 = vpop.f32.mrf.mxu0
        %2097 = vdwg.mxu0
        %2098 = vmatpush.bf16.msra.mxu0 0
        %2099 = vmatpush.bf16.msra.mxu0 0
        %2100 = vmatpush.bf16.msra.mxu0 0
        %2101 = vmatpush.bf16.msra.mxu0 0
        %2102 = vmatpush.bf16.msra.mxu0 0
        %2103 = vmatpush.bf16.msra.mxu0 0
        %2104 = vmatpush.bf16.msra.mxu0 0
        %2105 = vmatpush.bf16.msra.mxu0 %v2077
        %2106 = vmatmul.bf16.gmra.mxu0 %v2071
        %v2107 = vpop.f32.mrf.mxu0
        %v2108 = vadd.f32 0.0, %v2107
        %v2109 = vpop.f32.mrf.mxu0
        %2110 = vdwg.mxu0
        %2111 = vmatpush.bf16.msra.mxu0 0
        %2112 = vmatpush.bf16.msra.mxu0 0
        %2113 = vmatpush.bf16.msra.mxu0 0
        %2114 = vmatpush.bf16.msra.mxu0 0
        %2115 = vmatpush.bf16.msra.mxu0 0
        %2116 = vmatpush.bf16.msra.mxu0 0
        %2117 = vmatpush.bf16.msra.mxu0 0
        %2118 = vmatpush.bf16.msra.mxu0 %v2080
        %2119 = vmatmul.bf16.gmra.mxu0 %v2071
        %v2120 = vpop.f32.mrf.mxu0
        %v2121 = vadd.f32 0.0, %v2120
        %v2122 = vpop.f32.mrf.mxu0
        %2123 = vdwg.mxu0
        %2124 = vmatpush.bf16.msra.mxu0 0
        %2125 = vmatpush.bf16.msra.mxu0 0
        %2126 = vmatpush.bf16.msra.mxu0 0
        %2127 = vmatpush.bf16.msra.mxu0 0
        %2128 = vmatpush.bf16.msra.mxu0 0
        %2129 = vmatpush.bf16.msra.mxu0 0
        %2130 = vmatpush.bf16.msra.mxu0 0
        %2131 = vmatpush.bf16.msra.mxu0 %v2083
        %2132 = vmatmul.bf16.gmra.mxu0 %v2071
        %v2133 = vpop.f32.mrf.mxu0
        %v2134 = vadd.f32 0.0, %v2133
        %v2135 = vpop.f32.mrf.mxu0
        %2136 = vdwg.mxu0
        %v2137 = vadd.f32 %v1991, %v2095
        %v2138 = vadd.f32 %v1992, %v2108
        %v2139 = vadd.f32 %v1993, %v2121
        %v2140 = vadd.f32 %v1994, %v2134
        %v2141 = vld [vmem:[#allocation2] sm:$0x33]
        %v2142 = vld [vmem:[#allocation2 + $0x8] sm:$0x33]
        %v2143 = vld [vmem:[#allocation2 + $0x10] sm:$0x3]
        %s2144 = scalar_lea.vmem %s1, 36
        %v2145 = vld [vmem:[%s2144] ss:$8 sm:$0xf]
        %v2147 = vperm.slane %v2145, 0
        %v2148 = vperm.slane %v2145, 1
        %v2149 = vperm.slane %v2145, 2
        %v2150 = vperm.slane %v2145, 3
        %v2151 = vrot.slane %v2148, 4
        %v2152 = vrot.slane %v2150, 4
        %v2153 = vsel %vm424, %v2147, %v2151
        %v2154 = vsel %vm424, %v2149, %v2152
        %2155 = vrot.lane.b32.xlu0 %v2153, 72
        %v2156 = vpop.permute.xlu0 %2155
        %2157 = vrot.lane.b32.xlu0 %v2154, 72
        %v2158 = vpop.permute.xlu0 %2157
        %v2159 = vrot.slane %v2156, 4
        %v2160 = vrot.slane %v2158, 4
        %vm2161 = vcmask 588800
        %v2162 = vsel %vm2161, %v2159, %v2156
        %v2163 = vsel %vm424, %v2159, %v2160
        %v2164 = vsel %vm2161, %v2163, %v2158
        %v2168 = vmul.f32 %v2141, %v2162
        %v2169 = vmul.f32 %v2142, %v2164
        %v2170 = vmul.f32 %v2143, %v2160
        %s2171 = scalar_lea.vmem %s4, 24
        %v2172 = vld [vmem:[%s2171] sm:$0x3]
        %2176 = vst [vmem:[#allocation1] ss:$2 sm:$0xff] %v2168
        %s2177 = scalar_lea.vmem [#allocation1], 16
        %2178 = vst [vmem:[%s2177] ss:$2 sm:$0xff] %v2169
        %s2179 = scalar_lea.vmem [#allocation1], 32
        %2180 = vst [vmem:[%s2179] ss:$2 sm:$0xff] %v2170
        %v2181 = vld.sshfl [vmem:[#allocation1] sm:$0xff pattern:$0x75316420]
        %v2182 = vld.sshfl [vmem:[#allocation1 + $0x8] sm:$0xff pattern:$0x75316420]
        %v2183 = vld.sshfl [vmem:[#allocation1 + $0x10] sm:$0xff pattern:$0x75316420]
        %v2184 = vld.sshfl [vmem:[#allocation1 + $0x18] sm:$0xff pattern:$0x75316420]
        %v2185 = vld.sshfl [vmem:[#allocation1 + $0x20] sm:$0xff pattern:$0x75316420]
        %v2191 = vpack.c.bf16 %v2181, %v2181
        %v2192 = vpack.c.bf16 %v2182, %v2182
        %v2193 = vpack.c.bf16 %v2183, %v2183
        %v2194 = vpack.c.bf16 %v2184, %v2184
        %v2195 = vpack.c.bf16 %v2185, %v2185
        %2201 = vrot.lane.b32.xlu0 %v2191, 56
        %v2202 = vpop.permute.xlu0 %2201
        %2203 = vrot.lane.b32.xlu0 %v2192, 56
        %v2204 = vpop.permute.xlu0 %2203
        %2205 = vrot.lane.b32.xlu0 %v2193, 56
        %v2206 = vpop.permute.xlu0 %2205
        %2207 = vrot.lane.b32.xlu0 %v2194, 56
        %v2208 = vpop.permute.xlu0 %2207
        %2209 = vrot.lane.b32.xlu0 %v2195, 56
        %v2210 = vpop.permute.xlu0 %2209
        %vm2211 = vcmask 457728
        %v2212 = vsel %vm2211, %v2202, %v2204
        %v2213 = vsel %vm2211, %v2204, %v2206
        %v2214 = vsel %vm2211, %v2206, %v2208
        %v2215 = vsel %vm2211, %v2208, %v2210
        %v2217 = vsel %vm546, %v2172, 0
        %v2220 = vsel %vm550, %v2212, 0
        %v2223 = vsel %vm550, %v2213, 0
        %v2226 = vsel %vm550, %v2214, 0
        %v2229 = vsel %vm550, %v2215, 0
        %2231 = vmatpush.bf16.msra.mxu0 0
        %2232 = vmatpush.bf16.msra.mxu0 0
        %2233 = vmatpush.bf16.msra.mxu0 0
        %2234 = vmatpush.bf16.msra.mxu0 0
        %2235 = vmatpush.bf16.msra.mxu0 0
        %2236 = vmatpush.bf16.msra.mxu0 0
        %2237 = vmatpush.bf16.msra.mxu0 0
        %2238 = vmatpush.bf16.msra.mxu0 %v2220
        %2239 = vmatmul.bf16.gmra.mxu0 %v2217
        %v2240 = vpop.f32.mrf.mxu0
        %v2241 = vadd.f32 0.0, %v2240
        %v2242 = vpop.f32.mrf.mxu0
        %2243 = vdwg.mxu0
        %2244 = vmatpush.bf16.msra.mxu0 0
        %2245 = vmatpush.bf16.msra.mxu0 0
        %2246 = vmatpush.bf16.msra.mxu0 0
        %2247 = vmatpush.bf16.msra.mxu0 0
        %2248 = vmatpush.bf16.msra.mxu0 0
        %2249 = vmatpush.bf16.msra.mxu0 0
        %2250 = vmatpush.bf16.msra.mxu0 0
        %2251 = vmatpush.bf16.msra.mxu0 %v2223
        %2252 = vmatmul.bf16.gmra.mxu0 %v2217
        %v2253 = vpop.f32.mrf.mxu0
        %v2254 = vadd.f32 0.0, %v2253
        %v2255 = vpop.f32.mrf.mxu0
        %2256 = vdwg.mxu0
        %2257 = vmatpush.bf16.msra.mxu0 0
        %2258 = vmatpush.bf16.msra.mxu0 0
        %2259 = vmatpush.bf16.msra.mxu0 0
        %2260 = vmatpush.bf16.msra.mxu0 0
        %2261 = vmatpush.bf16.msra.mxu0 0
        %2262 = vmatpush.bf16.msra.mxu0 0
        %2263 = vmatpush.bf16.msra.mxu0 0
        %2264 = vmatpush.bf16.msra.mxu0 %v2226
        %2265 = vmatmul.bf16.gmra.mxu0 %v2217
        %v2266 = vpop.f32.mrf.mxu0
        %v2267 = vadd.f32 0.0, %v2266
        %v2268 = vpop.f32.mrf.mxu0
        %2269 = vdwg.mxu0
        %2270 = vmatpush.bf16.msra.mxu0 0
        %2271 = vmatpush.bf16.msra.mxu0 0
        %2272 = vmatpush.bf16.msra.mxu0 0
        %2273 = vmatpush.bf16.msra.mxu0 0
        %2274 = vmatpush.bf16.msra.mxu0 0
        %2275 = vmatpush.bf16.msra.mxu0 0
        %2276 = vmatpush.bf16.msra.mxu0 0
        %2277 = vmatpush.bf16.msra.mxu0 %v2229
        %2278 = vmatmul.bf16.gmra.mxu0 %v2217
        %v2279 = vpop.f32.mrf.mxu0
        %v2280 = vadd.f32 0.0, %v2279
        %v2281 = vpop.f32.mrf.mxu0
        %2282 = vdwg.mxu0
        %v2283 = vadd.f32 %v2137, %v2241
        %v2284 = vadd.f32 %v2138, %v2254
        %v2285 = vadd.f32 %v2139, %v2267
        %v2286 = vadd.f32 %v2140, %v2280
        %v2287 = vld [vmem:[#allocation2] sm:$0x33]
        %v2288 = vld [vmem:[#allocation2 + $0x8] sm:$0x33]
        %v2289 = vld [vmem:[#allocation2 + $0x10] sm:$0x3]
        %s2290 = scalar_lea.vmem %s4, 26
        %v2291 = vld [vmem:[%s2290] sm:$0x3]
        %2295 = vst [vmem:[#allocation1] ss:$2 sm:$0xff] %v2287
        %s2296 = scalar_lea.vmem [#allocation1], 16
        %2297 = vst [vmem:[%s2296] ss:$2 sm:$0xff] %v2288
        %s2298 = scalar_lea.vmem [#allocation1], 32
        %2299 = vst [vmem:[%s2298] ss:$2 sm:$0xff] %v2289
        %v2300 = vld.sshfl [vmem:[#allocation1] sm:$0xff pattern:$0x75316420]
        %v2301 = vld.sshfl [vmem:[#allocation1 + $0x8] sm:$0xff pattern:$0x75316420]
        %v2302 = vld.sshfl [vmem:[#allocation1 + $0x10] sm:$0xff pattern:$0x75316420]
        %v2303 = vld.sshfl [vmem:[#allocation1 + $0x18] sm:$0xff pattern:$0x75316420]
        %v2304 = vld.sshfl [vmem:[#allocation1 + $0x20] sm:$0xff pattern:$0x75316420]
        %v2310 = vpack.c.bf16 %v2300, %v2300
        %v2311 = vpack.c.bf16 %v2301, %v2301
        %v2312 = vpack.c.bf16 %v2302, %v2302
        %v2313 = vpack.c.bf16 %v2303, %v2303
        %v2314 = vpack.c.bf16 %v2304, %v2304
        %2320 = vrot.lane.b32.xlu0 %v2310, 55
        %v2321 = vpop.permute.xlu0 %2320
        %2322 = vrot.lane.b32.xlu0 %v2311, 55
        %v2323 = vpop.permute.xlu0 %2322
        %2324 = vrot.lane.b32.xlu0 %v2312, 55
        %v2325 = vpop.permute.xlu0 %2324
        %2326 = vrot.lane.b32.xlu0 %v2313, 55
        %v2327 = vpop.permute.xlu0 %2326
        %2328 = vrot.lane.b32.xlu0 %v2314, 55
        %v2329 = vpop.permute.xlu0 %2328
        %vm2330 = vcmask 449536
        %v2331 = vsel %vm2330, %v2321, %v2323
        %v2332 = vsel %vm2330, %v2323, %v2325
        %v2333 = vsel %vm2330, %v2325, %v2327
        %v2334 = vsel %vm2330, %v2327, %v2329
        %v2336 = vsel %vm546, %v2291, 0
        %v2339 = vsel %vm550, %v2331, 0
        %v2342 = vsel %vm550, %v2332, 0
        %v2345 = vsel %vm550, %v2333, 0
        %v2348 = vsel %vm550, %v2334, 0
        %2350 = vmatpush.bf16.msra.mxu0 0
        %2351 = vmatpush.bf16.msra.mxu0 0
        %2352 = vmatpush.bf16.msra.mxu0 0
        %2353 = vmatpush.bf16.msra.mxu0 0
        %2354 = vmatpush.bf16.msra.mxu0 0
        %2355 = vmatpush.bf16.msra.mxu0 0
        %2356 = vmatpush.bf16.msra.mxu0 0
        %2357 = vmatpush.bf16.msra.mxu0 %v2339
        %2358 = vmatmul.bf16.gmra.mxu0 %v2336
        %v2359 = vpop.f32.mrf.mxu0
        %v2360 = vadd.f32 0.0, %v2359
        %v2361 = vpop.f32.mrf.mxu0
        %2362 = vdwg.mxu0
        %2363 = vmatpush.bf16.msra.mxu0 0
        %2364 = vmatpush.bf16.msra.mxu0 0
        %2365 = vmatpush.bf16.msra.mxu0 0
        %2366 = vmatpush.bf16.msra.mxu0 0
        %2367 = vmatpush.bf16.msra.mxu0 0
        %2368 = vmatpush.bf16.msra.mxu0 0
        %2369 = vmatpush.bf16.msra.mxu0 0
        %2370 = vmatpush.bf16.msra.mxu0 %v2342
        %2371 = vmatmul.bf16.gmra.mxu0 %v2336
        %v2372 = vpop.f32.mrf.mxu0
        %v2373 = vadd.f32 0.0, %v2372
        %v2374 = vpop.f32.mrf.mxu0
        %2375 = vdwg.mxu0
        %2376 = vmatpush.bf16.msra.mxu0 0
        %2377 = vmatpush.bf16.msra.mxu0 0
        %2378 = vmatpush.bf16.msra.mxu0 0
        %2379 = vmatpush.bf16.msra.mxu0 0
        %2380 = vmatpush.bf16.msra.mxu0 0
        %2381 = vmatpush.bf16.msra.mxu0 0
        %2382 = vmatpush.bf16.msra.mxu0 0
        %2383 = vmatpush.bf16.msra.mxu0 %v2345
        %2384 = vmatmul.bf16.gmra.mxu0 %v2336
        %v2385 = vpop.f32.mrf.mxu0
        %v2386 = vadd.f32 0.0, %v2385
        %v2387 = vpop.f32.mrf.mxu0
        %2388 = vdwg.mxu0
        %2389 = vmatpush.bf16.msra.mxu0 0
        %2390 = vmatpush.bf16.msra.mxu0 0
        %2391 = vmatpush.bf16.msra.mxu0 0
        %2392 = vmatpush.bf16.msra.mxu0 0
        %2393 = vmatpush.bf16.msra.mxu0 0
        %2394 = vmatpush.bf16.msra.mxu0 0
        %2395 = vmatpush.bf16.msra.mxu0 0
        %2396 = vmatpush.bf16.msra.mxu0 %v2348
        %2397 = vmatmul.bf16.gmra.mxu0 %v2336
        %v2398 = vpop.f32.mrf.mxu0
        %v2399 = vadd.f32 0.0, %v2398
        %v2400 = vpop.f32.mrf.mxu0
        %2401 = vdwg.mxu0
        %v2402 = vadd.f32 %v2283, %v2360
        %v2403 = vadd.f32 %v2284, %v2373
        %v2404 = vadd.f32 %v2285, %v2386
        %v2405 = vadd.f32 %v2286, %v2399
        %v2406 = vld [vmem:[#allocation2] sm:$0x33]
        %v2407 = vld [vmem:[#allocation2 + $0x8] sm:$0x33]
        %v2408 = vld [vmem:[#allocation2 + $0x10] sm:$0x3]
        %s2409 = scalar_lea.vmem %s1, 38
        %v2410 = vld [vmem:[%s2409] ss:$8 sm:$0xf]
        %v2412 = vperm.slane %v2410, 0
        %v2413 = vperm.slane %v2410, 1
        %v2414 = vperm.slane %v2410, 2
        %v2415 = vperm.slane %v2410, 3
        %v2416 = vrot.slane %v2413, 4
        %v2417 = vrot.slane %v2415, 4
        %v2418 = vsel %vm424, %v2412, %v2416
        %v2419 = vsel %vm424, %v2414, %v2417
        %2420 = vrot.lane.b32.xlu0 %v2418, 74
        %v2421 = vpop.permute.xlu0 %2420
        %2422 = vrot.lane.b32.xlu0 %v2419, 74
        %v2423 = vpop.permute.xlu0 %2422
        %v2424 = vrot.slane %v2421, 4
        %v2425 = vrot.slane %v2423, 4
        %vm2426 = vcmask 605184
        %v2427 = vsel %vm2426, %v2424, %v2421
        %v2428 = vsel %vm424, %v2424, %v2425
        %v2429 = vsel %vm2426, %v2428, %v2423
        %v2433 = vmul.f32 %v2406, %v2427
        %v2434 = vmul.f32 %v2407, %v2429
        %v2435 = vmul.f32 %v2408, %v2425
        %s2436 = scalar_lea.vmem %s4, 28
        %v2437 = vld [vmem:[%s2436] sm:$0x3]
        %2441 = vst [vmem:[#allocation1] ss:$2 sm:$0xff] %v2433
        %s2442 = scalar_lea.vmem [#allocation1], 16
        %2443 = vst [vmem:[%s2442] ss:$2 sm:$0xff] %v2434
        %s2444 = scalar_lea.vmem [#allocation1], 32
        %2445 = vst [vmem:[%s2444] ss:$2 sm:$0xff] %v2435
        %v2446 = vld.sshfl [vmem:[#allocation1] sm:$0xff pattern:$0x75316420]
        %v2447 = vld.sshfl [vmem:[#allocation1 + $0x8] sm:$0xff pattern:$0x75316420]
        %v2448 = vld.sshfl [vmem:[#allocation1 + $0x10] sm:$0xff pattern:$0x75316420]
        %v2449 = vld.sshfl [vmem:[#allocation1 + $0x18] sm:$0xff pattern:$0x75316420]
        %v2450 = vld.sshfl [vmem:[#allocation1 + $0x20] sm:$0xff pattern:$0x75316420]
        %v2456 = vpack.c.bf16 %v2446, %v2446
        %v2457 = vpack.c.bf16 %v2447, %v2447
        %v2458 = vpack.c.bf16 %v2448, %v2448
        %v2459 = vpack.c.bf16 %v2449, %v2449
        %v2460 = vpack.c.bf16 %v2450, %v2450
        %2466 = vrot.lane.b32.xlu0 %v2456, 54
        %v2467 = vpop.permute.xlu0 %2466
        %2468 = vrot.lane.b32.xlu0 %v2457, 54
        %v2469 = vpop.permute.xlu0 %2468
        %2470 = vrot.lane.b32.xlu0 %v2458, 54
        %v2471 = vpop.permute.xlu0 %2470
        %2472 = vrot.lane.b32.xlu0 %v2459, 54
        %v2473 = vpop.permute.xlu0 %2472
        %2474 = vrot.lane.b32.xlu0 %v2460, 54
        %v2475 = vpop.permute.xlu0 %2474
        %vm2476 = vcmask 441344
        %v2477 = vsel %vm2476, %v2467, %v2469
        %v2478 = vsel %vm2476, %v2469, %v2471
        %v2479 = vsel %vm2476, %v2471, %v2473
        %v2480 = vsel %vm2476, %v2473, %v2475
        %v2482 = vsel %vm546, %v2437, 0
        %v2485 = vsel %vm550, %v2477, 0
        %v2488 = vsel %vm550, %v2478, 0
        %v2491 = vsel %vm550, %v2479, 0
        %v2494 = vsel %vm550, %v2480, 0
        %2496 = vmatpush.bf16.msra.mxu0 0
        %2497 = vmatpush.bf16.msra.mxu0 0
        %2498 = vmatpush.bf16.msra.mxu0 0
        %2499 = vmatpush.bf16.msra.mxu0 0
        %2500 = vmatpush.bf16.msra.mxu0 0
        %2501 = vmatpush.bf16.msra.mxu0 0
        %2502 = vmatpush.bf16.msra.mxu0 0
        %2503 = vmatpush.bf16.msra.mxu0 %v2485
        %2504 = vmatmul.bf16.gmra.mxu0 %v2482
        %v2505 = vpop.f32.mrf.mxu0
        %v2506 = vadd.f32 0.0, %v2505
        %v2507 = vpop.f32.mrf.mxu0
        %2508 = vdwg.mxu0
        %2509 = vmatpush.bf16.msra.mxu0 0
        %2510 = vmatpush.bf16.msra.mxu0 0
        %2511 = vmatpush.bf16.msra.mxu0 0
        %2512 = vmatpush.bf16.msra.mxu0 0
        %2513 = vmatpush.bf16.msra.mxu0 0
        %2514 = vmatpush.bf16.msra.mxu0 0
        %2515 = vmatpush.bf16.msra.mxu0 0
        %2516 = vmatpush.bf16.msra.mxu0 %v2488
        %2517 = vmatmul.bf16.gmra.mxu0 %v2482
        %v2518 = vpop.f32.mrf.mxu0
        %v2519 = vadd.f32 0.0, %v2518
        %v2520 = vpop.f32.mrf.mxu0
        %2521 = vdwg.mxu0
        %2522 = vmatpush.bf16.msra.mxu0 0
        %2523 = vmatpush.bf16.msra.mxu0 0
        %2524 = vmatpush.bf16.msra.mxu0 0
        %2525 = vmatpush.bf16.msra.mxu0 0
        %2526 = vmatpush.bf16.msra.mxu0 0
        %2527 = vmatpush.bf16.msra.mxu0 0
        %2528 = vmatpush.bf16.msra.mxu0 0
        %2529 = vmatpush.bf16.msra.mxu0 %v2491
        %2530 = vmatmul.bf16.gmra.mxu0 %v2482
        %v2531 = vpop.f32.mrf.mxu0
        %v2532 = vadd.f32 0.0, %v2531
        %v2533 = vpop.f32.mrf.mxu0
        %2534 = vdwg.mxu0
        %2535 = vmatpush.bf16.msra.mxu0 0
        %2536 = vmatpush.bf16.msra.mxu0 0
        %2537 = vmatpush.bf16.msra.mxu0 0
        %2538 = vmatpush.bf16.msra.mxu0 0
        %2539 = vmatpush.bf16.msra.mxu0 0
        %2540 = vmatpush.bf16.msra.mxu0 0
        %2541 = vmatpush.bf16.msra.mxu0 0
        %2542 = vmatpush.bf16.msra.mxu0 %v2494
        %2543 = vmatmul.bf16.gmra.mxu0 %v2482
        %v2544 = vpop.f32.mrf.mxu0
        %v2545 = vadd.f32 0.0, %v2544
        %v2546 = vpop.f32.mrf.mxu0
        %2547 = vdwg.mxu0
        %v2548 = vadd.f32 %v2402, %v2506
        %v2549 = vadd.f32 %v2403, %v2519
        %v2550 = vadd.f32 %v2404, %v2532
        %v2551 = vadd.f32 %v2405, %v2545
        %v2552 = vld [vmem:[#allocation2] sm:$0x33]
        %v2553 = vld [vmem:[#allocation2 + $0x8] sm:$0x33]
        %v2554 = vld [vmem:[#allocation2 + $0x10] sm:$0x3]
        %s2555 = scalar_lea.vmem %s1, 39
        %v2556 = vld [vmem:[%s2555] ss:$8 sm:$0xf]
        %v2558 = vperm.slane %v2556, 0
        %v2559 = vperm.slane %v2556, 1
        %v2560 = vperm.slane %v2556, 2
        %v2561 = vperm.slane %v2556, 3
        %v2562 = vrot.slane %v2559, 4
        %v2563 = vrot.slane %v2561, 4
        %v2564 = vsel %vm424, %v2558, %v2562
        %v2565 = vsel %vm424, %v2560, %v2563
        %2566 = vrot.lane.b32.xlu0 %v2564, 80
        %v2567 = vpop.permute.xlu0 %2566
        %2568 = vrot.lane.b32.xlu0 %v2565, 80
        %v2569 = vpop.permute.xlu0 %2568
        %v2570 = vrot.slane %v2567, 4
        %v2571 = vrot.slane %v2569, 4
        %vm2572 = vcmask 654336
        %v2573 = vsel %vm2572, %v2570, %v2567
        %v2574 = vsel %vm424, %v2570, %v2571
        %v2575 = vsel %vm2572, %v2574, %v2569
        %v2579 = vmul.f32 %v2552, %v2573
        %v2580 = vmul.f32 %v2553, %v2575
        %v2581 = vmul.f32 %v2554, %v2571
        %s2582 = scalar_lea.vmem %s4, 30
        %v2583 = vld [vmem:[%s2582] sm:$0x3]
        %2587 = vst [vmem:[#allocation1] ss:$2 sm:$0xff] %v2579
        %s2588 = scalar_lea.vmem [#allocation1], 16
        %2589 = vst [vmem:[%s2588] ss:$2 sm:$0xff] %v2580
        %s2590 = scalar_lea.vmem [#allocation1], 32
        %2591 = vst [vmem:[%s2590] ss:$2 sm:$0xff] %v2581
        %v2592 = vld.sshfl [vmem:[#allocation1] sm:$0xff pattern:$0x75316420]
        %v2593 = vld.sshfl [vmem:[#allocation1 + $0x8] sm:$0xff pattern:$0x75316420]
        %v2594 = vld.sshfl [vmem:[#allocation1 + $0x10] sm:$0xff pattern:$0x75316420]
        %v2595 = vld.sshfl [vmem:[#allocation1 + $0x18] sm:$0xff pattern:$0x75316420]
        %v2596 = vld.sshfl [vmem:[#allocation1 + $0x20] sm:$0xff pattern:$0x75316420]
        %v2602 = vpack.c.bf16 %v2592, %v2592
        %v2603 = vpack.c.bf16 %v2593, %v2593
        %v2604 = vpack.c.bf16 %v2594, %v2594
        %v2605 = vpack.c.bf16 %v2595, %v2595
        %v2606 = vpack.c.bf16 %v2596, %v2596
        %2612 = vrot.lane.b32.xlu0 %v2602, 48
        %v2613 = vpop.permute.xlu0 %2612
        %2614 = vrot.lane.b32.xlu0 %v2603, 48
        %v2615 = vpop.permute.xlu0 %2614
        %2616 = vrot.lane.b32.xlu0 %v2604, 48
        %v2617 = vpop.permute.xlu0 %2616
        %2618 = vrot.lane.b32.xlu0 %v2605, 48
        %v2619 = vpop.permute.xlu0 %2618
        %2620 = vrot.lane.b32.xlu0 %v2606, 48
        %v2621 = vpop.permute.xlu0 %2620
        %vm2622 = vcmask 392192
        %v2623 = vsel %vm2622, %v2613, %v2615
        %v2624 = vsel %vm2622, %v2615, %v2617
        %v2625 = vsel %vm2622, %v2617, %v2619
        %v2626 = vsel %vm2622, %v2619, %v2621
        %v2628 = vsel %vm546, %v2583, 0
        %v2631 = vsel %vm550, %v2623, 0
        %v2634 = vsel %vm550, %v2624, 0
        %v2637 = vsel %vm550, %v2625, 0
        %v2640 = vsel %vm550, %v2626, 0
        %2642 = vmatpush.bf16.msra.mxu0 0
        %2643 = vmatpush.bf16.msra.mxu0 0
        %2644 = vmatpush.bf16.msra.mxu0 0
        %2645 = vmatpush.bf16.msra.mxu0 0
        %2646 = vmatpush.bf16.msra.mxu0 0
        %2647 = vmatpush.bf16.msra.mxu0 0
        %2648 = vmatpush.bf16.msra.mxu0 0
        %2649 = vmatpush.bf16.msra.mxu0 %v2631
        %2650 = vmatmul.bf16.gmra.mxu0 %v2628
        %v2651 = vpop.f32.mrf.mxu0
        %v2652 = vadd.f32 0.0, %v2651
        %v2653 = vpop.f32.mrf.mxu0
        %2654 = vdwg.mxu0
        %2655 = vmatpush.bf16.msra.mxu0 0
        %2656 = vmatpush.bf16.msra.mxu0 0
        %2657 = vmatpush.bf16.msra.mxu0 0
        %2658 = vmatpush.bf16.msra.mxu0 0
        %2659 = vmatpush.bf16.msra.mxu0 0
        %2660 = vmatpush.bf16.msra.mxu0 0
        %2661 = vmatpush.bf16.msra.mxu0 0
        %2662 = vmatpush.bf16.msra.mxu0 %v2634
        %2663 = vmatmul.bf16.gmra.mxu0 %v2628
        %v2664 = vpop.f32.mrf.mxu0
        %v2665 = vadd.f32 0.0, %v2664
        %v2666 = vpop.f32.mrf.mxu0
        %2667 = vdwg.mxu0
        %2668 = vmatpush.bf16.msra.mxu0 0
        %2669 = vmatpush.bf16.msra.mxu0 0
        %2670 = vmatpush.bf16.msra.mxu0 0
        %2671 = vmatpush.bf16.msra.mxu0 0
        %2672 = vmatpush.bf16.msra.mxu0 0
        %2673 = vmatpush.bf16.msra.mxu0 0
        %2674 = vmatpush.bf16.msra.mxu0 0
        %2675 = vmatpush.bf16.msra.mxu0 %v2637
        %2676 = vmatmul.bf16.gmra.mxu0 %v2628
        %v2677 = vpop.f32.mrf.mxu0
        %v2678 = vadd.f32 0.0, %v2677
        %v2679 = vpop.f32.mrf.mxu0
        %2680 = vdwg.mxu0
        %2681 = vmatpush.bf16.msra.mxu0 0
        %2682 = vmatpush.bf16.msra.mxu0 0
        %2683 = vmatpush.bf16.msra.mxu0 0
        %2684 = vmatpush.bf16.msra.mxu0 0
        %2685 = vmatpush.bf16.msra.mxu0 0
        %2686 = vmatpush.bf16.msra.mxu0 0
        %2687 = vmatpush.bf16.msra.mxu0 0
        %2688 = vmatpush.bf16.msra.mxu0 %v2640
        %2689 = vmatmul.bf16.gmra.mxu0 %v2628
        %v2690 = vpop.f32.mrf.mxu0
        %v2691 = vadd.f32 0.0, %v2690
        %v2692 = vpop.f32.mrf.mxu0
        %2693 = vdwg.mxu0
        %v2694 = vadd.f32 %v2548, %v2652
        %v2695 = vadd.f32 %v2549, %v2665
        %v2696 = vadd.f32 %v2550, %v2678
        %v2697 = vadd.f32 %v2551, %v2691
        %v2698 = vld [vmem:[#allocation2] sm:$0x33]
        %v2699 = vld [vmem:[#allocation2 + $0x8] sm:$0x33]
        %v2700 = vld [vmem:[#allocation2 + $0x10] sm:$0x3]
        %s2701 = scalar_lea.vmem %s1, 64
        %v2702 = vld [vmem:[%s2701] ss:$8 sm:$0xf]
        %v2704 = vperm.slane %v2702, 0
        %v2705 = vperm.slane %v2702, 1
        %v2706 = vperm.slane %v2702, 2
        %v2707 = vperm.slane %v2702, 3
        %v2708 = vrot.slane %v2705, 4
        %v2709 = vrot.slane %v2707, 4
        %v2710 = vsel %vm424, %v2704, %v2708
        %v2711 = vsel %vm424, %v2706, %v2709
        %2712 = vrot.lane.b32.xlu0 %v2710, 81
        %v2713 = vpop.permute.xlu0 %2712
        %2714 = vrot.lane.b32.xlu0 %v2711, 81
        %v2715 = vpop.permute.xlu0 %2714
        %v2716 = vrot.slane %v2713, 4
        %v2717 = vrot.slane %v2715, 4
        %vm2718 = vcmask 662528
        %v2719 = vsel %vm2718, %v2716, %v2713
        %v2720 = vsel %vm424, %v2716, %v2717
        %v2721 = vsel %vm2718, %v2720, %v2715
        %v2725 = vmul.f32 %v2698, %v2719
        %v2726 = vmul.f32 %v2699, %v2721
        %v2727 = vmul.f32 %v2700, %v2717
        %s2728 = scalar_lea.vmem %s4, 32
        %v2729 = vld [vmem:[%s2728] sm:$0x3]
        %2733 = vst [vmem:[#allocation1] ss:$2 sm:$0xff] %v2725
        %s2734 = scalar_lea.vmem [#allocation1], 16
        %2735 = vst [vmem:[%s2734] ss:$2 sm:$0xff] %v2726
        %s2736 = scalar_lea.vmem [#allocation1], 32
        %2737 = vst [vmem:[%s2736] ss:$2 sm:$0xff] %v2727
        %v2738 = vld.sshfl [vmem:[#allocation1] sm:$0xff pattern:$0x75316420]
        %v2739 = vld.sshfl [vmem:[#allocation1 + $0x8] sm:$0xff pattern:$0x75316420]
        %v2740 = vld.sshfl [vmem:[#allocation1 + $0x10] sm:$0xff pattern:$0x75316420]
        %v2741 = vld.sshfl [vmem:[#allocation1 + $0x18] sm:$0xff pattern:$0x75316420]
        %v2742 = vld.sshfl [vmem:[#allocation1 + $0x20] sm:$0xff pattern:$0x75316420]
        %v2748 = vpack.c.bf16 %v2738, %v2738
        %v2749 = vpack.c.bf16 %v2739, %v2739
        %v2750 = vpack.c.bf16 %v2740, %v2740
        %v2751 = vpack.c.bf16 %v2741, %v2741
        %v2752 = vpack.c.bf16 %v2742, %v2742
        %2758 = vrot.lane.b32.xlu0 %v2748, 47
        %v2759 = vpop.permute.xlu0 %2758
        %2760 = vrot.lane.b32.xlu0 %v2749, 47
        %v2761 = vpop.permute.xlu0 %2760
        %2762 = vrot.lane.b32.xlu0 %v2750, 47
        %v2763 = vpop.permute.xlu0 %2762
        %2764 = vrot.lane.b32.xlu0 %v2751, 47
        %v2765 = vpop.permute.xlu0 %2764
        %2766 = vrot.lane.b32.xlu0 %v2752, 47
        %v2767 = vpop.permute.xlu0 %2766
        %vm2768 = vcmask 384000
        %v2769 = vsel %vm2768, %v2759, %v2761
        %v2770 = vsel %vm2768, %v2761, %v2763
        %v2771 = vsel %vm2768, %v2763, %v2765
        %v2772 = vsel %vm2768, %v2765, %v2767
        %v2774 = vsel %vm546, %v2729, 0
        %v2777 = vsel %vm550, %v2769, 0
        %v2780 = vsel %vm550, %v2770, 0
        %v2783 = vsel %vm550, %v2771, 0
        %v2786 = vsel %vm550, %v2772, 0
        %2788 = vmatpush.bf16.msra.mxu0 0
        %2789 = vmatpush.bf16.msra.mxu0 0
        %2790 = vmatpush.bf16.msra.mxu0 0
        %2791 = vmatpush.bf16.msra.mxu0 0
        %2792 = vmatpush.bf16.msra.mxu0 0
        %2793 = vmatpush.bf16.msra.mxu0 0
        %2794 = vmatpush.bf16.msra.mxu0 0
        %2795 = vmatpush.bf16.msra.mxu0 %v2777
        %2796 = vmatmul.bf16.gmra.mxu0 %v2774
        %v2797 = vpop.f32.mrf.mxu0
        %v2798 = vadd.f32 0.0, %v2797
        %v2799 = vpop.f32.mrf.mxu0
        %2800 = vdwg.mxu0
        %2801 = vmatpush.bf16.msra.mxu0 0
        %2802 = vmatpush.bf16.msra.mxu0 0
        %2803 = vmatpush.bf16.msra.mxu0 0
        %2804 = vmatpush.bf16.msra.mxu0 0
        %2805 = vmatpush.bf16.msra.mxu0 0
        %2806 = vmatpush.bf16.msra.mxu0 0
        %2807 = vmatpush.bf16.msra.mxu0 0
        %2808 = vmatpush.bf16.msra.mxu0 %v2780
        %2809 = vmatmul.bf16.gmra.mxu0 %v2774
        %v2810 = vpop.f32.mrf.mxu0
        %v2811 = vadd.f32 0.0, %v2810
        %v2812 = vpop.f32.mrf.mxu0
        %2813 = vdwg.mxu0
        %2814 = vmatpush.bf16.msra.mxu0 0
        %2815 = vmatpush.bf16.msra.mxu0 0
        %2816 = vmatpush.bf16.msra.mxu0 0
        %2817 = vmatpush.bf16.msra.mxu0 0
        %2818 = vmatpush.bf16.msra.mxu0 0
        %2819 = vmatpush.bf16.msra.mxu0 0
        %2820 = vmatpush.bf16.msra.mxu0 0
        %2821 = vmatpush.bf16.msra.mxu0 %v2783
        %2822 = vmatmul.bf16.gmra.mxu0 %v2774
        %v2823 = vpop.f32.mrf.mxu0
        %v2824 = vadd.f32 0.0, %v2823
        %v2825 = vpop.f32.mrf.mxu0
        %2826 = vdwg.mxu0
        %2827 = vmatpush.bf16.msra.mxu0 0
        %2828 = vmatpush.bf16.msra.mxu0 0
        %2829 = vmatpush.bf16.msra.mxu0 0
        %2830 = vmatpush.bf16.msra.mxu0 0
        %2831 = vmatpush.bf16.msra.mxu0 0
        %2832 = vmatpush.bf16.msra.mxu0 0
        %2833 = vmatpush.bf16.msra.mxu0 0
        %2834 = vmatpush.bf16.msra.mxu0 %v2786
        %2835 = vmatmul.bf16.gmra.mxu0 %v2774
        %v2836 = vpop.f32.mrf.mxu0
        %v2837 = vadd.f32 0.0, %v2836
        %v2838 = vpop.f32.mrf.mxu0
        %2839 = vdwg.mxu0
        %v2840 = vadd.f32 %v2694, %v2798
        %v2841 = vadd.f32 %v2695, %v2811
        %v2842 = vadd.f32 %v2696, %v2824
        %v2843 = vadd.f32 %v2697, %v2837
        %v2844 = vld [vmem:[#allocation2] sm:$0x33]
        %v2845 = vld [vmem:[#allocation2 + $0x8] sm:$0x33]
        %v2846 = vld [vmem:[#allocation2 + $0x10] sm:$0x3]
        %s2847 = scalar_lea.vmem %s1, 65
        %v2848 = vld [vmem:[%s2847] ss:$8 sm:$0xf]
        %v2850 = vperm.slane %v2848, 0
        %v2851 = vperm.slane %v2848, 1
        %v2852 = vperm.slane %v2848, 2
        %v2853 = vperm.slane %v2848, 3
        %v2854 = vrot.slane %v2851, 4
        %v2855 = vrot.slane %v2853, 4
        %v2856 = vsel %vm424, %v2850, %v2854
        %v2857 = vsel %vm424, %v2852, %v2855
        %2858 = vrot.lane.b32.xlu0 %v2856, 82
        %v2859 = vpop.permute.xlu0 %2858
        %2860 = vrot.lane.b32.xlu0 %v2857, 82
        %v2861 = vpop.permute.xlu0 %2860
        %v2862 = vrot.slane %v2859, 4
        %v2863 = vrot.slane %v2861, 4
        %vm2864 = vcmask 670720
        %v2865 = vsel %vm2864, %v2862, %v2859
        %v2866 = vsel %vm424, %v2862, %v2863
        %v2867 = vsel %vm2864, %v2866, %v2861
        %v2871 = vmul.f32 %v2844, %v2865
        %v2872 = vmul.f32 %v2845, %v2867
        %v2873 = vmul.f32 %v2846, %v2863
        %s2874 = scalar_lea.vmem %s4, 34
        %v2875 = vld [vmem:[%s2874] sm:$0x3]
        %2879 = vst [vmem:[#allocation1] ss:$2 sm:$0xff] %v2871
        %s2880 = scalar_lea.vmem [#allocation1], 16
        %2881 = vst [vmem:[%s2880] ss:$2 sm:$0xff] %v2872
        %s2882 = scalar_lea.vmem [#allocation1], 32
        %2883 = vst [vmem:[%s2882] ss:$2 sm:$0xff] %v2873
        %v2884 = vld.sshfl [vmem:[#allocation1] sm:$0xff pattern:$0x75316420]
        %v2885 = vld.sshfl [vmem:[#allocation1 + $0x8] sm:$0xff pattern:$0x75316420]
        %v2886 = vld.sshfl [vmem:[#allocation1 + $0x10] sm:$0xff pattern:$0x75316420]
        %v2887 = vld.sshfl [vmem:[#allocation1 + $0x18] sm:$0xff pattern:$0x75316420]
        %v2888 = vld.sshfl [vmem:[#allocation1 + $0x20] sm:$0xff pattern:$0x75316420]
        %v2894 = vpack.c.bf16 %v2884, %v2884
        %v2895 = vpack.c.bf16 %v2885, %v2885
        %v2896 = vpack.c.bf16 %v2886, %v2886
        %v2897 = vpack.c.bf16 %v2887, %v2887
        %v2898 = vpack.c.bf16 %v2888, %v2888
        %2904 = vrot.lane.b32.xlu0 %v2894, 46
        %v2905 = vpop.permute.xlu0 %2904
        %2906 = vrot.lane.b32.xlu0 %v2895, 46
        %v2907 = vpop.permute.xlu0 %2906
        %2908 = vrot.lane.b32.xlu0 %v2896, 46
        %v2909 = vpop.permute.xlu0 %2908
        %2910 = vrot.lane.b32.xlu0 %v2897, 46
        %v2911 = vpop.permute.xlu0 %2910
        %2912 = vrot.lane.b32.xlu0 %v2898, 46
        %v2913 = vpop.permute.xlu0 %2912
        %vm2914 = vcmask 375808
        %v2915 = vsel %vm2914, %v2905, %v2907
        %v2916 = vsel %vm2914, %v2907, %v2909
        %v2917 = vsel %vm2914, %v2909, %v2911
        %v2918 = vsel %vm2914, %v2911, %v2913
        %v2920 = vsel %vm546, %v2875, 0
        %v2923 = vsel %vm550, %v2915, 0
        %v2926 = vsel %vm550, %v2916, 0
        %v2929 = vsel %vm550, %v2917, 0
        %v2932 = vsel %vm550, %v2918, 0
        %2934 = vmatpush.bf16.msra.mxu0 0
        %2935 = vmatpush.bf16.msra.mxu0 0
        %2936 = vmatpush.bf16.msra.mxu0 0
        %2937 = vmatpush.bf16.msra.mxu0 0
        %2938 = vmatpush.bf16.msra.mxu0 0
        %2939 = vmatpush.bf16.msra.mxu0 0
        %2940 = vmatpush.bf16.msra.mxu0 0
        %2941 = vmatpush.bf16.msra.mxu0 %v2923
        %2942 = vmatmul.bf16.gmra.mxu0 %v2920
        %v2943 = vpop.f32.mrf.mxu0
        %v2944 = vadd.f32 0.0, %v2943
        %v2945 = vpop.f32.mrf.mxu0
        %2946 = vdwg.mxu0
        %2947 = vmatpush.bf16.msra.mxu0 0
        %2948 = vmatpush.bf16.msra.mxu0 0
        %2949 = vmatpush.bf16.msra.mxu0 0
        %2950 = vmatpush.bf16.msra.mxu0 0
        %2951 = vmatpush.bf16.msra.mxu0 0
        %2952 = vmatpush.bf16.msra.mxu0 0
        %2953 = vmatpush.bf16.msra.mxu0 0
        %2954 = vmatpush.bf16.msra.mxu0 %v2926
        %2955 = vmatmul.bf16.gmra.mxu0 %v2920
        %v2956 = vpop.f32.mrf.mxu0
        %v2957 = vadd.f32 0.0, %v2956
        %v2958 = vpop.f32.mrf.mxu0
        %2959 = vdwg.mxu0
        %2960 = vmatpush.bf16.msra.mxu0 0
        %2961 = vmatpush.bf16.msra.mxu0 0
        %2962 = vmatpush.bf16.msra.mxu0 0
        %2963 = vmatpush.bf16.msra.mxu0 0
        %2964 = vmatpush.bf16.msra.mxu0 0
        %2965 = vmatpush.bf16.msra.mxu0 0
        %2966 = vmatpush.bf16.msra.mxu0 0
        %2967 = vmatpush.bf16.msra.mxu0 %v2929
        %2968 = vmatmul.bf16.gmra.mxu0 %v2920
        %v2969 = vpop.f32.mrf.mxu0
        %v2970 = vadd.f32 0.0, %v2969
        %v2971 = vpop.f32.mrf.mxu0
        %2972 = vdwg.mxu0
        %2973 = vmatpush.bf16.msra.mxu0 0
        %2974 = vmatpush.bf16.msra.mxu0 0
        %2975 = vmatpush.bf16.msra.mxu0 0
        %2976 = vmatpush.bf16.msra.mxu0 0
        %2977 = vmatpush.bf16.msra.mxu0 0
        %2978 = vmatpush.bf16.msra.mxu0 0
        %2979 = vmatpush.bf16.msra.mxu0 0
        %2980 = vmatpush.bf16.msra.mxu0 %v2932
        %2981 = vmatmul.bf16.gmra.mxu0 %v2920
        %v2982 = vpop.f32.mrf.mxu0
        %v2983 = vadd.f32 0.0, %v2982
        %v2984 = vpop.f32.mrf.mxu0
        %2985 = vdwg.mxu0
        %v2986 = vadd.f32 %v2840, %v2944
        %v2987 = vadd.f32 %v2841, %v2957
        %v2988 = vadd.f32 %v2842, %v2970
        %v2989 = vadd.f32 %v2843, %v2983
        %v2990 = vld [vmem:[#allocation2 + $0x4] sm:$0x33]
        %v2991 = vld [vmem:[#allocation2 + $0xc] sm:$0x33]
        %s2992 = scalar_lea.vmem %s1, 66
        %v2993 = vld [vmem:[%s2992] ss:$8 sm:$0xf]
        %v2995 = vperm.slane %v2993, 0
        %v2996 = vperm.slane %v2993, 1
        %v2997 = vperm.slane %v2993, 2
        %v2998 = vperm.slane %v2993, 3
        %v2999 = vrot.slane %v2996, 4
        %v3000 = vrot.slane %v2998, 4
        %v3001 = vsel %vm424, %v2995, %v2999
        %v3002 = vsel %vm424, %v2997, %v3000
        %v3005 = vmul.f32 %v2990, %v3001
        %v3006 = vmul.f32 %v2991, %v3002
        %s3007 = scalar_lea.vmem %s4, 36
        %v3008 = vld [vmem:[%s3007] sm:$0x3]
        %3011 = vst [vmem:[#allocation1] ss:$2 sm:$0xff] %v3005
        %s3012 = scalar_lea.vmem [#allocation1], 16
        %3013 = vst [vmem:[%s3012] ss:$2 sm:$0xff] %v3006
        %v3014 = vld.sshfl [vmem:[#allocation1] sm:$0xff pattern:$0x75316420]
        %v3015 = vld.sshfl [vmem:[#allocation1 + $0x8] sm:$0xff pattern:$0x75316420]
        %v3016 = vld.sshfl [vmem:[#allocation1 + $0x10] sm:$0xff pattern:$0x75316420]
        %v3017 = vld.sshfl [vmem:[#allocation1 + $0x18] sm:$0xff pattern:$0x75316420]
        %v3022 = vpack.c.bf16 %v3014, %v3014
        %v3023 = vpack.c.bf16 %v3015, %v3015
        %v3024 = vpack.c.bf16 %v3016, %v3016
        %v3025 = vpack.c.bf16 %v3017, %v3017
        %v3027 = vsel %vm546, %v3008, 0
        %v3030 = vsel %vm550, %v3022, 0
        %v3033 = vsel %vm550, %v3023, 0
        %v3036 = vsel %vm550, %v3024, 0
        %v3039 = vsel %vm550, %v3025, 0
        %3041 = vmatpush.bf16.msra.mxu0 0
        %3042 = vmatpush.bf16.msra.mxu0 0
        %3043 = vmatpush.bf16.msra.mxu0 0
        %3044 = vmatpush.bf16.msra.mxu0 0
        %3045 = vmatpush.bf16.msra.mxu0 0
        %3046 = vmatpush.bf16.msra.mxu0 0
        %3047 = vmatpush.bf16.msra.mxu0 0
        %3048 = vmatpush.bf16.msra.mxu0 %v3030
        %3049 = vmatmul.bf16.gmra.mxu0 %v3027
        %v3050 = vpop.f32.mrf.mxu0
        %v3051 = vadd.f32 0.0, %v3050
        %v3052 = vpop.f32.mrf.mxu0
        %3053 = vdwg.mxu0
        %3054 = vmatpush.bf16.msra.mxu0 0
        %3055 = vmatpush.bf16.msra.mxu0 0
        %3056 = vmatpush.bf16.msra.mxu0 0
        %3057 = vmatpush.bf16.msra.mxu0 0
        %3058 = vmatpush.bf16.msra.mxu0 0
        %3059 = vmatpush.bf16.msra.mxu0 0
        %3060 = vmatpush.bf16.msra.mxu0 0
        %3061 = vmatpush.bf16.msra.mxu0 %v3033
        %3062 = vmatmul.bf16.gmra.mxu0 %v3027
        %v3063 = vpop.f32.mrf.mxu0
        %v3064 = vadd.f32 0.0, %v3063
        %v3065 = vpop.f32.mrf.mxu0
        %3066 = vdwg.mxu0
        %3067 = vmatpush.bf16.msra.mxu0 0
        %3068 = vmatpush.bf16.msra.mxu0 0
        %3069 = vmatpush.bf16.msra.mxu0 0
        %3070 = vmatpush.bf16.msra.mxu0 0
        %3071 = vmatpush.bf16.msra.mxu0 0
        %3072 = vmatpush.bf16.msra.mxu0 0
        %3073 = vmatpush.bf16.msra.mxu0 0
        %3074 = vmatpush.bf16.msra.mxu0 %v3036
        %3075 = vmatmul.bf16.gmra.mxu0 %v3027
        %v3076 = vpop.f32.mrf.mxu0
        %v3077 = vadd.f32 0.0, %v3076
        %v3078 = vpop.f32.mrf.mxu0
        %3079 = vdwg.mxu0
        %3080 = vmatpush.bf16.msra.mxu0 0
        %3081 = vmatpush.bf16.msra.mxu0 0
        %3082 = vmatpush.bf16.msra.mxu0 0
        %3083 = vmatpush.bf16.msra.mxu0 0
        %3084 = vmatpush.bf16.msra.mxu0 0
        %3085 = vmatpush.bf16.msra.mxu0 0
        %3086 = vmatpush.bf16.msra.mxu0 0
        %3087 = vmatpush.bf16.msra.mxu0 %v3039
        %3088 = vmatmul.bf16.gmra.mxu0 %v3027
        %v3089 = vpop.f32.mrf.mxu0
        %v3090 = vadd.f32 0.0, %v3089
        %v3091 = vpop.f32.mrf.mxu0
        %3092 = vdwg.mxu0
        %v3093 = vadd.f32 %v2986, %v3051
        %v3094 = vadd.f32 %v2987, %v3064
        %v3095 = vadd.f32 %v2988, %v3077
        %v3096 = vadd.f32 %v2989, %v3090
        %v3097 = vld [vmem:[#allocation2 + $0x4] sm:$0x33]
        %v3098 = vld [vmem:[#allocation2 + $0xc] sm:$0x33]
        %v3099 = vld [vmem:[#allocation2 + $0x14] sm:$0x3]
        %s3100 = scalar_lea.vmem %s1, 67
        %v3101 = vld [vmem:[%s3100] ss:$8 sm:$0xf]
        %v3103 = vperm.slane %v3101, 0
        %v3104 = vperm.slane %v3101, 1
        %v3105 = vperm.slane %v3101, 2
        %v3106 = vperm.slane %v3101, 3
        %v3107 = vrot.slane %v3104, 4
        %v3108 = vrot.slane %v3106, 4
        %v3109 = vsel %vm424, %v3103, %v3107
        %v3110 = vsel %vm424, %v3105, %v3108
        %3111 = vrot.lane.b32.xlu0 %v3109, 1
        %v3112 = vpop.permute.xlu0 %3111
        %3113 = vrot.lane.b32.xlu0 %v3110, 1
        %v3114 = vpop.permute.xlu0 %3113
        %v3115 = vrot.slane %v3112, 4
        %v3116 = vrot.slane %v3114, 4
        %v3117 = vsel %vm491, %v3115, %v3112
        %v3118 = vsel %vm424, %v3115, %v3116
        %v3119 = vsel %vm491, %v3118, %v3114
        %v3123 = vmul.f32 %v3097, %v3117
        %v3124 = vmul.f32 %v3098, %v3119
        %v3125 = vmul.f32 %v3099, %v3116
        %s3126 = scalar_lea.vmem %s4, 38
        %v3127 = vld [vmem:[%s3126] sm:$0x3]
        %3131 = vst [vmem:[#allocation1] ss:$2 sm:$0xff] %v3123
        %s3132 = scalar_lea.vmem [#allocation1], 16
        %3133 = vst [vmem:[%s3132] ss:$2 sm:$0xff] %v3124
        %s3134 = scalar_lea.vmem [#allocation1], 32
        %3135 = vst [vmem:[%s3134] ss:$2 sm:$0xff] %v3125
        %v3136 = vld.sshfl [vmem:[#allocation1] sm:$0xff pattern:$0x75316420]
        %v3137 = vld.sshfl [vmem:[#allocation1 + $0x8] sm:$0xff pattern:$0x75316420]
        %v3138 = vld.sshfl [vmem:[#allocation1 + $0x10] sm:$0xff pattern:$0x75316420]
        %v3139 = vld.sshfl [vmem:[#allocation1 + $0x18] sm:$0xff pattern:$0x75316420]
        %v3140 = vld.sshfl [vmem:[#allocation1 + $0x20] sm:$0xff pattern:$0x75316420]
        %v3146 = vpack.c.bf16 %v3136, %v3136
        %v3147 = vpack.c.bf16 %v3137, %v3137
        %v3148 = vpack.c.bf16 %v3138, %v3138
        %v3149 = vpack.c.bf16 %v3139, %v3139
        %v3150 = vpack.c.bf16 %v3140, %v3140
        %3156 = vrot.lane.b32.xlu0 %v3146, 127
        %v3157 = vpop.permute.xlu0 %3156
        %3158 = vrot.lane.b32.xlu0 %v3147, 127
        %v3159 = vpop.permute.xlu0 %3158
        %3160 = vrot.lane.b32.xlu0 %v3148, 127
        %v3161 = vpop.permute.xlu0 %3160
        %3162 = vrot.lane.b32.xlu0 %v3149, 127
        %v3163 = vpop.permute.xlu0 %3162
        %3164 = vrot.lane.b32.xlu0 %v3150, 127
        %v3165 = vpop.permute.xlu0 %3164
        %v3166 = vsel %vm541, %v3157, %v3159
        %v3167 = vsel %vm541, %v3159, %v3161
        %v3168 = vsel %vm541, %v3161, %v3163
        %v3169 = vsel %vm541, %v3163, %v3165
        %v3171 = vsel %vm546, %v3127, 0
        %v3174 = vsel %vm550, %v3166, 0
        %v3177 = vsel %vm550, %v3167, 0
        %v3180 = vsel %vm550, %v3168, 0
        %v3183 = vsel %vm550, %v3169, 0
        %3185 = vmatpush.bf16.msra.mxu0 0
        %3186 = vmatpush.bf16.msra.mxu0 0
        %3187 = vmatpush.bf16.msra.mxu0 0
        %3188 = vmatpush.bf16.msra.mxu0 0
        %3189 = vmatpush.bf16.msra.mxu0 0
        %3190 = vmatpush.bf16.msra.mxu0 0
        %3191 = vmatpush.bf16.msra.mxu0 0
        %3192 = vmatpush.bf16.msra.mxu0 %v3174
        %3193 = vmatmul.bf16.gmra.mxu0 %v3171
        %v3194 = vpop.f32.mrf.mxu0
        %v3195 = vadd.f32 0.0, %v3194
        %v3196 = vpop.f32.mrf.mxu0
        %3197 = vdwg.mxu0
        %3198 = vmatpush.bf16.msra.mxu0 0
        %3199 = vmatpush.bf16.msra.mxu0 0
        %3200 = vmatpush.bf16.msra.mxu0 0
        %3201 = vmatpush.bf16.msra.mxu0 0
        %3202 = vmatpush.bf16.msra.mxu0 0
        %3203 = vmatpush.bf16.msra.mxu0 0
        %3204 = vmatpush.bf16.msra.mxu0 0
        %3205 = vmatpush.bf16.msra.mxu0 %v3177
        %3206 = vmatmul.bf16.gmra.mxu0 %v3171
        %v3207 = vpop.f32.mrf.mxu0
        %v3208 = vadd.f32 0.0, %v3207
        %v3209 = vpop.f32.mrf.mxu0
        %3210 = vdwg.mxu0
        %3211 = vmatpush.bf16.msra.mxu0 0
        %3212 = vmatpush.bf16.msra.mxu0 0
        %3213 = vmatpush.bf16.msra.mxu0 0
        %3214 = vmatpush.bf16.msra.mxu0 0
        %3215 = vmatpush.bf16.msra.mxu0 0
        %3216 = vmatpush.bf16.msra.mxu0 0
        %3217 = vmatpush.bf16.msra.mxu0 0
        %3218 = vmatpush.bf16.msra.mxu0 %v3180
        %3219 = vmatmul.bf16.gmra.mxu0 %v3171
        %v3220 = vpop.f32.mrf.mxu0
        %v3221 = vadd.f32 0.0, %v3220
        %v3222 = vpop.f32.mrf.mxu0
        %3223 = vdwg.mxu0
        %3224 = vmatpush.bf16.msra.mxu0 0
        %3225 = vmatpush.bf16.msra.mxu0 0
        %3226 = vmatpush.bf16.msra.mxu0 0
        %3227 = vmatpush.bf16.msra.mxu0 0
        %3228 = vmatpush.bf16.msra.mxu0 0
        %3229 = vmatpush.bf16.msra.mxu0 0
        %3230 = vmatpush.bf16.msra.mxu0 0
        %3231 = vmatpush.bf16.msra.mxu0 %v3183
        %3232 = vmatmul.bf16.gmra.mxu0 %v3171
        %v3233 = vpop.f32.mrf.mxu0
        %v3234 = vadd.f32 0.0, %v3233
        %v3235 = vpop.f32.mrf.mxu0
        %3236 = vdwg.mxu0
        %v3237 = vadd.f32 %v3093, %v3195
        %v3238 = vadd.f32 %v3094, %v3208
        %v3239 = vadd.f32 %v3095, %v3221
        %v3240 = vadd.f32 %v3096, %v3234
        %v3241 = vld [vmem:[#allocation2 + $0x4] sm:$0x33]
        %v3242 = vld [vmem:[#allocation2 + $0xc] sm:$0x33]
        %v3243 = vld [vmem:[#allocation2 + $0x14] sm:$0x3]
        %s3244 = scalar_lea.vmem %s1, 68
        %v3245 = vld [vmem:[%s3244] ss:$8 sm:$0xf]
        %v3247 = vperm.slane %v3245, 0
        %v3248 = vperm.slane %v3245, 1
        %v3249 = vperm.slane %v3245, 2
        %v3250 = vperm.slane %v3245, 3
        %v3251 = vrot.slane %v3248, 4
        %v3252 = vrot.slane %v3250, 4
        %v3253 = vsel %vm424, %v3247, %v3251
        %v3254 = vsel %vm424, %v3249, %v3252
        %3255 = vrot.lane.b32.xlu0 %v3253, 2
        %v3256 = vpop.permute.xlu0 %3255
        %3257 = vrot.lane.b32.xlu0 %v3254, 2
        %v3258 = vpop.permute.xlu0 %3257
        %v3259 = vrot.slane %v3256, 4
        %v3260 = vrot.slane %v3258, 4
        %v3261 = vsel %vm546, %v3259, %v3256
        %v3262 = vsel %vm424, %v3259, %v3260
        %v3263 = vsel %vm546, %v3262, %v3258
        %v3267 = vmul.f32 %v3241, %v3261
        %v3268 = vmul.f32 %v3242, %v3263
        %v3269 = vmul.f32 %v3243, %v3260
        %s3270 = scalar_lea.vmem %s4, 40
        %v3271 = vld [vmem:[%s3270] sm:$0x3]
        %3275 = vst [vmem:[#allocation1] ss:$2 sm:$0xff] %v3267
        %s3276 = scalar_lea.vmem [#allocation1], 16
        %3277 = vst [vmem:[%s3276] ss:$2 sm:$0xff] %v3268
        %s3278 = scalar_lea.vmem [#allocation1], 32
        %3279 = vst [vmem:[%s3278] ss:$2 sm:$0xff] %v3269
        %v3280 = vld.sshfl [vmem:[#allocation1] sm:$0xff pattern:$0x75316420]
        %v3281 = vld.sshfl [vmem:[#allocation1 + $0x8] sm:$0xff pattern:$0x75316420]
        %v3282 = vld.sshfl [vmem:[#allocation1 + $0x10] sm:$0xff pattern:$0x75316420]
        %v3283 = vld.sshfl [vmem:[#allocation1 + $0x18] sm:$0xff pattern:$0x75316420]
        %v3284 = vld.sshfl [vmem:[#allocation1 + $0x20] sm:$0xff pattern:$0x75316420]
        %v3290 = vpack.c.bf16 %v3280, %v3280
        %v3291 = vpack.c.bf16 %v3281, %v3281
        %v3292 = vpack.c.bf16 %v3282, %v3282
        %v3293 = vpack.c.bf16 %v3283, %v3283
        %v3294 = vpack.c.bf16 %v3284, %v3284
        %3300 = vrot.lane.b32.xlu0 %v3290, 126
        %v3301 = vpop.permute.xlu0 %3300
        %3302 = vrot.lane.b32.xlu0 %v3291, 126
        %v3303 = vpop.permute.xlu0 %3302
        %3304 = vrot.lane.b32.xlu0 %v3292, 126
        %v3305 = vpop.permute.xlu0 %3304
        %3306 = vrot.lane.b32.xlu0 %v3293, 126
        %v3307 = vpop.permute.xlu0 %3306
        %3308 = vrot.lane.b32.xlu0 %v3294, 126
        %v3309 = vpop.permute.xlu0 %3308
        %v3310 = vsel %vm751, %v3301, %v3303
        %v3311 = vsel %vm751, %v3303, %v3305
        %v3312 = vsel %vm751, %v3305, %v3307
        %v3313 = vsel %vm751, %v3307, %v3309
        %v3315 = vsel %vm546, %v3271, 0
        %v3318 = vsel %vm550, %v3310, 0
        %v3321 = vsel %vm550, %v3311, 0
        %v3324 = vsel %vm550, %v3312, 0
        %v3327 = vsel %vm550, %v3313, 0
        %3329 = vmatpush.bf16.msra.mxu0 0
        %3330 = vmatpush.bf16.msra.mxu0 0
        %3331 = vmatpush.bf16.msra.mxu0 0
        %3332 = vmatpush.bf16.msra.mxu0 0
        %3333 = vmatpush.bf16.msra.mxu0 0
        %3334 = vmatpush.bf16.msra.mxu0 0
        %3335 = vmatpush.bf16.msra.mxu0 0
        %3336 = vmatpush.bf16.msra.mxu0 %v3318
        %3337 = vmatmul.bf16.gmra.mxu0 %v3315
        %v3338 = vpop.f32.mrf.mxu0
        %v3339 = vadd.f32 0.0, %v3338
        %v3340 = vpop.f32.mrf.mxu0
        %3341 = vdwg.mxu0
        %3342 = vmatpush.bf16.msra.mxu0 0
        %3343 = vmatpush.bf16.msra.mxu0 0
        %3344 = vmatpush.bf16.msra.mxu0 0
        %3345 = vmatpush.bf16.msra.mxu0 0
        %3346 = vmatpush.bf16.msra.mxu0 0
        %3347 = vmatpush.bf16.msra.mxu0 0
        %3348 = vmatpush.bf16.msra.mxu0 0
        %3349 = vmatpush.bf16.msra.mxu0 %v3321
        %3350 = vmatmul.bf16.gmra.mxu0 %v3315
        %v3351 = vpop.f32.mrf.mxu0
        %v3352 = vadd.f32 0.0, %v3351
        %v3353 = vpop.f32.mrf.mxu0
        %3354 = vdwg.mxu0
        %3355 = vmatpush.bf16.msra.mxu0 0
        %3356 = vmatpush.bf16.msra.mxu0 0
        %3357 = vmatpush.bf16.msra.mxu0 0
        %3358 = vmatpush.bf16.msra.mxu0 0
        %3359 = vmatpush.bf16.msra.mxu0 0
        %3360 = vmatpush.bf16.msra.mxu0 0
        %3361 = vmatpush.bf16.msra.mxu0 0
        %3362 = vmatpush.bf16.msra.mxu0 %v3324
        %3363 = vmatmul.bf16.gmra.mxu0 %v3315
        %v3364 = vpop.f32.mrf.mxu0
        %v3365 = vadd.f32 0.0, %v3364
        %v3366 = vpop.f32.mrf.mxu0
        %3367 = vdwg.mxu0
        %3368 = vmatpush.bf16.msra.mxu0 0
        %3369 = vmatpush.bf16.msra.mxu0 0
        %3370 = vmatpush.bf16.msra.mxu0 0
        %3371 = vmatpush.bf16.msra.mxu0 0
        %3372 = vmatpush.bf16.msra.mxu0 0
        %3373 = vmatpush.bf16.msra.mxu0 0
        %3374 = vmatpush.bf16.msra.mxu0 0
        %3375 = vmatpush.bf16.msra.mxu0 %v3327
        %3376 = vmatmul.bf16.gmra.mxu0 %v3315
        %v3377 = vpop.f32.mrf.mxu0
        %v3378 = vadd.f32 0.0, %v3377
        %v3379 = vpop.f32.mrf.mxu0
        %3380 = vdwg.mxu0
        %v3381 = vadd.f32 %v3237, %v3339
        %v3382 = vadd.f32 %v3238, %v3352
        %v3383 = vadd.f32 %v3239, %v3365
        %v3384 = vadd.f32 %v3240, %v3378
        %v3385 = vld [vmem:[#allocation2 + $0x4] sm:$0x33]
        %v3386 = vld [vmem:[#allocation2 + $0xc] sm:$0x33]
        %v3387 = vld [vmem:[#allocation2 + $0x14] sm:$0x3]
        %s3388 = scalar_lea.vmem %s1, 69
        %v3389 = vld [vmem:[%s3388] ss:$8 sm:$0xf]
        %v3391 = vperm.slane %v3389, 0
        %v3392 = vperm.slane %v3389, 1
        %v3393 = vperm.slane %v3389, 2
        %v3394 = vperm.slane %v3389, 3
        %v3395 = vrot.slane %v3392, 4
        %v3396 = vrot.slane %v3394, 4
        %v3397 = vsel %vm424, %v3391, %v3395
        %v3398 = vsel %vm424, %v3393, %v3396
        %3399 = vrot.lane.b32.xlu0 %v3397, 8
        %v3400 = vpop.permute.xlu0 %3399
        %3401 = vrot.lane.b32.xlu0 %v3398, 8
        %v3402 = vpop.permute.xlu0 %3401
        %v3403 = vrot.slane %v3400, 4
        %v3404 = vrot.slane %v3402, 4
        %v3405 = vsel %vm847, %v3403, %v3400
        %v3406 = vsel %vm424, %v3403, %v3404
        %v3407 = vsel %vm847, %v3406, %v3402
        %v3411 = vmul.f32 %v3385, %v3405
        %v3412 = vmul.f32 %v3386, %v3407
        %v3413 = vmul.f32 %v3387, %v3404
        %s3414 = scalar_lea.vmem %s4, 42
        %v3415 = vld [vmem:[%s3414] sm:$0x3]
        %3419 = vst [vmem:[#allocation1] ss:$2 sm:$0xff] %v3411
        %s3420 = scalar_lea.vmem [#allocation1], 16
        %3421 = vst [vmem:[%s3420] ss:$2 sm:$0xff] %v3412
        %s3422 = scalar_lea.vmem [#allocation1], 32
        %3423 = vst [vmem:[%s3422] ss:$2 sm:$0xff] %v3413
        %v3424 = vld.sshfl [vmem:[#allocation1] sm:$0xff pattern:$0x75316420]
        %v3425 = vld.sshfl [vmem:[#allocation1 + $0x8] sm:$0xff pattern:$0x75316420]
        %v3426 = vld.sshfl [vmem:[#allocation1 + $0x10] sm:$0xff pattern:$0x75316420]
        %v3427 = vld.sshfl [vmem:[#allocation1 + $0x18] sm:$0xff pattern:$0x75316420]
        %v3428 = vld.sshfl [vmem:[#allocation1 + $0x20] sm:$0xff pattern:$0x75316420]
        %v3434 = vpack.c.bf16 %v3424, %v3424
        %v3435 = vpack.c.bf16 %v3425, %v3425
        %v3436 = vpack.c.bf16 %v3426, %v3426
        %v3437 = vpack.c.bf16 %v3427, %v3427
        %v3438 = vpack.c.bf16 %v3428, %v3428
        %3444 = vrot.lane.b32.xlu0 %v3434, 120
        %v3445 = vpop.permute.xlu0 %3444
        %3446 = vrot.lane.b32.xlu0 %v3435, 120
        %v3447 = vpop.permute.xlu0 %3446
        %3448 = vrot.lane.b32.xlu0 %v3436, 120
        %v3449 = vpop.permute.xlu0 %3448
        %3450 = vrot.lane.b32.xlu0 %v3437, 120
        %v3451 = vpop.permute.xlu0 %3450
        %3452 = vrot.lane.b32.xlu0 %v3438, 120
        %v3453 = vpop.permute.xlu0 %3452
        %v3454 = vsel %vm897, %v3445, %v3447
        %v3455 = vsel %vm897, %v3447, %v3449
        %v3456 = vsel %vm897, %v3449, %v3451
        %v3457 = vsel %vm897, %v3451, %v3453
        %v3459 = vsel %vm546, %v3415, 0
        %v3462 = vsel %vm550, %v3454, 0
        %v3465 = vsel %vm550, %v3455, 0
        %v3468 = vsel %vm550, %v3456, 0
        %v3471 = vsel %vm550, %v3457, 0
        %3473 = vmatpush.bf16.msra.mxu0 0
        %3474 = vmatpush.bf16.msra.mxu0 0
        %3475 = vmatpush.bf16.msra.mxu0 0
        %3476 = vmatpush.bf16.msra.mxu0 0
        %3477 = vmatpush.bf16.msra.mxu0 0
        %3478 = vmatpush.bf16.msra.mxu0 0
        %3479 = vmatpush.bf16.msra.mxu0 0
        %3480 = vmatpush.bf16.msra.mxu0 %v3462
        %3481 = vmatmul.bf16.gmra.mxu0 %v3459
        %v3482 = vpop.f32.mrf.mxu0
        %v3483 = vadd.f32 0.0, %v3482
        %v3484 = vpop.f32.mrf.mxu0
        %3485 = vdwg.mxu0
        %3486 = vmatpush.bf16.msra.mxu0 0
        %3487 = vmatpush.bf16.msra.mxu0 0
        %3488 = vmatpush.bf16.msra.mxu0 0
        %3489 = vmatpush.bf16.msra.mxu0 0
        %3490 = vmatpush.bf16.msra.mxu0 0
        %3491 = vmatpush.bf16.msra.mxu0 0
        %3492 = vmatpush.bf16.msra.mxu0 0
        %3493 = vmatpush.bf16.msra.mxu0 %v3465
        %3494 = vmatmul.bf16.gmra.mxu0 %v3459
        %v3495 = vpop.f32.mrf.mxu0
        %v3496 = vadd.f32 0.0, %v3495
        %v3497 = vpop.f32.mrf.mxu0
        %3498 = vdwg.mxu0
        %3499 = vmatpush.bf16.msra.mxu0 0
        %3500 = vmatpush.bf16.msra.mxu0 0
        %3501 = vmatpush.bf16.msra.mxu0 0
        %3502 = vmatpush.bf16.msra.mxu0 0
        %3503 = vmatpush.bf16.msra.mxu0 0
        %3504 = vmatpush.bf16.msra.mxu0 0
        %3505 = vmatpush.bf16.msra.mxu0 0
        %3506 = vmatpush.bf16.msra.mxu0 %v3468
        %3507 = vmatmul.bf16.gmra.mxu0 %v3459
        %v3508 = vpop.f32.mrf.mxu0
        %v3509 = vadd.f32 0.0, %v3508
        %v3510 = vpop.f32.mrf.mxu0
        %3511 = vdwg.mxu0
        %3512 = vmatpush.bf16.msra.mxu0 0
        %3513 = vmatpush.bf16.msra.mxu0 0
        %3514 = vmatpush.bf16.msra.mxu0 0
        %3515 = vmatpush.bf16.msra.mxu0 0
        %3516 = vmatpush.bf16.msra.mxu0 0
        %3517 = vmatpush.bf16.msra.mxu0 0
        %3518 = vmatpush.bf16.msra.mxu0 0
        %3519 = vmatpush.bf16.msra.mxu0 %v3471
        %3520 = vmatmul.bf16.gmra.mxu0 %v3459
        %v3521 = vpop.f32.mrf.mxu0
        %v3522 = vadd.f32 0.0, %v3521
        %v3523 = vpop.f32.mrf.mxu0
        %3524 = vdwg.mxu0
        %v3525 = vadd.f32 %v3381, %v3483
        %v3526 = vadd.f32 %v3382, %v3496
        %v3527 = vadd.f32 %v3383, %v3509
        %v3528 = vadd.f32 %v3384, %v3522
        %v3529 = vld [vmem:[#allocation2 + $0x4] sm:$0x33]
        %v3530 = vld [vmem:[#allocation2 + $0xc] sm:$0x33]
        %v3531 = vld [vmem:[#allocation2 + $0x14] sm:$0x3]
        %s3532 = scalar_lea.vmem %s1, 70
        %v3533 = vld [vmem:[%s3532] ss:$8 sm:$0xf]
        %v3535 = vperm.slane %v3533, 0
        %v3536 = vperm.slane %v3533, 1
        %v3537 = vperm.slane %v3533, 2
        %v3538 = vperm.slane %v3533, 3
        %v3539 = vrot.slane %v3536, 4
        %v3540 = vrot.slane %v3538, 4
        %v3541 = vsel %vm424, %v3535, %v3539
        %v3542 = vsel %vm424, %v3537, %v3540
        %3543 = vrot.lane.b32.xlu0 %v3541, 9
        %v3544 = vpop.permute.xlu0 %3543
        %3545 = vrot.lane.b32.xlu0 %v3542, 9
        %v3546 = vpop.permute.xlu0 %3545
        %v3547 = vrot.slane %v3544, 4
        %v3548 = vrot.slane %v3546, 4
        %v3549 = vsel %vm993, %v3547, %v3544
        %v3550 = vsel %vm424, %v3547, %v3548
        %v3551 = vsel %vm993, %v3550, %v3546
        %v3555 = vmul.f32 %v3529, %v3549
        %v3556 = vmul.f32 %v3530, %v3551
        %v3557 = vmul.f32 %v3531, %v3548
        %s3558 = scalar_lea.vmem %s4, 44
        %v3559 = vld [vmem:[%s3558] sm:$0x3]
        %3563 = vst [vmem:[#allocation1] ss:$2 sm:$0xff] %v3555
        %s3564 = scalar_lea.vmem [#allocation1], 16
        %3565 = vst [vmem:[%s3564] ss:$2 sm:$0xff] %v3556
        %s3566 = scalar_lea.vmem [#allocation1], 32
        %3567 = vst [vmem:[%s3566] ss:$2 sm:$0xff] %v3557
        %v3568 = vld.sshfl [vmem:[#allocation1] sm:$0xff pattern:$0x75316420]
        %v3569 = vld.sshfl [vmem:[#allocation1 + $0x8] sm:$0xff pattern:$0x75316420]
        %v3570 = vld.sshfl [vmem:[#allocation1 + $0x10] sm:$0xff pattern:$0x75316420]
        %v3571 = vld.sshfl [vmem:[#allocation1 + $0x18] sm:$0xff pattern:$0x75316420]
        %v3572 = vld.sshfl [vmem:[#allocation1 + $0x20] sm:$0xff pattern:$0x75316420]
        %v3578 = vpack.c.bf16 %v3568, %v3568
        %v3579 = vpack.c.bf16 %v3569, %v3569
        %v3580 = vpack.c.bf16 %v3570, %v3570
        %v3581 = vpack.c.bf16 %v3571, %v3571
        %v3582 = vpack.c.bf16 %v3572, %v3572
        %3588 = vrot.lane.b32.xlu0 %v3578, 119
        %v3589 = vpop.permute.xlu0 %3588
        %3590 = vrot.lane.b32.xlu0 %v3579, 119
        %v3591 = vpop.permute.xlu0 %3590
        %3592 = vrot.lane.b32.xlu0 %v3580, 119
        %v3593 = vpop.permute.xlu0 %3592
        %3594 = vrot.lane.b32.xlu0 %v3581, 119
        %v3595 = vpop.permute.xlu0 %3594
        %3596 = vrot.lane.b32.xlu0 %v3582, 119
        %v3597 = vpop.permute.xlu0 %3596
        %v3598 = vsel %vm1043, %v3589, %v3591
        %v3599 = vsel %vm1043, %v3591, %v3593
        %v3600 = vsel %vm1043, %v3593, %v3595
        %v3601 = vsel %vm1043, %v3595, %v3597
        %v3603 = vsel %vm546, %v3559, 0
        %v3606 = vsel %vm550, %v3598, 0
        %v3609 = vsel %vm550, %v3599, 0
        %v3612 = vsel %vm550, %v3600, 0
        %v3615 = vsel %vm550, %v3601, 0
        %3617 = vmatpush.bf16.msra.mxu0 0
        %3618 = vmatpush.bf16.msra.mxu0 0
        %3619 = vmatpush.bf16.msra.mxu0 0
        %3620 = vmatpush.bf16.msra.mxu0 0
        %3621 = vmatpush.bf16.msra.mxu0 0
        %3622 = vmatpush.bf16.msra.mxu0 0
        %3623 = vmatpush.bf16.msra.mxu0 0
        %3624 = vmatpush.bf16.msra.mxu0 %v3606
        %3625 = vmatmul.bf16.gmra.mxu0 %v3603
        %v3626 = vpop.f32.mrf.mxu0
        %v3627 = vadd.f32 0.0, %v3626
        %v3628 = vpop.f32.mrf.mxu0
        %3629 = vdwg.mxu0
        %3630 = vmatpush.bf16.msra.mxu0 0
        %3631 = vmatpush.bf16.msra.mxu0 0
        %3632 = vmatpush.bf16.msra.mxu0 0
        %3633 = vmatpush.bf16.msra.mxu0 0
        %3634 = vmatpush.bf16.msra.mxu0 0
        %3635 = vmatpush.bf16.msra.mxu0 0
        %3636 = vmatpush.bf16.msra.mxu0 0
        %3637 = vmatpush.bf16.msra.mxu0 %v3609
        %3638 = vmatmul.bf16.gmra.mxu0 %v3603
        %v3639 = vpop.f32.mrf.mxu0
        %v3640 = vadd.f32 0.0, %v3639
        %v3641 = vpop.f32.mrf.mxu0
        %3642 = vdwg.mxu0
        %3643 = vmatpush.bf16.msra.mxu0 0
        %3644 = vmatpush.bf16.msra.mxu0 0
        %3645 = vmatpush.bf16.msra.mxu0 0
        %3646 = vmatpush.bf16.msra.mxu0 0
        %3647 = vmatpush.bf16.msra.mxu0 0
        %3648 = vmatpush.bf16.msra.mxu0 0
        %3649 = vmatpush.bf16.msra.mxu0 0
        %3650 = vmatpush.bf16.msra.mxu0 %v3612
        %3651 = vmatmul.bf16.gmra.mxu0 %v3603
        %v3652 = vpop.f32.mrf.mxu0
        %v3653 = vadd.f32 0.0, %v3652
        %v3654 = vpop.f32.mrf.mxu0
        %3655 = vdwg.mxu0
        %3656 = vmatpush.bf16.msra.mxu0 0
        %3657 = vmatpush.bf16.msra.mxu0 0
        %3658 = vmatpush.bf16.msra.mxu0 0
        %3659 = vmatpush.bf16.msra.mxu0 0
        %3660 = vmatpush.bf16.msra.mxu0 0
        %3661 = vmatpush.bf16.msra.mxu0 0
        %3662 = vmatpush.bf16.msra.mxu0 0
        %3663 = vmatpush.bf16.msra.mxu0 %v3615
        %3664 = vmatmul.bf16.gmra.mxu0 %v3603
        %v3665 = vpop.f32.mrf.mxu0
        %v3666 = vadd.f32 0.0, %v3665
        %v3667 = vpop.f32.mrf.mxu0
        %3668 = vdwg.mxu0
        %v3669 = vadd.f32 %v3525, %v3627
        %v3670 = vadd.f32 %v3526, %v3640
        %v3671 = vadd.f32 %v3527, %v3653
        %v3672 = vadd.f32 %v3528, %v3666
        %v3673 = vld [vmem:[#allocation2 + $0x4] sm:$0x33]
        %v3674 = vld [vmem:[#allocation2 + $0xc] sm:$0x33]
        %v3675 = vld [vmem:[#allocation2 + $0x14] sm:$0x3]
        %s3676 = scalar_lea.vmem %s1, 71
        %v3677 = vld [vmem:[%s3676] ss:$8 sm:$0xf]
        %v3679 = vperm.slane %v3677, 0
        %v3680 = vperm.slane %v3677, 1
        %v3681 = vperm.slane %v3677, 2
        %v3682 = vperm.slane %v3677, 3
        %v3683 = vrot.slane %v3680, 4
        %v3684 = vrot.slane %v3682, 4
        %v3685 = vsel %vm424, %v3679, %v3683
        %v3686 = vsel %vm424, %v3681, %v3684
        %3687 = vrot.lane.b32.xlu0 %v3685, 10
        %v3688 = vpop.permute.xlu0 %3687
        %3689 = vrot.lane.b32.xlu0 %v3686, 10
        %v3690 = vpop.permute.xlu0 %3689
        %v3691 = vrot.slane %v3688, 4
        %v3692 = vrot.slane %v3690, 4
        %v3693 = vsel %vm1139, %v3691, %v3688
        %v3694 = vsel %vm424, %v3691, %v3692
        %v3695 = vsel %vm1139, %v3694, %v3690
        %v3699 = vmul.f32 %v3673, %v3693
        %v3700 = vmul.f32 %v3674, %v3695
        %v3701 = vmul.f32 %v3675, %v3692
        %s3702 = scalar_lea.vmem %s4, 46
        %v3703 = vld [vmem:[%s3702] sm:$0x3]
        %3707 = vst [vmem:[#allocation1] ss:$2 sm:$0xff] %v3699
        %s3708 = scalar_lea.vmem [#allocation1], 16
        %3709 = vst [vmem:[%s3708] ss:$2 sm:$0xff] %v3700
        %s3710 = scalar_lea.vmem [#allocation1], 32
        %3711 = vst [vmem:[%s3710] ss:$2 sm:$0xff] %v3701
        %v3712 = vld.sshfl [vmem:[#allocation1] sm:$0xff pattern:$0x75316420]
        %v3713 = vld.sshfl [vmem:[#allocation1 + $0x8] sm:$0xff pattern:$0x75316420]
        %v3714 = vld.sshfl [vmem:[#allocation1 + $0x10] sm:$0xff pattern:$0x75316420]
        %v3715 = vld.sshfl [vmem:[#allocation1 + $0x18] sm:$0xff pattern:$0x75316420]
        %v3716 = vld.sshfl [vmem:[#allocation1 + $0x20] sm:$0xff pattern:$0x75316420]
        %v3722 = vpack.c.bf16 %v3712, %v3712
        %v3723 = vpack.c.bf16 %v3713, %v3713
        %v3724 = vpack.c.bf16 %v3714, %v3714
        %v3725 = vpack.c.bf16 %v3715, %v3715
        %v3726 = vpack.c.bf16 %v3716, %v3716
        %3732 = vrot.lane.b32.xlu0 %v3722, 118
        %v3733 = vpop.permute.xlu0 %3732
        %3734 = vrot.lane.b32.xlu0 %v3723, 118
        %v3735 = vpop.permute.xlu0 %3734
        %3736 = vrot.lane.b32.xlu0 %v3724, 118
        %v3737 = vpop.permute.xlu0 %3736
        %3738 = vrot.lane.b32.xlu0 %v3725, 118
        %v3739 = vpop.permute.xlu0 %3738
        %3740 = vrot.lane.b32.xlu0 %v3726, 118
        %v3741 = vpop.permute.xlu0 %3740
        %v3742 = vsel %vm1189, %v3733, %v3735
        %v3743 = vsel %vm1189, %v3735, %v3737
        %v3744 = vsel %vm1189, %v3737, %v3739
        %v3745 = vsel %vm1189, %v3739, %v3741
        %v3747 = vsel %vm546, %v3703, 0
        %v3750 = vsel %vm550, %v3742, 0
        %v3753 = vsel %vm550, %v3743, 0
        %v3756 = vsel %vm550, %v3744, 0
        %v3759 = vsel %vm550, %v3745, 0
        %3761 = vmatpush.bf16.msra.mxu0 0
        %3762 = vmatpush.bf16.msra.mxu0 0
        %3763 = vmatpush.bf16.msra.mxu0 0
        %3764 = vmatpush.bf16.msra.mxu0 0
        %3765 = vmatpush.bf16.msra.mxu0 0
        %3766 = vmatpush.bf16.msra.mxu0 0
        %3767 = vmatpush.bf16.msra.mxu0 0
        %3768 = vmatpush.bf16.msra.mxu0 %v3750
        %3769 = vmatmul.bf16.gmra.mxu0 %v3747
        %v3770 = vpop.f32.mrf.mxu0
        %v3771 = vadd.f32 0.0, %v3770
        %v3772 = vpop.f32.mrf.mxu0
        %3773 = vdwg.mxu0
        %3774 = vmatpush.bf16.msra.mxu0 0
        %3775 = vmatpush.bf16.msra.mxu0 0
        %3776 = vmatpush.bf16.msra.mxu0 0
        %3777 = vmatpush.bf16.msra.mxu0 0
        %3778 = vmatpush.bf16.msra.mxu0 0
        %3779 = vmatpush.bf16.msra.mxu0 0
        %3780 = vmatpush.bf16.msra.mxu0 0
        %3781 = vmatpush.bf16.msra.mxu0 %v3753
        %3782 = vmatmul.bf16.gmra.mxu0 %v3747
        %v3783 = vpop.f32.mrf.mxu0
        %v3784 = vadd.f32 0.0, %v3783
        %v3785 = vpop.f32.mrf.mxu0
        %3786 = vdwg.mxu0
        %3787 = vmatpush.bf16.msra.mxu0 0
        %3788 = vmatpush.bf16.msra.mxu0 0
        %3789 = vmatpush.bf16.msra.mxu0 0
        %3790 = vmatpush.bf16.msra.mxu0 0
        %3791 = vmatpush.bf16.msra.mxu0 0
        %3792 = vmatpush.bf16.msra.mxu0 0
        %3793 = vmatpush.bf16.msra.mxu0 0
        %3794 = vmatpush.bf16.msra.mxu0 %v3756
        %3795 = vmatmul.bf16.gmra.mxu0 %v3747
        %v3796 = vpop.f32.mrf.mxu0
        %v3797 = vadd.f32 0.0, %v3796
        %v3798 = vpop.f32.mrf.mxu0
        %3799 = vdwg.mxu0
        %3800 = vmatpush.bf16.msra.mxu0 0
        %3801 = vmatpush.bf16.msra.mxu0 0
        %3802 = vmatpush.bf16.msra.mxu0 0
        %3803 = vmatpush.bf16.msra.mxu0 0
        %3804 = vmatpush.bf16.msra.mxu0 0
        %3805 = vmatpush.bf16.msra.mxu0 0
        %3806 = vmatpush.bf16.msra.mxu0 0
        %3807 = vmatpush.bf16.msra.mxu0 %v3759
        %3808 = vmatmul.bf16.gmra.mxu0 %v3747
        %v3809 = vpop.f32.mrf.mxu0
        %v3810 = vadd.f32 0.0, %v3809
        %v3811 = vpop.f32.mrf.mxu0
        %3812 = vdwg.mxu0
        %v3813 = vadd.f32 %v3669, %v3771
        %v3814 = vadd.f32 %v3670, %v3784
        %v3815 = vadd.f32 %v3671, %v3797
        %v3816 = vadd.f32 %v3672, %v3810
        %v3817 = vld [vmem:[#allocation2 + $0x4] sm:$0x33]
        %v3818 = vld [vmem:[#allocation2 + $0xc] sm:$0x33]
        %v3819 = vld [vmem:[#allocation2 + $0x14] sm:$0x3]
        %s3820 = scalar_lea.vmem %s1, 96
        %v3821 = vld [vmem:[%s3820] ss:$8 sm:$0xf]
        %v3823 = vperm.slane %v3821, 0
        %v3824 = vperm.slane %v3821, 1
        %v3825 = vperm.slane %v3821, 2
        %v3826 = vperm.slane %v3821, 3
        %v3827 = vrot.slane %v3824, 4
        %v3828 = vrot.slane %v3826, 4
        %v3829 = vsel %vm424, %v3823, %v3827
        %v3830 = vsel %vm424, %v3825, %v3828
        %3831 = vrot.lane.b32.xlu0 %v3829, 16
        %v3832 = vpop.permute.xlu0 %3831
        %3833 = vrot.lane.b32.xlu0 %v3830, 16
        %v3834 = vpop.permute.xlu0 %3833
        %v3835 = vrot.slane %v3832, 4
        %v3836 = vrot.slane %v3834, 4
        %v3837 = vsel %vm1285, %v3835, %v3832
        %v3838 = vsel %vm424, %v3835, %v3836
        %v3839 = vsel %vm1285, %v3838, %v3834
        %v3843 = vmul.f32 %v3817, %v3837
        %v3844 = vmul.f32 %v3818, %v3839
        %v3845 = vmul.f32 %v3819, %v3836
        %s3846 = scalar_lea.vmem %s4, 48
        %v3847 = vld [vmem:[%s3846] sm:$0x3]
        %3851 = vst [vmem:[#allocation1] ss:$2 sm:$0xff] %v3843
        %s3852 = scalar_lea.vmem [#allocation1], 16
        %3853 = vst [vmem:[%s3852] ss:$2 sm:$0xff] %v3844
        %s3854 = scalar_lea.vmem [#allocation1], 32
        %3855 = vst [vmem:[%s3854] ss:$2 sm:$0xff] %v3845
        %v3856 = vld.sshfl [vmem:[#allocation1] sm:$0xff pattern:$0x75316420]
        %v3857 = vld.sshfl [vmem:[#allocation1 + $0x8] sm:$0xff pattern:$0x75316420]
        %v3858 = vld.sshfl [vmem:[#allocation1 + $0x10] sm:$0xff pattern:$0x75316420]
        %v3859 = vld.sshfl [vmem:[#allocation1 + $0x18] sm:$0xff pattern:$0x75316420]
        %v3860 = vld.sshfl [vmem:[#allocation1 + $0x20] sm:$0xff pattern:$0x75316420]
        %v3866 = vpack.c.bf16 %v3856, %v3856
        %v3867 = vpack.c.bf16 %v3857, %v3857
        %v3868 = vpack.c.bf16 %v3858, %v3858
        %v3869 = vpack.c.bf16 %v3859, %v3859
        %v3870 = vpack.c.bf16 %v3860, %v3860
        %3876 = vrot.lane.b32.xlu0 %v3866, 112
        %v3877 = vpop.permute.xlu0 %3876
        %3878 = vrot.lane.b32.xlu0 %v3867, 112
        %v3879 = vpop.permute.xlu0 %3878
        %3880 = vrot.lane.b32.xlu0 %v3868, 112
        %v3881 = vpop.permute.xlu0 %3880
        %3882 = vrot.lane.b32.xlu0 %v3869, 112
        %v3883 = vpop.permute.xlu0 %3882
        %3884 = vrot.lane.b32.xlu0 %v3870, 112
        %v3885 = vpop.permute.xlu0 %3884
        %v3886 = vsel %vm1335, %v3877, %v3879
        %v3887 = vsel %vm1335, %v3879, %v3881
        %v3888 = vsel %vm1335, %v3881, %v3883
        %v3889 = vsel %vm1335, %v3883, %v3885
        %v3891 = vsel %vm546, %v3847, 0
        %v3894 = vsel %vm550, %v3886, 0
        %v3897 = vsel %vm550, %v3887, 0
        %v3900 = vsel %vm550, %v3888, 0
        %v3903 = vsel %vm550, %v3889, 0
        %3905 = vmatpush.bf16.msra.mxu0 0
        %3906 = vmatpush.bf16.msra.mxu0 0
        %3907 = vmatpush.bf16.msra.mxu0 0
        %3908 = vmatpush.bf16.msra.mxu0 0
        %3909 = vmatpush.bf16.msra.mxu0 0
        %3910 = vmatpush.bf16.msra.mxu0 0
        %3911 = vmatpush.bf16.msra.mxu0 0
        %3912 = vmatpush.bf16.msra.mxu0 %v3894
        %3913 = vmatmul.bf16.gmra.mxu0 %v3891
        %v3914 = vpop.f32.mrf.mxu0
        %v3915 = vadd.f32 0.0, %v3914
        %v3916 = vpop.f32.mrf.mxu0
        %3917 = vdwg.mxu0
        %3918 = vmatpush.bf16.msra.mxu0 0
        %3919 = vmatpush.bf16.msra.mxu0 0
        %3920 = vmatpush.bf16.msra.mxu0 0
        %3921 = vmatpush.bf16.msra.mxu0 0
        %3922 = vmatpush.bf16.msra.mxu0 0
        %3923 = vmatpush.bf16.msra.mxu0 0
        %3924 = vmatpush.bf16.msra.mxu0 0
        %3925 = vmatpush.bf16.msra.mxu0 %v3897
        %3926 = vmatmul.bf16.gmra.mxu0 %v3891
        %v3927 = vpop.f32.mrf.mxu0
        %v3928 = vadd.f32 0.0, %v3927
        %v3929 = vpop.f32.mrf.mxu0
        %3930 = vdwg.mxu0
        %3931 = vmatpush.bf16.msra.mxu0 0
        %3932 = vmatpush.bf16.msra.mxu0 0
        %3933 = vmatpush.bf16.msra.mxu0 0
        %3934 = vmatpush.bf16.msra.mxu0 0
        %3935 = vmatpush.bf16.msra.mxu0 0
        %3936 = vmatpush.bf16.msra.mxu0 0
        %3937 = vmatpush.bf16.msra.mxu0 0
        %3938 = vmatpush.bf16.msra.mxu0 %v3900
        %3939 = vmatmul.bf16.gmra.mxu0 %v3891
        %v3940 = vpop.f32.mrf.mxu0
        %v3941 = vadd.f32 0.0, %v3940
        %v3942 = vpop.f32.mrf.mxu0
        %3943 = vdwg.mxu0
        %3944 = vmatpush.bf16.msra.mxu0 0
        %3945 = vmatpush.bf16.msra.mxu0 0
        %3946 = vmatpush.bf16.msra.mxu0 0
        %3947 = vmatpush.bf16.msra.mxu0 0
        %3948 = vmatpush.bf16.msra.mxu0 0
        %3949 = vmatpush.bf16.msra.mxu0 0
        %3950 = vmatpush.bf16.msra.mxu0 0
        %3951 = vmatpush.bf16.msra.mxu0 %v3903
        %3952 = vmatmul.bf16.gmra.mxu0 %v3891
        %v3953 = vpop.f32.mrf.mxu0
        %v3954 = vadd.f32 0.0, %v3953
        %v3955 = vpop.f32.mrf.mxu0
        %3956 = vdwg.mxu0
        %v3957 = vadd.f32 %v3813, %v3915
        %v3958 = vadd.f32 %v3814, %v3928
        %v3959 = vadd.f32 %v3815, %v3941
        %v3960 = vadd.f32 %v3816, %v3954
        %v3961 = vld [vmem:[#allocation2 + $0x4] sm:$0x33]
        %v3962 = vld [vmem:[#allocation2 + $0xc] sm:$0x33]
        %v3963 = vld [vmem:[#allocation2 + $0x14] sm:$0x3]
        %s3964 = scalar_lea.vmem %s1, 97
        %v3965 = vld [vmem:[%s3964] ss:$8 sm:$0xf]
        %v3967 = vperm.slane %v3965, 0
        %v3968 = vperm.slane %v3965, 1
        %v3969 = vperm.slane %v3965, 2
        %v3970 = vperm.slane %v3965, 3
        %v3971 = vrot.slane %v3968, 4
        %v3972 = vrot.slane %v3970, 4
        %v3973 = vsel %vm424, %v3967, %v3971
        %v3974 = vsel %vm424, %v3969, %v3972
        %3975 = vrot.lane.b32.xlu0 %v3973, 17
        %v3976 = vpop.permute.xlu0 %3975
        %3977 = vrot.lane.b32.xlu0 %v3974, 17
        %v3978 = vpop.permute.xlu0 %3977
        %v3979 = vrot.slane %v3976, 4
        %v3980 = vrot.slane %v3978, 4
        %v3981 = vsel %vm1431, %v3979, %v3976
        %v3982 = vsel %vm424, %v3979, %v3980
        %v3983 = vsel %vm1431, %v3982, %v3978
        %v3987 = vmul.f32 %v3961, %v3981
        %v3988 = vmul.f32 %v3962, %v3983
        %v3989 = vmul.f32 %v3963, %v3980
        %s3990 = scalar_lea.vmem %s4, 50
        %v3991 = vld [vmem:[%s3990] sm:$0x3]
        %3995 = vst [vmem:[#allocation1] ss:$2 sm:$0xff] %v3987
        %s3996 = scalar_lea.vmem [#allocation1], 16
        %3997 = vst [vmem:[%s3996] ss:$2 sm:$0xff] %v3988
        %s3998 = scalar_lea.vmem [#allocation1], 32
        %3999 = vst [vmem:[%s3998] ss:$2 sm:$0xff] %v3989
        %v4000 = vld.sshfl [vmem:[#allocation1] sm:$0xff pattern:$0x75316420]
        %v4001 = vld.sshfl [vmem:[#allocation1 + $0x8] sm:$0xff pattern:$0x75316420]
        %v4002 = vld.sshfl [vmem:[#allocation1 + $0x10] sm:$0xff pattern:$0x75316420]
        %v4003 = vld.sshfl [vmem:[#allocation1 + $0x18] sm:$0xff pattern:$0x75316420]
        %v4004 = vld.sshfl [vmem:[#allocation1 + $0x20] sm:$0xff pattern:$0x75316420]
        %v4010 = vpack.c.bf16 %v4000, %v4000
        %v4011 = vpack.c.bf16 %v4001, %v4001
        %v4012 = vpack.c.bf16 %v4002, %v4002
        %v4013 = vpack.c.bf16 %v4003, %v4003
        %v4014 = vpack.c.bf16 %v4004, %v4004
        %4020 = vrot.lane.b32.xlu0 %v4010, 111
        %v4021 = vpop.permute.xlu0 %4020
        %4022 = vrot.lane.b32.xlu0 %v4011, 111
        %v4023 = vpop.permute.xlu0 %4022
        %4024 = vrot.lane.b32.xlu0 %v4012, 111
        %v4025 = vpop.permute.xlu0 %4024
        %4026 = vrot.lane.b32.xlu0 %v4013, 111
        %v4027 = vpop.permute.xlu0 %4026
        %4028 = vrot.lane.b32.xlu0 %v4014, 111
        %v4029 = vpop.permute.xlu0 %4028
        %v4030 = vsel %vm1481, %v4021, %v4023
        %v4031 = vsel %vm1481, %v4023, %v4025
        %v4032 = vsel %vm1481, %v4025, %v4027
        %v4033 = vsel %vm1481, %v4027, %v4029
        %v4035 = vsel %vm546, %v3991, 0
        %v4038 = vsel %vm550, %v4030, 0
        %v4041 = vsel %vm550, %v4031, 0
        %v4044 = vsel %vm550, %v4032, 0
        %v4047 = vsel %vm550, %v4033, 0
        %4049 = vmatpush.bf16.msra.mxu0 0
        %4050 = vmatpush.bf16.msra.mxu0 0
        %4051 = vmatpush.bf16.msra.mxu0 0
        %4052 = vmatpush.bf16.msra.mxu0 0
        %4053 = vmatpush.bf16.msra.mxu0 0
        %4054 = vmatpush.bf16.msra.mxu0 0
        %4055 = vmatpush.bf16.msra.mxu0 0
        %4056 = vmatpush.bf16.msra.mxu0 %v4038
        %4057 = vmatmul.bf16.gmra.mxu0 %v4035
        %v4058 = vpop.f32.mrf.mxu0
        %v4059 = vadd.f32 0.0, %v4058
        %v4060 = vpop.f32.mrf.mxu0
        %4061 = vdwg.mxu0
        %4062 = vmatpush.bf16.msra.mxu0 0
        %4063 = vmatpush.bf16.msra.mxu0 0
        %4064 = vmatpush.bf16.msra.mxu0 0
        %4065 = vmatpush.bf16.msra.mxu0 0
        %4066 = vmatpush.bf16.msra.mxu0 0
        %4067 = vmatpush.bf16.msra.mxu0 0
        %4068 = vmatpush.bf16.msra.mxu0 0
        %4069 = vmatpush.bf16.msra.mxu0 %v4041
        %4070 = vmatmul.bf16.gmra.mxu0 %v4035
        %v4071 = vpop.f32.mrf.mxu0
        %v4072 = vadd.f32 0.0, %v4071
        %v4073 = vpop.f32.mrf.mxu0
        %4074 = vdwg.mxu0
        %4075 = vmatpush.bf16.msra.mxu0 0
        %4076 = vmatpush.bf16.msra.mxu0 0
        %4077 = vmatpush.bf16.msra.mxu0 0
        %4078 = vmatpush.bf16.msra.mxu0 0
        %4079 = vmatpush.bf16.msra.mxu0 0
        %4080 = vmatpush.bf16.msra.mxu0 0
        %4081 = vmatpush.bf16.msra.mxu0 0
        %4082 = vmatpush.bf16.msra.mxu0 %v4044
        %4083 = vmatmul.bf16.gmra.mxu0 %v4035
        %v4084 = vpop.f32.mrf.mxu0
        %v4085 = vadd.f32 0.0, %v4084
        %v4086 = vpop.f32.mrf.mxu0
        %4087 = vdwg.mxu0
        %4088 = vmatpush.bf16.msra.mxu0 0
        %4089 = vmatpush.bf16.msra.mxu0 0
        %4090 = vmatpush.bf16.msra.mxu0 0
        %4091 = vmatpush.bf16.msra.mxu0 0
        %4092 = vmatpush.bf16.msra.mxu0 0
        %4093 = vmatpush.bf16.msra.mxu0 0
        %4094 = vmatpush.bf16.msra.mxu0 0
        %4095 = vmatpush.bf16.msra.mxu0 %v4047
        %4096 = vmatmul.bf16.gmra.mxu0 %v4035
        %v4097 = vpop.f32.mrf.mxu0
        %v4098 = vadd.f32 0.0, %v4097
        %v4099 = vpop.f32.mrf.mxu0
        %4100 = vdwg.mxu0
        %v4101 = vadd.f32 %v3957, %v4059
        %v4102 = vadd.f32 %v3958, %v4072
        %v4103 = vadd.f32 %v3959, %v4085
        %v4104 = vadd.f32 %v3960, %v4098
        %v4105 = vld [vmem:[#allocation2 + $0x4] sm:$0x33]
        %v4106 = vld [vmem:[#allocation2 + $0xc] sm:$0x33]
        %v4107 = vld [vmem:[#allocation2 + $0x14] sm:$0x3]
        %s4108 = scalar_lea.vmem %s1, 98
        %v4109 = vld [vmem:[%s4108] ss:$8 sm:$0xf]
        %v4111 = vperm.slane %v4109, 0
        %v4112 = vperm.slane %v4109, 1
        %v4113 = vperm.slane %v4109, 2
        %v4114 = vperm.slane %v4109, 3
        %v4115 = vrot.slane %v4112, 4
        %v4116 = vrot.slane %v4114, 4
        %v4117 = vsel %vm424, %v4111, %v4115
        %v4118 = vsel %vm424, %v4113, %v4116
        %4119 = vrot.lane.b32.xlu0 %v4117, 18
        %v4120 = vpop.permute.xlu0 %4119
        %4121 = vrot.lane.b32.xlu0 %v4118, 18
        %v4122 = vpop.permute.xlu0 %4121
        %v4123 = vrot.slane %v4120, 4
        %v4124 = vrot.slane %v4122, 4
        %v4125 = vsel %vm1577, %v4123, %v4120
        %v4126 = vsel %vm424, %v4123, %v4124
        %v4127 = vsel %vm1577, %v4126, %v4122
        %v4131 = vmul.f32 %v4105, %v4125
        %v4132 = vmul.f32 %v4106, %v4127
        %v4133 = vmul.f32 %v4107, %v4124
        %s4134 = scalar_lea.vmem %s4, 52
        %v4135 = vld [vmem:[%s4134] sm:$0x3]
        %4139 = vst [vmem:[#allocation1] ss:$2 sm:$0xff] %v4131
        %s4140 = scalar_lea.vmem [#allocation1], 16
        %4141 = vst [vmem:[%s4140] ss:$2 sm:$0xff] %v4132
        %s4142 = scalar_lea.vmem [#allocation1], 32
        %4143 = vst [vmem:[%s4142] ss:$2 sm:$0xff] %v4133
        %v4144 = vld.sshfl [vmem:[#allocation1] sm:$0xff pattern:$0x75316420]
        %v4145 = vld.sshfl [vmem:[#allocation1 + $0x8] sm:$0xff pattern:$0x75316420]
        %v4146 = vld.sshfl [vmem:[#allocation1 + $0x10] sm:$0xff pattern:$0x75316420]
        %v4147 = vld.sshfl [vmem:[#allocation1 + $0x18] sm:$0xff pattern:$0x75316420]
        %v4148 = vld.sshfl [vmem:[#allocation1 + $0x20] sm:$0xff pattern:$0x75316420]
        %v4154 = vpack.c.bf16 %v4144, %v4144
        %v4155 = vpack.c.bf16 %v4145, %v4145
        %v4156 = vpack.c.bf16 %v4146, %v4146
        %v4157 = vpack.c.bf16 %v4147, %v4147
        %v4158 = vpack.c.bf16 %v4148, %v4148
        %4164 = vrot.lane.b32.xlu0 %v4154, 110
        %v4165 = vpop.permute.xlu0 %4164
        %4166 = vrot.lane.b32.xlu0 %v4155, 110
        %v4167 = vpop.permute.xlu0 %4166
        %4168 = vrot.lane.b32.xlu0 %v4156, 110
        %v4169 = vpop.permute.xlu0 %4168
        %4170 = vrot.lane.b32.xlu0 %v4157, 110
        %v4171 = vpop.permute.xlu0 %4170
        %4172 = vrot.lane.b32.xlu0 %v4158, 110
        %v4173 = vpop.permute.xlu0 %4172
        %v4174 = vsel %vm1627, %v4165, %v4167
        %v4175 = vsel %vm1627, %v4167, %v4169
        %v4176 = vsel %vm1627, %v4169, %v4171
        %v4177 = vsel %vm1627, %v4171, %v4173
        %v4179 = vsel %vm546, %v4135, 0
        %v4182 = vsel %vm550, %v4174, 0
        %v4185 = vsel %vm550, %v4175, 0
        %v4188 = vsel %vm550, %v4176, 0
        %v4191 = vsel %vm550, %v4177, 0
        %4193 = vmatpush.bf16.msra.mxu0 0
        %4194 = vmatpush.bf16.msra.mxu0 0
        %4195 = vmatpush.bf16.msra.mxu0 0
        %4196 = vmatpush.bf16.msra.mxu0 0
        %4197 = vmatpush.bf16.msra.mxu0 0
        %4198 = vmatpush.bf16.msra.mxu0 0
        %4199 = vmatpush.bf16.msra.mxu0 0
        %4200 = vmatpush.bf16.msra.mxu0 %v4182
        %4201 = vmatmul.bf16.gmra.mxu0 %v4179
        %v4202 = vpop.f32.mrf.mxu0
        %v4203 = vadd.f32 0.0, %v4202
        %v4204 = vpop.f32.mrf.mxu0
        %4205 = vdwg.mxu0
        %4206 = vmatpush.bf16.msra.mxu0 0
        %4207 = vmatpush.bf16.msra.mxu0 0
        %4208 = vmatpush.bf16.msra.mxu0 0
        %4209 = vmatpush.bf16.msra.mxu0 0
        %4210 = vmatpush.bf16.msra.mxu0 0
        %4211 = vmatpush.bf16.msra.mxu0 0
        %4212 = vmatpush.bf16.msra.mxu0 0
        %4213 = vmatpush.bf16.msra.mxu0 %v4185
        %4214 = vmatmul.bf16.gmra.mxu0 %v4179
        %v4215 = vpop.f32.mrf.mxu0
        %v4216 = vadd.f32 0.0, %v4215
        %v4217 = vpop.f32.mrf.mxu0
        %4218 = vdwg.mxu0
        %4219 = vmatpush.bf16.msra.mxu0 0
        %4220 = vmatpush.bf16.msra.mxu0 0
        %4221 = vmatpush.bf16.msra.mxu0 0
        %4222 = vmatpush.bf16.msra.mxu0 0
        %4223 = vmatpush.bf16.msra.mxu0 0
        %4224 = vmatpush.bf16.msra.mxu0 0
        %4225 = vmatpush.bf16.msra.mxu0 0
        %4226 = vmatpush.bf16.msra.mxu0 %v4188
        %4227 = vmatmul.bf16.gmra.mxu0 %v4179
        %v4228 = vpop.f32.mrf.mxu0
        %v4229 = vadd.f32 0.0, %v4228
        %v4230 = vpop.f32.mrf.mxu0
        %4231 = vdwg.mxu0
        %4232 = vmatpush.bf16.msra.mxu0 0
        %4233 = vmatpush.bf16.msra.mxu0 0
        %4234 = vmatpush.bf16.msra.mxu0 0
        %4235 = vmatpush.bf16.msra.mxu0 0
        %4236 = vmatpush.bf16.msra.mxu0 0
        %4237 = vmatpush.bf16.msra.mxu0 0
        %4238 = vmatpush.bf16.msra.mxu0 0
        %4239 = vmatpush.bf16.msra.mxu0 %v4191
        %4240 = vmatmul.bf16.gmra.mxu0 %v4179
        %v4241 = vpop.f32.mrf.mxu0
        %v4242 = vadd.f32 0.0, %v4241
        %v4243 = vpop.f32.mrf.mxu0
        %4244 = vdwg.mxu0
        %v4245 = vadd.f32 %v4101, %v4203
        %v4246 = vadd.f32 %v4102, %v4216
        %v4247 = vadd.f32 %v4103, %v4229
        %v4248 = vadd.f32 %v4104, %v4242
        %v4249 = vmax.f32 %v4245, 0.0
        %v4250 = vmax.f32 %v4246, 0.0
        %v4251 = vmax.f32 %v4247, 0.0
        %v4252 = vmax.f32 %v4248, 0.0
        %v4253 = vld [vmem:[%s5] sm:$0xf]
        %v4254 = vld [vmem:[%s6] sm:$0xf]
        %v4255 = vsel %vm424, %v4249, 0.0
        %v4256 = vsel %vm424, %v4250, 0.0
        %v4257 = vadd.f32 %v4255, %v4256
        %v4258 = vsel %vm424, %v4251, 0.0
        %v4259 = vadd.f32 %v4257, %v4258
        %v4260 = vsel %vm424, %v4252, 0.0
        %v4261 = vadd.f32 %v4259, %v4260
        %4262 = vadd.xlane.f32.xlu0 %v4261
        %v4263 = vpop.xlane.xlu0 %4262
        %v4264 = vadd.f32 %v4263, 0.0
        %v4265 = vsel %vm324, %v4264, %v4264
        %vm4266 = vcmask 1042432
        %v4267 = vsel %vm4266, %v4265, %v4264
        %v4268 = vrcp.pop 512.0
        %v4269 = vmul.f32 512.0, %v4268
        %v4270 = vsub.f32 1.0, %v4269
        %v4271 = vmul.f32 %v4268, %v4270
        %v4272 = vadd.f32 %v4268, %v4271
        %vm4273 = vweird.f32 %v4268
        %v4274 = vsel %vm4273, %v4268, %v4272
        %v4275 = vmul.f32 %v4267, %v4274
        %4277 = vset.pattern.permute.xlu0 0
        %4278 = vperm.xlu0 %4277, %v4275
        %v4279 = vpop.permute.xlu0 %4278
        %v4281 = vsub.f32 %v4249, %v4279
        %v4282 = vsub.f32 %v4250, %v4279
        %v4283 = vsub.f32 %v4251, %v4279
        %v4284 = vsub.f32 %v4252, %v4279
        %v4285 = vmul.f32 %v4281, %v4281
        %v4286 = vmul.f32 %v4282, %v4282
        %v4287 = vmul.f32 %v4283, %v4283
        %v4288 = vmul.f32 %v4284, %v4284
        %v4289 = vsel %vm424, %v4285, 0.0
        %v4290 = vsel %vm424, %v4286, 0.0
        %v4291 = vadd.f32 %v4289, %v4290
        %v4292 = vsel %vm424, %v4287, 0.0
        %v4293 = vadd.f32 %v4291, %v4292
        %v4294 = vsel %vm424, %v4288, 0.0
        %v4295 = vadd.f32 %v4293, %v4294
        %4296 = vadd.xlane.f32.xlu0 %v4295
        %v4297 = vpop.xlane.xlu0 %4296
        %v4298 = vadd.f32 %v4297, 0.0
        %v4299 = vsel %vm324, %v4298, %v4298
        %v4300 = vsel %vm4266, %v4299, %v4298
        %v4301 = vmul.f32 %v4300, %v4274
        %v4302 = vadd.f32 %v4301, 1e-05
        %v4303 = vrsqrt.pop %v4302
        %v4304 = vmul.f32 %v4303, %v4302
        %v4305 = vmul.f32 %v4304, %v4303
        %v4306 = vmul.f32 0.5, %v4305
        %v4307 = vsub.f32 1.5, %v4306
        %v4308 = vmul.f32 %v4303, %v4307
        %vm4309 = vweird.f32 %v4302
        %vm4310 = vweird.f32 %v4303
        %vm4311 = vmor %vm4309, %vm4310
        %v4312 = vsel %vm4311, %v4303, %v4308
        %v4313 = vmul.f32 %v4312, %v4253
        %v4314 = vmul.f32 %v4275, %v4313
        %v4315 = vsub.f32 %v4254, %v4314
        %4317 = vset.pattern.permute.xlu0 0
        %4318 = vperm.xlu0 %4317, %v4313
        %v4319 = vpop.permute.xlu0 %4318
        %v4321 = vmul.f32 %v4249, %v4319
        %v4322 = vmul.f32 %v4250, %v4319
        %v4323 = vmul.f32 %v4251, %v4319
        %v4324 = vmul.f32 %v4252, %v4319
        %4326 = vset.pattern.permute.xlu0 0
        %4327 = vperm.xlu0 %4326, %v4315
        %v4328 = vpop.permute.xlu0 %4327
        %v4330 = vadd.f32 %v4321, %v4328
        %v4331 = vadd.f32 %v4322, %v4328
        %v4332 = vadd.f32 %v4323, %v4328
        %v4333 = vadd.f32 %v4324, %v4328
        %v4338 = vrot.slane %v4331, 4
        %v4339 = vrot.slane %v4333, 4
        %v4340 = vsel %vm424, %v4330, %v4338
        %v4341 = vsel %vm424, %v4332, %v4339
        %4342 = vrot.lane.b32.xlu0 %v4340, 73
        %v4343 = vpop.permute.xlu0 %4342
        %4344 = vrot.lane.b32.xlu0 %v4341, 73
        %v4345 = vpop.permute.xlu0 %4344
        %v4346 = vrot.slane %v4343, 4
        %v4347 = vrot.slane %v4345, 4
        %v4348 = vsel %vm422, %v4346, %v4343
        %v4349 = vsel %vm424, %v4346, %v4347
        %v4350 = vsel %vm422, %v4349, %v4345
        %vm4354 = vcmask 1047556
        %vm4355 = vmor %vm4354, %vm307
        %4356 = vst.msk [vmem:[#allocation2] sm:$0xff] %vm4355, %v4348
        %4357 = vst [vmem:[#allocation2 + $0x8] sm:$0xff] %v4350
        %4358 = vst.msk [vmem:[#allocation2 + $0x10] sm:$0xf] %vm305, %v4347
        %v4359 = vld [vmem:[#allocation2] sm:$0xff]
        %v4360 = vld [vmem:[#allocation2 + $0x8] sm:$0xff]
        %v4361 = vld [vmem:[%s1] ss:$8 sm:$0xf]
        %v4363 = vperm.slane %v4361, 0
        %v4364 = vperm.slane %v4361, 1
        %v4365 = vperm.slane %v4361, 2
        %v4366 = vperm.slane %v4361, 3
        %v4367 = vrot.slane %v4364, 4
        %v4368 = vrot.slane %v4366, 4
        %v4369 = vsel %vm424, %v4363, %v4367
        %v4370 = vsel %vm424, %v4365, %v4368
        %v4373 = vmul.f32 %v4359, %v4369
        %v4374 = vmul.f32 %v4360, %v4370
        %v4375 = vld [vmem:[%s7] sm:$0xf]
        %4378 = vst [vmem:[#allocation1] ss:$2 sm:$0xff] %v4373
        %s4379 = scalar_lea.vmem [#allocation1], 16
        %4380 = vst [vmem:[%s4379] ss:$2 sm:$0xff] %v4374
        %v4381 = vld.sshfl [vmem:[#allocation1] sm:$0xff pattern:$0x75316420]
        %v4382 = vld.sshfl [vmem:[#allocation1 + $0x8] sm:$0xff pattern:$0x75316420]
        %v4383 = vld.sshfl [vmem:[#allocation1 + $0x10] sm:$0xff pattern:$0x75316420]
        %v4384 = vld.sshfl [vmem:[#allocation1 + $0x18] sm:$0xff pattern:$0x75316420]
        %v4389 = vpack.c.bf16 %v4381, %v4381
        %v4390 = vpack.c.bf16 %v4382, %v4382
        %v4391 = vpack.c.bf16 %v4383, %v4383
        %v4392 = vpack.c.bf16 %v4384, %v4384
        %v4393 = vld [vmem:[#allocation2] sm:$0xff]
        %v4394 = vld [vmem:[#allocation2 + $0x8] sm:$0xff]
        %v4395 = vld [vmem:[#allocation2 + $0x10] sm:$0xf]
        %v4396 = vld [vmem:[%s474] ss:$8 sm:$0xf]
        %v4398 = vperm.slane %v4396, 0
        %v4399 = vperm.slane %v4396, 1
        %v4400 = vperm.slane %v4396, 2
        %v4401 = vperm.slane %v4396, 3
        %v4402 = vrot.slane %v4399, 4
        %v4403 = vrot.slane %v4401, 4
        %v4404 = vsel %vm424, %v4398, %v4402
        %v4405 = vsel %vm424, %v4400, %v4403
        %4406 = vrot.lane.b32.xlu0 %v4404, 1
        %v4407 = vpop.permute.xlu0 %4406
        %4408 = vrot.lane.b32.xlu0 %v4405, 1
        %v4409 = vpop.permute.xlu0 %4408
        %v4410 = vrot.slane %v4407, 4
        %v4411 = vrot.slane %v4409, 4
        %v4412 = vsel %vm491, %v4410, %v4407
        %v4413 = vsel %vm424, %v4410, %v4411
        %v4414 = vsel %vm491, %v4413, %v4409
        %v4418 = vmul.f32 %v4393, %v4412
        %v4419 = vmul.f32 %v4394, %v4414
        %v4420 = vmul.f32 %v4395, %v4411
        %s4421 = scalar_lea.vmem %s7, 4
        %v4422 = vld [vmem:[%s4421] sm:$0xf]
        %4426 = vst [vmem:[#allocation1] ss:$2 sm:$0xff] %v4418
        %s4427 = scalar_lea.vmem [#allocation1], 16
        %4428 = vst [vmem:[%s4427] ss:$2 sm:$0xff] %v4419
        %s4429 = scalar_lea.vmem [#allocation1], 32
        %4430 = vst [vmem:[%s4429] ss:$2 sm:$0xff] %v4420
        %v4431 = vld.sshfl [vmem:[#allocation1] sm:$0xff pattern:$0x75316420]
        %v4432 = vld.sshfl [vmem:[#allocation1 + $0x8] sm:$0xff pattern:$0x75316420]
        %v4433 = vld.sshfl [vmem:[#allocation1 + $0x10] sm:$0xff pattern:$0x75316420]
        %v4434 = vld.sshfl [vmem:[#allocation1 + $0x18] sm:$0xff pattern:$0x75316420]
        %v4435 = vld.sshfl [vmem:[#allocation1 + $0x20] sm:$0xff pattern:$0x75316420]
        %v4441 = vpack.c.bf16 %v4431, %v4431
        %v4442 = vpack.c.bf16 %v4432, %v4432
        %v4443 = vpack.c.bf16 %v4433, %v4433
        %v4444 = vpack.c.bf16 %v4434, %v4434
        %v4445 = vpack.c.bf16 %v4435, %v4435
        %4451 = vrot.lane.b32.xlu0 %v4441, 127
        %v4452 = vpop.permute.xlu0 %4451
        %4453 = vrot.lane.b32.xlu0 %v4442, 127
        %v4454 = vpop.permute.xlu0 %4453
        %4455 = vrot.lane.b32.xlu0 %v4443, 127
        %v4456 = vpop.permute.xlu0 %4455
        %4457 = vrot.lane.b32.xlu0 %v4444, 127
        %v4458 = vpop.permute.xlu0 %4457
        %4459 = vrot.lane.b32.xlu0 %v4445, 127
        %v4460 = vpop.permute.xlu0 %4459
        %v4461 = vsel %vm541, %v4452, %v4454
        %v4462 = vsel %vm541, %v4454, %v4456
        %v4463 = vsel %vm541, %v4456, %v4458
        %v4464 = vsel %vm541, %v4458, %v4460
        %vm4465 = vcmask 31744
        %v4467 = vsel %vm4465, %v4422, 0
        %v4470 = vsel %vm324, %v4461, 0
        %v4473 = vsel %vm324, %v4462, 0
        %v4476 = vsel %vm324, %v4463, 0
        %v4479 = vsel %vm324, %v4464, 0
        %4481 = vmatpush.bf16.msra.mxu0 0
        %4482 = vmatpush.bf16.msra.mxu0 0
        %4483 = vmatpush.bf16.msra.mxu0 0
        %4484 = vmatpush.bf16.msra.mxu0 0
        %4485 = vmatpush.bf16.msra.mxu0 0
        %4486 = vmatpush.bf16.msra.mxu0 0
        %4487 = vmatpush.bf16.msra.mxu0 0
        %4488 = vmatpush.bf16.msra.mxu0 %v4470
        %4489 = vmatmul.bf16.gmra.mxu0 %v4467
        %v4490 = vpop.f32.mrf.mxu0
        %v4491 = vadd.f32 0.0, %v4490
        %v4492 = vpop.f32.mrf.mxu0
        %4493 = vdwg.mxu0
        %4494 = vmatpush.bf16.msra.mxu0 0
        %4495 = vmatpush.bf16.msra.mxu0 0
        %4496 = vmatpush.bf16.msra.mxu0 0
        %4497 = vmatpush.bf16.msra.mxu0 0
        %4498 = vmatpush.bf16.msra.mxu0 0
        %4499 = vmatpush.bf16.msra.mxu0 0
        %4500 = vmatpush.bf16.msra.mxu0 0
        %4501 = vmatpush.bf16.msra.mxu0 %v4473
        %4502 = vmatmul.bf16.gmra.mxu0 %v4467
        %v4503 = vpop.f32.mrf.mxu0
        %v4504 = vadd.f32 0.0, %v4503
        %v4505 = vpop.f32.mrf.mxu0
        %4506 = vdwg.mxu0
        %4507 = vmatpush.bf16.msra.mxu0 0
        %4508 = vmatpush.bf16.msra.mxu0 0
        %4509 = vmatpush.bf16.msra.mxu0 0
        %4510 = vmatpush.bf16.msra.mxu0 0
        %4511 = vmatpush.bf16.msra.mxu0 0
        %4512 = vmatpush.bf16.msra.mxu0 0
        %4513 = vmatpush.bf16.msra.mxu0 0
        %4514 = vmatpush.bf16.msra.mxu0 %v4476
        %4515 = vmatmul.bf16.gmra.mxu0 %v4467
        %v4516 = vpop.f32.mrf.mxu0
        %v4517 = vadd.f32 0.0, %v4516
        %v4518 = vpop.f32.mrf.mxu0
        %4519 = vdwg.mxu0
        %4520 = vmatpush.bf16.msra.mxu0 0
        %4521 = vmatpush.bf16.msra.mxu0 0
        %4522 = vmatpush.bf16.msra.mxu0 0
        %4523 = vmatpush.bf16.msra.mxu0 0
        %4524 = vmatpush.bf16.msra.mxu0 0
        %4525 = vmatpush.bf16.msra.mxu0 0
        %4526 = vmatpush.bf16.msra.mxu0 0
        %4527 = vmatpush.bf16.msra.mxu0 %v4479
        %4528 = vmatmul.bf16.gmra.mxu0 %v4467
        %v4529 = vpop.f32.mrf.mxu0
        %v4530 = vadd.f32 0.0, %v4529
        %v4531 = vpop.f32.mrf.mxu0
        %4532 = vdwg.mxu0
        %v4534 = vsel %vm4465, %v4375, 0
        %v4537 = vsel %vm324, %v4389, 0
        %v4540 = vsel %vm324, %v4390, 0
        %v4543 = vsel %vm324, %v4391, 0
        %v4546 = vsel %vm324, %v4392, 0
        %4548 = vmatpush.bf16.msra.mxu0 0
        %4549 = vmatpush.bf16.msra.mxu0 0
        %4550 = vmatpush.bf16.msra.mxu0 0
        %4551 = vmatpush.bf16.msra.mxu0 0
        %4552 = vmatpush.bf16.msra.mxu0 0
        %4553 = vmatpush.bf16.msra.mxu0 0
        %4554 = vmatpush.bf16.msra.mxu0 0
        %4555 = vmatpush.bf16.msra.mxu0 %v4537
        %4556 = vmatmul.bf16.gmra.mxu0 %v4534
        %v4557 = vpop.f32.mrf.mxu0
        %v4558 = vadd.f32 %v4491, %v4557
        %v4559 = vpop.f32.mrf.mxu0
        %4560 = vdwg.mxu0
        %4561 = vmatpush.bf16.msra.mxu0 0
        %4562 = vmatpush.bf16.msra.mxu0 0
        %4563 = vmatpush.bf16.msra.mxu0 0
        %4564 = vmatpush.bf16.msra.mxu0 0
        %4565 = vmatpush.bf16.msra.mxu0 0
        %4566 = vmatpush.bf16.msra.mxu0 0
        %4567 = vmatpush.bf16.msra.mxu0 0
        %4568 = vmatpush.bf16.msra.mxu0 %v4540
        %4569 = vmatmul.bf16.gmra.mxu0 %v4534
        %v4570 = vpop.f32.mrf.mxu0
        %v4571 = vadd.f32 %v4504, %v4570
        %v4572 = vpop.f32.mrf.mxu0
        %4573 = vdwg.mxu0
        %4574 = vmatpush.bf16.msra.mxu0 0
        %4575 = vmatpush.bf16.msra.mxu0 0
        %4576 = vmatpush.bf16.msra.mxu0 0
        %4577 = vmatpush.bf16.msra.mxu0 0
        %4578 = vmatpush.bf16.msra.mxu0 0
        %4579 = vmatpush.bf16.msra.mxu0 0
        %4580 = vmatpush.bf16.msra.mxu0 0
        %4581 = vmatpush.bf16.msra.mxu0 %v4543
        %4582 = vmatmul.bf16.gmra.mxu0 %v4534
        %v4583 = vpop.f32.mrf.mxu0
        %v4584 = vadd.f32 %v4517, %v4583
        %v4585 = vpop.f32.mrf.mxu0
        %4586 = vdwg.mxu0
        %4587 = vmatpush.bf16.msra.mxu0 0
        %4588 = vmatpush.bf16.msra.mxu0 0
        %4589 = vmatpush.bf16.msra.mxu0 0
        %4590 = vmatpush.bf16.msra.mxu0 0
        %4591 = vmatpush.bf16.msra.mxu0 0
        %4592 = vmatpush.bf16.msra.mxu0 0
        %4593 = vmatpush.bf16.msra.mxu0 0
        %4594 = vmatpush.bf16.msra.mxu0 %v4546
        %4595 = vmatmul.bf16.gmra.mxu0 %v4534
        %v4596 = vpop.f32.mrf.mxu0
        %v4597 = vadd.f32 %v4530, %v4596
        %v4598 = vpop.f32.mrf.mxu0
        %4599 = vdwg.mxu0
        %v4600 = vld [vmem:[#allocation2] sm:$0xff]
        %v4601 = vld [vmem:[#allocation2 + $0x8] sm:$0xff]
        %v4602 = vld [vmem:[#allocation2 + $0x10] sm:$0xf]
        %v4603 = vld [vmem:[%s685] ss:$8 sm:$0xf]
        %v4605 = vperm.slane %v4603, 0
        %v4606 = vperm.slane %v4603, 1
        %v4607 = vperm.slane %v4603, 2
        %v4608 = vperm.slane %v4603, 3
        %v4609 = vrot.slane %v4606, 4
        %v4610 = vrot.slane %v4608, 4
        %v4611 = vsel %vm424, %v4605, %v4609
        %v4612 = vsel %vm424, %v4607, %v4610
        %4613 = vrot.lane.b32.xlu0 %v4611, 2
        %v4614 = vpop.permute.xlu0 %4613
        %4615 = vrot.lane.b32.xlu0 %v4612, 2
        %v4616 = vpop.permute.xlu0 %4615
        %v4617 = vrot.slane %v4614, 4
        %v4618 = vrot.slane %v4616, 4
        %v4619 = vsel %vm546, %v4617, %v4614
        %v4620 = vsel %vm424, %v4617, %v4618
        %v4621 = vsel %vm546, %v4620, %v4616
        %v4625 = vmul.f32 %v4600, %v4619
        %v4626 = vmul.f32 %v4601, %v4621
        %v4627 = vmul.f32 %v4602, %v4618
        %s4628 = scalar_lea.vmem %s7, 8
        %v4629 = vld [vmem:[%s4628] sm:$0xf]
        %4633 = vst [vmem:[#allocation1] ss:$2 sm:$0xff] %v4625
        %s4634 = scalar_lea.vmem [#allocation1], 16
        %4635 = vst [vmem:[%s4634] ss:$2 sm:$0xff] %v4626
        %s4636 = scalar_lea.vmem [#allocation1], 32
        %4637 = vst [vmem:[%s4636] ss:$2 sm:$0xff] %v4627
        %v4638 = vld.sshfl [vmem:[#allocation1] sm:$0xff pattern:$0x75316420]
        %v4639 = vld.sshfl [vmem:[#allocation1 + $0x8] sm:$0xff pattern:$0x75316420]
        %v4640 = vld.sshfl [vmem:[#allocation1 + $0x10] sm:$0xff pattern:$0x75316420]
        %v4641 = vld.sshfl [vmem:[#allocation1 + $0x18] sm:$0xff pattern:$0x75316420]
        %v4642 = vld.sshfl [vmem:[#allocation1 + $0x20] sm:$0xff pattern:$0x75316420]
        %v4648 = vpack.c.bf16 %v4638, %v4638
        %v4649 = vpack.c.bf16 %v4639, %v4639
        %v4650 = vpack.c.bf16 %v4640, %v4640
        %v4651 = vpack.c.bf16 %v4641, %v4641
        %v4652 = vpack.c.bf16 %v4642, %v4642
        %4658 = vrot.lane.b32.xlu0 %v4648, 126
        %v4659 = vpop.permute.xlu0 %4658
        %4660 = vrot.lane.b32.xlu0 %v4649, 126
        %v4661 = vpop.permute.xlu0 %4660
        %4662 = vrot.lane.b32.xlu0 %v4650, 126
        %v4663 = vpop.permute.xlu0 %4662
        %4664 = vrot.lane.b32.xlu0 %v4651, 126
        %v4665 = vpop.permute.xlu0 %4664
        %4666 = vrot.lane.b32.xlu0 %v4652, 126
        %v4667 = vpop.permute.xlu0 %4666
        %v4668 = vsel %vm751, %v4659, %v4661
        %v4669 = vsel %vm751, %v4661, %v4663
        %v4670 = vsel %vm751, %v4663, %v4665
        %v4671 = vsel %vm751, %v4665, %v4667
        %v4673 = vsel %vm4465, %v4629, 0
        %v4676 = vsel %vm324, %v4668, 0
        %v4679 = vsel %vm324, %v4669, 0
        %v4682 = vsel %vm324, %v4670, 0
        %v4685 = vsel %vm324, %v4671, 0
        %4687 = vmatpush.bf16.msra.mxu0 0
        %4688 = vmatpush.bf16.msra.mxu0 0
        %4689 = vmatpush.bf16.msra.mxu0 0
        %4690 = vmatpush.bf16.msra.mxu0 0
        %4691 = vmatpush.bf16.msra.mxu0 0
        %4692 = vmatpush.bf16.msra.mxu0 0
        %4693 = vmatpush.bf16.msra.mxu0 0
        %4694 = vmatpush.bf16.msra.mxu0 %v4676
        %4695 = vmatmul.bf16.gmra.mxu0 %v4673
        %v4696 = vpop.f32.mrf.mxu0
        %v4697 = vadd.f32 0.0, %v4696
        %v4698 = vpop.f32.mrf.mxu0
        %4699 = vdwg.mxu0
        %4700 = vmatpush.bf16.msra.mxu0 0
        %4701 = vmatpush.bf16.msra.mxu0 0
        %4702 = vmatpush.bf16.msra.mxu0 0
        %4703 = vmatpush.bf16.msra.mxu0 0
        %4704 = vmatpush.bf16.msra.mxu0 0
        %4705 = vmatpush.bf16.msra.mxu0 0
        %4706 = vmatpush.bf16.msra.mxu0 0
        %4707 = vmatpush.bf16.msra.mxu0 %v4679
        %4708 = vmatmul.bf16.gmra.mxu0 %v4673
        %v4709 = vpop.f32.mrf.mxu0
        %v4710 = vadd.f32 0.0, %v4709
        %v4711 = vpop.f32.mrf.mxu0
        %4712 = vdwg.mxu0
        %4713 = vmatpush.bf16.msra.mxu0 0
        %4714 = vmatpush.bf16.msra.mxu0 0
        %4715 = vmatpush.bf16.msra.mxu0 0
        %4716 = vmatpush.bf16.msra.mxu0 0
        %4717 = vmatpush.bf16.msra.mxu0 0
        %4718 = vmatpush.bf16.msra.mxu0 0
        %4719 = vmatpush.bf16.msra.mxu0 0
        %4720 = vmatpush.bf16.msra.mxu0 %v4682
        %4721 = vmatmul.bf16.gmra.mxu0 %v4673
        %v4722 = vpop.f32.mrf.mxu0
        %v4723 = vadd.f32 0.0, %v4722
        %v4724 = vpop.f32.mrf.mxu0
        %4725 = vdwg.mxu0
        %4726 = vmatpush.bf16.msra.mxu0 0
        %4727 = vmatpush.bf16.msra.mxu0 0
        %4728 = vmatpush.bf16.msra.mxu0 0
        %4729 = vmatpush.bf16.msra.mxu0 0
        %4730 = vmatpush.bf16.msra.mxu0 0
        %4731 = vmatpush.bf16.msra.mxu0 0
        %4732 = vmatpush.bf16.msra.mxu0 0
        %4733 = vmatpush.bf16.msra.mxu0 %v4685
        %4734 = vmatmul.bf16.gmra.mxu0 %v4673
        %v4735 = vpop.f32.mrf.mxu0
        %v4736 = vadd.f32 0.0, %v4735
        %v4737 = vpop.f32.mrf.mxu0
        %4738 = vdwg.mxu0
        %v4739 = vadd.f32 %v4558, %v4697
        %v4740 = vadd.f32 %v4571, %v4710
        %v4741 = vadd.f32 %v4584, %v4723
        %v4742 = vadd.f32 %v4597, %v4736
        %v4743 = vld [vmem:[#allocation2] sm:$0xff]
        %v4744 = vld [vmem:[#allocation2 + $0x8] sm:$0xff]
        %v4745 = vld [vmem:[#allocation2 + $0x10] sm:$0xf]
        %v4746 = vld [vmem:[%s830] ss:$8 sm:$0xf]
        %v4748 = vperm.slane %v4746, 0
        %v4749 = vperm.slane %v4746, 1
        %v4750 = vperm.slane %v4746, 2
        %v4751 = vperm.slane %v4746, 3
        %v4752 = vrot.slane %v4749, 4
        %v4753 = vrot.slane %v4751, 4
        %v4754 = vsel %vm424, %v4748, %v4752
        %v4755 = vsel %vm424, %v4750, %v4753
        %4756 = vrot.lane.b32.xlu0 %v4754, 8
        %v4757 = vpop.permute.xlu0 %4756
        %4758 = vrot.lane.b32.xlu0 %v4755, 8
        %v4759 = vpop.permute.xlu0 %4758
        %v4760 = vrot.slane %v4757, 4
        %v4761 = vrot.slane %v4759, 4
        %v4762 = vsel %vm847, %v4760, %v4757
        %v4763 = vsel %vm424, %v4760, %v4761
        %v4764 = vsel %vm847, %v4763, %v4759
        %v4768 = vmul.f32 %v4743, %v4762
        %v4769 = vmul.f32 %v4744, %v4764
        %v4770 = vmul.f32 %v4745, %v4761
        %s4771 = scalar_lea.vmem %s7, 12
        %v4772 = vld [vmem:[%s4771] sm:$0xf]
        %4776 = vst [vmem:[#allocation1] ss:$2 sm:$0xff] %v4768
        %s4777 = scalar_lea.vmem [#allocation1], 16
        %4778 = vst [vmem:[%s4777] ss:$2 sm:$0xff] %v4769
        %s4779 = scalar_lea.vmem [#allocation1], 32
        %4780 = vst [vmem:[%s4779] ss:$2 sm:$0xff] %v4770
        %v4781 = vld.sshfl [vmem:[#allocation1] sm:$0xff pattern:$0x75316420]
        %v4782 = vld.sshfl [vmem:[#allocation1 + $0x8] sm:$0xff pattern:$0x75316420]
        %v4783 = vld.sshfl [vmem:[#allocation1 + $0x10] sm:$0xff pattern:$0x75316420]
        %v4784 = vld.sshfl [vmem:[#allocation1 + $0x18] sm:$0xff pattern:$0x75316420]
        %v4785 = vld.sshfl [vmem:[#allocation1 + $0x20] sm:$0xff pattern:$0x75316420]
        %v4791 = vpack.c.bf16 %v4781, %v4781
        %v4792 = vpack.c.bf16 %v4782, %v4782
        %v4793 = vpack.c.bf16 %v4783, %v4783
        %v4794 = vpack.c.bf16 %v4784, %v4784
        %v4795 = vpack.c.bf16 %v4785, %v4785
        %4801 = vrot.lane.b32.xlu0 %v4791, 120
        %v4802 = vpop.permute.xlu0 %4801
        %4803 = vrot.lane.b32.xlu0 %v4792, 120
        %v4804 = vpop.permute.xlu0 %4803
        %4805 = vrot.lane.b32.xlu0 %v4793, 120
        %v4806 = vpop.permute.xlu0 %4805
        %4807 = vrot.lane.b32.xlu0 %v4794, 120
        %v4808 = vpop.permute.xlu0 %4807
        %4809 = vrot.lane.b32.xlu0 %v4795, 120
        %v4810 = vpop.permute.xlu0 %4809
        %v4811 = vsel %vm897, %v4802, %v4804
        %v4812 = vsel %vm897, %v4804, %v4806
        %v4813 = vsel %vm897, %v4806, %v4808
        %v4814 = vsel %vm897, %v4808, %v4810
        %v4816 = vsel %vm4465, %v4772, 0
        %v4819 = vsel %vm324, %v4811, 0
        %v4822 = vsel %vm324, %v4812, 0
        %v4825 = vsel %vm324, %v4813, 0
        %v4828 = vsel %vm324, %v4814, 0
        %4830 = vmatpush.bf16.msra.mxu0 0
        %4831 = vmatpush.bf16.msra.mxu0 0
        %4832 = vmatpush.bf16.msra.mxu0 0
        %4833 = vmatpush.bf16.msra.mxu0 0
        %4834 = vmatpush.bf16.msra.mxu0 0
        %4835 = vmatpush.bf16.msra.mxu0 0
        %4836 = vmatpush.bf16.msra.mxu0 0
        %4837 = vmatpush.bf16.msra.mxu0 %v4819
        %4838 = vmatmul.bf16.gmra.mxu0 %v4816
        %v4839 = vpop.f32.mrf.mxu0
        %v4840 = vadd.f32 0.0, %v4839
        %v4841 = vpop.f32.mrf.mxu0
        %4842 = vdwg.mxu0
        %4843 = vmatpush.bf16.msra.mxu0 0
        %4844 = vmatpush.bf16.msra.mxu0 0
        %4845 = vmatpush.bf16.msra.mxu0 0
        %4846 = vmatpush.bf16.msra.mxu0 0
        %4847 = vmatpush.bf16.msra.mxu0 0
        %4848 = vmatpush.bf16.msra.mxu0 0
        %4849 = vmatpush.bf16.msra.mxu0 0
        %4850 = vmatpush.bf16.msra.mxu0 %v4822
        %4851 = vmatmul.bf16.gmra.mxu0 %v4816
        %v4852 = vpop.f32.mrf.mxu0
        %v4853 = vadd.f32 0.0, %v4852
        %v4854 = vpop.f32.mrf.mxu0
        %4855 = vdwg.mxu0
        %4856 = vmatpush.bf16.msra.mxu0 0
        %4857 = vmatpush.bf16.msra.mxu0 0
        %4858 = vmatpush.bf16.msra.mxu0 0
        %4859 = vmatpush.bf16.msra.mxu0 0
        %4860 = vmatpush.bf16.msra.mxu0 0
        %4861 = vmatpush.bf16.msra.mxu0 0
        %4862 = vmatpush.bf16.msra.mxu0 0
        %4863 = vmatpush.bf16.msra.mxu0 %v4825
        %4864 = vmatmul.bf16.gmra.mxu0 %v4816
        %v4865 = vpop.f32.mrf.mxu0
        %v4866 = vadd.f32 0.0, %v4865
        %v4867 = vpop.f32.mrf.mxu0
        %4868 = vdwg.mxu0
        %4869 = vmatpush.bf16.msra.mxu0 0
        %4870 = vmatpush.bf16.msra.mxu0 0
        %4871 = vmatpush.bf16.msra.mxu0 0
        %4872 = vmatpush.bf16.msra.mxu0 0
        %4873 = vmatpush.bf16.msra.mxu0 0
        %4874 = vmatpush.bf16.msra.mxu0 0
        %4875 = vmatpush.bf16.msra.mxu0 0
        %4876 = vmatpush.bf16.msra.mxu0 %v4828
        %4877 = vmatmul.bf16.gmra.mxu0 %v4816
        %v4878 = vpop.f32.mrf.mxu0
        %v4879 = vadd.f32 0.0, %v4878
        %v4880 = vpop.f32.mrf.mxu0
        %4881 = vdwg.mxu0
        %v4882 = vadd.f32 %v4739, %v4840
        %v4883 = vadd.f32 %v4740, %v4853
        %v4884 = vadd.f32 %v4741, %v4866
        %v4885 = vadd.f32 %v4742, %v4879
        %v4886 = vld [vmem:[#allocation2] sm:$0xff]
        %v4887 = vld [vmem:[#allocation2 + $0x8] sm:$0xff]
        %v4888 = vld [vmem:[#allocation2 + $0x10] sm:$0xf]
        %v4889 = vld [vmem:[%s976] ss:$8 sm:$0xf]
        %v4891 = vperm.slane %v4889, 0
        %v4892 = vperm.slane %v4889, 1
        %v4893 = vperm.slane %v4889, 2
        %v4894 = vperm.slane %v4889, 3
        %v4895 = vrot.slane %v4892, 4
        %v4896 = vrot.slane %v4894, 4
        %v4897 = vsel %vm424, %v4891, %v4895
        %v4898 = vsel %vm424, %v4893, %v4896
        %4899 = vrot.lane.b32.xlu0 %v4897, 9
        %v4900 = vpop.permute.xlu0 %4899
        %4901 = vrot.lane.b32.xlu0 %v4898, 9
        %v4902 = vpop.permute.xlu0 %4901
        %v4903 = vrot.slane %v4900, 4
        %v4904 = vrot.slane %v4902, 4
        %v4905 = vsel %vm993, %v4903, %v4900
        %v4906 = vsel %vm424, %v4903, %v4904
        %v4907 = vsel %vm993, %v4906, %v4902
        %v4911 = vmul.f32 %v4886, %v4905
        %v4912 = vmul.f32 %v4887, %v4907
        %v4913 = vmul.f32 %v4888, %v4904
        %s4914 = scalar_lea.vmem %s7, 16
        %v4915 = vld [vmem:[%s4914] sm:$0xf]
        %4919 = vst [vmem:[#allocation1] ss:$2 sm:$0xff] %v4911
        %s4920 = scalar_lea.vmem [#allocation1], 16
        %4921 = vst [vmem:[%s4920] ss:$2 sm:$0xff] %v4912
        %s4922 = scalar_lea.vmem [#allocation1], 32
        %4923 = vst [vmem:[%s4922] ss:$2 sm:$0xff] %v4913
        %v4924 = vld.sshfl [vmem:[#allocation1] sm:$0xff pattern:$0x75316420]
        %v4925 = vld.sshfl [vmem:[#allocation1 + $0x8] sm:$0xff pattern:$0x75316420]
        %v4926 = vld.sshfl [vmem:[#allocation1 + $0x10] sm:$0xff pattern:$0x75316420]
        %v4927 = vld.sshfl [vmem:[#allocation1 + $0x18] sm:$0xff pattern:$0x75316420]
        %v4928 = vld.sshfl [vmem:[#allocation1 + $0x20] sm:$0xff pattern:$0x75316420]
        %v4934 = vpack.c.bf16 %v4924, %v4924
        %v4935 = vpack.c.bf16 %v4925, %v4925
        %v4936 = vpack.c.bf16 %v4926, %v4926
        %v4937 = vpack.c.bf16 %v4927, %v4927
        %v4938 = vpack.c.bf16 %v4928, %v4928
        %4944 = vrot.lane.b32.xlu0 %v4934, 119
        %v4945 = vpop.permute.xlu0 %4944
        %4946 = vrot.lane.b32.xlu0 %v4935, 119
        %v4947 = vpop.permute.xlu0 %4946
        %4948 = vrot.lane.b32.xlu0 %v4936, 119
        %v4949 = vpop.permute.xlu0 %4948
        %4950 = vrot.lane.b32.xlu0 %v4937, 119
        %v4951 = vpop.permute.xlu0 %4950
        %4952 = vrot.lane.b32.xlu0 %v4938, 119
        %v4953 = vpop.permute.xlu0 %4952
        %v4954 = vsel %vm1043, %v4945, %v4947
        %v4955 = vsel %vm1043, %v4947, %v4949
        %v4956 = vsel %vm1043, %v4949, %v4951
        %v4957 = vsel %vm1043, %v4951, %v4953
        %v4959 = vsel %vm4465, %v4915, 0
        %v4962 = vsel %vm324, %v4954, 0
        %v4965 = vsel %vm324, %v4955, 0
        %v4968 = vsel %vm324, %v4956, 0
        %v4971 = vsel %vm324, %v4957, 0
        %4973 = vmatpush.bf16.msra.mxu0 0
        %4974 = vmatpush.bf16.msra.mxu0 0
        %4975 = vmatpush.bf16.msra.mxu0 0
        %4976 = vmatpush.bf16.msra.mxu0 0
        %4977 = vmatpush.bf16.msra.mxu0 0
        %4978 = vmatpush.bf16.msra.mxu0 0
        %4979 = vmatpush.bf16.msra.mxu0 0
        %4980 = vmatpush.bf16.msra.mxu0 %v4962
        %4981 = vmatmul.bf16.gmra.mxu0 %v4959
        %v4982 = vpop.f32.mrf.mxu0
        %v4983 = vadd.f32 0.0, %v4982
        %v4984 = vpop.f32.mrf.mxu0
        %4985 = vdwg.mxu0
        %4986 = vmatpush.bf16.msra.mxu0 0
        %4987 = vmatpush.bf16.msra.mxu0 0
        %4988 = vmatpush.bf16.msra.mxu0 0
        %4989 = vmatpush.bf16.msra.mxu0 0
        %4990 = vmatpush.bf16.msra.mxu0 0
        %4991 = vmatpush.bf16.msra.mxu0 0
        %4992 = vmatpush.bf16.msra.mxu0 0
        %4993 = vmatpush.bf16.msra.mxu0 %v4965
        %4994 = vmatmul.bf16.gmra.mxu0 %v4959
        %v4995 = vpop.f32.mrf.mxu0
        %v4996 = vadd.f32 0.0, %v4995
        %v4997 = vpop.f32.mrf.mxu0
        %4998 = vdwg.mxu0
        %4999 = vmatpush.bf16.msra.mxu0 0
        %5000 = vmatpush.bf16.msra.mxu0 0
        %5001 = vmatpush.bf16.msra.mxu0 0
        %5002 = vmatpush.bf16.msra.mxu0 0
        %5003 = vmatpush.bf16.msra.mxu0 0
        %5004 = vmatpush.bf16.msra.mxu0 0
        %5005 = vmatpush.bf16.msra.mxu0 0
        %5006 = vmatpush.bf16.msra.mxu0 %v4968
        %5007 = vmatmul.bf16.gmra.mxu0 %v4959
        %v5008 = vpop.f32.mrf.mxu0
        %v5009 = vadd.f32 0.0, %v5008
        %v5010 = vpop.f32.mrf.mxu0
        %5011 = vdwg.mxu0
        %5012 = vmatpush.bf16.msra.mxu0 0
        %5013 = vmatpush.bf16.msra.mxu0 0
        %5014 = vmatpush.bf16.msra.mxu0 0
        %5015 = vmatpush.bf16.msra.mxu0 0
        %5016 = vmatpush.bf16.msra.mxu0 0
        %5017 = vmatpush.bf16.msra.mxu0 0
        %5018 = vmatpush.bf16.msra.mxu0 0
        %5019 = vmatpush.bf16.msra.mxu0 %v4971
        %5020 = vmatmul.bf16.gmra.mxu0 %v4959
        %v5021 = vpop.f32.mrf.mxu0
        %v5022 = vadd.f32 0.0, %v5021
        %v5023 = vpop.f32.mrf.mxu0
        %5024 = vdwg.mxu0
        %v5025 = vadd.f32 %v4882, %v4983
        %v5026 = vadd.f32 %v4883, %v4996
        %v5027 = vadd.f32 %v4884, %v5009
        %v5028 = vadd.f32 %v4885, %v5022
        %v5029 = vld [vmem:[#allocation2] sm:$0xff]
        %v5030 = vld [vmem:[#allocation2 + $0x8] sm:$0xff]
        %v5031 = vld [vmem:[#allocation2 + $0x10] sm:$0xf]
        %v5032 = vld [vmem:[%s1122] ss:$8 sm:$0xf]
        %v5034 = vperm.slane %v5032, 0
        %v5035 = vperm.slane %v5032, 1
        %v5036 = vperm.slane %v5032, 2
        %v5037 = vperm.slane %v5032, 3
        %v5038 = vrot.slane %v5035, 4
        %v5039 = vrot.slane %v5037, 4
        %v5040 = vsel %vm424, %v5034, %v5038
        %v5041 = vsel %vm424, %v5036, %v5039
        %5042 = vrot.lane.b32.xlu0 %v5040, 10
        %v5043 = vpop.permute.xlu0 %5042
        %5044 = vrot.lane.b32.xlu0 %v5041, 10
        %v5045 = vpop.permute.xlu0 %5044
        %v5046 = vrot.slane %v5043, 4
        %v5047 = vrot.slane %v5045, 4
        %v5048 = vsel %vm1139, %v5046, %v5043
        %v5049 = vsel %vm424, %v5046, %v5047
        %v5050 = vsel %vm1139, %v5049, %v5045
        %v5054 = vmul.f32 %v5029, %v5048
        %v5055 = vmul.f32 %v5030, %v5050
        %v5056 = vmul.f32 %v5031, %v5047
        %s5057 = scalar_lea.vmem %s7, 20
        %v5058 = vld [vmem:[%s5057] sm:$0xf]
        %5062 = vst [vmem:[#allocation1] ss:$2 sm:$0xff] %v5054
        %s5063 = scalar_lea.vmem [#allocation1], 16
        %5064 = vst [vmem:[%s5063] ss:$2 sm:$0xff] %v5055
        %s5065 = scalar_lea.vmem [#allocation1], 32
        %5066 = vst [vmem:[%s5065] ss:$2 sm:$0xff] %v5056
        %v5067 = vld.sshfl [vmem:[#allocation1] sm:$0xff pattern:$0x75316420]
        %v5068 = vld.sshfl [vmem:[#allocation1 + $0x8] sm:$0xff pattern:$0x75316420]
        %v5069 = vld.sshfl [vmem:[#allocation1 + $0x10] sm:$0xff pattern:$0x75316420]
        %v5070 = vld.sshfl [vmem:[#allocation1 + $0x18] sm:$0xff pattern:$0x75316420]
        %v5071 = vld.sshfl [vmem:[#allocation1 + $0x20] sm:$0xff pattern:$0x75316420]
        %v5077 = vpack.c.bf16 %v5067, %v5067
        %v5078 = vpack.c.bf16 %v5068, %v5068
        %v5079 = vpack.c.bf16 %v5069, %v5069
        %v5080 = vpack.c.bf16 %v5070, %v5070
        %v5081 = vpack.c.bf16 %v5071, %v5071
        %5087 = vrot.lane.b32.xlu0 %v5077, 118
        %v5088 = vpop.permute.xlu0 %5087
        %5089 = vrot.lane.b32.xlu0 %v5078, 118
        %v5090 = vpop.permute.xlu0 %5089
        %5091 = vrot.lane.b32.xlu0 %v5079, 118
        %v5092 = vpop.permute.xlu0 %5091
        %5093 = vrot.lane.b32.xlu0 %v5080, 118
        %v5094 = vpop.permute.xlu0 %5093
        %5095 = vrot.lane.b32.xlu0 %v5081, 118
        %v5096 = vpop.permute.xlu0 %5095
        %v5097 = vsel %vm1189, %v5088, %v5090
        %v5098 = vsel %vm1189, %v5090, %v5092
        %v5099 = vsel %vm1189, %v5092, %v5094
        %v5100 = vsel %vm1189, %v5094, %v5096
        %v5102 = vsel %vm4465, %v5058, 0
        %v5105 = vsel %vm324, %v5097, 0
        %v5108 = vsel %vm324, %v5098, 0
        %v5111 = vsel %vm324, %v5099, 0
        %v5114 = vsel %vm324, %v5100, 0
        %5116 = vmatpush.bf16.msra.mxu0 0
        %5117 = vmatpush.bf16.msra.mxu0 0
        %5118 = vmatpush.bf16.msra.mxu0 0
        %5119 = vmatpush.bf16.msra.mxu0 0
        %5120 = vmatpush.bf16.msra.mxu0 0
        %5121 = vmatpush.bf16.msra.mxu0 0
        %5122 = vmatpush.bf16.msra.mxu0 0
        %5123 = vmatpush.bf16.msra.mxu0 %v5105
        %5124 = vmatmul.bf16.gmra.mxu0 %v5102
        %v5125 = vpop.f32.mrf.mxu0
        %v5126 = vadd.f32 0.0, %v5125
        %v5127 = vpop.f32.mrf.mxu0
        %5128 = vdwg.mxu0
        %5129 = vmatpush.bf16.msra.mxu0 0
        %5130 = vmatpush.bf16.msra.mxu0 0
        %5131 = vmatpush.bf16.msra.mxu0 0
        %5132 = vmatpush.bf16.msra.mxu0 0
        %5133 = vmatpush.bf16.msra.mxu0 0
        %5134 = vmatpush.bf16.msra.mxu0 0
        %5135 = vmatpush.bf16.msra.mxu0 0
        %5136 = vmatpush.bf16.msra.mxu0 %v5108
        %5137 = vmatmul.bf16.gmra.mxu0 %v5102
        %v5138 = vpop.f32.mrf.mxu0
        %v5139 = vadd.f32 0.0, %v5138
        %v5140 = vpop.f32.mrf.mxu0
        %5141 = vdwg.mxu0
        %5142 = vmatpush.bf16.msra.mxu0 0
        %5143 = vmatpush.bf16.msra.mxu0 0
        %5144 = vmatpush.bf16.msra.mxu0 0
        %5145 = vmatpush.bf16.msra.mxu0 0
        %5146 = vmatpush.bf16.msra.mxu0 0
        %5147 = vmatpush.bf16.msra.mxu0 0
        %5148 = vmatpush.bf16.msra.mxu0 0
        %5149 = vmatpush.bf16.msra.mxu0 %v5111
        %5150 = vmatmul.bf16.gmra.mxu0 %v5102
        %v5151 = vpop.f32.mrf.mxu0
        %v5152 = vadd.f32 0.0, %v5151
        %v5153 = vpop.f32.mrf.mxu0
        %5154 = vdwg.mxu0
        %5155 = vmatpush.bf16.msra.mxu0 0
        %5156 = vmatpush.bf16.msra.mxu0 0
        %5157 = vmatpush.bf16.msra.mxu0 0
        %5158 = vmatpush.bf16.msra.mxu0 0
        %5159 = vmatpush.bf16.msra.mxu0 0
        %5160 = vmatpush.bf16.msra.mxu0 0
        %5161 = vmatpush.bf16.msra.mxu0 0
        %5162 = vmatpush.bf16.msra.mxu0 %v5114
        %5163 = vmatmul.bf16.gmra.mxu0 %v5102
        %v5164 = vpop.f32.mrf.mxu0
        %v5165 = vadd.f32 0.0, %v5164
        %v5166 = vpop.f32.mrf.mxu0
        %5167 = vdwg.mxu0
        %v5168 = vadd.f32 %v5025, %v5126
        %v5169 = vadd.f32 %v5026, %v5139
        %v5170 = vadd.f32 %v5027, %v5152
        %v5171 = vadd.f32 %v5028, %v5165
        %v5172 = vld [vmem:[#allocation2] sm:$0xff]
        %v5173 = vld [vmem:[#allocation2 + $0x8] sm:$0xff]
        %v5174 = vld [vmem:[#allocation2 + $0x10] sm:$0xf]
        %v5175 = vld [vmem:[%s1268] ss:$8 sm:$0xf]
        %v5177 = vperm.slane %v5175, 0
        %v5178 = vperm.slane %v5175, 1
        %v5179 = vperm.slane %v5175, 2
        %v5180 = vperm.slane %v5175, 3
        %v5181 = vrot.slane %v5178, 4
        %v5182 = vrot.slane %v5180, 4
        %v5183 = vsel %vm424, %v5177, %v5181
        %v5184 = vsel %vm424, %v5179, %v5182
        %5185 = vrot.lane.b32.xlu0 %v5183, 16
        %v5186 = vpop.permute.xlu0 %5185
        %5187 = vrot.lane.b32.xlu0 %v5184, 16
        %v5188 = vpop.permute.xlu0 %5187
        %v5189 = vrot.slane %v5186, 4
        %v5190 = vrot.slane %v5188, 4
        %v5191 = vsel %vm1285, %v5189, %v5186
        %v5192 = vsel %vm424, %v5189, %v5190
        %v5193 = vsel %vm1285, %v5192, %v5188
        %v5197 = vmul.f32 %v5172, %v5191
        %v5198 = vmul.f32 %v5173, %v5193
        %v5199 = vmul.f32 %v5174, %v5190
        %s5200 = scalar_lea.vmem %s7, 24
        %v5201 = vld [vmem:[%s5200] sm:$0xf]
        %5205 = vst [vmem:[#allocation1] ss:$2 sm:$0xff] %v5197
        %s5206 = scalar_lea.vmem [#allocation1], 16
        %5207 = vst [vmem:[%s5206] ss:$2 sm:$0xff] %v5198
        %s5208 = scalar_lea.vmem [#allocation1], 32
        %5209 = vst [vmem:[%s5208] ss:$2 sm:$0xff] %v5199
        %v5210 = vld.sshfl [vmem:[#allocation1] sm:$0xff pattern:$0x75316420]
        %v5211 = vld.sshfl [vmem:[#allocation1 + $0x8] sm:$0xff pattern:$0x75316420]
        %v5212 = vld.sshfl [vmem:[#allocation1 + $0x10] sm:$0xff pattern:$0x75316420]
        %v5213 = vld.sshfl [vmem:[#allocation1 + $0x18] sm:$0xff pattern:$0x75316420]
        %v5214 = vld.sshfl [vmem:[#allocation1 + $0x20] sm:$0xff pattern:$0x75316420]
        %v5220 = vpack.c.bf16 %v5210, %v5210
        %v5221 = vpack.c.bf16 %v5211, %v5211
        %v5222 = vpack.c.bf16 %v5212, %v5212
        %v5223 = vpack.c.bf16 %v5213, %v5213
        %v5224 = vpack.c.bf16 %v5214, %v5214
        %5230 = vrot.lane.b32.xlu0 %v5220, 112
        %v5231 = vpop.permute.xlu0 %5230
        %5232 = vrot.lane.b32.xlu0 %v5221, 112
        %v5233 = vpop.permute.xlu0 %5232
        %5234 = vrot.lane.b32.xlu0 %v5222, 112
        %v5235 = vpop.permute.xlu0 %5234
        %5236 = vrot.lane.b32.xlu0 %v5223, 112
        %v5237 = vpop.permute.xlu0 %5236
        %5238 = vrot.lane.b32.xlu0 %v5224, 112
        %v5239 = vpop.permute.xlu0 %5238
        %v5240 = vsel %vm1335, %v5231, %v5233
        %v5241 = vsel %vm1335, %v5233, %v5235
        %v5242 = vsel %vm1335, %v5235, %v5237
        %v5243 = vsel %vm1335, %v5237, %v5239
        %v5245 = vsel %vm4465, %v5201, 0
        %v5248 = vsel %vm324, %v5240, 0
        %v5251 = vsel %vm324, %v5241, 0
        %v5254 = vsel %vm324, %v5242, 0
        %v5257 = vsel %vm324, %v5243, 0
        %5259 = vmatpush.bf16.msra.mxu0 0
        %5260 = vmatpush.bf16.msra.mxu0 0
        %5261 = vmatpush.bf16.msra.mxu0 0
        %5262 = vmatpush.bf16.msra.mxu0 0
        %5263 = vmatpush.bf16.msra.mxu0 0
        %5264 = vmatpush.bf16.msra.mxu0 0
        %5265 = vmatpush.bf16.msra.mxu0 0
        %5266 = vmatpush.bf16.msra.mxu0 %v5248
        %5267 = vmatmul.bf16.gmra.mxu0 %v5245
        %v5268 = vpop.f32.mrf.mxu0
        %v5269 = vadd.f32 0.0, %v5268
        %v5270 = vpop.f32.mrf.mxu0
        %5271 = vdwg.mxu0
        %5272 = vmatpush.bf16.msra.mxu0 0
        %5273 = vmatpush.bf16.msra.mxu0 0
        %5274 = vmatpush.bf16.msra.mxu0 0
        %5275 = vmatpush.bf16.msra.mxu0 0
        %5276 = vmatpush.bf16.msra.mxu0 0
        %5277 = vmatpush.bf16.msra.mxu0 0
        %5278 = vmatpush.bf16.msra.mxu0 0
        %5279 = vmatpush.bf16.msra.mxu0 %v5251
        %5280 = vmatmul.bf16.gmra.mxu0 %v5245
        %v5281 = vpop.f32.mrf.mxu0
        %v5282 = vadd.f32 0.0, %v5281
        %v5283 = vpop.f32.mrf.mxu0
        %5284 = vdwg.mxu0
        %5285 = vmatpush.bf16.msra.mxu0 0
        %5286 = vmatpush.bf16.msra.mxu0 0
        %5287 = vmatpush.bf16.msra.mxu0 0
        %5288 = vmatpush.bf16.msra.mxu0 0
        %5289 = vmatpush.bf16.msra.mxu0 0
        %5290 = vmatpush.bf16.msra.mxu0 0
        %5291 = vmatpush.bf16.msra.mxu0 0
        %5292 = vmatpush.bf16.msra.mxu0 %v5254
        %5293 = vmatmul.bf16.gmra.mxu0 %v5245
        %v5294 = vpop.f32.mrf.mxu0
        %v5295 = vadd.f32 0.0, %v5294
        %v5296 = vpop.f32.mrf.mxu0
        %5297 = vdwg.mxu0
        %5298 = vmatpush.bf16.msra.mxu0 0
        %5299 = vmatpush.bf16.msra.mxu0 0
        %5300 = vmatpush.bf16.msra.mxu0 0
        %5301 = vmatpush.bf16.msra.mxu0 0
        %5302 = vmatpush.bf16.msra.mxu0 0
        %5303 = vmatpush.bf16.msra.mxu0 0
        %5304 = vmatpush.bf16.msra.mxu0 0
        %5305 = vmatpush.bf16.msra.mxu0 %v5257
        %5306 = vmatmul.bf16.gmra.mxu0 %v5245
        %v5307 = vpop.f32.mrf.mxu0
        %v5308 = vadd.f32 0.0, %v5307
        %v5309 = vpop.f32.mrf.mxu0
        %5310 = vdwg.mxu0
        %v5311 = vadd.f32 %v5168, %v5269
        %v5312 = vadd.f32 %v5169, %v5282
        %v5313 = vadd.f32 %v5170, %v5295
        %v5314 = vadd.f32 %v5171, %v5308
        %v5315 = vld [vmem:[#allocation2] sm:$0xff]
        %v5316 = vld [vmem:[#allocation2 + $0x8] sm:$0xff]
        %v5317 = vld [vmem:[#allocation2 + $0x10] sm:$0xf]
        %v5318 = vld [vmem:[%s1414] ss:$8 sm:$0xf]
        %v5320 = vperm.slane %v5318, 0
        %v5321 = vperm.slane %v5318, 1
        %v5322 = vperm.slane %v5318, 2
        %v5323 = vperm.slane %v5318, 3
        %v5324 = vrot.slane %v5321, 4
        %v5325 = vrot.slane %v5323, 4
        %v5326 = vsel %vm424, %v5320, %v5324
        %v5327 = vsel %vm424, %v5322, %v5325
        %5328 = vrot.lane.b32.xlu0 %v5326, 17
        %v5329 = vpop.permute.xlu0 %5328
        %5330 = vrot.lane.b32.xlu0 %v5327, 17
        %v5331 = vpop.permute.xlu0 %5330
        %v5332 = vrot.slane %v5329, 4
        %v5333 = vrot.slane %v5331, 4
        %v5334 = vsel %vm1431, %v5332, %v5329
        %v5335 = vsel %vm424, %v5332, %v5333
        %v5336 = vsel %vm1431, %v5335, %v5331
        %v5340 = vmul.f32 %v5315, %v5334
        %v5341 = vmul.f32 %v5316, %v5336
        %v5342 = vmul.f32 %v5317, %v5333
        %s5343 = scalar_lea.vmem %s7, 28
        %v5344 = vld [vmem:[%s5343] sm:$0xf]
        %5348 = vst [vmem:[#allocation1] ss:$2 sm:$0xff] %v5340
        %s5349 = scalar_lea.vmem [#allocation1], 16
        %5350 = vst [vmem:[%s5349] ss:$2 sm:$0xff] %v5341
        %s5351 = scalar_lea.vmem [#allocation1], 32
        %5352 = vst [vmem:[%s5351] ss:$2 sm:$0xff] %v5342
        %v5353 = vld.sshfl [vmem:[#allocation1] sm:$0xff pattern:$0x75316420]
        %v5354 = vld.sshfl [vmem:[#allocation1 + $0x8] sm:$0xff pattern:$0x75316420]
        %v5355 = vld.sshfl [vmem:[#allocation1 + $0x10] sm:$0xff pattern:$0x75316420]
        %v5356 = vld.sshfl [vmem:[#allocation1 + $0x18] sm:$0xff pattern:$0x75316420]
        %v5357 = vld.sshfl [vmem:[#allocation1 + $0x20] sm:$0xff pattern:$0x75316420]
        %v5363 = vpack.c.bf16 %v5353, %v5353
        %v5364 = vpack.c.bf16 %v5354, %v5354
        %v5365 = vpack.c.bf16 %v5355, %v5355
        %v5366 = vpack.c.bf16 %v5356, %v5356
        %v5367 = vpack.c.bf16 %v5357, %v5357
        %5373 = vrot.lane.b32.xlu0 %v5363, 111
        %v5374 = vpop.permute.xlu0 %5373
        %5375 = vrot.lane.b32.xlu0 %v5364, 111
        %v5376 = vpop.permute.xlu0 %5375
        %5377 = vrot.lane.b32.xlu0 %v5365, 111
        %v5378 = vpop.permute.xlu0 %5377
        %5379 = vrot.lane.b32.xlu0 %v5366, 111
        %v5380 = vpop.permute.xlu0 %5379
        %5381 = vrot.lane.b32.xlu0 %v5367, 111
        %v5382 = vpop.permute.xlu0 %5381
        %v5383 = vsel %vm1481, %v5374, %v5376
        %v5384 = vsel %vm1481, %v5376, %v5378
        %v5385 = vsel %vm1481, %v5378, %v5380
        %v5386 = vsel %vm1481, %v5380, %v5382
        %v5388 = vsel %vm4465, %v5344, 0
        %v5391 = vsel %vm324, %v5383, 0
        %v5394 = vsel %vm324, %v5384, 0
        %v5397 = vsel %vm324, %v5385, 0
        %v5400 = vsel %vm324, %v5386, 0
        %5402 = vmatpush.bf16.msra.mxu0 0
        %5403 = vmatpush.bf16.msra.mxu0 0
        %5404 = vmatpush.bf16.msra.mxu0 0
        %5405 = vmatpush.bf16.msra.mxu0 0
        %5406 = vmatpush.bf16.msra.mxu0 0
        %5407 = vmatpush.bf16.msra.mxu0 0
        %5408 = vmatpush.bf16.msra.mxu0 0
        %5409 = vmatpush.bf16.msra.mxu0 %v5391
        %5410 = vmatmul.bf16.gmra.mxu0 %v5388
        %v5411 = vpop.f32.mrf.mxu0
        %v5412 = vadd.f32 0.0, %v5411
        %v5413 = vpop.f32.mrf.mxu0
        %5414 = vdwg.mxu0
        %5415 = vmatpush.bf16.msra.mxu0 0
        %5416 = vmatpush.bf16.msra.mxu0 0
        %5417 = vmatpush.bf16.msra.mxu0 0
        %5418 = vmatpush.bf16.msra.mxu0 0
        %5419 = vmatpush.bf16.msra.mxu0 0
        %5420 = vmatpush.bf16.msra.mxu0 0
        %5421 = vmatpush.bf16.msra.mxu0 0
        %5422 = vmatpush.bf16.msra.mxu0 %v5394
        %5423 = vmatmul.bf16.gmra.mxu0 %v5388
        %v5424 = vpop.f32.mrf.mxu0
        %v5425 = vadd.f32 0.0, %v5424
        %v5426 = vpop.f32.mrf.mxu0
        %5427 = vdwg.mxu0
        %5428 = vmatpush.bf16.msra.mxu0 0
        %5429 = vmatpush.bf16.msra.mxu0 0
        %5430 = vmatpush.bf16.msra.mxu0 0
        %5431 = vmatpush.bf16.msra.mxu0 0
        %5432 = vmatpush.bf16.msra.mxu0 0
        %5433 = vmatpush.bf16.msra.mxu0 0
        %5434 = vmatpush.bf16.msra.mxu0 0
        %5435 = vmatpush.bf16.msra.mxu0 %v5397
        %5436 = vmatmul.bf16.gmra.mxu0 %v5388
        %v5437 = vpop.f32.mrf.mxu0
        %v5438 = vadd.f32 0.0, %v5437
        %v5439 = vpop.f32.mrf.mxu0
        %5440 = vdwg.mxu0
        %5441 = vmatpush.bf16.msra.mxu0 0
        %5442 = vmatpush.bf16.msra.mxu0 0
        %5443 = vmatpush.bf16.msra.mxu0 0
        %5444 = vmatpush.bf16.msra.mxu0 0
        %5445 = vmatpush.bf16.msra.mxu0 0
        %5446 = vmatpush.bf16.msra.mxu0 0
        %5447 = vmatpush.bf16.msra.mxu0 0
        %5448 = vmatpush.bf16.msra.mxu0 %v5400
        %5449 = vmatmul.bf16.gmra.mxu0 %v5388
        %v5450 = vpop.f32.mrf.mxu0
        %v5451 = vadd.f32 0.0, %v5450
        %v5452 = vpop.f32.mrf.mxu0
        %5453 = vdwg.mxu0
        %v5454 = vadd.f32 %v5311, %v5412
        %v5455 = vadd.f32 %v5312, %v5425
        %v5456 = vadd.f32 %v5313, %v5438
        %v5457 = vadd.f32 %v5314, %v5451
        %v5458 = vld [vmem:[#allocation2] sm:$0xff]
        %v5459 = vld [vmem:[#allocation2 + $0x8] sm:$0xff]
        %v5460 = vld [vmem:[#allocation2 + $0x10] sm:$0xf]
        %v5461 = vld [vmem:[%s1560] ss:$8 sm:$0xf]
        %v5463 = vperm.slane %v5461, 0
        %v5464 = vperm.slane %v5461, 1
        %v5465 = vperm.slane %v5461, 2
        %v5466 = vperm.slane %v5461, 3
        %v5467 = vrot.slane %v5464, 4
        %v5468 = vrot.slane %v5466, 4
        %v5469 = vsel %vm424, %v5463, %v5467
        %v5470 = vsel %vm424, %v5465, %v5468
        %5471 = vrot.lane.b32.xlu0 %v5469, 18
        %v5472 = vpop.permute.xlu0 %5471
        %5473 = vrot.lane.b32.xlu0 %v5470, 18
        %v5474 = vpop.permute.xlu0 %5473
        %v5475 = vrot.slane %v5472, 4
        %v5476 = vrot.slane %v5474, 4
        %v5477 = vsel %vm1577, %v5475, %v5472
        %v5478 = vsel %vm424, %v5475, %v5476
        %v5479 = vsel %vm1577, %v5478, %v5474
        %v5483 = vmul.f32 %v5458, %v5477
        %v5484 = vmul.f32 %v5459, %v5479
        %v5485 = vmul.f32 %v5460, %v5476
        %s5486 = scalar_lea.vmem %s7, 32
        %v5487 = vld [vmem:[%s5486] sm:$0xf]
        %5491 = vst [vmem:[#allocation1] ss:$2 sm:$0xff] %v5483
        %s5492 = scalar_lea.vmem [#allocation1], 16
        %5493 = vst [vmem:[%s5492] ss:$2 sm:$0xff] %v5484
        %s5494 = scalar_lea.vmem [#allocation1], 32
        %5495 = vst [vmem:[%s5494] ss:$2 sm:$0xff] %v5485
        %v5496 = vld.sshfl [vmem:[#allocation1] sm:$0xff pattern:$0x75316420]
        %v5497 = vld.sshfl [vmem:[#allocation1 + $0x8] sm:$0xff pattern:$0x75316420]
        %v5498 = vld.sshfl [vmem:[#allocation1 + $0x10] sm:$0xff pattern:$0x75316420]
        %v5499 = vld.sshfl [vmem:[#allocation1 + $0x18] sm:$0xff pattern:$0x75316420]
        %v5500 = vld.sshfl [vmem:[#allocation1 + $0x20] sm:$0xff pattern:$0x75316420]
        %v5506 = vpack.c.bf16 %v5496, %v5496
        %v5507 = vpack.c.bf16 %v5497, %v5497
        %v5508 = vpack.c.bf16 %v5498, %v5498
        %v5509 = vpack.c.bf16 %v5499, %v5499
        %v5510 = vpack.c.bf16 %v5500, %v5500
        %5516 = vrot.lane.b32.xlu0 %v5506, 110
        %v5517 = vpop.permute.xlu0 %5516
        %5518 = vrot.lane.b32.xlu0 %v5507, 110
        %v5519 = vpop.permute.xlu0 %5518
        %5520 = vrot.lane.b32.xlu0 %v5508, 110
        %v5521 = vpop.permute.xlu0 %5520
        %5522 = vrot.lane.b32.xlu0 %v5509, 110
        %v5523 = vpop.permute.xlu0 %5522
        %5524 = vrot.lane.b32.xlu0 %v5510, 110
        %v5525 = vpop.permute.xlu0 %5524
        %v5526 = vsel %vm1627, %v5517, %v5519
        %v5527 = vsel %vm1627, %v5519, %v5521
        %v5528 = vsel %vm1627, %v5521, %v5523
        %v5529 = vsel %vm1627, %v5523, %v5525
        %v5531 = vsel %vm4465, %v5487, 0
        %v5534 = vsel %vm324, %v5526, 0
        %v5537 = vsel %vm324, %v5527, 0
        %v5540 = vsel %vm324, %v5528, 0
        %v5543 = vsel %vm324, %v5529, 0
        %5545 = vmatpush.bf16.msra.mxu0 0
        %5546 = vmatpush.bf16.msra.mxu0 0
        %5547 = vmatpush.bf16.msra.mxu0 0
        %5548 = vmatpush.bf16.msra.mxu0 0
        %5549 = vmatpush.bf16.msra.mxu0 0
        %5550 = vmatpush.bf16.msra.mxu0 0
        %5551 = vmatpush.bf16.msra.mxu0 0
        %5552 = vmatpush.bf16.msra.mxu0 %v5534
        %5553 = vmatmul.bf16.gmra.mxu0 %v5531
        %v5554 = vpop.f32.mrf.mxu0
        %v5555 = vadd.f32 0.0, %v5554
        %v5556 = vpop.f32.mrf.mxu0
        %5557 = vdwg.mxu0
        %5558 = vmatpush.bf16.msra.mxu0 0
        %5559 = vmatpush.bf16.msra.mxu0 0
        %5560 = vmatpush.bf16.msra.mxu0 0
        %5561 = vmatpush.bf16.msra.mxu0 0
        %5562 = vmatpush.bf16.msra.mxu0 0
        %5563 = vmatpush.bf16.msra.mxu0 0
        %5564 = vmatpush.bf16.msra.mxu0 0
        %5565 = vmatpush.bf16.msra.mxu0 %v5537
        %5566 = vmatmul.bf16.gmra.mxu0 %v5531
        %v5567 = vpop.f32.mrf.mxu0
        %v5568 = vadd.f32 0.0, %v5567
        %v5569 = vpop.f32.mrf.mxu0
        %5570 = vdwg.mxu0
        %5571 = vmatpush.bf16.msra.mxu0 0
        %5572 = vmatpush.bf16.msra.mxu0 0
        %5573 = vmatpush.bf16.msra.mxu0 0
        %5574 = vmatpush.bf16.msra.mxu0 0
        %5575 = vmatpush.bf16.msra.mxu0 0
        %5576 = vmatpush.bf16.msra.mxu0 0
        %5577 = vmatpush.bf16.msra.mxu0 0
        %5578 = vmatpush.bf16.msra.mxu0 %v5540
        %5579 = vmatmul.bf16.gmra.mxu0 %v5531
        %v5580 = vpop.f32.mrf.mxu0
        %v5581 = vadd.f32 0.0, %v5580
        %v5582 = vpop.f32.mrf.mxu0
        %5583 = vdwg.mxu0
        %5584 = vmatpush.bf16.msra.mxu0 0
        %5585 = vmatpush.bf16.msra.mxu0 0
        %5586 = vmatpush.bf16.msra.mxu0 0
        %5587 = vmatpush.bf16.msra.mxu0 0
        %5588 = vmatpush.bf16.msra.mxu0 0
        %5589 = vmatpush.bf16.msra.mxu0 0
        %5590 = vmatpush.bf16.msra.mxu0 0
        %5591 = vmatpush.bf16.msra.mxu0 %v5543
        %5592 = vmatmul.bf16.gmra.mxu0 %v5531
        %v5593 = vpop.f32.mrf.mxu0
        %v5594 = vadd.f32 0.0, %v5593
        %v5595 = vpop.f32.mrf.mxu0
        %5596 = vdwg.mxu0
        %v5597 = vadd.f32 %v5454, %v5555
        %v5598 = vadd.f32 %v5455, %v5568
        %v5599 = vadd.f32 %v5456, %v5581
        %v5600 = vadd.f32 %v5457, %v5594
        %v5601 = vld [vmem:[#allocation2] sm:$0xff]
        %v5602 = vld [vmem:[#allocation2 + $0x8] sm:$0xff]
        %v5603 = vld [vmem:[#allocation2 + $0x10] sm:$0xf]
        %v5604 = vld [vmem:[%s1706] ss:$8 sm:$0xf]
        %v5606 = vperm.slane %v5604, 0
        %v5607 = vperm.slane %v5604, 1
        %v5608 = vperm.slane %v5604, 2
        %v5609 = vperm.slane %v5604, 3
        %v5610 = vrot.slane %v5607, 4
        %v5611 = vrot.slane %v5609, 4
        %v5612 = vsel %vm424, %v5606, %v5610
        %v5613 = vsel %vm424, %v5608, %v5611
        %5614 = vrot.lane.b32.xlu0 %v5612, 64
        %v5615 = vpop.permute.xlu0 %5614
        %5616 = vrot.lane.b32.xlu0 %v5613, 64
        %v5617 = vpop.permute.xlu0 %5616
        %v5618 = vrot.slane %v5615, 4
        %v5619 = vrot.slane %v5617, 4
        %v5620 = vsel %vm1723, %v5618, %v5615
        %v5621 = vsel %vm424, %v5618, %v5619
        %v5622 = vsel %vm1723, %v5621, %v5617
        %v5626 = vmul.f32 %v5601, %v5620
        %v5627 = vmul.f32 %v5602, %v5622
        %v5628 = vmul.f32 %v5603, %v5619
        %s5629 = scalar_lea.vmem %s7, 36
        %v5630 = vld [vmem:[%s5629] sm:$0xf]
        %5634 = vst [vmem:[#allocation1] ss:$2 sm:$0xff] %v5626
        %s5635 = scalar_lea.vmem [#allocation1], 16
        %5636 = vst [vmem:[%s5635] ss:$2 sm:$0xff] %v5627
        %s5637 = scalar_lea.vmem [#allocation1], 32
        %5638 = vst [vmem:[%s5637] ss:$2 sm:$0xff] %v5628
        %v5639 = vld.sshfl [vmem:[#allocation1] sm:$0xff pattern:$0x75316420]
        %v5640 = vld.sshfl [vmem:[#allocation1 + $0x8] sm:$0xff pattern:$0x75316420]
        %v5641 = vld.sshfl [vmem:[#allocation1 + $0x10] sm:$0xff pattern:$0x75316420]
        %v5642 = vld.sshfl [vmem:[#allocation1 + $0x18] sm:$0xff pattern:$0x75316420]
        %v5643 = vld.sshfl [vmem:[#allocation1 + $0x20] sm:$0xff pattern:$0x75316420]
        %v5649 = vpack.c.bf16 %v5639, %v5639
        %v5650 = vpack.c.bf16 %v5640, %v5640
        %v5651 = vpack.c.bf16 %v5641, %v5641
        %v5652 = vpack.c.bf16 %v5642, %v5642
        %v5653 = vpack.c.bf16 %v5643, %v5643
        %5659 = vrot.lane.b32.xlu0 %v5649, 64
        %v5660 = vpop.permute.xlu0 %5659
        %5661 = vrot.lane.b32.xlu0 %v5650, 64
        %v5662 = vpop.permute.xlu0 %5661
        %5663 = vrot.lane.b32.xlu0 %v5651, 64
        %v5664 = vpop.permute.xlu0 %5663
        %5665 = vrot.lane.b32.xlu0 %v5652, 64
        %v5666 = vpop.permute.xlu0 %5665
        %5667 = vrot.lane.b32.xlu0 %v5653, 64
        %v5668 = vpop.permute.xlu0 %5667
        %v5669 = vsel %vm1773, %v5660, %v5662
        %v5670 = vsel %vm1773, %v5662, %v5664
        %v5671 = vsel %vm1773, %v5664, %v5666
        %v5672 = vsel %vm1773, %v5666, %v5668
        %v5674 = vsel %vm4465, %v5630, 0
        %v5677 = vsel %vm324, %v5669, 0
        %v5680 = vsel %vm324, %v5670, 0
        %v5683 = vsel %vm324, %v5671, 0
        %v5686 = vsel %vm324, %v5672, 0
        %5688 = vmatpush.bf16.msra.mxu0 0
        %5689 = vmatpush.bf16.msra.mxu0 0
        %5690 = vmatpush.bf16.msra.mxu0 0
        %5691 = vmatpush.bf16.msra.mxu0 0
        %5692 = vmatpush.bf16.msra.mxu0 0
        %5693 = vmatpush.bf16.msra.mxu0 0
        %5694 = vmatpush.bf16.msra.mxu0 0
        %5695 = vmatpush.bf16.msra.mxu0 %v5677
        %5696 = vmatmul.bf16.gmra.mxu0 %v5674
        %v5697 = vpop.f32.mrf.mxu0
        %v5698 = vadd.f32 0.0, %v5697
        %v5699 = vpop.f32.mrf.mxu0
        %5700 = vdwg.mxu0
        %5701 = vmatpush.bf16.msra.mxu0 0
        %5702 = vmatpush.bf16.msra.mxu0 0
        %5703 = vmatpush.bf16.msra.mxu0 0
        %5704 = vmatpush.bf16.msra.mxu0 0
        %5705 = vmatpush.bf16.msra.mxu0 0
        %5706 = vmatpush.bf16.msra.mxu0 0
        %5707 = vmatpush.bf16.msra.mxu0 0
        %5708 = vmatpush.bf16.msra.mxu0 %v5680
        %5709 = vmatmul.bf16.gmra.mxu0 %v5674
        %v5710 = vpop.f32.mrf.mxu0
        %v5711 = vadd.f32 0.0, %v5710
        %v5712 = vpop.f32.mrf.mxu0
        %5713 = vdwg.mxu0
        %5714 = vmatpush.bf16.msra.mxu0 0
        %5715 = vmatpush.bf16.msra.mxu0 0
        %5716 = vmatpush.bf16.msra.mxu0 0
        %5717 = vmatpush.bf16.msra.mxu0 0
        %5718 = vmatpush.bf16.msra.mxu0 0
        %5719 = vmatpush.bf16.msra.mxu0 0
        %5720 = vmatpush.bf16.msra.mxu0 0
        %5721 = vmatpush.bf16.msra.mxu0 %v5683
        %5722 = vmatmul.bf16.gmra.mxu0 %v5674
        %v5723 = vpop.f32.mrf.mxu0
        %v5724 = vadd.f32 0.0, %v5723
        %v5725 = vpop.f32.mrf.mxu0
        %5726 = vdwg.mxu0
        %5727 = vmatpush.bf16.msra.mxu0 0
        %5728 = vmatpush.bf16.msra.mxu0 0
        %5729 = vmatpush.bf16.msra.mxu0 0
        %5730 = vmatpush.bf16.msra.mxu0 0
        %5731 = vmatpush.bf16.msra.mxu0 0
        %5732 = vmatpush.bf16.msra.mxu0 0
        %5733 = vmatpush.bf16.msra.mxu0 0
        %5734 = vmatpush.bf16.msra.mxu0 %v5686
        %5735 = vmatmul.bf16.gmra.mxu0 %v5674
        %v5736 = vpop.f32.mrf.mxu0
        %v5737 = vadd.f32 0.0, %v5736
        %v5738 = vpop.f32.mrf.mxu0
        %5739 = vdwg.mxu0
        %v5740 = vadd.f32 %v5597, %v5698
        %v5741 = vadd.f32 %v5598, %v5711
        %v5742 = vadd.f32 %v5599, %v5724
        %v5743 = vadd.f32 %v5600, %v5737
        %v5744 = vld [vmem:[#allocation2] sm:$0xff]
        %v5745 = vld [vmem:[#allocation2 + $0x8] sm:$0xff]
        %v5746 = vld [vmem:[#allocation2 + $0x10] sm:$0xf]
        %v5747 = vld [vmem:[%s1852] ss:$8 sm:$0xf]
        %v5749 = vperm.slane %v5747, 0
        %v5750 = vperm.slane %v5747, 1
        %v5751 = vperm.slane %v5747, 2
        %v5752 = vperm.slane %v5747, 3
        %v5753 = vrot.slane %v5750, 4
        %v5754 = vrot.slane %v5752, 4
        %v5755 = vsel %vm424, %v5749, %v5753
        %v5756 = vsel %vm424, %v5751, %v5754
        %5757 = vrot.lane.b32.xlu0 %v5755, 65
        %v5758 = vpop.permute.xlu0 %5757
        %5759 = vrot.lane.b32.xlu0 %v5756, 65
        %v5760 = vpop.permute.xlu0 %5759
        %v5761 = vrot.slane %v5758, 4
        %v5762 = vrot.slane %v5760, 4
        %v5763 = vsel %vm1869, %v5761, %v5758
        %v5764 = vsel %vm424, %v5761, %v5762
        %v5765 = vsel %vm1869, %v5764, %v5760
        %v5769 = vmul.f32 %v5744, %v5763
        %v5770 = vmul.f32 %v5745, %v5765
        %v5771 = vmul.f32 %v5746, %v5762
        %s5772 = scalar_lea.vmem %s7, 40
        %v5773 = vld [vmem:[%s5772] sm:$0xf]
        %5777 = vst [vmem:[#allocation1] ss:$2 sm:$0xff] %v5769
        %s5778 = scalar_lea.vmem [#allocation1], 16
        %5779 = vst [vmem:[%s5778] ss:$2 sm:$0xff] %v5770
        %s5780 = scalar_lea.vmem [#allocation1], 32
        %5781 = vst [vmem:[%s5780] ss:$2 sm:$0xff] %v5771
        %v5782 = vld.sshfl [vmem:[#allocation1] sm:$0xff pattern:$0x75316420]
        %v5783 = vld.sshfl [vmem:[#allocation1 + $0x8] sm:$0xff pattern:$0x75316420]
        %v5784 = vld.sshfl [vmem:[#allocation1 + $0x10] sm:$0xff pattern:$0x75316420]
        %v5785 = vld.sshfl [vmem:[#allocation1 + $0x18] sm:$0xff pattern:$0x75316420]
        %v5786 = vld.sshfl [vmem:[#allocation1 + $0x20] sm:$0xff pattern:$0x75316420]
        %v5792 = vpack.c.bf16 %v5782, %v5782
        %v5793 = vpack.c.bf16 %v5783, %v5783
        %v5794 = vpack.c.bf16 %v5784, %v5784
        %v5795 = vpack.c.bf16 %v5785, %v5785
        %v5796 = vpack.c.bf16 %v5786, %v5786
        %5802 = vrot.lane.b32.xlu0 %v5792, 63
        %v5803 = vpop.permute.xlu0 %5802
        %5804 = vrot.lane.b32.xlu0 %v5793, 63
        %v5805 = vpop.permute.xlu0 %5804
        %5806 = vrot.lane.b32.xlu0 %v5794, 63
        %v5807 = vpop.permute.xlu0 %5806
        %5808 = vrot.lane.b32.xlu0 %v5795, 63
        %v5809 = vpop.permute.xlu0 %5808
        %5810 = vrot.lane.b32.xlu0 %v5796, 63
        %v5811 = vpop.permute.xlu0 %5810
        %v5812 = vsel %vm1919, %v5803, %v5805
        %v5813 = vsel %vm1919, %v5805, %v5807
        %v5814 = vsel %vm1919, %v5807, %v5809
        %v5815 = vsel %vm1919, %v5809, %v5811
        %v5817 = vsel %vm4465, %v5773, 0
        %v5820 = vsel %vm324, %v5812, 0
        %v5823 = vsel %vm324, %v5813, 0
        %v5826 = vsel %vm324, %v5814, 0
        %v5829 = vsel %vm324, %v5815, 0
        %5831 = vmatpush.bf16.msra.mxu0 0
        %5832 = vmatpush.bf16.msra.mxu0 0
        %5833 = vmatpush.bf16.msra.mxu0 0
        %5834 = vmatpush.bf16.msra.mxu0 0
        %5835 = vmatpush.bf16.msra.mxu0 0
        %5836 = vmatpush.bf16.msra.mxu0 0
        %5837 = vmatpush.bf16.msra.mxu0 0
        %5838 = vmatpush.bf16.msra.mxu0 %v5820
        %5839 = vmatmul.bf16.gmra.mxu0 %v5817
        %v5840 = vpop.f32.mrf.mxu0
        %v5841 = vadd.f32 0.0, %v5840
        %v5842 = vpop.f32.mrf.mxu0
        %5843 = vdwg.mxu0
        %5844 = vmatpush.bf16.msra.mxu0 0
        %5845 = vmatpush.bf16.msra.mxu0 0
        %5846 = vmatpush.bf16.msra.mxu0 0
        %5847 = vmatpush.bf16.msra.mxu0 0
        %5848 = vmatpush.bf16.msra.mxu0 0
        %5849 = vmatpush.bf16.msra.mxu0 0
        %5850 = vmatpush.bf16.msra.mxu0 0
        %5851 = vmatpush.bf16.msra.mxu0 %v5823
        %5852 = vmatmul.bf16.gmra.mxu0 %v5817
        %v5853 = vpop.f32.mrf.mxu0
        %v5854 = vadd.f32 0.0, %v5853
        %v5855 = vpop.f32.mrf.mxu0
        %5856 = vdwg.mxu0
        %5857 = vmatpush.bf16.msra.mxu0 0
        %5858 = vmatpush.bf16.msra.mxu0 0
        %5859 = vmatpush.bf16.msra.mxu0 0
        %5860 = vmatpush.bf16.msra.mxu0 0
        %5861 = vmatpush.bf16.msra.mxu0 0
        %5862 = vmatpush.bf16.msra.mxu0 0
        %5863 = vmatpush.bf16.msra.mxu0 0
        %5864 = vmatpush.bf16.msra.mxu0 %v5826
        %5865 = vmatmul.bf16.gmra.mxu0 %v5817
        %v5866 = vpop.f32.mrf.mxu0
        %v5867 = vadd.f32 0.0, %v5866
        %v5868 = vpop.f32.mrf.mxu0
        %5869 = vdwg.mxu0
        %5870 = vmatpush.bf16.msra.mxu0 0
        %5871 = vmatpush.bf16.msra.mxu0 0
        %5872 = vmatpush.bf16.msra.mxu0 0
        %5873 = vmatpush.bf16.msra.mxu0 0
        %5874 = vmatpush.bf16.msra.mxu0 0
        %5875 = vmatpush.bf16.msra.mxu0 0
        %5876 = vmatpush.bf16.msra.mxu0 0
        %5877 = vmatpush.bf16.msra.mxu0 %v5829
        %5878 = vmatmul.bf16.gmra.mxu0 %v5817
        %v5879 = vpop.f32.mrf.mxu0
        %v5880 = vadd.f32 0.0, %v5879
        %v5881 = vpop.f32.mrf.mxu0
        %5882 = vdwg.mxu0
        %v5883 = vadd.f32 %v5740, %v5841
        %v5884 = vadd.f32 %v5741, %v5854
        %v5885 = vadd.f32 %v5742, %v5867
        %v5886 = vadd.f32 %v5743, %v5880
        %v5887 = vld [vmem:[#allocation2] sm:$0xff]
        %v5888 = vld [vmem:[#allocation2 + $0x8] sm:$0xff]
        %v5889 = vld [vmem:[#allocation2 + $0x10] sm:$0xf]
        %v5890 = vld [vmem:[%s1998] ss:$8 sm:$0xf]
        %v5892 = vperm.slane %v5890, 0
        %v5893 = vperm.slane %v5890, 1
        %v5894 = vperm.slane %v5890, 2
        %v5895 = vperm.slane %v5890, 3
        %v5896 = vrot.slane %v5893, 4
        %v5897 = vrot.slane %v5895, 4
        %v5898 = vsel %vm424, %v5892, %v5896
        %v5899 = vsel %vm424, %v5894, %v5897
        %5900 = vrot.lane.b32.xlu0 %v5898, 66
        %v5901 = vpop.permute.xlu0 %5900
        %5902 = vrot.lane.b32.xlu0 %v5899, 66
        %v5903 = vpop.permute.xlu0 %5902
        %v5904 = vrot.slane %v5901, 4
        %v5905 = vrot.slane %v5903, 4
        %v5906 = vsel %vm2015, %v5904, %v5901
        %v5907 = vsel %vm424, %v5904, %v5905
        %v5908 = vsel %vm2015, %v5907, %v5903
        %v5912 = vmul.f32 %v5887, %v5906
        %v5913 = vmul.f32 %v5888, %v5908
        %v5914 = vmul.f32 %v5889, %v5905
        %s5915 = scalar_lea.vmem %s7, 44
        %v5916 = vld [vmem:[%s5915] sm:$0xf]
        %5920 = vst [vmem:[#allocation1] ss:$2 sm:$0xff] %v5912
        %s5921 = scalar_lea.vmem [#allocation1], 16
        %5922 = vst [vmem:[%s5921] ss:$2 sm:$0xff] %v5913
        %s5923 = scalar_lea.vmem [#allocation1], 32
        %5924 = vst [vmem:[%s5923] ss:$2 sm:$0xff] %v5914
        %v5925 = vld.sshfl [vmem:[#allocation1] sm:$0xff pattern:$0x75316420]
        %v5926 = vld.sshfl [vmem:[#allocation1 + $0x8] sm:$0xff pattern:$0x75316420]
        %v5927 = vld.sshfl [vmem:[#allocation1 + $0x10] sm:$0xff pattern:$0x75316420]
        %v5928 = vld.sshfl [vmem:[#allocation1 + $0x18] sm:$0xff pattern:$0x75316420]
        %v5929 = vld.sshfl [vmem:[#allocation1 + $0x20] sm:$0xff pattern:$0x75316420]
        %v5935 = vpack.c.bf16 %v5925, %v5925
        %v5936 = vpack.c.bf16 %v5926, %v5926
        %v5937 = vpack.c.bf16 %v5927, %v5927
        %v5938 = vpack.c.bf16 %v5928, %v5928
        %v5939 = vpack.c.bf16 %v5929, %v5929
        %5945 = vrot.lane.b32.xlu0 %v5935, 62
        %v5946 = vpop.permute.xlu0 %5945
        %5947 = vrot.lane.b32.xlu0 %v5936, 62
        %v5948 = vpop.permute.xlu0 %5947
        %5949 = vrot.lane.b32.xlu0 %v5937, 62
        %v5950 = vpop.permute.xlu0 %5949
        %5951 = vrot.lane.b32.xlu0 %v5938, 62
        %v5952 = vpop.permute.xlu0 %5951
        %5953 = vrot.lane.b32.xlu0 %v5939, 62
        %v5954 = vpop.permute.xlu0 %5953
        %v5955 = vsel %vm2065, %v5946, %v5948
        %v5956 = vsel %vm2065, %v5948, %v5950
        %v5957 = vsel %vm2065, %v5950, %v5952
        %v5958 = vsel %vm2065, %v5952, %v5954
        %v5960 = vsel %vm4465, %v5916, 0
        %v5963 = vsel %vm324, %v5955, 0
        %v5966 = vsel %vm324, %v5956, 0
        %v5969 = vsel %vm324, %v5957, 0
        %v5972 = vsel %vm324, %v5958, 0
        %5974 = vmatpush.bf16.msra.mxu0 0
        %5975 = vmatpush.bf16.msra.mxu0 0
        %5976 = vmatpush.bf16.msra.mxu0 0
        %5977 = vmatpush.bf16.msra.mxu0 0
        %5978 = vmatpush.bf16.msra.mxu0 0
        %5979 = vmatpush.bf16.msra.mxu0 0
        %5980 = vmatpush.bf16.msra.mxu0 0
        %5981 = vmatpush.bf16.msra.mxu0 %v5963
        %5982 = vmatmul.bf16.gmra.mxu0 %v5960
        %v5983 = vpop.f32.mrf.mxu0
        %v5984 = vadd.f32 0.0, %v5983
        %v5985 = vpop.f32.mrf.mxu0
        %5986 = vdwg.mxu0
        %5987 = vmatpush.bf16.msra.mxu0 0
        %5988 = vmatpush.bf16.msra.mxu0 0
        %5989 = vmatpush.bf16.msra.mxu0 0
        %5990 = vmatpush.bf16.msra.mxu0 0
        %5991 = vmatpush.bf16.msra.mxu0 0
        %5992 = vmatpush.bf16.msra.mxu0 0
        %5993 = vmatpush.bf16.msra.mxu0 0
        %5994 = vmatpush.bf16.msra.mxu0 %v5966
        %5995 = vmatmul.bf16.gmra.mxu0 %v5960
        %v5996 = vpop.f32.mrf.mxu0
        %v5997 = vadd.f32 0.0, %v5996
        %v5998 = vpop.f32.mrf.mxu0
        %5999 = vdwg.mxu0
        %6000 = vmatpush.bf16.msra.mxu0 0
        %6001 = vmatpush.bf16.msra.mxu0 0
        %6002 = vmatpush.bf16.msra.mxu0 0
        %6003 = vmatpush.bf16.msra.mxu0 0
        %6004 = vmatpush.bf16.msra.mxu0 0
        %6005 = vmatpush.bf16.msra.mxu0 0
        %6006 = vmatpush.bf16.msra.mxu0 0
        %6007 = vmatpush.bf16.msra.mxu0 %v5969
        %6008 = vmatmul.bf16.gmra.mxu0 %v5960
        %v6009 = vpop.f32.mrf.mxu0
        %v6010 = vadd.f32 0.0, %v6009
        %v6011 = vpop.f32.mrf.mxu0
        %6012 = vdwg.mxu0
        %6013 = vmatpush.bf16.msra.mxu0 0
        %6014 = vmatpush.bf16.msra.mxu0 0
        %6015 = vmatpush.bf16.msra.mxu0 0
        %6016 = vmatpush.bf16.msra.mxu0 0
        %6017 = vmatpush.bf16.msra.mxu0 0
        %6018 = vmatpush.bf16.msra.mxu0 0
        %6019 = vmatpush.bf16.msra.mxu0 0
        %6020 = vmatpush.bf16.msra.mxu0 %v5972
        %6021 = vmatmul.bf16.gmra.mxu0 %v5960
        %v6022 = vpop.f32.mrf.mxu0
        %v6023 = vadd.f32 0.0, %v6022
        %v6024 = vpop.f32.mrf.mxu0
        %6025 = vdwg.mxu0
        %v6026 = vadd.f32 %v5883, %v5984
        %v6027 = vadd.f32 %v5884, %v5997
        %v6028 = vadd.f32 %v5885, %v6010
        %v6029 = vadd.f32 %v5886, %v6023
        %v6030 = vld [vmem:[#allocation2] sm:$0xff]
        %v6031 = vld [vmem:[#allocation2 + $0x8] sm:$0xff]
        %v6032 = vld [vmem:[#allocation2 + $0x10] sm:$0xf]
        %v6033 = vld [vmem:[%s2144] ss:$8 sm:$0xf]
        %v6035 = vperm.slane %v6033, 0
        %v6036 = vperm.slane %v6033, 1
        %v6037 = vperm.slane %v6033, 2
        %v6038 = vperm.slane %v6033, 3
        %v6039 = vrot.slane %v6036, 4
        %v6040 = vrot.slane %v6038, 4
        %v6041 = vsel %vm424, %v6035, %v6039
        %v6042 = vsel %vm424, %v6037, %v6040
        %6043 = vrot.lane.b32.xlu0 %v6041, 72
        %v6044 = vpop.permute.xlu0 %6043
        %6045 = vrot.lane.b32.xlu0 %v6042, 72
        %v6046 = vpop.permute.xlu0 %6045
        %v6047 = vrot.slane %v6044, 4
        %v6048 = vrot.slane %v6046, 4
        %v6049 = vsel %vm2161, %v6047, %v6044
        %v6050 = vsel %vm424, %v6047, %v6048
        %v6051 = vsel %vm2161, %v6050, %v6046
        %v6055 = vmul.f32 %v6030, %v6049
        %v6056 = vmul.f32 %v6031, %v6051
        %v6057 = vmul.f32 %v6032, %v6048
        %s6058 = scalar_lea.vmem %s7, 48
        %v6059 = vld [vmem:[%s6058] sm:$0xf]
        %6063 = vst [vmem:[#allocation1] ss:$2 sm:$0xff] %v6055
        %s6064 = scalar_lea.vmem [#allocation1], 16
        %6065 = vst [vmem:[%s6064] ss:$2 sm:$0xff] %v6056
        %s6066 = scalar_lea.vmem [#allocation1], 32
        %6067 = vst [vmem:[%s6066] ss:$2 sm:$0xff] %v6057
        %v6068 = vld.sshfl [vmem:[#allocation1] sm:$0xff pattern:$0x75316420]
        %v6069 = vld.sshfl [vmem:[#allocation1 + $0x8] sm:$0xff pattern:$0x75316420]
        %v6070 = vld.sshfl [vmem:[#allocation1 + $0x10] sm:$0xff pattern:$0x75316420]
        %v6071 = vld.sshfl [vmem:[#allocation1 + $0x18] sm:$0xff pattern:$0x75316420]
        %v6072 = vld.sshfl [vmem:[#allocation1 + $0x20] sm:$0xff pattern:$0x75316420]
        %v6078 = vpack.c.bf16 %v6068, %v6068
        %v6079 = vpack.c.bf16 %v6069, %v6069
        %v6080 = vpack.c.bf16 %v6070, %v6070
        %v6081 = vpack.c.bf16 %v6071, %v6071
        %v6082 = vpack.c.bf16 %v6072, %v6072
        %6088 = vrot.lane.b32.xlu0 %v6078, 56
        %v6089 = vpop.permute.xlu0 %6088
        %6090 = vrot.lane.b32.xlu0 %v6079, 56
        %v6091 = vpop.permute.xlu0 %6090
        %6092 = vrot.lane.b32.xlu0 %v6080, 56
        %v6093 = vpop.permute.xlu0 %6092
        %6094 = vrot.lane.b32.xlu0 %v6081, 56
        %v6095 = vpop.permute.xlu0 %6094
        %6096 = vrot.lane.b32.xlu0 %v6082, 56
        %v6097 = vpop.permute.xlu0 %6096
        %v6098 = vsel %vm2211, %v6089, %v6091
        %v6099 = vsel %vm2211, %v6091, %v6093
        %v6100 = vsel %vm2211, %v6093, %v6095
        %v6101 = vsel %vm2211, %v6095, %v6097
        %v6103 = vsel %vm4465, %v6059, 0
        %v6106 = vsel %vm324, %v6098, 0
        %v6109 = vsel %vm324, %v6099, 0
        %v6112 = vsel %vm324, %v6100, 0
        %v6115 = vsel %vm324, %v6101, 0
        %6117 = vmatpush.bf16.msra.mxu0 0
        %6118 = vmatpush.bf16.msra.mxu0 0
        %6119 = vmatpush.bf16.msra.mxu0 0
        %6120 = vmatpush.bf16.msra.mxu0 0
        %6121 = vmatpush.bf16.msra.mxu0 0
        %6122 = vmatpush.bf16.msra.mxu0 0
        %6123 = vmatpush.bf16.msra.mxu0 0
        %6124 = vmatpush.bf16.msra.mxu0 %v6106
        %6125 = vmatmul.bf16.gmra.mxu0 %v6103
        %v6126 = vpop.f32.mrf.mxu0
        %v6127 = vadd.f32 0.0, %v6126
        %v6128 = vpop.f32.mrf.mxu0
        %6129 = vdwg.mxu0
        %6130 = vmatpush.bf16.msra.mxu0 0
        %6131 = vmatpush.bf16.msra.mxu0 0
        %6132 = vmatpush.bf16.msra.mxu0 0
        %6133 = vmatpush.bf16.msra.mxu0 0
        %6134 = vmatpush.bf16.msra.mxu0 0
        %6135 = vmatpush.bf16.msra.mxu0 0
        %6136 = vmatpush.bf16.msra.mxu0 0
        %6137 = vmatpush.bf16.msra.mxu0 %v6109
        %6138 = vmatmul.bf16.gmra.mxu0 %v6103
        %v6139 = vpop.f32.mrf.mxu0
        %v6140 = vadd.f32 0.0, %v6139
        %v6141 = vpop.f32.mrf.mxu0
        %6142 = vdwg.mxu0
        %6143 = vmatpush.bf16.msra.mxu0 0
        %6144 = vmatpush.bf16.msra.mxu0 0
        %6145 = vmatpush.bf16.msra.mxu0 0
        %6146 = vmatpush.bf16.msra.mxu0 0
        %6147 = vmatpush.bf16.msra.mxu0 0
        %6148 = vmatpush.bf16.msra.mxu0 0
        %6149 = vmatpush.bf16.msra.mxu0 0
        %6150 = vmatpush.bf16.msra.mxu0 %v6112
        %6151 = vmatmul.bf16.gmra.mxu0 %v6103
        %v6152 = vpop.f32.mrf.mxu0
        %v6153 = vadd.f32 0.0, %v6152
        %v6154 = vpop.f32.mrf.mxu0
        %6155 = vdwg.mxu0
        %6156 = vmatpush.bf16.msra.mxu0 0
        %6157 = vmatpush.bf16.msra.mxu0 0
        %6158 = vmatpush.bf16.msra.mxu0 0
        %6159 = vmatpush.bf16.msra.mxu0 0
        %6160 = vmatpush.bf16.msra.mxu0 0
        %6161 = vmatpush.bf16.msra.mxu0 0
        %6162 = vmatpush.bf16.msra.mxu0 0
        %6163 = vmatpush.bf16.msra.mxu0 %v6115
        %6164 = vmatmul.bf16.gmra.mxu0 %v6103
        %v6165 = vpop.f32.mrf.mxu0
        %v6166 = vadd.f32 0.0, %v6165
        %v6167 = vpop.f32.mrf.mxu0
        %6168 = vdwg.mxu0
        %v6169 = vadd.f32 %v6026, %v6127
        %v6170 = vadd.f32 %v6027, %v6140
        %v6171 = vadd.f32 %v6028, %v6153
        %v6172 = vadd.f32 %v6029, %v6166
        %v6173 = vld [vmem:[#allocation2] sm:$0xff]
        %v6174 = vld [vmem:[#allocation2 + $0x8] sm:$0xff]
        %v6175 = vld [vmem:[#allocation2 + $0x10] sm:$0xf]
        %s6176 = scalar_lea.vmem %s7, 52
        %v6177 = vld [vmem:[%s6176] sm:$0xf]
        %6181 = vst [vmem:[#allocation1] ss:$2 sm:$0xff] %v6173
        %s6182 = scalar_lea.vmem [#allocation1], 16
        %6183 = vst [vmem:[%s6182] ss:$2 sm:$0xff] %v6174
        %s6184 = scalar_lea.vmem [#allocation1], 32
        %6185 = vst [vmem:[%s6184] ss:$2 sm:$0xff] %v6175
        %v6186 = vld.sshfl [vmem:[#allocation1] sm:$0xff pattern:$0x75316420]
        %v6187 = vld.sshfl [vmem:[#allocation1 + $0x8] sm:$0xff pattern:$0x75316420]
        %v6188 = vld.sshfl [vmem:[#allocation1 + $0x10] sm:$0xff pattern:$0x75316420]
        %v6189 = vld.sshfl [vmem:[#allocation1 + $0x18] sm:$0xff pattern:$0x75316420]
        %v6190 = vld.sshfl [vmem:[#allocation1 + $0x20] sm:$0xff pattern:$0x75316420]
        %v6196 = vpack.c.bf16 %v6186, %v6186
        %v6197 = vpack.c.bf16 %v6187, %v6187
        %v6198 = vpack.c.bf16 %v6188, %v6188
        %v6199 = vpack.c.bf16 %v6189, %v6189
        %v6200 = vpack.c.bf16 %v6190, %v6190
        %6206 = vrot.lane.b32.xlu0 %v6196, 55
        %v6207 = vpop.permute.xlu0 %6206
        %6208 = vrot.lane.b32.xlu0 %v6197, 55
        %v6209 = vpop.permute.xlu0 %6208
        %6210 = vrot.lane.b32.xlu0 %v6198, 55
        %v6211 = vpop.permute.xlu0 %6210
        %6212 = vrot.lane.b32.xlu0 %v6199, 55
        %v6213 = vpop.permute.xlu0 %6212
        %6214 = vrot.lane.b32.xlu0 %v6200, 55
        %v6215 = vpop.permute.xlu0 %6214
        %v6216 = vsel %vm2330, %v6207, %v6209
        %v6217 = vsel %vm2330, %v6209, %v6211
        %v6218 = vsel %vm2330, %v6211, %v6213
        %v6219 = vsel %vm2330, %v6213, %v6215
        %v6221 = vsel %vm4465, %v6177, 0
        %v6224 = vsel %vm324, %v6216, 0
        %v6227 = vsel %vm324, %v6217, 0
        %v6230 = vsel %vm324, %v6218, 0
        %v6233 = vsel %vm324, %v6219, 0
        %6235 = vmatpush.bf16.msra.mxu0 0
        %6236 = vmatpush.bf16.msra.mxu0 0
        %6237 = vmatpush.bf16.msra.mxu0 0
        %6238 = vmatpush.bf16.msra.mxu0 0
        %6239 = vmatpush.bf16.msra.mxu0 0
        %6240 = vmatpush.bf16.msra.mxu0 0
        %6241 = vmatpush.bf16.msra.mxu0 0
        %6242 = vmatpush.bf16.msra.mxu0 %v6224
        %6243 = vmatmul.bf16.gmra.mxu0 %v6221
        %v6244 = vpop.f32.mrf.mxu0
        %v6245 = vadd.f32 0.0, %v6244
        %v6246 = vpop.f32.mrf.mxu0
        %6247 = vdwg.mxu0
        %6248 = vmatpush.bf16.msra.mxu0 0
        %6249 = vmatpush.bf16.msra.mxu0 0
        %6250 = vmatpush.bf16.msra.mxu0 0
        %6251 = vmatpush.bf16.msra.mxu0 0
        %6252 = vmatpush.bf16.msra.mxu0 0
        %6253 = vmatpush.bf16.msra.mxu0 0
        %6254 = vmatpush.bf16.msra.mxu0 0
        %6255 = vmatpush.bf16.msra.mxu0 %v6227
        %6256 = vmatmul.bf16.gmra.mxu0 %v6221
        %v6257 = vpop.f32.mrf.mxu0
        %v6258 = vadd.f32 0.0, %v6257
        %v6259 = vpop.f32.mrf.mxu0
        %6260 = vdwg.mxu0
        %6261 = vmatpush.bf16.msra.mxu0 0
        %6262 = vmatpush.bf16.msra.mxu0 0
        %6263 = vmatpush.bf16.msra.mxu0 0
        %6264 = vmatpush.bf16.msra.mxu0 0
        %6265 = vmatpush.bf16.msra.mxu0 0
        %6266 = vmatpush.bf16.msra.mxu0 0
        %6267 = vmatpush.bf16.msra.mxu0 0
        %6268 = vmatpush.bf16.msra.mxu0 %v6230
        %6269 = vmatmul.bf16.gmra.mxu0 %v6221
        %v6270 = vpop.f32.mrf.mxu0
        %v6271 = vadd.f32 0.0, %v6270
        %v6272 = vpop.f32.mrf.mxu0
        %6273 = vdwg.mxu0
        %6274 = vmatpush.bf16.msra.mxu0 0
        %6275 = vmatpush.bf16.msra.mxu0 0
        %6276 = vmatpush.bf16.msra.mxu0 0
        %6277 = vmatpush.bf16.msra.mxu0 0
        %6278 = vmatpush.bf16.msra.mxu0 0
        %6279 = vmatpush.bf16.msra.mxu0 0
        %6280 = vmatpush.bf16.msra.mxu0 0
        %6281 = vmatpush.bf16.msra.mxu0 %v6233
        %6282 = vmatmul.bf16.gmra.mxu0 %v6221
        %v6283 = vpop.f32.mrf.mxu0
        %v6284 = vadd.f32 0.0, %v6283
        %v6285 = vpop.f32.mrf.mxu0
        %6286 = vdwg.mxu0
        %v6287 = vadd.f32 %v6169, %v6245
        %v6288 = vadd.f32 %v6170, %v6258
        %v6289 = vadd.f32 %v6171, %v6271
        %v6290 = vadd.f32 %v6172, %v6284
        %v6291 = vld [vmem:[#allocation2] sm:$0xff]
        %v6292 = vld [vmem:[#allocation2 + $0x8] sm:$0xff]
        %v6293 = vld [vmem:[#allocation2 + $0x10] sm:$0xf]
        %v6294 = vld [vmem:[%s2409] ss:$8 sm:$0xf]
        %v6296 = vperm.slane %v6294, 0
        %v6297 = vperm.slane %v6294, 1
        %v6298 = vperm.slane %v6294, 2
        %v6299 = vperm.slane %v6294, 3
        %v6300 = vrot.slane %v6297, 4
        %v6301 = vrot.slane %v6299, 4
        %v6302 = vsel %vm424, %v6296, %v6300
        %v6303 = vsel %vm424, %v6298, %v6301
        %6304 = vrot.lane.b32.xlu0 %v6302, 74
        %v6305 = vpop.permute.xlu0 %6304
        %6306 = vrot.lane.b32.xlu0 %v6303, 74
        %v6307 = vpop.permute.xlu0 %6306
        %v6308 = vrot.slane %v6305, 4
        %v6309 = vrot.slane %v6307, 4
        %v6310 = vsel %vm2426, %v6308, %v6305
        %v6311 = vsel %vm424, %v6308, %v6309
        %v6312 = vsel %vm2426, %v6311, %v6307
        %v6316 = vmul.f32 %v6291, %v6310
        %v6317 = vmul.f32 %v6292, %v6312
        %v6318 = vmul.f32 %v6293, %v6309
        %s6319 = scalar_lea.vmem %s7, 56
        %v6320 = vld [vmem:[%s6319] sm:$0xf]
        %6324 = vst [vmem:[#allocation1] ss:$2 sm:$0xff] %v6316
        %s6325 = scalar_lea.vmem [#allocation1], 16
        %6326 = vst [vmem:[%s6325] ss:$2 sm:$0xff] %v6317
        %s6327 = scalar_lea.vmem [#allocation1], 32
        %6328 = vst [vmem:[%s6327] ss:$2 sm:$0xff] %v6318
        %v6329 = vld.sshfl [vmem:[#allocation1] sm:$0xff pattern:$0x75316420]
        %v6330 = vld.sshfl [vmem:[#allocation1 + $0x8] sm:$0xff pattern:$0x75316420]
        %v6331 = vld.sshfl [vmem:[#allocation1 + $0x10] sm:$0xff pattern:$0x75316420]
        %v6332 = vld.sshfl [vmem:[#allocation1 + $0x18] sm:$0xff pattern:$0x75316420]
        %v6333 = vld.sshfl [vmem:[#allocation1 + $0x20] sm:$0xff pattern:$0x75316420]
        %v6339 = vpack.c.bf16 %v6329, %v6329
        %v6340 = vpack.c.bf16 %v6330, %v6330
        %v6341 = vpack.c.bf16 %v6331, %v6331
        %v6342 = vpack.c.bf16 %v6332, %v6332
        %v6343 = vpack.c.bf16 %v6333, %v6333
        %6349 = vrot.lane.b32.xlu0 %v6339, 54
        %v6350 = vpop.permute.xlu0 %6349
        %6351 = vrot.lane.b32.xlu0 %v6340, 54
        %v6352 = vpop.permute.xlu0 %6351
        %6353 = vrot.lane.b32.xlu0 %v6341, 54
        %v6354 = vpop.permute.xlu0 %6353
        %6355 = vrot.lane.b32.xlu0 %v6342, 54
        %v6356 = vpop.permute.xlu0 %6355
        %6357 = vrot.lane.b32.xlu0 %v6343, 54
        %v6358 = vpop.permute.xlu0 %6357
        %v6359 = vsel %vm2476, %v6350, %v6352
        %v6360 = vsel %vm2476, %v6352, %v6354
        %v6361 = vsel %vm2476, %v6354, %v6356
        %v6362 = vsel %vm2476, %v6356, %v6358
        %v6364 = vsel %vm4465, %v6320, 0
        %v6367 = vsel %vm324, %v6359, 0
        %v6370 = vsel %vm324, %v6360, 0
        %v6373 = vsel %vm324, %v6361, 0
        %v6376 = vsel %vm324, %v6362, 0
        %6378 = vmatpush.bf16.msra.mxu0 0
        %6379 = vmatpush.bf16.msra.mxu0 0
        %6380 = vmatpush.bf16.msra.mxu0 0
        %6381 = vmatpush.bf16.msra.mxu0 0
        %6382 = vmatpush.bf16.msra.mxu0 0
        %6383 = vmatpush.bf16.msra.mxu0 0
        %6384 = vmatpush.bf16.msra.mxu0 0
        %6385 = vmatpush.bf16.msra.mxu0 %v6367
        %6386 = vmatmul.bf16.gmra.mxu0 %v6364
        %v6387 = vpop.f32.mrf.mxu0
        %v6388 = vadd.f32 0.0, %v6387
        %v6389 = vpop.f32.mrf.mxu0
        %6390 = vdwg.mxu0
        %6391 = vmatpush.bf16.msra.mxu0 0
        %6392 = vmatpush.bf16.msra.mxu0 0
        %6393 = vmatpush.bf16.msra.mxu0 0
        %6394 = vmatpush.bf16.msra.mxu0 0
        %6395 = vmatpush.bf16.msra.mxu0 0
        %6396 = vmatpush.bf16.msra.mxu0 0
        %6397 = vmatpush.bf16.msra.mxu0 0
        %6398 = vmatpush.bf16.msra.mxu0 %v6370
        %6399 = vmatmul.bf16.gmra.mxu0 %v6364
        %v6400 = vpop.f32.mrf.mxu0
        %v6401 = vadd.f32 0.0, %v6400
        %v6402 = vpop.f32.mrf.mxu0
        %6403 = vdwg.mxu0
        %6404 = vmatpush.bf16.msra.mxu0 0
        %6405 = vmatpush.bf16.msra.mxu0 0
        %6406 = vmatpush.bf16.msra.mxu0 0
        %6407 = vmatpush.bf16.msra.mxu0 0
        %6408 = vmatpush.bf16.msra.mxu0 0
        %6409 = vmatpush.bf16.msra.mxu0 0
        %6410 = vmatpush.bf16.msra.mxu0 0
        %6411 = vmatpush.bf16.msra.mxu0 %v6373
        %6412 = vmatmul.bf16.gmra.mxu0 %v6364
        %v6413 = vpop.f32.mrf.mxu0
        %v6414 = vadd.f32 0.0, %v6413
        %v6415 = vpop.f32.mrf.mxu0
        %6416 = vdwg.mxu0
        %6417 = vmatpush.bf16.msra.mxu0 0
        %6418 = vmatpush.bf16.msra.mxu0 0
        %6419 = vmatpush.bf16.msra.mxu0 0
        %6420 = vmatpush.bf16.msra.mxu0 0
        %6421 = vmatpush.bf16.msra.mxu0 0
        %6422 = vmatpush.bf16.msra.mxu0 0
        %6423 = vmatpush.bf16.msra.mxu0 0
        %6424 = vmatpush.bf16.msra.mxu0 %v6376
        %6425 = vmatmul.bf16.gmra.mxu0 %v6364
        %v6426 = vpop.f32.mrf.mxu0
        %v6427 = vadd.f32 0.0, %v6426
        %v6428 = vpop.f32.mrf.mxu0
        %6429 = vdwg.mxu0
        %v6430 = vadd.f32 %v6287, %v6388
        %v6431 = vadd.f32 %v6288, %v6401
        %v6432 = vadd.f32 %v6289, %v6414
        %v6433 = vadd.f32 %v6290, %v6427
        %v6434 = vld [vmem:[#allocation2] sm:$0xff]
        %v6435 = vld [vmem:[#allocation2 + $0x8] sm:$0xff]
        %v6436 = vld [vmem:[#allocation2 + $0x10] sm:$0xf]
        %v6437 = vld [vmem:[%s2555] ss:$8 sm:$0xf]
        %v6439 = vperm.slane %v6437, 0
        %v6440 = vperm.slane %v6437, 1
        %v6441 = vperm.slane %v6437, 2
        %v6442 = vperm.slane %v6437, 3
        %v6443 = vrot.slane %v6440, 4
        %v6444 = vrot.slane %v6442, 4
        %v6445 = vsel %vm424, %v6439, %v6443
        %v6446 = vsel %vm424, %v6441, %v6444
        %6447 = vrot.lane.b32.xlu0 %v6445, 80
        %v6448 = vpop.permute.xlu0 %6447
        %6449 = vrot.lane.b32.xlu0 %v6446, 80
        %v6450 = vpop.permute.xlu0 %6449
        %v6451 = vrot.slane %v6448, 4
        %v6452 = vrot.slane %v6450, 4
        %v6453 = vsel %vm2572, %v6451, %v6448
        %v6454 = vsel %vm424, %v6451, %v6452
        %v6455 = vsel %vm2572, %v6454, %v6450
        %v6459 = vmul.f32 %v6434, %v6453
        %v6460 = vmul.f32 %v6435, %v6455
        %v6461 = vmul.f32 %v6436, %v6452
        %s6462 = scalar_lea.vmem %s7, 60
        %v6463 = vld [vmem:[%s6462] sm:$0xf]
        %6467 = vst [vmem:[#allocation1] ss:$2 sm:$0xff] %v6459
        %s6468 = scalar_lea.vmem [#allocation1], 16
        %6469 = vst [vmem:[%s6468] ss:$2 sm:$0xff] %v6460
        %s6470 = scalar_lea.vmem [#allocation1], 32
        %6471 = vst [vmem:[%s6470] ss:$2 sm:$0xff] %v6461
        %v6472 = vld.sshfl [vmem:[#allocation1] sm:$0xff pattern:$0x75316420]
        %v6473 = vld.sshfl [vmem:[#allocation1 + $0x8] sm:$0xff pattern:$0x75316420]
        %v6474 = vld.sshfl [vmem:[#allocation1 + $0x10] sm:$0xff pattern:$0x75316420]
        %v6475 = vld.sshfl [vmem:[#allocation1 + $0x18] sm:$0xff pattern:$0x75316420]
        %v6476 = vld.sshfl [vmem:[#allocation1 + $0x20] sm:$0xff pattern:$0x75316420]
        %v6482 = vpack.c.bf16 %v6472, %v6472
        %v6483 = vpack.c.bf16 %v6473, %v6473
        %v6484 = vpack.c.bf16 %v6474, %v6474
        %v6485 = vpack.c.bf16 %v6475, %v6475
        %v6486 = vpack.c.bf16 %v6476, %v6476
        %6492 = vrot.lane.b32.xlu0 %v6482, 48
        %v6493 = vpop.permute.xlu0 %6492
        %6494 = vrot.lane.b32.xlu0 %v6483, 48
        %v6495 = vpop.permute.xlu0 %6494
        %6496 = vrot.lane.b32.xlu0 %v6484, 48
        %v6497 = vpop.permute.xlu0 %6496
        %6498 = vrot.lane.b32.xlu0 %v6485, 48
        %v6499 = vpop.permute.xlu0 %6498
        %6500 = vrot.lane.b32.xlu0 %v6486, 48
        %v6501 = vpop.permute.xlu0 %6500
        %v6502 = vsel %vm2622, %v6493, %v6495
        %v6503 = vsel %vm2622, %v6495, %v6497
        %v6504 = vsel %vm2622, %v6497, %v6499
        %v6505 = vsel %vm2622, %v6499, %v6501
        %v6507 = vsel %vm4465, %v6463, 0
        %v6510 = vsel %vm324, %v6502, 0
        %v6513 = vsel %vm324, %v6503, 0
        %v6516 = vsel %vm324, %v6504, 0
        %v6519 = vsel %vm324, %v6505, 0
        %6521 = vmatpush.bf16.msra.mxu0 0
        %6522 = vmatpush.bf16.msra.mxu0 0
        %6523 = vmatpush.bf16.msra.mxu0 0
        %6524 = vmatpush.bf16.msra.mxu0 0
        %6525 = vmatpush.bf16.msra.mxu0 0
        %6526 = vmatpush.bf16.msra.mxu0 0
        %6527 = vmatpush.bf16.msra.mxu0 0
        %6528 = vmatpush.bf16.msra.mxu0 %v6510
        %6529 = vmatmul.bf16.gmra.mxu0 %v6507
        %v6530 = vpop.f32.mrf.mxu0
        %v6531 = vadd.f32 0.0, %v6530
        %v6532 = vpop.f32.mrf.mxu0
        %6533 = vdwg.mxu0
        %6534 = vmatpush.bf16.msra.mxu0 0
        %6535 = vmatpush.bf16.msra.mxu0 0
        %6536 = vmatpush.bf16.msra.mxu0 0
        %6537 = vmatpush.bf16.msra.mxu0 0
        %6538 = vmatpush.bf16.msra.mxu0 0
        %6539 = vmatpush.bf16.msra.mxu0 0
        %6540 = vmatpush.bf16.msra.mxu0 0
        %6541 = vmatpush.bf16.msra.mxu0 %v6513
        %6542 = vmatmul.bf16.gmra.mxu0 %v6507
        %v6543 = vpop.f32.mrf.mxu0
        %v6544 = vadd.f32 0.0, %v6543
        %v6545 = vpop.f32.mrf.mxu0
        %6546 = vdwg.mxu0
        %6547 = vmatpush.bf16.msra.mxu0 0
        %6548 = vmatpush.bf16.msra.mxu0 0
        %6549 = vmatpush.bf16.msra.mxu0 0
        %6550 = vmatpush.bf16.msra.mxu0 0
        %6551 = vmatpush.bf16.msra.mxu0 0
        %6552 = vmatpush.bf16.msra.mxu0 0
        %6553 = vmatpush.bf16.msra.mxu0 0
        %6554 = vmatpush.bf16.msra.mxu0 %v6516
        %6555 = vmatmul.bf16.gmra.mxu0 %v6507
        %v6556 = vpop.f32.mrf.mxu0
        %v6557 = vadd.f32 0.0, %v6556
        %v6558 = vpop.f32.mrf.mxu0
        %6559 = vdwg.mxu0
        %6560 = vmatpush.bf16.msra.mxu0 0
        %6561 = vmatpush.bf16.msra.mxu0 0
        %6562 = vmatpush.bf16.msra.mxu0 0
        %6563 = vmatpush.bf16.msra.mxu0 0
        %6564 = vmatpush.bf16.msra.mxu0 0
        %6565 = vmatpush.bf16.msra.mxu0 0
        %6566 = vmatpush.bf16.msra.mxu0 0
        %6567 = vmatpush.bf16.msra.mxu0 %v6519
        %6568 = vmatmul.bf16.gmra.mxu0 %v6507
        %v6569 = vpop.f32.mrf.mxu0
        %v6570 = vadd.f32 0.0, %v6569
        %v6571 = vpop.f32.mrf.mxu0
        %6572 = vdwg.mxu0
        %v6573 = vadd.f32 %v6430, %v6531
        %v6574 = vadd.f32 %v6431, %v6544
        %v6575 = vadd.f32 %v6432, %v6557
        %v6576 = vadd.f32 %v6433, %v6570
        %v6577 = vld [vmem:[#allocation2] sm:$0xff]
        %v6578 = vld [vmem:[#allocation2 + $0x8] sm:$0xff]
        %v6579 = vld [vmem:[#allocation2 + $0x10] sm:$0xf]
        %v6580 = vld [vmem:[%s2701] ss:$8 sm:$0xf]
        %v6582 = vperm.slane %v6580, 0
        %v6583 = vperm.slane %v6580, 1
        %v6584 = vperm.slane %v6580, 2
        %v6585 = vperm.slane %v6580, 3
        %v6586 = vrot.slane %v6583, 4
        %v6587 = vrot.slane %v6585, 4
        %v6588 = vsel %vm424, %v6582, %v6586
        %v6589 = vsel %vm424, %v6584, %v6587
        %6590 = vrot.lane.b32.xlu0 %v6588, 81
        %v6591 = vpop.permute.xlu0 %6590
        %6592 = vrot.lane.b32.xlu0 %v6589, 81
        %v6593 = vpop.permute.xlu0 %6592
        %v6594 = vrot.slane %v6591, 4
        %v6595 = vrot.slane %v6593, 4
        %v6596 = vsel %vm2718, %v6594, %v6591
        %v6597 = vsel %vm424, %v6594, %v6595
        %v6598 = vsel %vm2718, %v6597, %v6593
        %v6602 = vmul.f32 %v6577, %v6596
        %v6603 = vmul.f32 %v6578, %v6598
        %v6604 = vmul.f32 %v6579, %v6595
        %s6605 = scalar_lea.vmem %s7, 64
        %v6606 = vld [vmem:[%s6605] sm:$0xf]
        %6610 = vst [vmem:[#allocation1] ss:$2 sm:$0xff] %v6602
        %s6611 = scalar_lea.vmem [#allocation1], 16
        %6612 = vst [vmem:[%s6611] ss:$2 sm:$0xff] %v6603
        %s6613 = scalar_lea.vmem [#allocation1], 32
        %6614 = vst [vmem:[%s6613] ss:$2 sm:$0xff] %v6604
        %v6615 = vld.sshfl [vmem:[#allocation1] sm:$0xff pattern:$0x75316420]
        %v6616 = vld.sshfl [vmem:[#allocation1 + $0x8] sm:$0xff pattern:$0x75316420]
        %v6617 = vld.sshfl [vmem:[#allocation1 + $0x10] sm:$0xff pattern:$0x75316420]
        %v6618 = vld.sshfl [vmem:[#allocation1 + $0x18] sm:$0xff pattern:$0x75316420]
        %v6619 = vld.sshfl [vmem:[#allocation1 + $0x20] sm:$0xff pattern:$0x75316420]
        %v6625 = vpack.c.bf16 %v6615, %v6615
        %v6626 = vpack.c.bf16 %v6616, %v6616
        %v6627 = vpack.c.bf16 %v6617, %v6617
        %v6628 = vpack.c.bf16 %v6618, %v6618
        %v6629 = vpack.c.bf16 %v6619, %v6619
        %6635 = vrot.lane.b32.xlu0 %v6625, 47
        %v6636 = vpop.permute.xlu0 %6635
        %6637 = vrot.lane.b32.xlu0 %v6626, 47
        %v6638 = vpop.permute.xlu0 %6637
        %6639 = vrot.lane.b32.xlu0 %v6627, 47
        %v6640 = vpop.permute.xlu0 %6639
        %6641 = vrot.lane.b32.xlu0 %v6628, 47
        %v6642 = vpop.permute.xlu0 %6641
        %6643 = vrot.lane.b32.xlu0 %v6629, 47
        %v6644 = vpop.permute.xlu0 %6643
        %v6645 = vsel %vm2768, %v6636, %v6638
        %v6646 = vsel %vm2768, %v6638, %v6640
        %v6647 = vsel %vm2768, %v6640, %v6642
        %v6648 = vsel %vm2768, %v6642, %v6644
        %v6650 = vsel %vm4465, %v6606, 0
        %v6653 = vsel %vm324, %v6645, 0
        %v6656 = vsel %vm324, %v6646, 0
        %v6659 = vsel %vm324, %v6647, 0
        %v6662 = vsel %vm324, %v6648, 0
        %6664 = vmatpush.bf16.msra.mxu0 0
        %6665 = vmatpush.bf16.msra.mxu0 0
        %6666 = vmatpush.bf16.msra.mxu0 0
        %6667 = vmatpush.bf16.msra.mxu0 0
        %6668 = vmatpush.bf16.msra.mxu0 0
        %6669 = vmatpush.bf16.msra.mxu0 0
        %6670 = vmatpush.bf16.msra.mxu0 0
        %6671 = vmatpush.bf16.msra.mxu0 %v6653
        %6672 = vmatmul.bf16.gmra.mxu0 %v6650
        %v6673 = vpop.f32.mrf.mxu0
        %v6674 = vadd.f32 0.0, %v6673
        %v6675 = vpop.f32.mrf.mxu0
        %6676 = vdwg.mxu0
        %6677 = vmatpush.bf16.msra.mxu0 0
        %6678 = vmatpush.bf16.msra.mxu0 0
        %6679 = vmatpush.bf16.msra.mxu0 0
        %6680 = vmatpush.bf16.msra.mxu0 0
        %6681 = vmatpush.bf16.msra.mxu0 0
        %6682 = vmatpush.bf16.msra.mxu0 0
        %6683 = vmatpush.bf16.msra.mxu0 0
        %6684 = vmatpush.bf16.msra.mxu0 %v6656
        %6685 = vmatmul.bf16.gmra.mxu0 %v6650
        %v6686 = vpop.f32.mrf.mxu0
        %v6687 = vadd.f32 0.0, %v6686
        %v6688 = vpop.f32.mrf.mxu0
        %6689 = vdwg.mxu0
        %6690 = vmatpush.bf16.msra.mxu0 0
        %6691 = vmatpush.bf16.msra.mxu0 0
        %6692 = vmatpush.bf16.msra.mxu0 0
        %6693 = vmatpush.bf16.msra.mxu0 0
        %6694 = vmatpush.bf16.msra.mxu0 0
        %6695 = vmatpush.bf16.msra.mxu0 0
        %6696 = vmatpush.bf16.msra.mxu0 0
        %6697 = vmatpush.bf16.msra.mxu0 %v6659
        %6698 = vmatmul.bf16.gmra.mxu0 %v6650
        %v6699 = vpop.f32.mrf.mxu0
        %v6700 = vadd.f32 0.0, %v6699
        %v6701 = vpop.f32.mrf.mxu0
        %6702 = vdwg.mxu0
        %6703 = vmatpush.bf16.msra.mxu0 0
        %6704 = vmatpush.bf16.msra.mxu0 0
        %6705 = vmatpush.bf16.msra.mxu0 0
        %6706 = vmatpush.bf16.msra.mxu0 0
        %6707 = vmatpush.bf16.msra.mxu0 0
        %6708 = vmatpush.bf16.msra.mxu0 0
        %6709 = vmatpush.bf16.msra.mxu0 0
        %6710 = vmatpush.bf16.msra.mxu0 %v6662
        %6711 = vmatmul.bf16.gmra.mxu0 %v6650
        %v6712 = vpop.f32.mrf.mxu0
        %v6713 = vadd.f32 0.0, %v6712
        %v6714 = vpop.f32.mrf.mxu0
        %6715 = vdwg.mxu0
        %v6716 = vadd.f32 %v6573, %v6674
        %v6717 = vadd.f32 %v6574, %v6687
        %v6718 = vadd.f32 %v6575, %v6700
        %v6719 = vadd.f32 %v6576, %v6713
        %v6720 = vld [vmem:[#allocation2] sm:$0xff]
        %v6721 = vld [vmem:[#allocation2 + $0x8] sm:$0xff]
        %v6722 = vld [vmem:[#allocation2 + $0x10] sm:$0xf]
        %v6723 = vld [vmem:[%s2847] ss:$8 sm:$0xf]
        %v6725 = vperm.slane %v6723, 0
        %v6726 = vperm.slane %v6723, 1
        %v6727 = vperm.slane %v6723, 2
        %v6728 = vperm.slane %v6723, 3
        %v6729 = vrot.slane %v6726, 4
        %v6730 = vrot.slane %v6728, 4
        %v6731 = vsel %vm424, %v6725, %v6729
        %v6732 = vsel %vm424, %v6727, %v6730
        %6733 = vrot.lane.b32.xlu0 %v6731, 82
        %v6734 = vpop.permute.xlu0 %6733
        %6735 = vrot.lane.b32.xlu0 %v6732, 82
        %v6736 = vpop.permute.xlu0 %6735
        %v6737 = vrot.slane %v6734, 4
        %v6738 = vrot.slane %v6736, 4
        %v6739 = vsel %vm2864, %v6737, %v6734
        %v6740 = vsel %vm424, %v6737, %v6738
        %v6741 = vsel %vm2864, %v6740, %v6736
        %v6745 = vmul.f32 %v6720, %v6739
        %v6746 = vmul.f32 %v6721, %v6741
        %v6747 = vmul.f32 %v6722, %v6738
        %s6748 = scalar_lea.vmem %s7, 68
        %v6749 = vld [vmem:[%s6748] sm:$0xf]
        %6753 = vst [vmem:[#allocation1] ss:$2 sm:$0xff] %v6745
        %s6754 = scalar_lea.vmem [#allocation1], 16
        %6755 = vst [vmem:[%s6754] ss:$2 sm:$0xff] %v6746
        %s6756 = scalar_lea.vmem [#allocation1], 32
        %6757 = vst [vmem:[%s6756] ss:$2 sm:$0xff] %v6747
        %v6758 = vld.sshfl [vmem:[#allocation1] sm:$0xff pattern:$0x75316420]
        %v6759 = vld.sshfl [vmem:[#allocation1 + $0x8] sm:$0xff pattern:$0x75316420]
        %v6760 = vld.sshfl [vmem:[#allocation1 + $0x10] sm:$0xff pattern:$0x75316420]
        %v6761 = vld.sshfl [vmem:[#allocation1 + $0x18] sm:$0xff pattern:$0x75316420]
        %v6762 = vld.sshfl [vmem:[#allocation1 + $0x20] sm:$0xff pattern:$0x75316420]
        %v6768 = vpack.c.bf16 %v6758, %v6758
        %v6769 = vpack.c.bf16 %v6759, %v6759
        %v6770 = vpack.c.bf16 %v6760, %v6760
        %v6771 = vpack.c.bf16 %v6761, %v6761
        %v6772 = vpack.c.bf16 %v6762, %v6762
        %6778 = vrot.lane.b32.xlu0 %v6768, 46
        %v6779 = vpop.permute.xlu0 %6778
        %6780 = vrot.lane.b32.xlu0 %v6769, 46
        %v6781 = vpop.permute.xlu0 %6780
        %6782 = vrot.lane.b32.xlu0 %v6770, 46
        %v6783 = vpop.permute.xlu0 %6782
        %6784 = vrot.lane.b32.xlu0 %v6771, 46
        %v6785 = vpop.permute.xlu0 %6784
        %6786 = vrot.lane.b32.xlu0 %v6772, 46
        %v6787 = vpop.permute.xlu0 %6786
        %v6788 = vsel %vm2914, %v6779, %v6781
        %v6789 = vsel %vm2914, %v6781, %v6783
        %v6790 = vsel %vm2914, %v6783, %v6785
        %v6791 = vsel %vm2914, %v6785, %v6787
        %v6793 = vsel %vm4465, %v6749, 0
        %v6796 = vsel %vm324, %v6788, 0
        %v6799 = vsel %vm324, %v6789, 0
        %v6802 = vsel %vm324, %v6790, 0
        %v6805 = vsel %vm324, %v6791, 0
        %6807 = vmatpush.bf16.msra.mxu0 0
        %6808 = vmatpush.bf16.msra.mxu0 0
        %6809 = vmatpush.bf16.msra.mxu0 0
        %6810 = vmatpush.bf16.msra.mxu0 0
        %6811 = vmatpush.bf16.msra.mxu0 0
        %6812 = vmatpush.bf16.msra.mxu0 0
        %6813 = vmatpush.bf16.msra.mxu0 0
        %6814 = vmatpush.bf16.msra.mxu0 %v6796
        %6815 = vmatmul.bf16.gmra.mxu0 %v6793
        %v6816 = vpop.f32.mrf.mxu0
        %v6817 = vadd.f32 0.0, %v6816
        %v6818 = vpop.f32.mrf.mxu0
        %6819 = vdwg.mxu0
        %6820 = vmatpush.bf16.msra.mxu0 0
        %6821 = vmatpush.bf16.msra.mxu0 0
        %6822 = vmatpush.bf16.msra.mxu0 0
        %6823 = vmatpush.bf16.msra.mxu0 0
        %6824 = vmatpush.bf16.msra.mxu0 0
        %6825 = vmatpush.bf16.msra.mxu0 0
        %6826 = vmatpush.bf16.msra.mxu0 0
        %6827 = vmatpush.bf16.msra.mxu0 %v6799
        %6828 = vmatmul.bf16.gmra.mxu0 %v6793
        %v6829 = vpop.f32.mrf.mxu0
        %v6830 = vadd.f32 0.0, %v6829
        %v6831 = vpop.f32.mrf.mxu0
        %6832 = vdwg.mxu0
        %6833 = vmatpush.bf16.msra.mxu0 0
        %6834 = vmatpush.bf16.msra.mxu0 0
        %6835 = vmatpush.bf16.msra.mxu0 0
        %6836 = vmatpush.bf16.msra.mxu0 0
        %6837 = vmatpush.bf16.msra.mxu0 0
        %6838 = vmatpush.bf16.msra.mxu0 0
        %6839 = vmatpush.bf16.msra.mxu0 0
        %6840 = vmatpush.bf16.msra.mxu0 %v6802
        %6841 = vmatmul.bf16.gmra.mxu0 %v6793
        %v6842 = vpop.f32.mrf.mxu0
        %v6843 = vadd.f32 0.0, %v6842
        %v6844 = vpop.f32.mrf.mxu0
        %6845 = vdwg.mxu0
        %6846 = vmatpush.bf16.msra.mxu0 0
        %6847 = vmatpush.bf16.msra.mxu0 0
        %6848 = vmatpush.bf16.msra.mxu0 0
        %6849 = vmatpush.bf16.msra.mxu0 0
        %6850 = vmatpush.bf16.msra.mxu0 0
        %6851 = vmatpush.bf16.msra.mxu0 0
        %6852 = vmatpush.bf16.msra.mxu0 0
        %6853 = vmatpush.bf16.msra.mxu0 %v6805
        %6854 = vmatmul.bf16.gmra.mxu0 %v6793
        %v6855 = vpop.f32.mrf.mxu0
        %v6856 = vadd.f32 0.0, %v6855
        %v6857 = vpop.f32.mrf.mxu0
        %6858 = vdwg.mxu0
        %v6859 = vadd.f32 %v6716, %v6817
        %v6860 = vadd.f32 %v6717, %v6830
        %v6861 = vadd.f32 %v6718, %v6843
        %v6862 = vadd.f32 %v6719, %v6856
        %v6863 = vld [vmem:[#allocation2 + $0x4] sm:$0xff]
        %v6864 = vld [vmem:[#allocation2 + $0xc] sm:$0xff]
        %v6865 = vld [vmem:[%s2992] ss:$8 sm:$0xf]
        %v6867 = vperm.slane %v6865, 0
        %v6868 = vperm.slane %v6865, 1
        %v6869 = vperm.slane %v6865, 2
        %v6870 = vperm.slane %v6865, 3
        %v6871 = vrot.slane %v6868, 4
        %v6872 = vrot.slane %v6870, 4
        %v6873 = vsel %vm424, %v6867, %v6871
        %v6874 = vsel %vm424, %v6869, %v6872
        %v6877 = vmul.f32 %v6863, %v6873
        %v6878 = vmul.f32 %v6864, %v6874
        %s6879 = scalar_lea.vmem %s7, 72
        %v6880 = vld [vmem:[%s6879] sm:$0xf]
        %6883 = vst [vmem:[#allocation1] ss:$2 sm:$0xff] %v6877
        %s6884 = scalar_lea.vmem [#allocation1], 16
        %6885 = vst [vmem:[%s6884] ss:$2 sm:$0xff] %v6878
        %v6886 = vld.sshfl [vmem:[#allocation1] sm:$0xff pattern:$0x75316420]
        %v6887 = vld.sshfl [vmem:[#allocation1 + $0x8] sm:$0xff pattern:$0x75316420]
        %v6888 = vld.sshfl [vmem:[#allocation1 + $0x10] sm:$0xff pattern:$0x75316420]
        %v6889 = vld.sshfl [vmem:[#allocation1 + $0x18] sm:$0xff pattern:$0x75316420]
        %v6894 = vpack.c.bf16 %v6886, %v6886
        %v6895 = vpack.c.bf16 %v6887, %v6887
        %v6896 = vpack.c.bf16 %v6888, %v6888
        %v6897 = vpack.c.bf16 %v6889, %v6889
        %v6899 = vsel %vm4465, %v6880, 0
        %v6902 = vsel %vm324, %v6894, 0
        %v6905 = vsel %vm324, %v6895, 0
        %v6908 = vsel %vm324, %v6896, 0
        %v6911 = vsel %vm324, %v6897, 0
        %6913 = vmatpush.bf16.msra.mxu0 0
        %6914 = vmatpush.bf16.msra.mxu0 0
        %6915 = vmatpush.bf16.msra.mxu0 0
        %6916 = vmatpush.bf16.msra.mxu0 0
        %6917 = vmatpush.bf16.msra.mxu0 0
        %6918 = vmatpush.bf16.msra.mxu0 0
        %6919 = vmatpush.bf16.msra.mxu0 0
        %6920 = vmatpush.bf16.msra.mxu0 %v6902
        %6921 = vmatmul.bf16.gmra.mxu0 %v6899
        %v6922 = vpop.f32.mrf.mxu0
        %v6923 = vadd.f32 0.0, %v6922
        %v6924 = vpop.f32.mrf.mxu0
        %6925 = vdwg.mxu0
        %6926 = vmatpush.bf16.msra.mxu0 0
        %6927 = vmatpush.bf16.msra.mxu0 0
        %6928 = vmatpush.bf16.msra.mxu0 0
        %6929 = vmatpush.bf16.msra.mxu0 0
        %6930 = vmatpush.bf16.msra.mxu0 0
        %6931 = vmatpush.bf16.msra.mxu0 0
        %6932 = vmatpush.bf16.msra.mxu0 0
        %6933 = vmatpush.bf16.msra.mxu0 %v6905
        %6934 = vmatmul.bf16.gmra.mxu0 %v6899
        %v6935 = vpop.f32.mrf.mxu0
        %v6936 = vadd.f32 0.0, %v6935
        %v6937 = vpop.f32.mrf.mxu0
        %6938 = vdwg.mxu0
        %6939 = vmatpush.bf16.msra.mxu0 0
        %6940 = vmatpush.bf16.msra.mxu0 0
        %6941 = vmatpush.bf16.msra.mxu0 0
        %6942 = vmatpush.bf16.msra.mxu0 0
        %6943 = vmatpush.bf16.msra.mxu0 0
        %6944 = vmatpush.bf16.msra.mxu0 0
        %6945 = vmatpush.bf16.msra.mxu0 0
        %6946 = vmatpush.bf16.msra.mxu0 %v6908
        %6947 = vmatmul.bf16.gmra.mxu0 %v6899
        %v6948 = vpop.f32.mrf.mxu0
        %v6949 = vadd.f32 0.0, %v6948
        %v6950 = vpop.f32.mrf.mxu0
        %6951 = vdwg.mxu0
        %6952 = vmatpush.bf16.msra.mxu0 0
        %6953 = vmatpush.bf16.msra.mxu0 0
        %6954 = vmatpush.bf16.msra.mxu0 0
        %6955 = vmatpush.bf16.msra.mxu0 0
        %6956 = vmatpush.bf16.msra.mxu0 0
        %6957 = vmatpush.bf16.msra.mxu0 0
        %6958 = vmatpush.bf16.msra.mxu0 0
        %6959 = vmatpush.bf16.msra.mxu0 %v6911
        %6960 = vmatmul.bf16.gmra.mxu0 %v6899
        %v6961 = vpop.f32.mrf.mxu0
        %v6962 = vadd.f32 0.0, %v6961
        %v6963 = vpop.f32.mrf.mxu0
        %6964 = vdwg.mxu0
        %v6965 = vadd.f32 %v6859, %v6923
        %v6966 = vadd.f32 %v6860, %v6936
        %v6967 = vadd.f32 %v6861, %v6949
        %v6968 = vadd.f32 %v6862, %v6962
        %v6969 = vld [vmem:[#allocation2 + $0x4] sm:$0xff]
        %v6970 = vld [vmem:[#allocation2 + $0xc] sm:$0xff]
        %v6971 = vld [vmem:[#allocation2 + $0x14] sm:$0xf]
        %v6972 = vld [vmem:[%s3100] ss:$8 sm:$0xf]
        %v6974 = vperm.slane %v6972, 0
        %v6975 = vperm.slane %v6972, 1
        %v6976 = vperm.slane %v6972, 2
        %v6977 = vperm.slane %v6972, 3
        %v6978 = vrot.slane %v6975, 4
        %v6979 = vrot.slane %v6977, 4
        %v6980 = vsel %vm424, %v6974, %v6978
        %v6981 = vsel %vm424, %v6976, %v6979
        %6982 = vrot.lane.b32.xlu0 %v6980, 1
        %v6983 = vpop.permute.xlu0 %6982
        %6984 = vrot.lane.b32.xlu0 %v6981, 1
        %v6985 = vpop.permute.xlu0 %6984
        %v6986 = vrot.slane %v6983, 4
        %v6987 = vrot.slane %v6985, 4
        %v6988 = vsel %vm491, %v6986, %v6983
        %v6989 = vsel %vm424, %v6986, %v6987
        %v6990 = vsel %vm491, %v6989, %v6985
        %v6994 = vmul.f32 %v6969, %v6988
        %v6995 = vmul.f32 %v6970, %v6990
        %v6996 = vmul.f32 %v6971, %v6987
        %s6997 = scalar_lea.vmem %s7, 76
        %v6998 = vld [vmem:[%s6997] sm:$0xf]
        %7002 = vst [vmem:[#allocation1] ss:$2 sm:$0xff] %v6994
        %s7003 = scalar_lea.vmem [#allocation1], 16
        %7004 = vst [vmem:[%s7003] ss:$2 sm:$0xff] %v6995
        %s7005 = scalar_lea.vmem [#allocation1], 32
        %7006 = vst [vmem:[%s7005] ss:$2 sm:$0xff] %v6996
        %v7007 = vld.sshfl [vmem:[#allocation1] sm:$0xff pattern:$0x75316420]
        %v7008 = vld.sshfl [vmem:[#allocation1 + $0x8] sm:$0xff pattern:$0x75316420]
        %v7009 = vld.sshfl [vmem:[#allocation1 + $0x10] sm:$0xff pattern:$0x75316420]
        %v7010 = vld.sshfl [vmem:[#allocation1 + $0x18] sm:$0xff pattern:$0x75316420]
        %v7011 = vld.sshfl [vmem:[#allocation1 + $0x20] sm:$0xff pattern:$0x75316420]
        %v7017 = vpack.c.bf16 %v7007, %v7007
        %v7018 = vpack.c.bf16 %v7008, %v7008
        %v7019 = vpack.c.bf16 %v7009, %v7009
        %v7020 = vpack.c.bf16 %v7010, %v7010
        %v7021 = vpack.c.bf16 %v7011, %v7011
        %7027 = vrot.lane.b32.xlu0 %v7017, 127
        %v7028 = vpop.permute.xlu0 %7027
        %7029 = vrot.lane.b32.xlu0 %v7018, 127
        %v7030 = vpop.permute.xlu0 %7029
        %7031 = vrot.lane.b32.xlu0 %v7019, 127
        %v7032 = vpop.permute.xlu0 %7031
        %7033 = vrot.lane.b32.xlu0 %v7020, 127
        %v7034 = vpop.permute.xlu0 %7033
        %7035 = vrot.lane.b32.xlu0 %v7021, 127
        %v7036 = vpop.permute.xlu0 %7035
        %v7037 = vsel %vm541, %v7028, %v7030
        %v7038 = vsel %vm541, %v7030, %v7032
        %v7039 = vsel %vm541, %v7032, %v7034
        %v7040 = vsel %vm541, %v7034, %v7036
        %v7042 = vsel %vm4465, %v6998, 0
        %v7045 = vsel %vm324, %v7037, 0
        %v7048 = vsel %vm324, %v7038, 0
        %v7051 = vsel %vm324, %v7039, 0
        %v7054 = vsel %vm324, %v7040, 0
        %7056 = vmatpush.bf16.msra.mxu0 0
        %7057 = vmatpush.bf16.msra.mxu0 0
        %7058 = vmatpush.bf16.msra.mxu0 0
        %7059 = vmatpush.bf16.msra.mxu0 0
        %7060 = vmatpush.bf16.msra.mxu0 0
        %7061 = vmatpush.bf16.msra.mxu0 0
        %7062 = vmatpush.bf16.msra.mxu0 0
        %7063 = vmatpush.bf16.msra.mxu0 %v7045
        %7064 = vmatmul.bf16.gmra.mxu0 %v7042
        %v7065 = vpop.f32.mrf.mxu0
        %v7066 = vadd.f32 0.0, %v7065
        %v7067 = vpop.f32.mrf.mxu0
        %7068 = vdwg.mxu0
        %7069 = vmatpush.bf16.msra.mxu0 0
        %7070 = vmatpush.bf16.msra.mxu0 0
        %7071 = vmatpush.bf16.msra.mxu0 0
        %7072 = vmatpush.bf16.msra.mxu0 0
        %7073 = vmatpush.bf16.msra.mxu0 0
        %7074 = vmatpush.bf16.msra.mxu0 0
        %7075 = vmatpush.bf16.msra.mxu0 0
        %7076 = vmatpush.bf16.msra.mxu0 %v7048
        %7077 = vmatmul.bf16.gmra.mxu0 %v7042
        %v7078 = vpop.f32.mrf.mxu0
        %v7079 = vadd.f32 0.0, %v7078
        %v7080 = vpop.f32.mrf.mxu0
        %7081 = vdwg.mxu0
        %7082 = vmatpush.bf16.msra.mxu0 0
        %7083 = vmatpush.bf16.msra.mxu0 0
        %7084 = vmatpush.bf16.msra.mxu0 0
        %7085 = vmatpush.bf16.msra.mxu0 0
        %7086 = vmatpush.bf16.msra.mxu0 0
        %7087 = vmatpush.bf16.msra.mxu0 0
        %7088 = vmatpush.bf16.msra.mxu0 0
        %7089 = vmatpush.bf16.msra.mxu0 %v7051
        %7090 = vmatmul.bf16.gmra.mxu0 %v7042
        %v7091 = vpop.f32.mrf.mxu0
        %v7092 = vadd.f32 0.0, %v7091
        %v7093 = vpop.f32.mrf.mxu0
        %7094 = vdwg.mxu0
        %7095 = vmatpush.bf16.msra.mxu0 0
        %7096 = vmatpush.bf16.msra.mxu0 0
        %7097 = vmatpush.bf16.msra.mxu0 0
        %7098 = vmatpush.bf16.msra.mxu0 0
        %7099 = vmatpush.bf16.msra.mxu0 0
        %7100 = vmatpush.bf16.msra.mxu0 0
        %7101 = vmatpush.bf16.msra.mxu0 0
        %7102 = vmatpush.bf16.msra.mxu0 %v7054
        %7103 = vmatmul.bf16.gmra.mxu0 %v7042
        %v7104 = vpop.f32.mrf.mxu0
        %v7105 = vadd.f32 0.0, %v7104
        %v7106 = vpop.f32.mrf.mxu0
        %7107 = vdwg.mxu0
        %v7108 = vadd.f32 %v6965, %v7066
        %v7109 = vadd.f32 %v6966, %v7079
        %v7110 = vadd.f32 %v6967, %v7092
        %v7111 = vadd.f32 %v6968, %v7105
        %v7112 = vld [vmem:[#allocation2 + $0x4] sm:$0xff]
        %v7113 = vld [vmem:[#allocation2 + $0xc] sm:$0xff]
        %v7114 = vld [vmem:[#allocation2 + $0x14] sm:$0xf]
        %v7115 = vld [vmem:[%s3244] ss:$8 sm:$0xf]
        %v7117 = vperm.slane %v7115, 0
        %v7118 = vperm.slane %v7115, 1
        %v7119 = vperm.slane %v7115, 2
        %v7120 = vperm.slane %v7115, 3
        %v7121 = vrot.slane %v7118, 4
        %v7122 = vrot.slane %v7120, 4
        %v7123 = vsel %vm424, %v7117, %v7121
        %v7124 = vsel %vm424, %v7119, %v7122
        %7125 = vrot.lane.b32.xlu0 %v7123, 2
        %v7126 = vpop.permute.xlu0 %7125
        %7127 = vrot.lane.b32.xlu0 %v7124, 2
        %v7128 = vpop.permute.xlu0 %7127
        %v7129 = vrot.slane %v7126, 4
        %v7130 = vrot.slane %v7128, 4
        %v7131 = vsel %vm546, %v7129, %v7126
        %v7132 = vsel %vm424, %v7129, %v7130
        %v7133 = vsel %vm546, %v7132, %v7128
        %v7137 = vmul.f32 %v7112, %v7131
        %v7138 = vmul.f32 %v7113, %v7133
        %v7139 = vmul.f32 %v7114, %v7130
        %s7140 = scalar_lea.vmem %s7, 80
        %v7141 = vld [vmem:[%s7140] sm:$0xf]
        %7145 = vst [vmem:[#allocation1] ss:$2 sm:$0xff] %v7137
        %s7146 = scalar_lea.vmem [#allocation1], 16
        %7147 = vst [vmem:[%s7146] ss:$2 sm:$0xff] %v7138
        %s7148 = scalar_lea.vmem [#allocation1], 32
        %7149 = vst [vmem:[%s7148] ss:$2 sm:$0xff] %v7139
        %v7150 = vld.sshfl [vmem:[#allocation1] sm:$0xff pattern:$0x75316420]
        %v7151 = vld.sshfl [vmem:[#allocation1 + $0x8] sm:$0xff pattern:$0x75316420]
        %v7152 = vld.sshfl [vmem:[#allocation1 + $0x10] sm:$0xff pattern:$0x75316420]
        %v7153 = vld.sshfl [vmem:[#allocation1 + $0x18] sm:$0xff pattern:$0x75316420]
        %v7154 = vld.sshfl [vmem:[#allocation1 + $0x20] sm:$0xff pattern:$0x75316420]
        %v7160 = vpack.c.bf16 %v7150, %v7150
        %v7161 = vpack.c.bf16 %v7151, %v7151
        %v7162 = vpack.c.bf16 %v7152, %v7152
        %v7163 = vpack.c.bf16 %v7153, %v7153
        %v7164 = vpack.c.bf16 %v7154, %v7154
        %7170 = vrot.lane.b32.xlu0 %v7160, 126
        %v7171 = vpop.permute.xlu0 %7170
        %7172 = vrot.lane.b32.xlu0 %v7161, 126
        %v7173 = vpop.permute.xlu0 %7172
        %7174 = vrot.lane.b32.xlu0 %v7162, 126
        %v7175 = vpop.permute.xlu0 %7174
        %7176 = vrot.lane.b32.xlu0 %v7163, 126
        %v7177 = vpop.permute.xlu0 %7176
        %7178 = vrot.lane.b32.xlu0 %v7164, 126
        %v7179 = vpop.permute.xlu0 %7178
        %v7180 = vsel %vm751, %v7171, %v7173
        %v7181 = vsel %vm751, %v7173, %v7175
        %v7182 = vsel %vm751, %v7175, %v7177
        %v7183 = vsel %vm751, %v7177, %v7179
        %v7185 = vsel %vm4465, %v7141, 0
        %v7188 = vsel %vm324, %v7180, 0
        %v7191 = vsel %vm324, %v7181, 0
        %v7194 = vsel %vm324, %v7182, 0
        %v7197 = vsel %vm324, %v7183, 0
        %7199 = vmatpush.bf16.msra.mxu0 0
        %7200 = vmatpush.bf16.msra.mxu0 0
        %7201 = vmatpush.bf16.msra.mxu0 0
        %7202 = vmatpush.bf16.msra.mxu0 0
        %7203 = vmatpush.bf16.msra.mxu0 0
        %7204 = vmatpush.bf16.msra.mxu0 0
        %7205 = vmatpush.bf16.msra.mxu0 0
        %7206 = vmatpush.bf16.msra.mxu0 %v7188
        %7207 = vmatmul.bf16.gmra.mxu0 %v7185
        %v7208 = vpop.f32.mrf.mxu0
        %v7209 = vadd.f32 0.0, %v7208
        %v7210 = vpop.f32.mrf.mxu0
        %7211 = vdwg.mxu0
        %7212 = vmatpush.bf16.msra.mxu0 0
        %7213 = vmatpush.bf16.msra.mxu0 0
        %7214 = vmatpush.bf16.msra.mxu0 0
        %7215 = vmatpush.bf16.msra.mxu0 0
        %7216 = vmatpush.bf16.msra.mxu0 0
        %7217 = vmatpush.bf16.msra.mxu0 0
        %7218 = vmatpush.bf16.msra.mxu0 0
        %7219 = vmatpush.bf16.msra.mxu0 %v7191
        %7220 = vmatmul.bf16.gmra.mxu0 %v7185
        %v7221 = vpop.f32.mrf.mxu0
        %v7222 = vadd.f32 0.0, %v7221
        %v7223 = vpop.f32.mrf.mxu0
        %7224 = vdwg.mxu0
        %7225 = vmatpush.bf16.msra.mxu0 0
        %7226 = vmatpush.bf16.msra.mxu0 0
        %7227 = vmatpush.bf16.msra.mxu0 0
        %7228 = vmatpush.bf16.msra.mxu0 0
        %7229 = vmatpush.bf16.msra.mxu0 0
        %7230 = vmatpush.bf16.msra.mxu0 0
        %7231 = vmatpush.bf16.msra.mxu0 0
        %7232 = vmatpush.bf16.msra.mxu0 %v7194
        %7233 = vmatmul.bf16.gmra.mxu0 %v7185
        %v7234 = vpop.f32.mrf.mxu0
        %v7235 = vadd.f32 0.0, %v7234
        %v7236 = vpop.f32.mrf.mxu0
        %7237 = vdwg.mxu0
        %7238 = vmatpush.bf16.msra.mxu0 0
        %7239 = vmatpush.bf16.msra.mxu0 0
        %7240 = vmatpush.bf16.msra.mxu0 0
        %7241 = vmatpush.bf16.msra.mxu0 0
        %7242 = vmatpush.bf16.msra.mxu0 0
        %7243 = vmatpush.bf16.msra.mxu0 0
        %7244 = vmatpush.bf16.msra.mxu0 0
        %7245 = vmatpush.bf16.msra.mxu0 %v7197
        %7246 = vmatmul.bf16.gmra.mxu0 %v7185
        %v7247 = vpop.f32.mrf.mxu0
        %v7248 = vadd.f32 0.0, %v7247
        %v7249 = vpop.f32.mrf.mxu0
        %7250 = vdwg.mxu0
        %v7251 = vadd.f32 %v7108, %v7209
        %v7252 = vadd.f32 %v7109, %v7222
        %v7253 = vadd.f32 %v7110, %v7235
        %v7254 = vadd.f32 %v7111, %v7248
        %v7255 = vld [vmem:[#allocation2 + $0x4] sm:$0xff]
        %v7256 = vld [vmem:[#allocation2 + $0xc] sm:$0xff]
        %v7257 = vld [vmem:[#allocation2 + $0x14] sm:$0xf]
        %v7258 = vld [vmem:[%s3388] ss:$8 sm:$0xf]
        %v7260 = vperm.slane %v7258, 0
        %v7261 = vperm.slane %v7258, 1
        %v7262 = vperm.slane %v7258, 2
        %v7263 = vperm.slane %v7258, 3
        %v7264 = vrot.slane %v7261, 4
        %v7265 = vrot.slane %v7263, 4
        %v7266 = vsel %vm424, %v7260, %v7264
        %v7267 = vsel %vm424, %v7262, %v7265
        %7268 = vrot.lane.b32.xlu0 %v7266, 8
        %v7269 = vpop.permute.xlu0 %7268
        %7270 = vrot.lane.b32.xlu0 %v7267, 8
        %v7271 = vpop.permute.xlu0 %7270
        %v7272 = vrot.slane %v7269, 4
        %v7273 = vrot.slane %v7271, 4
        %v7274 = vsel %vm847, %v7272, %v7269
        %v7275 = vsel %vm424, %v7272, %v7273
        %v7276 = vsel %vm847, %v7275, %v7271
        %v7280 = vmul.f32 %v7255, %v7274
        %v7281 = vmul.f32 %v7256, %v7276
        %v7282 = vmul.f32 %v7257, %v7273
        %s7283 = scalar_lea.vmem %s7, 84
        %v7284 = vld [vmem:[%s7283] sm:$0xf]
        %7288 = vst [vmem:[#allocation1] ss:$2 sm:$0xff] %v7280
        %s7289 = scalar_lea.vmem [#allocation1], 16
        %7290 = vst [vmem:[%s7289] ss:$2 sm:$0xff] %v7281
        %s7291 = scalar_lea.vmem [#allocation1], 32
        %7292 = vst [vmem:[%s7291] ss:$2 sm:$0xff] %v7282
        %v7293 = vld.sshfl [vmem:[#allocation1] sm:$0xff pattern:$0x75316420]
        %v7294 = vld.sshfl [vmem:[#allocation1 + $0x8] sm:$0xff pattern:$0x75316420]
        %v7295 = vld.sshfl [vmem:[#allocation1 + $0x10] sm:$0xff pattern:$0x75316420]
        %v7296 = vld.sshfl [vmem:[#allocation1 + $0x18] sm:$0xff pattern:$0x75316420]
        %v7297 = vld.sshfl [vmem:[#allocation1 + $0x20] sm:$0xff pattern:$0x75316420]
        %v7303 = vpack.c.bf16 %v7293, %v7293
        %v7304 = vpack.c.bf16 %v7294, %v7294
        %v7305 = vpack.c.bf16 %v7295, %v7295
        %v7306 = vpack.c.bf16 %v7296, %v7296
        %v7307 = vpack.c.bf16 %v7297, %v7297
        %7313 = vrot.lane.b32.xlu0 %v7303, 120
        %v7314 = vpop.permute.xlu0 %7313
        %7315 = vrot.lane.b32.xlu0 %v7304, 120
        %v7316 = vpop.permute.xlu0 %7315
        %7317 = vrot.lane.b32.xlu0 %v7305, 120
        %v7318 = vpop.permute.xlu0 %7317
        %7319 = vrot.lane.b32.xlu0 %v7306, 120
        %v7320 = vpop.permute.xlu0 %7319
        %7321 = vrot.lane.b32.xlu0 %v7307, 120
        %v7322 = vpop.permute.xlu0 %7321
        %v7323 = vsel %vm897, %v7314, %v7316
        %v7324 = vsel %vm897, %v7316, %v7318
        %v7325 = vsel %vm897, %v7318, %v7320
        %v7326 = vsel %vm897, %v7320, %v7322
        %v7328 = vsel %vm4465, %v7284, 0
        %v7331 = vsel %vm324, %v7323, 0
        %v7334 = vsel %vm324, %v7324, 0
        %v7337 = vsel %vm324, %v7325, 0
        %v7340 = vsel %vm324, %v7326, 0
        %7342 = vmatpush.bf16.msra.mxu0 0
        %7343 = vmatpush.bf16.msra.mxu0 0
        %7344 = vmatpush.bf16.msra.mxu0 0
        %7345 = vmatpush.bf16.msra.mxu0 0
        %7346 = vmatpush.bf16.msra.mxu0 0
        %7347 = vmatpush.bf16.msra.mxu0 0
        %7348 = vmatpush.bf16.msra.mxu0 0
        %7349 = vmatpush.bf16.msra.mxu0 %v7331
        %7350 = vmatmul.bf16.gmra.mxu0 %v7328
        %v7351 = vpop.f32.mrf.mxu0
        %v7352 = vadd.f32 0.0, %v7351
        %v7353 = vpop.f32.mrf.mxu0
        %7354 = vdwg.mxu0
        %7355 = vmatpush.bf16.msra.mxu0 0
        %7356 = vmatpush.bf16.msra.mxu0 0
        %7357 = vmatpush.bf16.msra.mxu0 0
        %7358 = vmatpush.bf16.msra.mxu0 0
        %7359 = vmatpush.bf16.msra.mxu0 0
        %7360 = vmatpush.bf16.msra.mxu0 0
        %7361 = vmatpush.bf16.msra.mxu0 0
        %7362 = vmatpush.bf16.msra.mxu0 %v7334
        %7363 = vmatmul.bf16.gmra.mxu0 %v7328
        %v7364 = vpop.f32.mrf.mxu0
        %v7365 = vadd.f32 0.0, %v7364
        %v7366 = vpop.f32.mrf.mxu0
        %7367 = vdwg.mxu0
        %7368 = vmatpush.bf16.msra.mxu0 0
        %7369 = vmatpush.bf16.msra.mxu0 0
        %7370 = vmatpush.bf16.msra.mxu0 0
        %7371 = vmatpush.bf16.msra.mxu0 0
        %7372 = vmatpush.bf16.msra.mxu0 0
        %7373 = vmatpush.bf16.msra.mxu0 0
        %7374 = vmatpush.bf16.msra.mxu0 0
        %7375 = vmatpush.bf16.msra.mxu0 %v7337
        %7376 = vmatmul.bf16.gmra.mxu0 %v7328
        %v7377 = vpop.f32.mrf.mxu0
        %v7378 = vadd.f32 0.0, %v7377
        %v7379 = vpop.f32.mrf.mxu0
        %7380 = vdwg.mxu0
        %7381 = vmatpush.bf16.msra.mxu0 0
        %7382 = vmatpush.bf16.msra.mxu0 0
        %7383 = vmatpush.bf16.msra.mxu0 0
        %7384 = vmatpush.bf16.msra.mxu0 0
        %7385 = vmatpush.bf16.msra.mxu0 0
        %7386 = vmatpush.bf16.msra.mxu0 0
        %7387 = vmatpush.bf16.msra.mxu0 0
        %7388 = vmatpush.bf16.msra.mxu0 %v7340
        %7389 = vmatmul.bf16.gmra.mxu0 %v7328
        %v7390 = vpop.f32.mrf.mxu0
        %v7391 = vadd.f32 0.0, %v7390
        %v7392 = vpop.f32.mrf.mxu0
        %7393 = vdwg.mxu0
        %v7394 = vadd.f32 %v7251, %v7352
        %v7395 = vadd.f32 %v7252, %v7365
        %v7396 = vadd.f32 %v7253, %v7378
        %v7397 = vadd.f32 %v7254, %v7391
        %v7398 = vld [vmem:[#allocation2 + $0x4] sm:$0xff]
        %v7399 = vld [vmem:[#allocation2 + $0xc] sm:$0xff]
        %v7400 = vld [vmem:[#allocation2 + $0x14] sm:$0xf]
        %v7401 = vld [vmem:[%s3532] ss:$8 sm:$0xf]
        %v7403 = vperm.slane %v7401, 0
        %v7404 = vperm.slane %v7401, 1
        %v7405 = vperm.slane %v7401, 2
        %v7406 = vperm.slane %v7401, 3
        %v7407 = vrot.slane %v7404, 4
        %v7408 = vrot.slane %v7406, 4
        %v7409 = vsel %vm424, %v7403, %v7407
        %v7410 = vsel %vm424, %v7405, %v7408
        %7411 = vrot.lane.b32.xlu0 %v7409, 9
        %v7412 = vpop.permute.xlu0 %7411
        %7413 = vrot.lane.b32.xlu0 %v7410, 9
        %v7414 = vpop.permute.xlu0 %7413
        %v7415 = vrot.slane %v7412, 4
        %v7416 = vrot.slane %v7414, 4
        %v7417 = vsel %vm993, %v7415, %v7412
        %v7418 = vsel %vm424, %v7415, %v7416
        %v7419 = vsel %vm993, %v7418, %v7414
        %v7423 = vmul.f32 %v7398, %v7417
        %v7424 = vmul.f32 %v7399, %v7419
        %v7425 = vmul.f32 %v7400, %v7416
        %s7426 = scalar_lea.vmem %s7, 88
        %v7427 = vld [vmem:[%s7426] sm:$0xf]
        %7431 = vst [vmem:[#allocation1] ss:$2 sm:$0xff] %v7423
        %s7432 = scalar_lea.vmem [#allocation1], 16
        %7433 = vst [vmem:[%s7432] ss:$2 sm:$0xff] %v7424
        %s7434 = scalar_lea.vmem [#allocation1], 32
        %7435 = vst [vmem:[%s7434] ss:$2 sm:$0xff] %v7425
        %v7436 = vld.sshfl [vmem:[#allocation1] sm:$0xff pattern:$0x75316420]
        %v7437 = vld.sshfl [vmem:[#allocation1 + $0x8] sm:$0xff pattern:$0x75316420]
        %v7438 = vld.sshfl [vmem:[#allocation1 + $0x10] sm:$0xff pattern:$0x75316420]
        %v7439 = vld.sshfl [vmem:[#allocation1 + $0x18] sm:$0xff pattern:$0x75316420]
        %v7440 = vld.sshfl [vmem:[#allocation1 + $0x20] sm:$0xff pattern:$0x75316420]
        %v7446 = vpack.c.bf16 %v7436, %v7436
        %v7447 = vpack.c.bf16 %v7437, %v7437
        %v7448 = vpack.c.bf16 %v7438, %v7438
        %v7449 = vpack.c.bf16 %v7439, %v7439
        %v7450 = vpack.c.bf16 %v7440, %v7440
        %7456 = vrot.lane.b32.xlu0 %v7446, 119
        %v7457 = vpop.permute.xlu0 %7456
        %7458 = vrot.lane.b32.xlu0 %v7447, 119
        %v7459 = vpop.permute.xlu0 %7458
        %7460 = vrot.lane.b32.xlu0 %v7448, 119
        %v7461 = vpop.permute.xlu0 %7460
        %7462 = vrot.lane.b32.xlu0 %v7449, 119
        %v7463 = vpop.permute.xlu0 %7462
        %7464 = vrot.lane.b32.xlu0 %v7450, 119
        %v7465 = vpop.permute.xlu0 %7464
        %v7466 = vsel %vm1043, %v7457, %v7459
        %v7467 = vsel %vm1043, %v7459, %v7461
        %v7468 = vsel %vm1043, %v7461, %v7463
        %v7469 = vsel %vm1043, %v7463, %v7465
        %v7471 = vsel %vm4465, %v7427, 0
        %v7474 = vsel %vm324, %v7466, 0
        %v7477 = vsel %vm324, %v7467, 0
        %v7480 = vsel %vm324, %v7468, 0
        %v7483 = vsel %vm324, %v7469, 0
        %7485 = vmatpush.bf16.msra.mxu0 0
        %7486 = vmatpush.bf16.msra.mxu0 0
        %7487 = vmatpush.bf16.msra.mxu0 0
        %7488 = vmatpush.bf16.msra.mxu0 0
        %7489 = vmatpush.bf16.msra.mxu0 0
        %7490 = vmatpush.bf16.msra.mxu0 0
        %7491 = vmatpush.bf16.msra.mxu0 0
        %7492 = vmatpush.bf16.msra.mxu0 %v7474
        %7493 = vmatmul.bf16.gmra.mxu0 %v7471
        %v7494 = vpop.f32.mrf.mxu0
        %v7495 = vadd.f32 0.0, %v7494
        %v7496 = vpop.f32.mrf.mxu0
        %7497 = vdwg.mxu0
        %7498 = vmatpush.bf16.msra.mxu0 0
        %7499 = vmatpush.bf16.msra.mxu0 0
        %7500 = vmatpush.bf16.msra.mxu0 0
        %7501 = vmatpush.bf16.msra.mxu0 0
        %7502 = vmatpush.bf16.msra.mxu0 0
        %7503 = vmatpush.bf16.msra.mxu0 0
        %7504 = vmatpush.bf16.msra.mxu0 0
        %7505 = vmatpush.bf16.msra.mxu0 %v7477
        %7506 = vmatmul.bf16.gmra.mxu0 %v7471
        %v7507 = vpop.f32.mrf.mxu0
        %v7508 = vadd.f32 0.0, %v7507
        %v7509 = vpop.f32.mrf.mxu0
        %7510 = vdwg.mxu0
        %7511 = vmatpush.bf16.msra.mxu0 0
        %7512 = vmatpush.bf16.msra.mxu0 0
        %7513 = vmatpush.bf16.msra.mxu0 0
        %7514 = vmatpush.bf16.msra.mxu0 0
        %7515 = vmatpush.bf16.msra.mxu0 0
        %7516 = vmatpush.bf16.msra.mxu0 0
        %7517 = vmatpush.bf16.msra.mxu0 0
        %7518 = vmatpush.bf16.msra.mxu0 %v7480
        %7519 = vmatmul.bf16.gmra.mxu0 %v7471
        %v7520 = vpop.f32.mrf.mxu0
        %v7521 = vadd.f32 0.0, %v7520
        %v7522 = vpop.f32.mrf.mxu0
        %7523 = vdwg.mxu0
        %7524 = vmatpush.bf16.msra.mxu0 0
        %7525 = vmatpush.bf16.msra.mxu0 0
        %7526 = vmatpush.bf16.msra.mxu0 0
        %7527 = vmatpush.bf16.msra.mxu0 0
        %7528 = vmatpush.bf16.msra.mxu0 0
        %7529 = vmatpush.bf16.msra.mxu0 0
        %7530 = vmatpush.bf16.msra.mxu0 0
        %7531 = vmatpush.bf16.msra.mxu0 %v7483
        %7532 = vmatmul.bf16.gmra.mxu0 %v7471
        %v7533 = vpop.f32.mrf.mxu0
        %v7534 = vadd.f32 0.0, %v7533
        %v7535 = vpop.f32.mrf.mxu0
        %7536 = vdwg.mxu0
        %v7537 = vadd.f32 %v7394, %v7495
        %v7538 = vadd.f32 %v7395, %v7508
        %v7539 = vadd.f32 %v7396, %v7521
        %v7540 = vadd.f32 %v7397, %v7534
        %v7541 = vld [vmem:[#allocation2 + $0x4] sm:$0xff]
        %v7542 = vld [vmem:[#allocation2 + $0xc] sm:$0xff]
        %v7543 = vld [vmem:[#allocation2 + $0x14] sm:$0xf]
        %v7544 = vld [vmem:[%s3676] ss:$8 sm:$0xf]
        %v7546 = vperm.slane %v7544, 0
        %v7547 = vperm.slane %v7544, 1
        %v7548 = vperm.slane %v7544, 2
        %v7549 = vperm.slane %v7544, 3
        %v7550 = vrot.slane %v7547, 4
        %v7551 = vrot.slane %v7549, 4
        %v7552 = vsel %vm424, %v7546, %v7550
        %v7553 = vsel %vm424, %v7548, %v7551
        %7554 = vrot.lane.b32.xlu0 %v7552, 10
        %v7555 = vpop.permute.xlu0 %7554
        %7556 = vrot.lane.b32.xlu0 %v7553, 10
        %v7557 = vpop.permute.xlu0 %7556
        %v7558 = vrot.slane %v7555, 4
        %v7559 = vrot.slane %v7557, 4
        %v7560 = vsel %vm1139, %v7558, %v7555
        %v7561 = vsel %vm424, %v7558, %v7559
        %v7562 = vsel %vm1139, %v7561, %v7557
        %v7566 = vmul.f32 %v7541, %v7560
        %v7567 = vmul.f32 %v7542, %v7562
        %v7568 = vmul.f32 %v7543, %v7559
        %s7569 = scalar_lea.vmem %s7, 92
        %v7570 = vld [vmem:[%s7569] sm:$0xf]
        %7574 = vst [vmem:[#allocation1] ss:$2 sm:$0xff] %v7566
        %s7575 = scalar_lea.vmem [#allocation1], 16
        %7576 = vst [vmem:[%s7575] ss:$2 sm:$0xff] %v7567
        %s7577 = scalar_lea.vmem [#allocation1], 32
        %7578 = vst [vmem:[%s7577] ss:$2 sm:$0xff] %v7568
        %v7579 = vld.sshfl [vmem:[#allocation1] sm:$0xff pattern:$0x75316420]
        %v7580 = vld.sshfl [vmem:[#allocation1 + $0x8] sm:$0xff pattern:$0x75316420]
        %v7581 = vld.sshfl [vmem:[#allocation1 + $0x10] sm:$0xff pattern:$0x75316420]
        %v7582 = vld.sshfl [vmem:[#allocation1 + $0x18] sm:$0xff pattern:$0x75316420]
        %v7583 = vld.sshfl [vmem:[#allocation1 + $0x20] sm:$0xff pattern:$0x75316420]
        %v7589 = vpack.c.bf16 %v7579, %v7579
        %v7590 = vpack.c.bf16 %v7580, %v7580
        %v7591 = vpack.c.bf16 %v7581, %v7581
        %v7592 = vpack.c.bf16 %v7582, %v7582
        %v7593 = vpack.c.bf16 %v7583, %v7583
        %7599 = vrot.lane.b32.xlu0 %v7589, 118
        %v7600 = vpop.permute.xlu0 %7599
        %7601 = vrot.lane.b32.xlu0 %v7590, 118
        %v7602 = vpop.permute.xlu0 %7601
        %7603 = vrot.lane.b32.xlu0 %v7591, 118
        %v7604 = vpop.permute.xlu0 %7603
        %7605 = vrot.lane.b32.xlu0 %v7592, 118
        %v7606 = vpop.permute.xlu0 %7605
        %7607 = vrot.lane.b32.xlu0 %v7593, 118
        %v7608 = vpop.permute.xlu0 %7607
        %v7609 = vsel %vm1189, %v7600, %v7602
        %v7610 = vsel %vm1189, %v7602, %v7604
        %v7611 = vsel %vm1189, %v7604, %v7606
        %v7612 = vsel %vm1189, %v7606, %v7608
        %v7614 = vsel %vm4465, %v7570, 0
        %v7617 = vsel %vm324, %v7609, 0
        %v7620 = vsel %vm324, %v7610, 0
        %v7623 = vsel %vm324, %v7611, 0
        %v7626 = vsel %vm324, %v7612, 0
        %7628 = vmatpush.bf16.msra.mxu0 0
        %7629 = vmatpush.bf16.msra.mxu0 0
        %7630 = vmatpush.bf16.msra.mxu0 0
        %7631 = vmatpush.bf16.msra.mxu0 0
        %7632 = vmatpush.bf16.msra.mxu0 0
        %7633 = vmatpush.bf16.msra.mxu0 0
        %7634 = vmatpush.bf16.msra.mxu0 0
        %7635 = vmatpush.bf16.msra.mxu0 %v7617
        %7636 = vmatmul.bf16.gmra.mxu0 %v7614
        %v7637 = vpop.f32.mrf.mxu0
        %v7638 = vadd.f32 0.0, %v7637
        %v7639 = vpop.f32.mrf.mxu0
        %7640 = vdwg.mxu0
        %7641 = vmatpush.bf16.msra.mxu0 0
        %7642 = vmatpush.bf16.msra.mxu0 0
        %7643 = vmatpush.bf16.msra.mxu0 0
        %7644 = vmatpush.bf16.msra.mxu0 0
        %7645 = vmatpush.bf16.msra.mxu0 0
        %7646 = vmatpush.bf16.msra.mxu0 0
        %7647 = vmatpush.bf16.msra.mxu0 0
        %7648 = vmatpush.bf16.msra.mxu0 %v7620
        %7649 = vmatmul.bf16.gmra.mxu0 %v7614
        %v7650 = vpop.f32.mrf.mxu0
        %v7651 = vadd.f32 0.0, %v7650
        %v7652 = vpop.f32.mrf.mxu0
        %7653 = vdwg.mxu0
        %7654 = vmatpush.bf16.msra.mxu0 0
        %7655 = vmatpush.bf16.msra.mxu0 0
        %7656 = vmatpush.bf16.msra.mxu0 0
        %7657 = vmatpush.bf16.msra.mxu0 0
        %7658 = vmatpush.bf16.msra.mxu0 0
        %7659 = vmatpush.bf16.msra.mxu0 0
        %7660 = vmatpush.bf16.msra.mxu0 0
        %7661 = vmatpush.bf16.msra.mxu0 %v7623
        %7662 = vmatmul.bf16.gmra.mxu0 %v7614
        %v7663 = vpop.f32.mrf.mxu0
        %v7664 = vadd.f32 0.0, %v7663
        %v7665 = vpop.f32.mrf.mxu0
        %7666 = vdwg.mxu0
        %7667 = vmatpush.bf16.msra.mxu0 0
        %7668 = vmatpush.bf16.msra.mxu0 0
        %7669 = vmatpush.bf16.msra.mxu0 0
        %7670 = vmatpush.bf16.msra.mxu0 0
        %7671 = vmatpush.bf16.msra.mxu0 0
        %7672 = vmatpush.bf16.msra.mxu0 0
        %7673 = vmatpush.bf16.msra.mxu0 0
        %7674 = vmatpush.bf16.msra.mxu0 %v7626
        %7675 = vmatmul.bf16.gmra.mxu0 %v7614
        %v7676 = vpop.f32.mrf.mxu0
        %v7677 = vadd.f32 0.0, %v7676
        %v7678 = vpop.f32.mrf.mxu0
        %7679 = vdwg.mxu0
        %v7680 = vadd.f32 %v7537, %v7638
        %v7681 = vadd.f32 %v7538, %v7651
        %v7682 = vadd.f32 %v7539, %v7664
        %v7683 = vadd.f32 %v7540, %v7677
        %v7684 = vld [vmem:[#allocation2 + $0x4] sm:$0xff]
        %v7685 = vld [vmem:[#allocation2 + $0xc] sm:$0xff]
        %v7686 = vld [vmem:[#allocation2 + $0x14] sm:$0xf]
        %v7687 = vld [vmem:[%s3820] ss:$8 sm:$0xf]
        %v7689 = vperm.slane %v7687, 0
        %v7690 = vperm.slane %v7687, 1
        %v7691 = vperm.slane %v7687, 2
        %v7692 = vperm.slane %v7687, 3
        %v7693 = vrot.slane %v7690, 4
        %v7694 = vrot.slane %v7692, 4
        %v7695 = vsel %vm424, %v7689, %v7693
        %v7696 = vsel %vm424, %v7691, %v7694
        %7697 = vrot.lane.b32.xlu0 %v7695, 16
        %v7698 = vpop.permute.xlu0 %7697
        %7699 = vrot.lane.b32.xlu0 %v7696, 16
        %v7700 = vpop.permute.xlu0 %7699
        %v7701 = vrot.slane %v7698, 4
        %v7702 = vrot.slane %v7700, 4
        %v7703 = vsel %vm1285, %v7701, %v7698
        %v7704 = vsel %vm424, %v7701, %v7702
        %v7705 = vsel %vm1285, %v7704, %v7700
        %v7709 = vmul.f32 %v7684, %v7703
        %v7710 = vmul.f32 %v7685, %v7705
        %v7711 = vmul.f32 %v7686, %v7702
        %s7712 = scalar_lea.vmem %s7, 96
        %v7713 = vld [vmem:[%s7712] sm:$0xf]
        %7717 = vst [vmem:[#allocation1] ss:$2 sm:$0xff] %v7709
        %s7718 = scalar_lea.vmem [#allocation1], 16
        %7719 = vst [vmem:[%s7718] ss:$2 sm:$0xff] %v7710
        %s7720 = scalar_lea.vmem [#allocation1], 32
        %7721 = vst [vmem:[%s7720] ss:$2 sm:$0xff] %v7711
        %v7722 = vld.sshfl [vmem:[#allocation1] sm:$0xff pattern:$0x75316420]
        %v7723 = vld.sshfl [vmem:[#allocation1 + $0x8] sm:$0xff pattern:$0x75316420]
        %v7724 = vld.sshfl [vmem:[#allocation1 + $0x10] sm:$0xff pattern:$0x75316420]
        %v7725 = vld.sshfl [vmem:[#allocation1 + $0x18] sm:$0xff pattern:$0x75316420]
        %v7726 = vld.sshfl [vmem:[#allocation1 + $0x20] sm:$0xff pattern:$0x75316420]
        %v7732 = vpack.c.bf16 %v7722, %v7722
        %v7733 = vpack.c.bf16 %v7723, %v7723
        %v7734 = vpack.c.bf16 %v7724, %v7724
        %v7735 = vpack.c.bf16 %v7725, %v7725
        %v7736 = vpack.c.bf16 %v7726, %v7726
        %7742 = vrot.lane.b32.xlu0 %v7732, 112
        %v7743 = vpop.permute.xlu0 %7742
        %7744 = vrot.lane.b32.xlu0 %v7733, 112
        %v7745 = vpop.permute.xlu0 %7744
        %7746 = vrot.lane.b32.xlu0 %v7734, 112
        %v7747 = vpop.permute.xlu0 %7746
        %7748 = vrot.lane.b32.xlu0 %v7735, 112
        %v7749 = vpop.permute.xlu0 %7748
        %7750 = vrot.lane.b32.xlu0 %v7736, 112
        %v7751 = vpop.permute.xlu0 %7750
        %v7752 = vsel %vm1335, %v7743, %v7745
        %v7753 = vsel %vm1335, %v7745, %v7747
        %v7754 = vsel %vm1335, %v7747, %v7749
        %v7755 = vsel %vm1335, %v7749, %v7751
        %v7757 = vsel %vm4465, %v7713, 0
        %v7760 = vsel %vm324, %v7752, 0
        %v7763 = vsel %vm324, %v7753, 0
        %v7766 = vsel %vm324, %v7754, 0
        %v7769 = vsel %vm324, %v7755, 0
        %7771 = vmatpush.bf16.msra.mxu0 0
        %7772 = vmatpush.bf16.msra.mxu0 0
        %7773 = vmatpush.bf16.msra.mxu0 0
        %7774 = vmatpush.bf16.msra.mxu0 0
        %7775 = vmatpush.bf16.msra.mxu0 0
        %7776 = vmatpush.bf16.msra.mxu0 0
        %7777 = vmatpush.bf16.msra.mxu0 0
        %7778 = vmatpush.bf16.msra.mxu0 %v7760
        %7779 = vmatmul.bf16.gmra.mxu0 %v7757
        %v7780 = vpop.f32.mrf.mxu0
        %v7781 = vadd.f32 0.0, %v7780
        %v7782 = vpop.f32.mrf.mxu0
        %7783 = vdwg.mxu0
        %7784 = vmatpush.bf16.msra.mxu0 0
        %7785 = vmatpush.bf16.msra.mxu0 0
        %7786 = vmatpush.bf16.msra.mxu0 0
        %7787 = vmatpush.bf16.msra.mxu0 0
        %7788 = vmatpush.bf16.msra.mxu0 0
        %7789 = vmatpush.bf16.msra.mxu0 0
        %7790 = vmatpush.bf16.msra.mxu0 0
        %7791 = vmatpush.bf16.msra.mxu0 %v7763
        %7792 = vmatmul.bf16.gmra.mxu0 %v7757
        %v7793 = vpop.f32.mrf.mxu0
        %v7794 = vadd.f32 0.0, %v7793
        %v7795 = vpop.f32.mrf.mxu0
        %7796 = vdwg.mxu0
        %7797 = vmatpush.bf16.msra.mxu0 0
        %7798 = vmatpush.bf16.msra.mxu0 0
        %7799 = vmatpush.bf16.msra.mxu0 0
        %7800 = vmatpush.bf16.msra.mxu0 0
        %7801 = vmatpush.bf16.msra.mxu0 0
        %7802 = vmatpush.bf16.msra.mxu0 0
        %7803 = vmatpush.bf16.msra.mxu0 0
        %7804 = vmatpush.bf16.msra.mxu0 %v7766
        %7805 = vmatmul.bf16.gmra.mxu0 %v7757
        %v7806 = vpop.f32.mrf.mxu0
        %v7807 = vadd.f32 0.0, %v7806
        %v7808 = vpop.f32.mrf.mxu0
        %7809 = vdwg.mxu0
        %7810 = vmatpush.bf16.msra.mxu0 0
        %7811 = vmatpush.bf16.msra.mxu0 0
        %7812 = vmatpush.bf16.msra.mxu0 0
        %7813 = vmatpush.bf16.msra.mxu0 0
        %7814 = vmatpush.bf16.msra.mxu0 0
        %7815 = vmatpush.bf16.msra.mxu0 0
        %7816 = vmatpush.bf16.msra.mxu0 0
        %7817 = vmatpush.bf16.msra.mxu0 %v7769
        %7818 = vmatmul.bf16.gmra.mxu0 %v7757
        %v7819 = vpop.f32.mrf.mxu0
        %v7820 = vadd.f32 0.0, %v7819
        %v7821 = vpop.f32.mrf.mxu0
        %7822 = vdwg.mxu0
        %v7823 = vadd.f32 %v7680, %v7781
        %v7824 = vadd.f32 %v7681, %v7794
        %v7825 = vadd.f32 %v7682, %v7807
        %v7826 = vadd.f32 %v7683, %v7820
        %v7827 = vld [vmem:[#allocation2 + $0x4] sm:$0xff]
        %v7828 = vld [vmem:[#allocation2 + $0xc] sm:$0xff]
        %v7829 = vld [vmem:[#allocation2 + $0x14] sm:$0xf]
        %v7830 = vld [vmem:[%s3964] ss:$8 sm:$0xf]
        %v7832 = vperm.slane %v7830, 0
        %v7833 = vperm.slane %v7830, 1
        %v7834 = vperm.slane %v7830, 2
        %v7835 = vperm.slane %v7830, 3
        %v7836 = vrot.slane %v7833, 4
        %v7837 = vrot.slane %v7835, 4
        %v7838 = vsel %vm424, %v7832, %v7836
        %v7839 = vsel %vm424, %v7834, %v7837
        %7840 = vrot.lane.b32.xlu0 %v7838, 17
        %v7841 = vpop.permute.xlu0 %7840
        %7842 = vrot.lane.b32.xlu0 %v7839, 17
        %v7843 = vpop.permute.xlu0 %7842
        %v7844 = vrot.slane %v7841, 4
        %v7845 = vrot.slane %v7843, 4
        %v7846 = vsel %vm1431, %v7844, %v7841
        %v7847 = vsel %vm424, %v7844, %v7845
        %v7848 = vsel %vm1431, %v7847, %v7843
        %v7852 = vmul.f32 %v7827, %v7846
        %v7853 = vmul.f32 %v7828, %v7848
        %v7854 = vmul.f32 %v7829, %v7845
        %s7855 = scalar_lea.vmem %s7, 100
        %v7856 = vld [vmem:[%s7855] sm:$0xf]
        %7860 = vst [vmem:[#allocation1] ss:$2 sm:$0xff] %v7852
        %s7861 = scalar_lea.vmem [#allocation1], 16
        %7862 = vst [vmem:[%s7861] ss:$2 sm:$0xff] %v7853
        %s7863 = scalar_lea.vmem [#allocation1], 32
        %7864 = vst [vmem:[%s7863] ss:$2 sm:$0xff] %v7854
        %v7865 = vld.sshfl [vmem:[#allocation1] sm:$0xff pattern:$0x75316420]
        %v7866 = vld.sshfl [vmem:[#allocation1 + $0x8] sm:$0xff pattern:$0x75316420]
        %v7867 = vld.sshfl [vmem:[#allocation1 + $0x10] sm:$0xff pattern:$0x75316420]
        %v7868 = vld.sshfl [vmem:[#allocation1 + $0x18] sm:$0xff pattern:$0x75316420]
        %v7869 = vld.sshfl [vmem:[#allocation1 + $0x20] sm:$0xff pattern:$0x75316420]
        %v7875 = vpack.c.bf16 %v7865, %v7865
        %v7876 = vpack.c.bf16 %v7866, %v7866
        %v7877 = vpack.c.bf16 %v7867, %v7867
        %v7878 = vpack.c.bf16 %v7868, %v7868
        %v7879 = vpack.c.bf16 %v7869, %v7869
        %7885 = vrot.lane.b32.xlu0 %v7875, 111
        %v7886 = vpop.permute.xlu0 %7885
        %7887 = vrot.lane.b32.xlu0 %v7876, 111
        %v7888 = vpop.permute.xlu0 %7887
        %7889 = vrot.lane.b32.xlu0 %v7877, 111
        %v7890 = vpop.permute.xlu0 %7889
        %7891 = vrot.lane.b32.xlu0 %v7878, 111
        %v7892 = vpop.permute.xlu0 %7891
        %7893 = vrot.lane.b32.xlu0 %v7879, 111
        %v7894 = vpop.permute.xlu0 %7893
        %v7895 = vsel %vm1481, %v7886, %v7888
        %v7896 = vsel %vm1481, %v7888, %v7890
        %v7897 = vsel %vm1481, %v7890, %v7892
        %v7898 = vsel %vm1481, %v7892, %v7894
        %v7900 = vsel %vm4465, %v7856, 0
        %v7903 = vsel %vm324, %v7895, 0
        %v7906 = vsel %vm324, %v7896, 0
        %v7909 = vsel %vm324, %v7897, 0
        %v7912 = vsel %vm324, %v7898, 0
        %7914 = vmatpush.bf16.msra.mxu0 0
        %7915 = vmatpush.bf16.msra.mxu0 0
        %7916 = vmatpush.bf16.msra.mxu0 0
        %7917 = vmatpush.bf16.msra.mxu0 0
        %7918 = vmatpush.bf16.msra.mxu0 0
        %7919 = vmatpush.bf16.msra.mxu0 0
        %7920 = vmatpush.bf16.msra.mxu0 0
        %7921 = vmatpush.bf16.msra.mxu0 %v7903
        %7922 = vmatmul.bf16.gmra.mxu0 %v7900
        %v7923 = vpop.f32.mrf.mxu0
        %v7924 = vadd.f32 0.0, %v7923
        %v7925 = vpop.f32.mrf.mxu0
        %7926 = vdwg.mxu0
        %7927 = vmatpush.bf16.msra.mxu0 0
        %7928 = vmatpush.bf16.msra.mxu0 0
        %7929 = vmatpush.bf16.msra.mxu0 0
        %7930 = vmatpush.bf16.msra.mxu0 0
        %7931 = vmatpush.bf16.msra.mxu0 0
        %7932 = vmatpush.bf16.msra.mxu0 0
        %7933 = vmatpush.bf16.msra.mxu0 0
        %7934 = vmatpush.bf16.msra.mxu0 %v7906
        %7935 = vmatmul.bf16.gmra.mxu0 %v7900
        %v7936 = vpop.f32.mrf.mxu0
        %v7937 = vadd.f32 0.0, %v7936
        %v7938 = vpop.f32.mrf.mxu0
        %7939 = vdwg.mxu0
        %7940 = vmatpush.bf16.msra.mxu0 0
        %7941 = vmatpush.bf16.msra.mxu0 0
        %7942 = vmatpush.bf16.msra.mxu0 0
        %7943 = vmatpush.bf16.msra.mxu0 0
        %7944 = vmatpush.bf16.msra.mxu0 0
        %7945 = vmatpush.bf16.msra.mxu0 0
        %7946 = vmatpush.bf16.msra.mxu0 0
        %7947 = vmatpush.bf16.msra.mxu0 %v7909
        %7948 = vmatmul.bf16.gmra.mxu0 %v7900
        %v7949 = vpop.f32.mrf.mxu0
        %v7950 = vadd.f32 0.0, %v7949
        %v7951 = vpop.f32.mrf.mxu0
        %7952 = vdwg.mxu0
        %7953 = vmatpush.bf16.msra.mxu0 0
        %7954 = vmatpush.bf16.msra.mxu0 0
        %7955 = vmatpush.bf16.msra.mxu0 0
        %7956 = vmatpush.bf16.msra.mxu0 0
        %7957 = vmatpush.bf16.msra.mxu0 0
        %7958 = vmatpush.bf16.msra.mxu0 0
        %7959 = vmatpush.bf16.msra.mxu0 0
        %7960 = vmatpush.bf16.msra.mxu0 %v7912
        %7961 = vmatmul.bf16.gmra.mxu0 %v7900
        %v7962 = vpop.f32.mrf.mxu0
        %v7963 = vadd.f32 0.0, %v7962
        %v7964 = vpop.f32.mrf.mxu0
        %7965 = vdwg.mxu0
        %v7966 = vadd.f32 %v7823, %v7924
        %v7967 = vadd.f32 %v7824, %v7937
        %v7968 = vadd.f32 %v7825, %v7950
        %v7969 = vadd.f32 %v7826, %v7963
        %v7970 = vld [vmem:[#allocation2 + $0x4] sm:$0xff]
        %v7971 = vld [vmem:[#allocation2 + $0xc] sm:$0xff]
        %v7972 = vld [vmem:[#allocation2 + $0x14] sm:$0xf]
        %v7973 = vld [vmem:[%s4108] ss:$8 sm:$0xf]
        %v7975 = vperm.slane %v7973, 0
        %v7976 = vperm.slane %v7973, 1
        %v7977 = vperm.slane %v7973, 2
        %v7978 = vperm.slane %v7973, 3
        %v7979 = vrot.slane %v7976, 4
        %v7980 = vrot.slane %v7978, 4
        %v7981 = vsel %vm424, %v7975, %v7979
        %v7982 = vsel %vm424, %v7977, %v7980
        %7983 = vrot.lane.b32.xlu0 %v7981, 18
        %v7984 = vpop.permute.xlu0 %7983
        %7985 = vrot.lane.b32.xlu0 %v7982, 18
        %v7986 = vpop.permute.xlu0 %7985
        %v7987 = vrot.slane %v7984, 4
        %v7988 = vrot.slane %v7986, 4
        %v7989 = vsel %vm1577, %v7987, %v7984
        %v7990 = vsel %vm424, %v7987, %v7988
        %v7991 = vsel %vm1577, %v7990, %v7986
        %v7995 = vmul.f32 %v7970, %v7989
        %v7996 = vmul.f32 %v7971, %v7991
        %v7997 = vmul.f32 %v7972, %v7988
        %s7998 = scalar_lea.vmem %s7, 104
        %v7999 = vld [vmem:[%s7998] sm:$0xf]
        %8003 = vst [vmem:[#allocation1] ss:$2 sm:$0xff] %v7995
        %s8004 = scalar_lea.vmem [#allocation1], 16
        %8005 = vst [vmem:[%s8004] ss:$2 sm:$0xff] %v7996
        %s8006 = scalar_lea.vmem [#allocation1], 32
        %8007 = vst [vmem:[%s8006] ss:$2 sm:$0xff] %v7997
        %v8008 = vld.sshfl [vmem:[#allocation1] sm:$0xff pattern:$0x75316420]
        %v8009 = vld.sshfl [vmem:[#allocation1 + $0x8] sm:$0xff pattern:$0x75316420]
        %v8010 = vld.sshfl [vmem:[#allocation1 + $0x10] sm:$0xff pattern:$0x75316420]
        %v8011 = vld.sshfl [vmem:[#allocation1 + $0x18] sm:$0xff pattern:$0x75316420]
        %v8012 = vld.sshfl [vmem:[#allocation1 + $0x20] sm:$0xff pattern:$0x75316420]
        %v8018 = vpack.c.bf16 %v8008, %v8008
        %v8019 = vpack.c.bf16 %v8009, %v8009
        %v8020 = vpack.c.bf16 %v8010, %v8010
        %v8021 = vpack.c.bf16 %v8011, %v8011
        %v8022 = vpack.c.bf16 %v8012, %v8012
        %8028 = vrot.lane.b32.xlu0 %v8018, 110
        %v8029 = vpop.permute.xlu0 %8028
        %8030 = vrot.lane.b32.xlu0 %v8019, 110
        %v8031 = vpop.permute.xlu0 %8030
        %8032 = vrot.lane.b32.xlu0 %v8020, 110
        %v8033 = vpop.permute.xlu0 %8032
        %8034 = vrot.lane.b32.xlu0 %v8021, 110
        %v8035 = vpop.permute.xlu0 %8034
        %8036 = vrot.lane.b32.xlu0 %v8022, 110
        %v8037 = vpop.permute.xlu0 %8036
        %v8038 = vsel %vm1627, %v8029, %v8031
        %v8039 = vsel %vm1627, %v8031, %v8033
        %v8040 = vsel %vm1627, %v8033, %v8035
        %v8041 = vsel %vm1627, %v8035, %v8037
        %v8043 = vsel %vm4465, %v7999, 0
        %v8046 = vsel %vm324, %v8038, 0
        %v8049 = vsel %vm324, %v8039, 0
        %v8052 = vsel %vm324, %v8040, 0
        %v8055 = vsel %vm324, %v8041, 0
        %8057 = vmatpush.bf16.msra.mxu0 0
        %8058 = vmatpush.bf16.msra.mxu0 0
        %8059 = vmatpush.bf16.msra.mxu0 0
        %8060 = vmatpush.bf16.msra.mxu0 0
        %8061 = vmatpush.bf16.msra.mxu0 0
        %8062 = vmatpush.bf16.msra.mxu0 0
        %8063 = vmatpush.bf16.msra.mxu0 0
        %8064 = vmatpush.bf16.msra.mxu0 %v8046
        %8065 = vmatmul.bf16.gmra.mxu0 %v8043
        %v8066 = vpop.f32.mrf.mxu0
        %v8067 = vadd.f32 0.0, %v8066
        %v8068 = vpop.f32.mrf.mxu0
        %8069 = vdwg.mxu0
        %8070 = vmatpush.bf16.msra.mxu0 0
        %8071 = vmatpush.bf16.msra.mxu0 0
        %8072 = vmatpush.bf16.msra.mxu0 0
        %8073 = vmatpush.bf16.msra.mxu0 0
        %8074 = vmatpush.bf16.msra.mxu0 0
        %8075 = vmatpush.bf16.msra.mxu0 0
        %8076 = vmatpush.bf16.msra.mxu0 0
        %8077 = vmatpush.bf16.msra.mxu0 %v8049
        %8078 = vmatmul.bf16.gmra.mxu0 %v8043
        %v8079 = vpop.f32.mrf.mxu0
        %v8080 = vadd.f32 0.0, %v8079
        %v8081 = vpop.f32.mrf.mxu0
        %8082 = vdwg.mxu0
        %8083 = vmatpush.bf16.msra.mxu0 0
        %8084 = vmatpush.bf16.msra.mxu0 0
        %8085 = vmatpush.bf16.msra.mxu0 0
        %8086 = vmatpush.bf16.msra.mxu0 0
        %8087 = vmatpush.bf16.msra.mxu0 0
        %8088 = vmatpush.bf16.msra.mxu0 0
        %8089 = vmatpush.bf16.msra.mxu0 0
        %8090 = vmatpush.bf16.msra.mxu0 %v8052
        %8091 = vmatmul.bf16.gmra.mxu0 %v8043
        %v8092 = vpop.f32.mrf.mxu0
        %v8093 = vadd.f32 0.0, %v8092
        %v8094 = vpop.f32.mrf.mxu0
        %8095 = vdwg.mxu0
        %8096 = vmatpush.bf16.msra.mxu0 0
        %8097 = vmatpush.bf16.msra.mxu0 0
        %8098 = vmatpush.bf16.msra.mxu0 0
        %8099 = vmatpush.bf16.msra.mxu0 0
        %8100 = vmatpush.bf16.msra.mxu0 0
        %8101 = vmatpush.bf16.msra.mxu0 0
        %8102 = vmatpush.bf16.msra.mxu0 0
        %8103 = vmatpush.bf16.msra.mxu0 %v8055
        %8104 = vmatmul.bf16.gmra.mxu0 %v8043
        %v8105 = vpop.f32.mrf.mxu0
        %v8106 = vadd.f32 0.0, %v8105
        %v8107 = vpop.f32.mrf.mxu0
        %8108 = vdwg.mxu0
        %v8109 = vadd.f32 %v7966, %v8067
        %v8110 = vadd.f32 %v7967, %v8080
        %v8111 = vadd.f32 %v7968, %v8093
        %v8112 = vadd.f32 %v7969, %v8106
        %v8113 = vmax.f32 %v8109, 0.0
        %v8114 = vmax.f32 %v8110, 0.0
        %v8115 = vmax.f32 %v8111, 0.0
        %v8116 = vmax.f32 %v8112, 0.0
        %v8117 = vpack.c.bf16 %v8114, %v8113
        %v8118 = vpack.c.bf16 %v8116, %v8115
        %8119 = vst [vmem:[%s298] sm:$0xff] %v8117
        %8120 = vst [vmem:[%s298 + $0x8] sm:$0xff] %v8118
        %s8121 = sand.u32 %s203, 1
        %s8122 = scalar_lea.sflag [#allocation4], %s8121
        %s8123 = sand.u32 %s203, 1
        %s8124 = smul.addr %s8123, 16
        %s8125 = scalar_lea.vmem [#allocation3], %s8124
        // Predicated region
        $region53: #{tpu_custom_call.1} parent=51 // pred_check
          %p8126 = pneg %p213
        $region54: #{tpu_custom_call.1} parent=51 // pred_check_branch
          %8128 = sbr.rel (%p8126) target = $region56
        $region55: #{tpu_custom_call.1} parent=51 // pred_region
          %8130 = vsyncadd %s8122, 0
          %s8131 = smul.addr %s22, 4
          %s8132 = smul.addr %s8131, 4
          %s8133 = scalar_lea.hbm %s8, %s8132
          %s8135 = sshll.u32 %s8125, 4
          %s8136 = int_to_ptr.vmem [resolvable:$true] %s8135
          %s8137 = sshll.u32 %s8133, 4
          %s8138 = int_to_ptr.hbm [resolvable:$true] %s8137
          %8140 = dma.vmem_to_hbm [thread:$0]  %s8136, 256, %s8138, %s8122
        $region56: #{tpu_custom_call.1} parent=51 // pred_fallthru
          _
      $region52: #{tpu_custom_call.1} parent=5 // pred_fallthru
        _
      %p8141 = scmp.le.s32.totalorder 2, %s17
      // Predicated region
      $region57: #{tpu_custom_call.1} parent=5 // pred_check
        %p8142 = pneg %p8141
      $region58: #{tpu_custom_call.1} parent=5 // pred_check_branch
        %8144 = sbr.rel (%p8142) target = $region60
      $region59: #{tpu_custom_call.1} parent=5 // pred_region
        %s8145 = ssub.s32 %s17, 2
        // Predicated region
        $region61: #{tpu_custom_call.1} parent=59 // pred_check
          %p8146 = pneg %p219
        $region62: #{tpu_custom_call.1} parent=59 // pred_check_branch
          %8148 = sbr.rel (%p8146) target = $region64
        $region63: #{tpu_custom_call.1} parent=59 // pred_region
          %s8149 = sand.u32 %s204, 1
          %s8150 = scalar_lea.sflag [#allocation4], %s8149
          %s8151 = sand.u32 %s204, 1
          %s8152 = smul.addr %s8151, 16
          %s8153 = scalar_lea.vmem [#allocation3], %s8152
          %8155 = dma.done %s8150, 256
        $region64: #{tpu_custom_call.1} parent=59 // pred_fallthru
          _
      $region60: #{tpu_custom_call.1} parent=5 // pred_fallthru
        _
    $region6: #{tpu_custom_call.1} parent=1 // loop_footer
      %s21 = sadd.s32 1, %s17
    $region7: #{tpu_custom_call.1} parent=1 // loop_footer_branch
      %16 = sbr.rel target = $region3
    $region8: #{tpu_custom_call.1} parent=1 // loop_exit
      _
    %8156 = vsyncpa [#allocation4], 1
    %s8157 = scalar_lea.sflag [#allocation4], 1
    %8158 = vsyncpa %s8157, 1

</llo_original>
